<compile_context>
chip_gen: v6e
topology: v6e:2x2x1
jax: 0.10.0
libtpu: 0.0.40
codegen_flags: <defaults>
</compile_context>

<pallas_src>
import jax
import jax.numpy as jnp
from jax import lax
from jax.experimental import pallas as pl
from jax.experimental.pallas import tpu as pltpu

LEAKY_SLOPE = 0.01        # F.leaky_relu default
BN_EPS = 1e-5             # nn.BatchNorm2d default
MXU_DTYPE = jnp.bfloat16  # matmul operand dtype (f32 accumulate)


def _round_up(x, m):
    return (x + m - 1) // m * m


# -----------------------------------------------------------------------------
# Fused kernel: conv3x3 + BN(batch stats) + leaky_relu, three times, + residual
# -----------------------------------------------------------------------------
def block_kernel(x_ref, w1_ref, w2_ref, w3_ref,
                 g1_ref, be1_ref, g2_ref, be2_ref, g3_ref, be3_ref,
                 o_ref):
    # x_ref : (N, H+2, Wp8, C) f32  -- 1-px zero halo, W axis padded to mult-of-8
    # w*_ref: (9*Cin, Cout)    bf16 -- dense-K packed conv weights (real channels)
    # g*/be*: (1, Cout)        f32  -- BN affine
    # o_ref : (N, H, W, C)     f32
    N, H, W, C = o_ref.shape
    P = N * H * W

    def taps(tp):
        """Dense-K im2col from a halo'd tensor/ref -> (P, 9*Cin) bf16."""
        cols = [tp[:, dy:dy + H, dx:dx + W, :]
                for dy in range(3) for dx in range(3)]
        # TODO(synk): dx = 1,2 slices are unaligned sublane reads; a roll-based
        # (XLU) shift would shave a few load/store slots, negligible here.
        return jnp.concatenate(cols, axis=-1).reshape(P, -1).astype(MXU_DTYPE)

    def pad_hw(t):
        """Zero 1-px spatial halo around a (N,H,W,Cf) value (no scratch stores)."""
        cf = t.shape[-1]
        zr = jnp.zeros((N, 1, W, cf), t.dtype)
        t = jnp.concatenate([zr, t, zr], axis=1)          # major-axis concat
        zc = jnp.zeros((N, H + 2, 1, cf), t.dtype)
        return jnp.concatenate([zc, t, zc], axis=2)

    def conv_bn_lrelu(t, w_ref, g_ref, be_ref):
        # Single dense-K MXU matmul (K = 9*Cin real channels), f32 accumulate.
        acc = jnp.dot(t, w_ref[...], preferred_element_type=jnp.float32)  # (P,Cout)
        # Training-mode batch statistics over all N*H*W rows (two-pass variance).
        mean = jnp.mean(acc, axis=0, keepdims=True)
        var = jnp.mean(jnp.square(acc - mean), axis=0, keepdims=True)
        # Fold BN into per-channel scale/shift, then a single fused pass + lrelu.
        scale = g_ref[...] * lax.rsqrt(var + BN_EPS)       # (1, Cout)
        shift = be_ref[...] - mean * scale                 # (1, Cout)
        y = acc * scale + shift
        y = jnp.maximum(y, LEAKY_SLOPE * y)                # leaky_relu
        return y.reshape(N, H, W, -1)                      # stays f32

    # ---- layer 1: C -> C/2 (x_ref already halo'd by the wrapper) ----
    y = conv_bn_lrelu(taps(x_ref), w1_ref, g1_ref, be1_ref)
    # ---- layer 2: C/2 -> C/2 ----
    y = conv_bn_lrelu(taps(pad_hw(y)), w2_ref, g2_ref, be2_ref)
    # ---- layer 3: C/2 -> C ----
    y = conv_bn_lrelu(taps(pad_hw(y)), w3_ref, g3_ref, be3_ref)

    # Identity residual from the block input (exact f32, straight from the ref).
    res = x_ref[:, 1:H + 1, 1:W + 1, :]
    o_ref[...] = (res + y).astype(o_ref.dtype)


# -----------------------------------------------------------------------------
# Wrapper (plain-JAX glue: layout transpose, halo/alignment padding, packing)
# -----------------------------------------------------------------------------
def block_forward(x_nchw, p):
    N, C, H, W = x_nchw.shape
    Cm = C // 2

    # NCHW -> NHWC; add the 1-px zero halo; pad stored W axis to a multiple of 8.
    x = jnp.transpose(x_nchw, (0, 2, 3, 1)).astype(jnp.float32)
    wp8 = _round_up(W + 2, 8)
    x_pad = jnp.pad(x, ((0, 0), (1, 1), (1, wp8 - (W + 1)), (0, 0)))

    # Dense-K packed conv weights: HWIO (3,3,Cin,Cout) -> (9*Cin, Cout) bf16.
    # Conv biases b1/b2/b3 are intentionally NOT passed: training-mode BN
    # subtracts the per-channel batch mean, so they cancel exactly.
    def pack_w(w):
        kh, kw, cin, cout = w.shape
        return w.reshape(kh * kw * cin, cout).astype(MXU_DTYPE)

    def row(v):
        return jnp.asarray(v, jnp.float32).reshape(1, -1)

    args = (x_pad,
            pack_w(p["w1"]), pack_w(p["w2"]), pack_w(p["w3"]),
            row(p["g1"]), row(p["be1"]),
            row(p["g2"]), row(p["be2"]),
            row(p["g3"]), row(p["be3"]))

    flops = 2 * N * H * W * 9 * (C * Cm + Cm * Cm + Cm * C)
    bytes_accessed = (sum(int(a.size) * a.dtype.itemsize for a in args)
                      + N * H * W * C * 4)
    cost = pl.CostEstimate(flops=flops, transcendentals=C + 2 * Cm,
                           bytes_accessed=bytes_accessed)

    vmem = pl.BlockSpec(memory_space=pltpu.MemorySpace.VMEM)
    out_nhwc = pl.pallas_call(
        block_kernel,
        out_shape=jax.ShapeDtypeStruct((N, H, W, C), jnp.float32),
        in_specs=[vmem] * len(args),
        out_specs=vmem,
        compiler_params=pltpu.CompilerParams(
            # Explicit scoped-VMEM budget (live set here is <1 MiB; this is
            # comfortably within physical VMEM on v5e/v6e/v7x).
            vmem_limit_bytes=32 * 1024 * 1024),
        cost_estimate=cost,
    )(*args)

    return jnp.transpose(out_nhwc, (0, 3, 1, 2))   # NHWC -> NCHW


# -----------------------------------------------------------------------------
# Pure-JAX f32 reference (includes the conv bias to validate its cancellation)
# -----------------------------------------------------------------------------
def _ref_forward(x_nchw, p):
    x = jnp.transpose(x_nchw, (0, 2, 3, 1))

    def conv(t, w, b):
        y = lax.conv_general_dilated(
            t, w, window_strides=(1, 1), padding="SAME",
            dimension_numbers=("NHWC", "HWIO", "NHWC"))
        return y + b.reshape(1, 1, 1, -1)

    def bn(t, g, be):
        mean = jnp.mean(t, axis=(0, 1, 2), keepdims=True)
        var = jnp.mean((t - mean) ** 2, axis=(0, 1, 2), keepdims=True)
        return g.reshape(1, 1, 1, -1) * (t - mean) * lax.rsqrt(var + BN_EPS) \
            + be.reshape(1, 1, 1, -1)

    def lrelu(t):
        return jnp.where(t > 0, t, LEAKY_SLOPE * t)

    h = lrelu(bn(conv(x, p["w1"], p["b1"]), p["g1"], p["be1"]))
    h = lrelu(bn(conv(h, p["w2"], p["b2"]), p["g2"], p["be2"]))
    h = lrelu(bn(conv(h, p["w3"], p["b3"]), p["g3"], p["be3"]))
    out = x + h
    return jnp.transpose(out, (0, 3, 1, 2))


# -----------------------------------------------------------------------------
# Deterministic parameter init (shapes match nn.Conv2d / nn.BatchNorm2d)
# -----------------------------------------------------------------------------
def init_params(key, C):
    Cm = C // 2
    ks = jax.random.split(key, 12)

    def conv_w(k, cin, cout):       # HWIO
        return 0.2 * jax.random.normal(k, (3, 3, cin, cout), jnp.float32)

    def vec(k, c, base=0.0):
        return base + 0.1 * jax.random.normal(k, (c,), jnp.float32)

    return {
        "w1": conv_w(ks[0], C, Cm),  "b1": vec(ks[1], Cm),
        "g1": vec(ks[2], Cm, 1.0),   "be1": vec(ks[3], Cm),
        "w2": conv_w(ks[4], Cm, Cm), "b2": vec(ks[5], Cm),
        "g2": vec(ks[6], Cm, 1.0),   "be2": vec(ks[7], Cm),
        "w3": conv_w(ks[8], Cm, C),  "b3": vec(ks[9], C),
        "g3": vec(ks[10], C, 1.0),   "be3": vec(ks[11], C),
    }


if __name__ == "__main__":
    key = jax.random.PRNGKey(0)
    k_x, k_p = jax.random.split(key)

    N, C, H, W = 2, 4, 16, 16
    x = jax.random.normal(k_x, (N, C, H, W), jnp.float32)
    params = init_params(k_p, C)

    out = jax.block_until_ready(block_forward(x, params))
    ref = jax.block_until_ready(_ref_forward(x, params))

    assert out.shape == (N, C, H, W)
    # Tolerance reflects bf16 tap/weight MXU operands (f32 accumulate, f32 BN)
    # compared against an end-to-end f32 reference across three layers.
    err = float(jnp.max(jnp.abs(out - ref)))
    assert jnp.allclose(out, ref, rtol=5e-2, atol=5e-2), f"max abs err {err}"

    print("KERNEL_OK")
</pallas_src>

<mosaic_0001>
module attributes {stable_mosaic.version = 11 : i64} {
  func.func @block_kernel(%arg0: memref<2x18x24x4xf32, #tpu.memory_space<vmem>>, %arg1: memref<36x2xbf16, #tpu.memory_space<vmem>>, %arg2: memref<18x2xbf16, #tpu.memory_space<vmem>>, %arg3: memref<18x4xbf16, #tpu.memory_space<vmem>>, %arg4: memref<1x2xf32, #tpu.memory_space<vmem>>, %arg5: memref<1x2xf32, #tpu.memory_space<vmem>>, %arg6: memref<1x2xf32, #tpu.memory_space<vmem>>, %arg7: memref<1x2xf32, #tpu.memory_space<vmem>>, %arg8: memref<1x4xf32, #tpu.memory_space<vmem>>, %arg9: memref<1x4xf32, #tpu.memory_space<vmem>>, %arg10: memref<2x16x16x4xf32, #tpu.memory_space<vmem>>) attributes {dimension_semantics = [], scalar_prefetch = 0 : i64, scratch_operands = 0 : i64, tpu.core_type = #tpu.core_type<tc>} {
    %c0 = arith.constant 0 : index
    %c0_0 = arith.constant 0 : index
    %c0_1 = arith.constant 0 : index
    %c0_2 = arith.constant 0 : index
    %0 = vector.load %arg0[%c0, %c0_0, %c0_1, %c0_2] : memref<2x18x24x4xf32, #tpu.memory_space<vmem>>, vector<2x16x16x4xf32>
    %c0_3 = arith.constant 0 : index
    %c0_4 = arith.constant 0 : index
    %c1 = arith.constant 1 : index
    %c0_5 = arith.constant 0 : index
    %1 = vector.load %arg0[%c0_3, %c0_4, %c1, %c0_5] : memref<2x18x24x4xf32, #tpu.memory_space<vmem>>, vector<2x16x16x4xf32>
    %c0_6 = arith.constant 0 : index
    %c0_7 = arith.constant 0 : index
    %c2 = arith.constant 2 : index
    %c0_8 = arith.constant 0 : index
    %2 = vector.load %arg0[%c0_6, %c0_7, %c2, %c0_8] : memref<2x18x24x4xf32, #tpu.memory_space<vmem>>, vector<2x16x16x4xf32>
    %c0_9 = arith.constant 0 : index
    %c1_10 = arith.constant 1 : index
    %c0_11 = arith.constant 0 : index
    %c0_12 = arith.constant 0 : index
    %3 = vector.load %arg0[%c0_9, %c1_10, %c0_11, %c0_12] : memref<2x18x24x4xf32, #tpu.memory_space<vmem>>, vector<2x16x16x4xf32>
    %c0_13 = arith.constant 0 : index
    %c1_14 = arith.constant 1 : index
    %c1_15 = arith.constant 1 : index
    %c0_16 = arith.constant 0 : index
    %4 = vector.load %arg0[%c0_13, %c1_14, %c1_15, %c0_16] : memref<2x18x24x4xf32, #tpu.memory_space<vmem>>, vector<2x16x16x4xf32>
    %c0_17 = arith.constant 0 : index
    %c1_18 = arith.constant 1 : index
    %c2_19 = arith.constant 2 : index
    %c0_20 = arith.constant 0 : index
    %5 = vector.load %arg0[%c0_17, %c1_18, %c2_19, %c0_20] : memref<2x18x24x4xf32, #tpu.memory_space<vmem>>, vector<2x16x16x4xf32>
    %c0_21 = arith.constant 0 : index
    %c2_22 = arith.constant 2 : index
    %c0_23 = arith.constant 0 : index
    %c0_24 = arith.constant 0 : index
    %6 = vector.load %arg0[%c0_21, %c2_22, %c0_23, %c0_24] : memref<2x18x24x4xf32, #tpu.memory_space<vmem>>, vector<2x16x16x4xf32>
    %c0_25 = arith.constant 0 : index
    %c2_26 = arith.constant 2 : index
    %c1_27 = arith.constant 1 : index
    %c0_28 = arith.constant 0 : index
    %7 = vector.load %arg0[%c0_25, %c2_26, %c1_27, %c0_28] : memref<2x18x24x4xf32, #tpu.memory_space<vmem>>, vector<2x16x16x4xf32>
    %c0_29 = arith.constant 0 : index
    %c2_30 = arith.constant 2 : index
    %c2_31 = arith.constant 2 : index
    %c0_32 = arith.constant 0 : index
    %8 = vector.load %arg0[%c0_29, %c2_30, %c2_31, %c0_32] : memref<2x18x24x4xf32, #tpu.memory_space<vmem>>, vector<2x16x16x4xf32>
    %9 = tpu.concatenate %0, %1, %2, %3, %4, %5, %6, %7, %8 in 3 : vector<2x16x16x4xf32>, vector<2x16x16x4xf32>, vector<2x16x16x4xf32>, vector<2x16x16x4xf32>, vector<2x16x16x4xf32>, vector<2x16x16x4xf32>, vector<2x16x16x4xf32>, vector<2x16x16x4xf32>, vector<2x16x16x4xf32> -> vector<2x16x16x36xf32>
    %10 = vector.shape_cast %9 : vector<2x16x16x36xf32> to vector<512x36xf32>
    %11 = arith.truncf %10 : vector<512x36xf32> to vector<512x36xbf16>
    %c0_33 = arith.constant 0 : index
    %c0_34 = arith.constant 0 : index
    %12 = vector.load %arg1[%c0_33, %c0_34] : memref<36x2xbf16, #tpu.memory_space<vmem>>, vector<36x2xbf16>
    %cst = arith.constant dense<0.000000e+00> : vector<512x2xf32>
    %13 = tpu.matmul %11, %12, %cst {dimension_numbers = #tpu.dot_dimension_numbers<[1], [0], [0], [1], [0, 0, 1, 1], [], []>} : vector<512x36xbf16>, vector<36x2xbf16>, vector<512x2xf32> -> vector<512x2xf32>
    %cst_35 = arith.constant dense<0.000000e+00> : vector<2xf32>
    %14 = vector.multi_reduction <add>, %13, %cst_35 [0] : vector<512x2xf32> to vector<2xf32>
    %15 = vector.shape_cast %14 : vector<2xf32> to vector<1x2xf32>
    %cst_36 = arith.constant 5.120000e+02 : f32
    %16 = vector.broadcast %cst_36 : f32 to vector<1x2xf32>
    %17 = arith.divf %15, %16 : vector<1x2xf32>
    %18 = vector.broadcast %17 : vector<1x2xf32> to vector<512x2xf32>
    %19 = arith.subf %13, %18 : vector<512x2xf32>
    %20 = arith.mulf %19, %19 : vector<512x2xf32>
    %cst_37 = arith.constant dense<0.000000e+00> : vector<2xf32>
    %21 = vector.multi_reduction <add>, %20, %cst_37 [0] : vector<512x2xf32> to vector<2xf32>
    %22 = vector.shape_cast %21 : vector<2xf32> to vector<1x2xf32>
    %cst_38 = arith.constant 5.120000e+02 : f32
    %23 = vector.broadcast %cst_38 : f32 to vector<1x2xf32>
    %24 = arith.divf %22, %23 : vector<1x2xf32>
    %c0_39 = arith.constant 0 : index
    %c0_40 = arith.constant 0 : index
    %25 = vector.load %arg4[%c0_39, %c0_40] : memref<1x2xf32, #tpu.memory_space<vmem>>, vector<1x2xf32>
    %cst_41 = arith.constant 9.99999974E-6 : f32
    %26 = vector.broadcast %cst_41 : f32 to vector<1x2xf32>
    %27 = arith.addf %24, %26 : vector<1x2xf32>
    %28 = math.rsqrt %27 : vector<1x2xf32>
    %29 = arith.mulf %25, %28 : vector<1x2xf32>
    %c0_42 = arith.constant 0 : index
    %c0_43 = arith.constant 0 : index
    %30 = vector.load %arg5[%c0_42, %c0_43] : memref<1x2xf32, #tpu.memory_space<vmem>>, vector<1x2xf32>
    %31 = arith.mulf %17, %29 : vector<1x2xf32>
    %32 = arith.subf %30, %31 : vector<1x2xf32>
    %33 = vector.broadcast %29 : vector<1x2xf32> to vector<512x2xf32>
    %34 = arith.mulf %13, %33 : vector<512x2xf32>
    %35 = vector.broadcast %32 : vector<1x2xf32> to vector<512x2xf32>
    %36 = arith.addf %34, %35 : vector<512x2xf32>
    %cst_44 = arith.constant 0.00999999977 : f32
    %37 = vector.broadcast %cst_44 : f32 to vector<512x2xf32>
    %38 = arith.mulf %37, %36 : vector<512x2xf32>
    %39 = arith.maximumf %36, %38 : vector<512x2xf32>
    %40 = vector.shape_cast %39 : vector<512x2xf32> to vector<2x16x16x2xf32>
    %cst_45 = arith.constant 0.000000e+00 : f32
    %41 = vector.broadcast %cst_45 : f32 to vector<2x1x16x2xf32>
    %42 = tpu.concatenate %41, %40, %41 in 1 : vector<2x1x16x2xf32>, vector<2x16x16x2xf32>, vector<2x1x16x2xf32> -> vector<2x18x16x2xf32>
    %cst_46 = arith.constant 0.000000e+00 : f32
    %43 = vector.broadcast %cst_46 : f32 to vector<2x18x1x2xf32>
    %44 = tpu.concatenate %43, %42, %43 in 2 : vector<2x18x1x2xf32>, vector<2x18x16x2xf32>, vector<2x18x1x2xf32> -> vector<2x18x18x2xf32>
    %45 = vector.extract_strided_slice %44 {offsets = [0, 0, 0, 0], sizes = [2, 16, 16, 2], strides = [1, 1, 1, 1]} : vector<2x18x18x2xf32> to vector<2x16x16x2xf32>
    %46 = vector.extract_strided_slice %44 {offsets = [0, 0, 1, 0], sizes = [2, 16, 16, 2], strides = [1, 1, 1, 1]} : vector<2x18x18x2xf32> to vector<2x16x16x2xf32>
    %47 = vector.extract_strided_slice %44 {offsets = [0, 0, 2, 0], sizes = [2, 16, 16, 2], strides = [1, 1, 1, 1]} : vector<2x18x18x2xf32> to vector<2x16x16x2xf32>
    %48 = vector.extract_strided_slice %44 {offsets = [0, 1, 0, 0], sizes = [2, 16, 16, 2], strides = [1, 1, 1, 1]} : vector<2x18x18x2xf32> to vector<2x16x16x2xf32>
    %49 = vector.extract_strided_slice %44 {offsets = [0, 1, 1, 0], sizes = [2, 16, 16, 2], strides = [1, 1, 1, 1]} : vector<2x18x18x2xf32> to vector<2x16x16x2xf32>
    %50 = vector.extract_strided_slice %44 {offsets = [0, 1, 2, 0], sizes = [2, 16, 16, 2], strides = [1, 1, 1, 1]} : vector<2x18x18x2xf32> to vector<2x16x16x2xf32>
    %51 = vector.extract_strided_slice %44 {offsets = [0, 2, 0, 0], sizes = [2, 16, 16, 2], strides = [1, 1, 1, 1]} : vector<2x18x18x2xf32> to vector<2x16x16x2xf32>
    %52 = vector.extract_strided_slice %44 {offsets = [0, 2, 1, 0], sizes = [2, 16, 16, 2], strides = [1, 1, 1, 1]} : vector<2x18x18x2xf32> to vector<2x16x16x2xf32>
    %53 = vector.extract_strided_slice %44 {offsets = [0, 2, 2, 0], sizes = [2, 16, 16, 2], strides = [1, 1, 1, 1]} : vector<2x18x18x2xf32> to vector<2x16x16x2xf32>
    %54 = tpu.concatenate %45, %46, %47, %48, %49, %50, %51, %52, %53 in 3 : vector<2x16x16x2xf32>, vector<2x16x16x2xf32>, vector<2x16x16x2xf32>, vector<2x16x16x2xf32>, vector<2x16x16x2xf32>, vector<2x16x16x2xf32>, vector<2x16x16x2xf32>, vector<2x16x16x2xf32>, vector<2x16x16x2xf32> -> vector<2x16x16x18xf32>
    %55 = vector.shape_cast %54 : vector<2x16x16x18xf32> to vector<512x18xf32>
    %56 = arith.truncf %55 : vector<512x18xf32> to vector<512x18xbf16>
    %c0_47 = arith.constant 0 : index
    %c0_48 = arith.constant 0 : index
    %57 = vector.load %arg2[%c0_47, %c0_48] : memref<18x2xbf16, #tpu.memory_space<vmem>>, vector<18x2xbf16>
    %cst_49 = arith.constant dense<0.000000e+00> : vector<512x2xf32>
    %58 = tpu.matmul %56, %57, %cst_49 {dimension_numbers = #tpu.dot_dimension_numbers<[1], [0], [0], [1], [0, 0, 1, 1], [], []>} : vector<512x18xbf16>, vector<18x2xbf16>, vector<512x2xf32> -> vector<512x2xf32>
    %cst_50 = arith.constant dense<0.000000e+00> : vector<2xf32>
    %59 = vector.multi_reduction <add>, %58, %cst_50 [0] : vector<512x2xf32> to vector<2xf32>
    %60 = vector.shape_cast %59 : vector<2xf32> to vector<1x2xf32>
    %cst_51 = arith.constant 5.120000e+02 : f32
    %61 = vector.broadcast %cst_51 : f32 to vector<1x2xf32>
    %62 = arith.divf %60, %61 : vector<1x2xf32>
    %63 = vector.broadcast %62 : vector<1x2xf32> to vector<512x2xf32>
    %64 = arith.subf %58, %63 : vector<512x2xf32>
    %65 = arith.mulf %64, %64 : vector<512x2xf32>
    %cst_52 = arith.constant dense<0.000000e+00> : vector<2xf32>
    %66 = vector.multi_reduction <add>, %65, %cst_52 [0] : vector<512x2xf32> to vector<2xf32>
    %67 = vector.shape_cast %66 : vector<2xf32> to vector<1x2xf32>
    %cst_53 = arith.constant 5.120000e+02 : f32
    %68 = vector.broadcast %cst_53 : f32 to vector<1x2xf32>
    %69 = arith.divf %67, %68 : vector<1x2xf32>
    %c0_54 = arith.constant 0 : index
    %c0_55 = arith.constant 0 : index
    %70 = vector.load %arg6[%c0_54, %c0_55] : memref<1x2xf32, #tpu.memory_space<vmem>>, vector<1x2xf32>
    %cst_56 = arith.constant 9.99999974E-6 : f32
    %71 = vector.broadcast %cst_56 : f32 to vector<1x2xf32>
    %72 = arith.addf %69, %71 : vector<1x2xf32>
    %73 = math.rsqrt %72 : vector<1x2xf32>
    %74 = arith.mulf %70, %73 : vector<1x2xf32>
    %c0_57 = arith.constant 0 : index
    %c0_58 = arith.constant 0 : index
    %75 = vector.load %arg7[%c0_57, %c0_58] : memref<1x2xf32, #tpu.memory_space<vmem>>, vector<1x2xf32>
    %76 = arith.mulf %62, %74 : vector<1x2xf32>
    %77 = arith.subf %75, %76 : vector<1x2xf32>
    %78 = vector.broadcast %74 : vector<1x2xf32> to vector<512x2xf32>
    %79 = arith.mulf %58, %78 : vector<512x2xf32>
    %80 = vector.broadcast %77 : vector<1x2xf32> to vector<512x2xf32>
    %81 = arith.addf %79, %80 : vector<512x2xf32>
    %cst_59 = arith.constant 0.00999999977 : f32
    %82 = vector.broadcast %cst_59 : f32 to vector<512x2xf32>
    %83 = arith.mulf %82, %81 : vector<512x2xf32>
    %84 = arith.maximumf %81, %83 : vector<512x2xf32>
    %85 = vector.shape_cast %84 : vector<512x2xf32> to vector<2x16x16x2xf32>
    %cst_60 = arith.constant 0.000000e+00 : f32
    %86 = vector.broadcast %cst_60 : f32 to vector<2x1x16x2xf32>
    %87 = tpu.concatenate %86, %85, %86 in 1 : vector<2x1x16x2xf32>, vector<2x16x16x2xf32>, vector<2x1x16x2xf32> -> vector<2x18x16x2xf32>
    %cst_61 = arith.constant 0.000000e+00 : f32
    %88 = vector.broadcast %cst_61 : f32 to vector<2x18x1x2xf32>
    %89 = tpu.concatenate %88, %87, %88 in 2 : vector<2x18x1x2xf32>, vector<2x18x16x2xf32>, vector<2x18x1x2xf32> -> vector<2x18x18x2xf32>
    %90 = vector.extract_strided_slice %89 {offsets = [0, 0, 0, 0], sizes = [2, 16, 16, 2], strides = [1, 1, 1, 1]} : vector<2x18x18x2xf32> to vector<2x16x16x2xf32>
    %91 = vector.extract_strided_slice %89 {offsets = [0, 0, 1, 0], sizes = [2, 16, 16, 2], strides = [1, 1, 1, 1]} : vector<2x18x18x2xf32> to vector<2x16x16x2xf32>
    %92 = vector.extract_strided_slice %89 {offsets = [0, 0, 2, 0], sizes = [2, 16, 16, 2], strides = [1, 1, 1, 1]} : vector<2x18x18x2xf32> to vector<2x16x16x2xf32>
    %93 = vector.extract_strided_slice %89 {offsets = [0, 1, 0, 0], sizes = [2, 16, 16, 2], strides = [1, 1, 1, 1]} : vector<2x18x18x2xf32> to vector<2x16x16x2xf32>
    %94 = vector.extract_strided_slice %89 {offsets = [0, 1, 1, 0], sizes = [2, 16, 16, 2], strides = [1, 1, 1, 1]} : vector<2x18x18x2xf32> to vector<2x16x16x2xf32>
    %95 = vector.extract_strided_slice %89 {offsets = [0, 1, 2, 0], sizes = [2, 16, 16, 2], strides = [1, 1, 1, 1]} : vector<2x18x18x2xf32> to vector<2x16x16x2xf32>
    %96 = vector.extract_strided_slice %89 {offsets = [0, 2, 0, 0], sizes = [2, 16, 16, 2], strides = [1, 1, 1, 1]} : vector<2x18x18x2xf32> to vector<2x16x16x2xf32>
    %97 = vector.extract_strided_slice %89 {offsets = [0, 2, 1, 0], sizes = [2, 16, 16, 2], strides = [1, 1, 1, 1]} : vector<2x18x18x2xf32> to vector<2x16x16x2xf32>
    %98 = vector.extract_strided_slice %89 {offsets = [0, 2, 2, 0], sizes = [2, 16, 16, 2], strides = [1, 1, 1, 1]} : vector<2x18x18x2xf32> to vector<2x16x16x2xf32>
    %99 = tpu.concatenate %90, %91, %92, %93, %94, %95, %96, %97, %98 in 3 : vector<2x16x16x2xf32>, vector<2x16x16x2xf32>, vector<2x16x16x2xf32>, vector<2x16x16x2xf32>, vector<2x16x16x2xf32>, vector<2x16x16x2xf32>, vector<2x16x16x2xf32>, vector<2x16x16x2xf32>, vector<2x16x16x2xf32> -> vector<2x16x16x18xf32>
    %100 = vector.shape_cast %99 : vector<2x16x16x18xf32> to vector<512x18xf32>
    %101 = arith.truncf %100 : vector<512x18xf32> to vector<512x18xbf16>
    %c0_62 = arith.constant 0 : index
    %c0_63 = arith.constant 0 : index
    %102 = vector.load %arg3[%c0_62, %c0_63] : memref<18x4xbf16, #tpu.memory_space<vmem>>, vector<18x4xbf16>
    %cst_64 = arith.constant dense<0.000000e+00> : vector<512x4xf32>
    %103 = tpu.matmul %101, %102, %cst_64 {dimension_numbers = #tpu.dot_dimension_numbers<[1], [0], [0], [1], [0, 0, 1, 1], [], []>} : vector<512x18xbf16>, vector<18x4xbf16>, vector<512x4xf32> -> vector<512x4xf32>
    %cst_65 = arith.constant dense<0.000000e+00> : vector<4xf32>
    %104 = vector.multi_reduction <add>, %103, %cst_65 [0] : vector<512x4xf32> to vector<4xf32>
    %105 = vector.shape_cast %104 : vector<4xf32> to vector<1x4xf32>
    %cst_66 = arith.constant 5.120000e+02 : f32
    %106 = vector.broadcast %cst_66 : f32 to vector<1x4xf32>
    %107 = arith.divf %105, %106 : vector<1x4xf32>
    %108 = vector.broadcast %107 : vector<1x4xf32> to vector<512x4xf32>
    %109 = arith.subf %103, %108 : vector<512x4xf32>
    %110 = arith.mulf %109, %109 : vector<512x4xf32>
    %cst_67 = arith.constant dense<0.000000e+00> : vector<4xf32>
    %111 = vector.multi_reduction <add>, %110, %cst_67 [0] : vector<512x4xf32> to vector<4xf32>
    %112 = vector.shape_cast %111 : vector<4xf32> to vector<1x4xf32>
    %cst_68 = arith.constant 5.120000e+02 : f32
    %113 = vector.broadcast %cst_68 : f32 to vector<1x4xf32>
    %114 = arith.divf %112, %113 : vector<1x4xf32>
    %c0_69 = arith.constant 0 : index
    %c0_70 = arith.constant 0 : index
    %115 = vector.load %arg8[%c0_69, %c0_70] : memref<1x4xf32, #tpu.memory_space<vmem>>, vector<1x4xf32>
    %cst_71 = arith.constant 9.99999974E-6 : f32
    %116 = vector.broadcast %cst_71 : f32 to vector<1x4xf32>
    %117 = arith.addf %114, %116 : vector<1x4xf32>
    %118 = math.rsqrt %117 : vector<1x4xf32>
    %119 = arith.mulf %115, %118 : vector<1x4xf32>
    %c0_72 = arith.constant 0 : index
    %c0_73 = arith.constant 0 : index
    %120 = vector.load %arg9[%c0_72, %c0_73] : memref<1x4xf32, #tpu.memory_space<vmem>>, vector<1x4xf32>
    %121 = arith.mulf %107, %119 : vector<1x4xf32>
    %122 = arith.subf %120, %121 : vector<1x4xf32>
    %123 = vector.broadcast %119 : vector<1x4xf32> to vector<512x4xf32>
    %124 = arith.mulf %103, %123 : vector<512x4xf32>
    %125 = vector.broadcast %122 : vector<1x4xf32> to vector<512x4xf32>
    %126 = arith.addf %124, %125 : vector<512x4xf32>
    %cst_74 = arith.constant 0.00999999977 : f32
    %127 = vector.broadcast %cst_74 : f32 to vector<512x4xf32>
    %128 = arith.mulf %127, %126 : vector<512x4xf32>
    %129 = arith.maximumf %126, %128 : vector<512x4xf32>
    %130 = vector.shape_cast %129 : vector<512x4xf32> to vector<2x16x16x4xf32>
    %c0_75 = arith.constant 0 : index
    %c1_76 = arith.constant 1 : index
    %c1_77 = arith.constant 1 : index
    %c0_78 = arith.constant 0 : index
    %131 = vector.load %arg0[%c0_75, %c1_76, %c1_77, %c0_78] : memref<2x18x24x4xf32, #tpu.memory_space<vmem>>, vector<2x16x16x4xf32>
    %132 = arith.addf %131, %130 : vector<2x16x16x4xf32>
    %c0_79 = arith.constant 0 : index
    %c0_80 = arith.constant 0 : index
    %c0_81 = arith.constant 0 : index
    %c0_82 = arith.constant 0 : index
    %133 = vector.load %arg10[%c0_79, %c0_80, %c0_81, %c0_82] : memref<2x16x16x4xf32, #tpu.memory_space<vmem>>, vector<2x16x16x4xf32>
    tpu.vector_store %arg10[%c0_79, %c0_80, %c0_81, %c0_82], %132 {strides = array<i32>} : memref<2x16x16x4xf32, #tpu.memory_space<vmem>>, vector<2x16x16x4xf32>,
    return
  }
}

</mosaic_0001>

<llo_original>
// kernel: tpu_custom_call.1
$region0: #{tpu_custom_call.1}
  #allocation0 [shape = 'u32[]', space=smem, size = 0x4, offset = 0x4, fixed_abs, tag = 'smem constant byte address 0x4 - core index']
  #allocation1 [shape = 'u32[144,128]{1,0:T(1,128)}', space=vmem, size = 0x12000, scoped, tag = 'internal scratch']
  %s0 = inlined_call_operand.vmem [shape: f32[2,18,24,4], index: 0, kind: input, shape index: {}]
  %s1 = inlined_call_operand.vmem [shape: bf16[36,2], index: 1, kind: input, shape index: {}]
  %s2 = inlined_call_operand.vmem [shape: bf16[18,2], index: 2, kind: input, shape index: {}]
  %s3 = inlined_call_operand.vmem [shape: bf16[18,4], index: 3, kind: input, shape index: {}]
  %s4 = inlined_call_operand.vmem [shape: f32[1,2], index: 4, kind: input, shape index: {}]
  %s5 = inlined_call_operand.vmem [shape: f32[1,2], index: 5, kind: input, shape index: {}]
  %s6 = inlined_call_operand.vmem [shape: f32[1,2], index: 6, kind: input, shape index: {}]
  %s7 = inlined_call_operand.vmem [shape: f32[1,2], index: 7, kind: input, shape index: {}]
  %s8 = inlined_call_operand.vmem [shape: f32[1,4], index: 8, kind: input, shape index: {}]
  %s9 = inlined_call_operand.vmem [shape: f32[1,4], index: 9, kind: input, shape index: {}]
  %s10 = inlined_call_operand.vmem [shape: f32[2,16,16,4], index: 10, kind: output, shape index: {}]
  %s11 = sld [smem:[#allocation0]]
  $region50: #{tpu_custom_call.1} parent=0
    _
  %s13 = ssub.s32 1, %s11
  %s14 = scalar_select 0, %s13, %s11
  // Predicated region
  $region2: #{tpu_custom_call.1} parent=0 // pred_check
    _
  $region3: #{tpu_custom_call.1} parent=0 // pred_check_branch
    %16 = sbr.rel (0) target = $region5
  $region4: #{tpu_custom_call.1} parent=0 // pred_region
    _
  $region5: #{tpu_custom_call.1} parent=0 // pred_fallthru
    _
  // Predicated region
  $region6: #{tpu_custom_call.1} parent=0 // pred_check
    _
  $region7: #{tpu_custom_call.1} parent=0 // pred_check_branch
    %18 = sbr.rel (0) target = $region9
  $region8: #{tpu_custom_call.1} parent=0 // pred_region
    _
  $region9: #{tpu_custom_call.1} parent=0 // pred_fallthru
    _
  // Predicated region
  $region10: #{tpu_custom_call.1} parent=0 // pred_check
    _
  $region11: #{tpu_custom_call.1} parent=0 // pred_check_branch
    %20 = sbr.rel (0) target = $region13
  $region12: #{tpu_custom_call.1} parent=0 // pred_region
    _
  $region13: #{tpu_custom_call.1} parent=0 // pred_fallthru
    _
  // Predicated region
  $region14: #{tpu_custom_call.1} parent=0 // pred_check
    _
  $region15: #{tpu_custom_call.1} parent=0 // pred_check_branch
    %22 = sbr.rel (0) target = $region17
  $region16: #{tpu_custom_call.1} parent=0 // pred_region
    _
  $region17: #{tpu_custom_call.1} parent=0 // pred_fallthru
    _
  // Predicated region
  $region18: #{tpu_custom_call.1} parent=0 // pred_check
    _
  $region19: #{tpu_custom_call.1} parent=0 // pred_check_branch
    %24 = sbr.rel (0) target = $region21
  $region20: #{tpu_custom_call.1} parent=0 // pred_region
    _
  $region21: #{tpu_custom_call.1} parent=0 // pred_fallthru
    _
  // Predicated region
  $region22: #{tpu_custom_call.1} parent=0 // pred_check
    _
  $region23: #{tpu_custom_call.1} parent=0 // pred_check_branch
    %26 = sbr.rel (0) target = $region25
  $region24: #{tpu_custom_call.1} parent=0 // pred_region
    _
  $region25: #{tpu_custom_call.1} parent=0 // pred_fallthru
    _
  // Predicated region
  $region26: #{tpu_custom_call.1} parent=0 // pred_check
    _
  $region27: #{tpu_custom_call.1} parent=0 // pred_check_branch
    %28 = sbr.rel (0) target = $region29
  $region28: #{tpu_custom_call.1} parent=0 // pred_region
    _
  $region29: #{tpu_custom_call.1} parent=0 // pred_fallthru
    _
  // Predicated region
  $region30: #{tpu_custom_call.1} parent=0 // pred_check
    _
  $region31: #{tpu_custom_call.1} parent=0 // pred_check_branch
    %30 = sbr.rel (0) target = $region33
  $region32: #{tpu_custom_call.1} parent=0 // pred_region
    _
  $region33: #{tpu_custom_call.1} parent=0 // pred_fallthru
    _
  // Predicated region
  $region34: #{tpu_custom_call.1} parent=0 // pred_check
    _
  $region35: #{tpu_custom_call.1} parent=0 // pred_check_branch
    %32 = sbr.rel (0) target = $region37
  $region36: #{tpu_custom_call.1} parent=0 // pred_region
    _
  $region37: #{tpu_custom_call.1} parent=0 // pred_fallthru
    _
  // Predicated region
  $region38: #{tpu_custom_call.1} parent=0 // pred_check
    _
  $region39: #{tpu_custom_call.1} parent=0 // pred_check_branch
    %34 = sbr.rel (0) target = $region41
  $region40: #{tpu_custom_call.1} parent=0 // pred_region
    _
  $region41: #{tpu_custom_call.1} parent=0 // pred_fallthru
    _
  %v36 = vld [vmem:[%s0] sm:$0xff]
  %v37 = vld [vmem:[%s0 + $0x8] sm:$0xff]
  %v38 = vld [vmem:[%s0 + $0x18] sm:$0xff]
  %v39 = vld [vmem:[%s0 + $0x20] sm:$0xff]
  %v40 = vld [vmem:[%s0 + $0x30] sm:$0xff]
  %v41 = vld [vmem:[%s0 + $0x38] sm:$0xff]
  %v42 = vld [vmem:[%s0 + $0x48] sm:$0xff]
  %v43 = vld [vmem:[%s0 + $0x50] sm:$0xff]
  %v44 = vld [vmem:[%s0 + $0x60] sm:$0xff]
  %v45 = vld [vmem:[%s0 + $0x68] sm:$0xff]
  %v46 = vld [vmem:[%s0 + $0x78] sm:$0xff]
  %v47 = vld [vmem:[%s0 + $0x80] sm:$0xff]
  %v48 = vld [vmem:[%s0 + $0x90] sm:$0xff]
  %v49 = vld [vmem:[%s0 + $0x98] sm:$0xff]
  %v50 = vld [vmem:[%s0 + $0xa8] sm:$0xff]
  %v51 = vld [vmem:[%s0 + $0xb0] sm:$0xff]
  %v52 = vld [vmem:[%s0 + $0xc0] sm:$0xff]
  %v53 = vld [vmem:[%s0 + $0xc8] sm:$0xff]
  %v54 = vld [vmem:[%s0 + $0xd8] sm:$0xff]
  %v55 = vld [vmem:[%s0 + $0xe0] sm:$0xff]
  %v56 = vld [vmem:[%s0 + $0xf0] sm:$0xff]
  %v57 = vld [vmem:[%s0 + $0xf8] sm:$0xff]
  %v58 = vld [vmem:[%s0 + $0x108] sm:$0xff]
  %v59 = vld [vmem:[%s0 + $0x110] sm:$0xff]
  %v60 = vld [vmem:[%s0 + $0x120] sm:$0xff]
  %v61 = vld [vmem:[%s0 + $0x128] sm:$0xff]
  %v62 = vld [vmem:[%s0 + $0x138] sm:$0xff]
  %v63 = vld [vmem:[%s0 + $0x140] sm:$0xff]
  %v64 = vld [vmem:[%s0 + $0x150] sm:$0xff]
  %v65 = vld [vmem:[%s0 + $0x158] sm:$0xff]
  %v66 = vld [vmem:[%s0 + $0x168] sm:$0xff]
  %v67 = vld [vmem:[%s0 + $0x170] sm:$0xff]
  %v68 = vld [vmem:[%s0 + $0x1b0] sm:$0xff]
  %v69 = vld [vmem:[%s0 + $0x1b8] sm:$0xff]
  %v70 = vld [vmem:[%s0 + $0x1c8] sm:$0xff]
  %v71 = vld [vmem:[%s0 + $0x1d0] sm:$0xff]
  %v72 = vld [vmem:[%s0 + $0x1e0] sm:$0xff]
  %v73 = vld [vmem:[%s0 + $0x1e8] sm:$0xff]
  %v74 = vld [vmem:[%s0 + $0x1f8] sm:$0xff]
  %v75 = vld [vmem:[%s0 + $0x200] sm:$0xff]
  %v76 = vld [vmem:[%s0 + $0x210] sm:$0xff]
  %v77 = vld [vmem:[%s0 + $0x218] sm:$0xff]
  %v78 = vld [vmem:[%s0 + $0x228] sm:$0xff]
  %v79 = vld [vmem:[%s0 + $0x230] sm:$0xff]
  %v80 = vld [vmem:[%s0 + $0x240] sm:$0xff]
  %v81 = vld [vmem:[%s0 + $0x248] sm:$0xff]
  %v82 = vld [vmem:[%s0 + $0x258] sm:$0xff]
  %v83 = vld [vmem:[%s0 + $0x260] sm:$0xff]
  %v84 = vld [vmem:[%s0 + $0x270] sm:$0xff]
  %v85 = vld [vmem:[%s0 + $0x278] sm:$0xff]
  %v86 = vld [vmem:[%s0 + $0x288] sm:$0xff]
  %v87 = vld [vmem:[%s0 + $0x290] sm:$0xff]
  %v88 = vld [vmem:[%s0 + $0x2a0] sm:$0xff]
  %v89 = vld [vmem:[%s0 + $0x2a8] sm:$0xff]
  %v90 = vld [vmem:[%s0 + $0x2b8] sm:$0xff]
  %v91 = vld [vmem:[%s0 + $0x2c0] sm:$0xff]
  %v92 = vld [vmem:[%s0 + $0x2d0] sm:$0xff]
  %v93 = vld [vmem:[%s0 + $0x2d8] sm:$0xff]
  %v94 = vld [vmem:[%s0 + $0x2e8] sm:$0xff]
  %v95 = vld [vmem:[%s0 + $0x2f0] sm:$0xff]
  %v96 = vld [vmem:[%s0 + $0x300] sm:$0xff]
  %v97 = vld [vmem:[%s0 + $0x308] sm:$0xff]
  %v98 = vld [vmem:[%s0 + $0x318] sm:$0xff]
  %v99 = vld [vmem:[%s0 + $0x320] sm:$0xff]
  %v100 = vld [vmem:[%s0 + $0x1] sm:$0xff]
  %v101 = vld [vmem:[%s0 + $0x9] sm:$0xff]
  %v102 = vld [vmem:[%s0 + $0x19] sm:$0xff]
  %v103 = vld [vmem:[%s0 + $0x21] sm:$0xff]
  %v104 = vld [vmem:[%s0 + $0x31] sm:$0xff]
  %v105 = vld [vmem:[%s0 + $0x39] sm:$0xff]
  %v106 = vld [vmem:[%s0 + $0x49] sm:$0xff]
  %v107 = vld [vmem:[%s0 + $0x51] sm:$0xff]
  %v108 = vld [vmem:[%s0 + $0x61] sm:$0xff]
  %v109 = vld [vmem:[%s0 + $0x69] sm:$0xff]
  %v110 = vld [vmem:[%s0 + $0x79] sm:$0xff]
  %v111 = vld [vmem:[%s0 + $0x81] sm:$0xff]
  %v112 = vld [vmem:[%s0 + $0x91] sm:$0xff]
  %v113 = vld [vmem:[%s0 + $0x99] sm:$0xff]
  %v114 = vld [vmem:[%s0 + $0xa9] sm:$0xff]
  %v115 = vld [vmem:[%s0 + $0xb1] sm:$0xff]
  %v116 = vld [vmem:[%s0 + $0xc1] sm:$0xff]
  %v117 = vld [vmem:[%s0 + $0xc9] sm:$0xff]
  %v118 = vld [vmem:[%s0 + $0xd9] sm:$0xff]
  %v119 = vld [vmem:[%s0 + $0xe1] sm:$0xff]
  %v120 = vld [vmem:[%s0 + $0xf1] sm:$0xff]
  %v121 = vld [vmem:[%s0 + $0xf9] sm:$0xff]
  %v122 = vld [vmem:[%s0 + $0x109] sm:$0xff]
  %v123 = vld [vmem:[%s0 + $0x111] sm:$0xff]
  %v124 = vld [vmem:[%s0 + $0x121] sm:$0xff]
  %v125 = vld [vmem:[%s0 + $0x129] sm:$0xff]
  %v126 = vld [vmem:[%s0 + $0x139] sm:$0xff]
  %v127 = vld [vmem:[%s0 + $0x141] sm:$0xff]
  %v128 = vld [vmem:[%s0 + $0x151] sm:$0xff]
  %v129 = vld [vmem:[%s0 + $0x159] sm:$0xff]
  %v130 = vld [vmem:[%s0 + $0x169] sm:$0xff]
  %v131 = vld [vmem:[%s0 + $0x171] sm:$0xff]
  %v132 = vld [vmem:[%s0 + $0x1b1] sm:$0xff]
  %v133 = vld [vmem:[%s0 + $0x1b9] sm:$0xff]
  %v134 = vld [vmem:[%s0 + $0x1c9] sm:$0xff]
  %v135 = vld [vmem:[%s0 + $0x1d1] sm:$0xff]
  %v136 = vld [vmem:[%s0 + $0x1e1] sm:$0xff]
  %v137 = vld [vmem:[%s0 + $0x1e9] sm:$0xff]
  %v138 = vld [vmem:[%s0 + $0x1f9] sm:$0xff]
  %v139 = vld [vmem:[%s0 + $0x201] sm:$0xff]
  %v140 = vld [vmem:[%s0 + $0x211] sm:$0xff]
  %v141 = vld [vmem:[%s0 + $0x219] sm:$0xff]
  %v142 = vld [vmem:[%s0 + $0x229] sm:$0xff]
  %v143 = vld [vmem:[%s0 + $0x231] sm:$0xff]
  %v144 = vld [vmem:[%s0 + $0x241] sm:$0xff]
  %v145 = vld [vmem:[%s0 + $0x249] sm:$0xff]
  %v146 = vld [vmem:[%s0 + $0x259] sm:$0xff]
  %v147 = vld [vmem:[%s0 + $0x261] sm:$0xff]
  %v148 = vld [vmem:[%s0 + $0x271] sm:$0xff]
  %v149 = vld [vmem:[%s0 + $0x279] sm:$0xff]
  %v150 = vld [vmem:[%s0 + $0x289] sm:$0xff]
  %v151 = vld [vmem:[%s0 + $0x291] sm:$0xff]
  %v152 = vld [vmem:[%s0 + $0x2a1] sm:$0xff]
  %v153 = vld [vmem:[%s0 + $0x2a9] sm:$0xff]
  %v154 = vld [vmem:[%s0 + $0x2b9] sm:$0xff]
  %v155 = vld [vmem:[%s0 + $0x2c1] sm:$0xff]
  %v156 = vld [vmem:[%s0 + $0x2d1] sm:$0xff]
  %v157 = vld [vmem:[%s0 + $0x2d9] sm:$0xff]
  %v158 = vld [vmem:[%s0 + $0x2e9] sm:$0xff]
  %v159 = vld [vmem:[%s0 + $0x2f1] sm:$0xff]
  %v160 = vld [vmem:[%s0 + $0x301] sm:$0xff]
  %v161 = vld [vmem:[%s0 + $0x309] sm:$0xff]
  %v162 = vld [vmem:[%s0 + $0x319] sm:$0xff]
  %v163 = vld [vmem:[%s0 + $0x321] sm:$0xff]
  %v164 = vld [vmem:[%s0 + $0x2] sm:$0xff]
  %v165 = vld [vmem:[%s0 + $0xa] sm:$0xff]
  %v166 = vld [vmem:[%s0 + $0x1a] sm:$0xff]
  %v167 = vld [vmem:[%s0 + $0x22] sm:$0xff]
  %v168 = vld [vmem:[%s0 + $0x32] sm:$0xff]
  %v169 = vld [vmem:[%s0 + $0x3a] sm:$0xff]
  %v170 = vld [vmem:[%s0 + $0x4a] sm:$0xff]
  %v171 = vld [vmem:[%s0 + $0x52] sm:$0xff]
  %v172 = vld [vmem:[%s0 + $0x62] sm:$0xff]
  %v173 = vld [vmem:[%s0 + $0x6a] sm:$0xff]
  %v174 = vld [vmem:[%s0 + $0x7a] sm:$0xff]
  %v175 = vld [vmem:[%s0 + $0x82] sm:$0xff]
  %v176 = vld [vmem:[%s0 + $0x92] sm:$0xff]
  %v177 = vld [vmem:[%s0 + $0x9a] sm:$0xff]
  %v178 = vld [vmem:[%s0 + $0xaa] sm:$0xff]
  %v179 = vld [vmem:[%s0 + $0xb2] sm:$0xff]
  %v180 = vld [vmem:[%s0 + $0xc2] sm:$0xff]
  %v181 = vld [vmem:[%s0 + $0xca] sm:$0xff]
  %v182 = vld [vmem:[%s0 + $0xda] sm:$0xff]
  %v183 = vld [vmem:[%s0 + $0xe2] sm:$0xff]
  %v184 = vld [vmem:[%s0 + $0xf2] sm:$0xff]
  %v185 = vld [vmem:[%s0 + $0xfa] sm:$0xff]
  %v186 = vld [vmem:[%s0 + $0x10a] sm:$0xff]
  %v187 = vld [vmem:[%s0 + $0x112] sm:$0xff]
  %v188 = vld [vmem:[%s0 + $0x122] sm:$0xff]
  %v189 = vld [vmem:[%s0 + $0x12a] sm:$0xff]
  %v190 = vld [vmem:[%s0 + $0x13a] sm:$0xff]
  %v191 = vld [vmem:[%s0 + $0x142] sm:$0xff]
  %v192 = vld [vmem:[%s0 + $0x152] sm:$0xff]
  %v193 = vld [vmem:[%s0 + $0x15a] sm:$0xff]
  %v194 = vld [vmem:[%s0 + $0x16a] sm:$0xff]
  %v195 = vld [vmem:[%s0 + $0x172] sm:$0xff]
  %v196 = vld [vmem:[%s0 + $0x1b2] sm:$0xff]
  %v197 = vld [vmem:[%s0 + $0x1ba] sm:$0xff]
  %v198 = vld [vmem:[%s0 + $0x1ca] sm:$0xff]
  %v199 = vld [vmem:[%s0 + $0x1d2] sm:$0xff]
  %v200 = vld [vmem:[%s0 + $0x1e2] sm:$0xff]
  %v201 = vld [vmem:[%s0 + $0x1ea] sm:$0xff]
  %v202 = vld [vmem:[%s0 + $0x1fa] sm:$0xff]
  %v203 = vld [vmem:[%s0 + $0x202] sm:$0xff]
  %v204 = vld [vmem:[%s0 + $0x212] sm:$0xff]
  %v205 = vld [vmem:[%s0 + $0x21a] sm:$0xff]
  %v206 = vld [vmem:[%s0 + $0x22a] sm:$0xff]
  %v207 = vld [vmem:[%s0 + $0x232] sm:$0xff]
  %v208 = vld [vmem:[%s0 + $0x242] sm:$0xff]
  %v209 = vld [vmem:[%s0 + $0x24a] sm:$0xff]
  %v210 = vld [vmem:[%s0 + $0x25a] sm:$0xff]
  %v211 = vld [vmem:[%s0 + $0x262] sm:$0xff]
  %v212 = vld [vmem:[%s0 + $0x272] sm:$0xff]
  %v213 = vld [vmem:[%s0 + $0x27a] sm:$0xff]
  %v214 = vld [vmem:[%s0 + $0x28a] sm:$0xff]
  %v215 = vld [vmem:[%s0 + $0x292] sm:$0xff]
  %v216 = vld [vmem:[%s0 + $0x2a2] sm:$0xff]
  %v217 = vld [vmem:[%s0 + $0x2aa] sm:$0xff]
  %v218 = vld [vmem:[%s0 + $0x2ba] sm:$0xff]
  %v219 = vld [vmem:[%s0 + $0x2c2] sm:$0xff]
  %v220 = vld [vmem:[%s0 + $0x2d2] sm:$0xff]
  %v221 = vld [vmem:[%s0 + $0x2da] sm:$0xff]
  %v222 = vld [vmem:[%s0 + $0x2ea] sm:$0xff]
  %v223 = vld [vmem:[%s0 + $0x2f2] sm:$0xff]
  %v224 = vld [vmem:[%s0 + $0x302] sm:$0xff]
  %v225 = vld [vmem:[%s0 + $0x30a] sm:$0xff]
  %v226 = vld [vmem:[%s0 + $0x31a] sm:$0xff]
  %v227 = vld [vmem:[%s0 + $0x322] sm:$0xff]
  %s228 = scalar_lea.vmem %s0, 24
  %v229 = vld [vmem:[%s228] sm:$0xff]
  %v230 = vld [vmem:[%s228 + $0x8] sm:$0xff]
  %v231 = vld [vmem:[%s228 + $0x18] sm:$0xff]
  %v232 = vld [vmem:[%s228 + $0x20] sm:$0xff]
  %v233 = vld [vmem:[%s228 + $0x30] sm:$0xff]
  %v234 = vld [vmem:[%s228 + $0x38] sm:$0xff]
  %v235 = vld [vmem:[%s228 + $0x48] sm:$0xff]
  %v236 = vld [vmem:[%s228 + $0x50] sm:$0xff]
  %v237 = vld [vmem:[%s228 + $0x60] sm:$0xff]
  %v238 = vld [vmem:[%s228 + $0x68] sm:$0xff]
  %v239 = vld [vmem:[%s228 + $0x78] sm:$0xff]
  %v240 = vld [vmem:[%s228 + $0x80] sm:$0xff]
  %v241 = vld [vmem:[%s228 + $0x90] sm:$0xff]
  %v242 = vld [vmem:[%s228 + $0x98] sm:$0xff]
  %v243 = vld [vmem:[%s228 + $0xa8] sm:$0xff]
  %v244 = vld [vmem:[%s228 + $0xb0] sm:$0xff]
  %v245 = vld [vmem:[%s228 + $0xc0] sm:$0xff]
  %v246 = vld [vmem:[%s228 + $0xc8] sm:$0xff]
  %v247 = vld [vmem:[%s228 + $0xd8] sm:$0xff]
  %v248 = vld [vmem:[%s228 + $0xe0] sm:$0xff]
  %v249 = vld [vmem:[%s228 + $0xf0] sm:$0xff]
  %v250 = vld [vmem:[%s228 + $0xf8] sm:$0xff]
  %v251 = vld [vmem:[%s228 + $0x108] sm:$0xff]
  %v252 = vld [vmem:[%s228 + $0x110] sm:$0xff]
  %v253 = vld [vmem:[%s228 + $0x120] sm:$0xff]
  %v254 = vld [vmem:[%s228 + $0x128] sm:$0xff]
  %v255 = vld [vmem:[%s228 + $0x138] sm:$0xff]
  %v256 = vld [vmem:[%s228 + $0x140] sm:$0xff]
  %v257 = vld [vmem:[%s228 + $0x150] sm:$0xff]
  %v258 = vld [vmem:[%s228 + $0x158] sm:$0xff]
  %v259 = vld [vmem:[%s228 + $0x168] sm:$0xff]
  %v260 = vld [vmem:[%s228 + $0x170] sm:$0xff]
  %v261 = vld [vmem:[%s228 + $0x1b0] sm:$0xff]
  %v262 = vld [vmem:[%s228 + $0x1b8] sm:$0xff]
  %v263 = vld [vmem:[%s228 + $0x1c8] sm:$0xff]
  %v264 = vld [vmem:[%s228 + $0x1d0] sm:$0xff]
  %v265 = vld [vmem:[%s228 + $0x1e0] sm:$0xff]
  %v266 = vld [vmem:[%s228 + $0x1e8] sm:$0xff]
  %v267 = vld [vmem:[%s228 + $0x1f8] sm:$0xff]
  %v268 = vld [vmem:[%s228 + $0x200] sm:$0xff]
  %v269 = vld [vmem:[%s228 + $0x210] sm:$0xff]
  %v270 = vld [vmem:[%s228 + $0x218] sm:$0xff]
  %v271 = vld [vmem:[%s228 + $0x228] sm:$0xff]
  %v272 = vld [vmem:[%s228 + $0x230] sm:$0xff]
  %v273 = vld [vmem:[%s228 + $0x240] sm:$0xff]
  %v274 = vld [vmem:[%s228 + $0x248] sm:$0xff]
  %v275 = vld [vmem:[%s228 + $0x258] sm:$0xff]
  %v276 = vld [vmem:[%s228 + $0x260] sm:$0xff]
  %v277 = vld [vmem:[%s228 + $0x270] sm:$0xff]
  %v278 = vld [vmem:[%s228 + $0x278] sm:$0xff]
  %v279 = vld [vmem:[%s228 + $0x288] sm:$0xff]
  %v280 = vld [vmem:[%s228 + $0x290] sm:$0xff]
  %v281 = vld [vmem:[%s228 + $0x2a0] sm:$0xff]
  %v282 = vld [vmem:[%s228 + $0x2a8] sm:$0xff]
  %v283 = vld [vmem:[%s228 + $0x2b8] sm:$0xff]
  %v284 = vld [vmem:[%s228 + $0x2c0] sm:$0xff]
  %v285 = vld [vmem:[%s228 + $0x2d0] sm:$0xff]
  %v286 = vld [vmem:[%s228 + $0x2d8] sm:$0xff]
  %v287 = vld [vmem:[%s228 + $0x2e8] sm:$0xff]
  %v288 = vld [vmem:[%s228 + $0x2f0] sm:$0xff]
  %v289 = vld [vmem:[%s228 + $0x300] sm:$0xff]
  %v290 = vld [vmem:[%s228 + $0x308] sm:$0xff]
  %v291 = vld [vmem:[%s228 + $0x318] sm:$0xff]
  %v292 = vld [vmem:[%s228 + $0x320] sm:$0xff]
  %v293 = vld [vmem:[%s228 + $0x1] sm:$0xff]
  %v294 = vld [vmem:[%s228 + $0x9] sm:$0xff]
  %v295 = vld [vmem:[%s228 + $0x19] sm:$0xff]
  %v296 = vld [vmem:[%s228 + $0x21] sm:$0xff]
  %v297 = vld [vmem:[%s228 + $0x31] sm:$0xff]
  %v298 = vld [vmem:[%s228 + $0x39] sm:$0xff]
  %v299 = vld [vmem:[%s228 + $0x49] sm:$0xff]
  %v300 = vld [vmem:[%s228 + $0x51] sm:$0xff]
  %v301 = vld [vmem:[%s228 + $0x61] sm:$0xff]
  %v302 = vld [vmem:[%s228 + $0x69] sm:$0xff]
  %v303 = vld [vmem:[%s228 + $0x79] sm:$0xff]
  %v304 = vld [vmem:[%s228 + $0x81] sm:$0xff]
  %v305 = vld [vmem:[%s228 + $0x91] sm:$0xff]
  %v306 = vld [vmem:[%s228 + $0x99] sm:$0xff]
  %v307 = vld [vmem:[%s228 + $0xa9] sm:$0xff]
  %v308 = vld [vmem:[%s228 + $0xb1] sm:$0xff]
  %v309 = vld [vmem:[%s228 + $0xc1] sm:$0xff]
  %v310 = vld [vmem:[%s228 + $0xc9] sm:$0xff]
  %v311 = vld [vmem:[%s228 + $0xd9] sm:$0xff]
  %v312 = vld [vmem:[%s228 + $0xe1] sm:$0xff]
  %v313 = vld [vmem:[%s228 + $0xf1] sm:$0xff]
  %v314 = vld [vmem:[%s228 + $0xf9] sm:$0xff]
  %v315 = vld [vmem:[%s228 + $0x109] sm:$0xff]
  %v316 = vld [vmem:[%s228 + $0x111] sm:$0xff]
  %v317 = vld [vmem:[%s228 + $0x121] sm:$0xff]
  %v318 = vld [vmem:[%s228 + $0x129] sm:$0xff]
  %v319 = vld [vmem:[%s228 + $0x139] sm:$0xff]
  %v320 = vld [vmem:[%s228 + $0x141] sm:$0xff]
  %v321 = vld [vmem:[%s228 + $0x151] sm:$0xff]
  %v322 = vld [vmem:[%s228 + $0x159] sm:$0xff]
  %v323 = vld [vmem:[%s228 + $0x169] sm:$0xff]
  %v324 = vld [vmem:[%s228 + $0x171] sm:$0xff]
  %v325 = vld [vmem:[%s228 + $0x1b1] sm:$0xff]
  %v326 = vld [vmem:[%s228 + $0x1b9] sm:$0xff]
  %v327 = vld [vmem:[%s228 + $0x1c9] sm:$0xff]
  %v328 = vld [vmem:[%s228 + $0x1d1] sm:$0xff]
  %v329 = vld [vmem:[%s228 + $0x1e1] sm:$0xff]
  %v330 = vld [vmem:[%s228 + $0x1e9] sm:$0xff]
  %v331 = vld [vmem:[%s228 + $0x1f9] sm:$0xff]
  %v332 = vld [vmem:[%s228 + $0x201] sm:$0xff]
  %v333 = vld [vmem:[%s228 + $0x211] sm:$0xff]
  %v334 = vld [vmem:[%s228 + $0x219] sm:$0xff]
  %v335 = vld [vmem:[%s228 + $0x229] sm:$0xff]
  %v336 = vld [vmem:[%s228 + $0x231] sm:$0xff]
  %v337 = vld [vmem:[%s228 + $0x241] sm:$0xff]
  %v338 = vld [vmem:[%s228 + $0x249] sm:$0xff]
  %v339 = vld [vmem:[%s228 + $0x259] sm:$0xff]
  %v340 = vld [vmem:[%s228 + $0x261] sm:$0xff]
  %v341 = vld [vmem:[%s228 + $0x271] sm:$0xff]
  %v342 = vld [vmem:[%s228 + $0x279] sm:$0xff]
  %v343 = vld [vmem:[%s228 + $0x289] sm:$0xff]
  %v344 = vld [vmem:[%s228 + $0x291] sm:$0xff]
  %v345 = vld [vmem:[%s228 + $0x2a1] sm:$0xff]
  %v346 = vld [vmem:[%s228 + $0x2a9] sm:$0xff]
  %v347 = vld [vmem:[%s228 + $0x2b9] sm:$0xff]
  %v348 = vld [vmem:[%s228 + $0x2c1] sm:$0xff]
  %v349 = vld [vmem:[%s228 + $0x2d1] sm:$0xff]
  %v350 = vld [vmem:[%s228 + $0x2d9] sm:$0xff]
  %v351 = vld [vmem:[%s228 + $0x2e9] sm:$0xff]
  %v352 = vld [vmem:[%s228 + $0x2f1] sm:$0xff]
  %v353 = vld [vmem:[%s228 + $0x301] sm:$0xff]
  %v354 = vld [vmem:[%s228 + $0x309] sm:$0xff]
  %v355 = vld [vmem:[%s228 + $0x319] sm:$0xff]
  %v356 = vld [vmem:[%s228 + $0x321] sm:$0xff]
  %v357 = vld [vmem:[%s228 + $0x2] sm:$0xff]
  %v358 = vld [vmem:[%s228 + $0xa] sm:$0xff]
  %v359 = vld [vmem:[%s228 + $0x1a] sm:$0xff]
  %v360 = vld [vmem:[%s228 + $0x22] sm:$0xff]
  %v361 = vld [vmem:[%s228 + $0x32] sm:$0xff]
  %v362 = vld [vmem:[%s228 + $0x3a] sm:$0xff]
  %v363 = vld [vmem:[%s228 + $0x4a] sm:$0xff]
  %v364 = vld [vmem:[%s228 + $0x52] sm:$0xff]
  %v365 = vld [vmem:[%s228 + $0x62] sm:$0xff]
  %v366 = vld [vmem:[%s228 + $0x6a] sm:$0xff]
  %v367 = vld [vmem:[%s228 + $0x7a] sm:$0xff]
  %v368 = vld [vmem:[%s228 + $0x82] sm:$0xff]
  %v369 = vld [vmem:[%s228 + $0x92] sm:$0xff]
  %v370 = vld [vmem:[%s228 + $0x9a] sm:$0xff]
  %v371 = vld [vmem:[%s228 + $0xaa] sm:$0xff]
  %v372 = vld [vmem:[%s228 + $0xb2] sm:$0xff]
  %v373 = vld [vmem:[%s228 + $0xc2] sm:$0xff]
  %v374 = vld [vmem:[%s228 + $0xca] sm:$0xff]
  %v375 = vld [vmem:[%s228 + $0xda] sm:$0xff]
  %v376 = vld [vmem:[%s228 + $0xe2] sm:$0xff]
  %v377 = vld [vmem:[%s228 + $0xf2] sm:$0xff]
  %v378 = vld [vmem:[%s228 + $0xfa] sm:$0xff]
  %v379 = vld [vmem:[%s228 + $0x10a] sm:$0xff]
  %v380 = vld [vmem:[%s228 + $0x112] sm:$0xff]
  %v381 = vld [vmem:[%s228 + $0x122] sm:$0xff]
  %v382 = vld [vmem:[%s228 + $0x12a] sm:$0xff]
  %v383 = vld [vmem:[%s228 + $0x13a] sm:$0xff]
  %v384 = vld [vmem:[%s228 + $0x142] sm:$0xff]
  %v385 = vld [vmem:[%s228 + $0x152] sm:$0xff]
  %v386 = vld [vmem:[%s228 + $0x15a] sm:$0xff]
  %v387 = vld [vmem:[%s228 + $0x16a] sm:$0xff]
  %v388 = vld [vmem:[%s228 + $0x172] sm:$0xff]
  %v389 = vld [vmem:[%s228 + $0x1b2] sm:$0xff]
  %v390 = vld [vmem:[%s228 + $0x1ba] sm:$0xff]
  %v391 = vld [vmem:[%s228 + $0x1ca] sm:$0xff]
  %v392 = vld [vmem:[%s228 + $0x1d2] sm:$0xff]
  %v393 = vld [vmem:[%s228 + $0x1e2] sm:$0xff]
  %v394 = vld [vmem:[%s228 + $0x1ea] sm:$0xff]
  %v395 = vld [vmem:[%s228 + $0x1fa] sm:$0xff]
  %v396 = vld [vmem:[%s228 + $0x202] sm:$0xff]
  %v397 = vld [vmem:[%s228 + $0x212] sm:$0xff]
  %v398 = vld [vmem:[%s228 + $0x21a] sm:$0xff]
  %v399 = vld [vmem:[%s228 + $0x22a] sm:$0xff]
  %v400 = vld [vmem:[%s228 + $0x232] sm:$0xff]
  %v401 = vld [vmem:[%s228 + $0x242] sm:$0xff]
  %v402 = vld [vmem:[%s228 + $0x24a] sm:$0xff]
  %v403 = vld [vmem:[%s228 + $0x25a] sm:$0xff]
  %v404 = vld [vmem:[%s228 + $0x262] sm:$0xff]
  %v405 = vld [vmem:[%s228 + $0x272] sm:$0xff]
  %v406 = vld [vmem:[%s228 + $0x27a] sm:$0xff]
  %v407 = vld [vmem:[%s228 + $0x28a] sm:$0xff]
  %v408 = vld [vmem:[%s228 + $0x292] sm:$0xff]
  %v409 = vld [vmem:[%s228 + $0x2a2] sm:$0xff]
  %v410 = vld [vmem:[%s228 + $0x2aa] sm:$0xff]
  %v411 = vld [vmem:[%s228 + $0x2ba] sm:$0xff]
  %v412 = vld [vmem:[%s228 + $0x2c2] sm:$0xff]
  %v413 = vld [vmem:[%s228 + $0x2d2] sm:$0xff]
  %v414 = vld [vmem:[%s228 + $0x2da] sm:$0xff]
  %v415 = vld [vmem:[%s228 + $0x2ea] sm:$0xff]
  %v416 = vld [vmem:[%s228 + $0x2f2] sm:$0xff]
  %v417 = vld [vmem:[%s228 + $0x302] sm:$0xff]
  %v418 = vld [vmem:[%s228 + $0x30a] sm:$0xff]
  %v419 = vld [vmem:[%s228 + $0x31a] sm:$0xff]
  %v420 = vld [vmem:[%s228 + $0x322] sm:$0xff]
  %s421 = scalar_lea.vmem %s0, 48
  %v422 = vld [vmem:[%s421] sm:$0xff]
  %v423 = vld [vmem:[%s421 + $0x8] sm:$0xff]
  %v424 = vld [vmem:[%s421 + $0x18] sm:$0xff]
  %v425 = vld [vmem:[%s421 + $0x20] sm:$0xff]
  %v426 = vld [vmem:[%s421 + $0x30] sm:$0xff]
  %v427 = vld [vmem:[%s421 + $0x38] sm:$0xff]
  %v428 = vld [vmem:[%s421 + $0x48] sm:$0xff]
  %v429 = vld [vmem:[%s421 + $0x50] sm:$0xff]
  %v430 = vld [vmem:[%s421 + $0x60] sm:$0xff]
  %v431 = vld [vmem:[%s421 + $0x68] sm:$0xff]
  %v432 = vld [vmem:[%s421 + $0x78] sm:$0xff]
  %v433 = vld [vmem:[%s421 + $0x80] sm:$0xff]
  %v434 = vld [vmem:[%s421 + $0x90] sm:$0xff]
  %v435 = vld [vmem:[%s421 + $0x98] sm:$0xff]
  %v436 = vld [vmem:[%s421 + $0xa8] sm:$0xff]
  %v437 = vld [vmem:[%s421 + $0xb0] sm:$0xff]
  %v438 = vld [vmem:[%s421 + $0xc0] sm:$0xff]
  %v439 = vld [vmem:[%s421 + $0xc8] sm:$0xff]
  %v440 = vld [vmem:[%s421 + $0xd8] sm:$0xff]
  %v441 = vld [vmem:[%s421 + $0xe0] sm:$0xff]
  %v442 = vld [vmem:[%s421 + $0xf0] sm:$0xff]
  %v443 = vld [vmem:[%s421 + $0xf8] sm:$0xff]
  %v444 = vld [vmem:[%s421 + $0x108] sm:$0xff]
  %v445 = vld [vmem:[%s421 + $0x110] sm:$0xff]
  %v446 = vld [vmem:[%s421 + $0x120] sm:$0xff]
  %v447 = vld [vmem:[%s421 + $0x128] sm:$0xff]
  %v448 = vld [vmem:[%s421 + $0x138] sm:$0xff]
  %v449 = vld [vmem:[%s421 + $0x140] sm:$0xff]
  %v450 = vld [vmem:[%s421 + $0x150] sm:$0xff]
  %v451 = vld [vmem:[%s421 + $0x158] sm:$0xff]
  %v452 = vld [vmem:[%s421 + $0x168] sm:$0xff]
  %v453 = vld [vmem:[%s421 + $0x170] sm:$0xff]
  %v454 = vld [vmem:[%s421 + $0x1b0] sm:$0xff]
  %v455 = vld [vmem:[%s421 + $0x1b8] sm:$0xff]
  %v456 = vld [vmem:[%s421 + $0x1c8] sm:$0xff]
  %v457 = vld [vmem:[%s421 + $0x1d0] sm:$0xff]
  %v458 = vld [vmem:[%s421 + $0x1e0] sm:$0xff]
  %v459 = vld [vmem:[%s421 + $0x1e8] sm:$0xff]
  %v460 = vld [vmem:[%s421 + $0x1f8] sm:$0xff]
  %v461 = vld [vmem:[%s421 + $0x200] sm:$0xff]
  %v462 = vld [vmem:[%s421 + $0x210] sm:$0xff]
  %v463 = vld [vmem:[%s421 + $0x218] sm:$0xff]
  %v464 = vld [vmem:[%s421 + $0x228] sm:$0xff]
  %v465 = vld [vmem:[%s421 + $0x230] sm:$0xff]
  %v466 = vld [vmem:[%s421 + $0x240] sm:$0xff]
  %v467 = vld [vmem:[%s421 + $0x248] sm:$0xff]
  %v468 = vld [vmem:[%s421 + $0x258] sm:$0xff]
  %v469 = vld [vmem:[%s421 + $0x260] sm:$0xff]
  %v470 = vld [vmem:[%s421 + $0x270] sm:$0xff]
  %v471 = vld [vmem:[%s421 + $0x278] sm:$0xff]
  %v472 = vld [vmem:[%s421 + $0x288] sm:$0xff]
  %v473 = vld [vmem:[%s421 + $0x290] sm:$0xff]
  %v474 = vld [vmem:[%s421 + $0x2a0] sm:$0xff]
  %v475 = vld [vmem:[%s421 + $0x2a8] sm:$0xff]
  %v476 = vld [vmem:[%s421 + $0x2b8] sm:$0xff]
  %v477 = vld [vmem:[%s421 + $0x2c0] sm:$0xff]
  %v478 = vld [vmem:[%s421 + $0x2d0] sm:$0xff]
  %v479 = vld [vmem:[%s421 + $0x2d8] sm:$0xff]
  %v480 = vld [vmem:[%s421 + $0x2e8] sm:$0xff]
  %v481 = vld [vmem:[%s421 + $0x2f0] sm:$0xff]
  %v482 = vld [vmem:[%s421 + $0x300] sm:$0xff]
  %v483 = vld [vmem:[%s421 + $0x308] sm:$0xff]
  %v484 = vld [vmem:[%s421 + $0x318] sm:$0xff]
  %v485 = vld [vmem:[%s421 + $0x320] sm:$0xff]
  %v486 = vld [vmem:[%s421 + $0x1] sm:$0xff]
  %v487 = vld [vmem:[%s421 + $0x9] sm:$0xff]
  %v488 = vld [vmem:[%s421 + $0x19] sm:$0xff]
  %v489 = vld [vmem:[%s421 + $0x21] sm:$0xff]
  %v490 = vld [vmem:[%s421 + $0x31] sm:$0xff]
  %v491 = vld [vmem:[%s421 + $0x39] sm:$0xff]
  %v492 = vld [vmem:[%s421 + $0x49] sm:$0xff]
  %v493 = vld [vmem:[%s421 + $0x51] sm:$0xff]
  %v494 = vld [vmem:[%s421 + $0x61] sm:$0xff]
  %v495 = vld [vmem:[%s421 + $0x69] sm:$0xff]
  %v496 = vld [vmem:[%s421 + $0x79] sm:$0xff]
  %v497 = vld [vmem:[%s421 + $0x81] sm:$0xff]
  %v498 = vld [vmem:[%s421 + $0x91] sm:$0xff]
  %v499 = vld [vmem:[%s421 + $0x99] sm:$0xff]
  %v500 = vld [vmem:[%s421 + $0xa9] sm:$0xff]
  %v501 = vld [vmem:[%s421 + $0xb1] sm:$0xff]
  %v502 = vld [vmem:[%s421 + $0xc1] sm:$0xff]
  %v503 = vld [vmem:[%s421 + $0xc9] sm:$0xff]
  %v504 = vld [vmem:[%s421 + $0xd9] sm:$0xff]
  %v505 = vld [vmem:[%s421 + $0xe1] sm:$0xff]
  %v506 = vld [vmem:[%s421 + $0xf1] sm:$0xff]
  %v507 = vld [vmem:[%s421 + $0xf9] sm:$0xff]
  %v508 = vld [vmem:[%s421 + $0x109] sm:$0xff]
  %v509 = vld [vmem:[%s421 + $0x111] sm:$0xff]
  %v510 = vld [vmem:[%s421 + $0x121] sm:$0xff]
  %v511 = vld [vmem:[%s421 + $0x129] sm:$0xff]
  %v512 = vld [vmem:[%s421 + $0x139] sm:$0xff]
  %v513 = vld [vmem:[%s421 + $0x141] sm:$0xff]
  %v514 = vld [vmem:[%s421 + $0x151] sm:$0xff]
  %v515 = vld [vmem:[%s421 + $0x159] sm:$0xff]
  %v516 = vld [vmem:[%s421 + $0x169] sm:$0xff]
  %v517 = vld [vmem:[%s421 + $0x171] sm:$0xff]
  %v518 = vld [vmem:[%s421 + $0x1b1] sm:$0xff]
  %v519 = vld [vmem:[%s421 + $0x1b9] sm:$0xff]
  %v520 = vld [vmem:[%s421 + $0x1c9] sm:$0xff]
  %v521 = vld [vmem:[%s421 + $0x1d1] sm:$0xff]
  %v522 = vld [vmem:[%s421 + $0x1e1] sm:$0xff]
  %v523 = vld [vmem:[%s421 + $0x1e9] sm:$0xff]
  %v524 = vld [vmem:[%s421 + $0x1f9] sm:$0xff]
  %v525 = vld [vmem:[%s421 + $0x201] sm:$0xff]
  %v526 = vld [vmem:[%s421 + $0x211] sm:$0xff]
  %v527 = vld [vmem:[%s421 + $0x219] sm:$0xff]
  %v528 = vld [vmem:[%s421 + $0x229] sm:$0xff]
  %v529 = vld [vmem:[%s421 + $0x231] sm:$0xff]
  %v530 = vld [vmem:[%s421 + $0x241] sm:$0xff]
  %v531 = vld [vmem:[%s421 + $0x249] sm:$0xff]
  %v532 = vld [vmem:[%s421 + $0x259] sm:$0xff]
  %v533 = vld [vmem:[%s421 + $0x261] sm:$0xff]
  %v534 = vld [vmem:[%s421 + $0x271] sm:$0xff]
  %v535 = vld [vmem:[%s421 + $0x279] sm:$0xff]
  %v536 = vld [vmem:[%s421 + $0x289] sm:$0xff]
  %v537 = vld [vmem:[%s421 + $0x291] sm:$0xff]
  %v538 = vld [vmem:[%s421 + $0x2a1] sm:$0xff]
  %v539 = vld [vmem:[%s421 + $0x2a9] sm:$0xff]
  %v540 = vld [vmem:[%s421 + $0x2b9] sm:$0xff]
  %v541 = vld [vmem:[%s421 + $0x2c1] sm:$0xff]
  %v542 = vld [vmem:[%s421 + $0x2d1] sm:$0xff]
  %v543 = vld [vmem:[%s421 + $0x2d9] sm:$0xff]
  %v544 = vld [vmem:[%s421 + $0x2e9] sm:$0xff]
  %v545 = vld [vmem:[%s421 + $0x2f1] sm:$0xff]
  %v546 = vld [vmem:[%s421 + $0x301] sm:$0xff]
  %v547 = vld [vmem:[%s421 + $0x309] sm:$0xff]
  %v548 = vld [vmem:[%s421 + $0x319] sm:$0xff]
  %v549 = vld [vmem:[%s421 + $0x321] sm:$0xff]
  %v550 = vld [vmem:[%s421 + $0x2] sm:$0xff]
  %v551 = vld [vmem:[%s421 + $0xa] sm:$0xff]
  %v552 = vld [vmem:[%s421 + $0x1a] sm:$0xff]
  %v553 = vld [vmem:[%s421 + $0x22] sm:$0xff]
  %v554 = vld [vmem:[%s421 + $0x32] sm:$0xff]
  %v555 = vld [vmem:[%s421 + $0x3a] sm:$0xff]
  %v556 = vld [vmem:[%s421 + $0x4a] sm:$0xff]
  %v557 = vld [vmem:[%s421 + $0x52] sm:$0xff]
  %v558 = vld [vmem:[%s421 + $0x62] sm:$0xff]
  %v559 = vld [vmem:[%s421 + $0x6a] sm:$0xff]
  %v560 = vld [vmem:[%s421 + $0x7a] sm:$0xff]
  %v561 = vld [vmem:[%s421 + $0x82] sm:$0xff]
  %v562 = vld [vmem:[%s421 + $0x92] sm:$0xff]
  %v563 = vld [vmem:[%s421 + $0x9a] sm:$0xff]
  %v564 = vld [vmem:[%s421 + $0xaa] sm:$0xff]
  %v565 = vld [vmem:[%s421 + $0xb2] sm:$0xff]
  %v566 = vld [vmem:[%s421 + $0xc2] sm:$0xff]
  %v567 = vld [vmem:[%s421 + $0xca] sm:$0xff]
  %v568 = vld [vmem:[%s421 + $0xda] sm:$0xff]
  %v569 = vld [vmem:[%s421 + $0xe2] sm:$0xff]
  %v570 = vld [vmem:[%s421 + $0xf2] sm:$0xff]
  %v571 = vld [vmem:[%s421 + $0xfa] sm:$0xff]
  %v572 = vld [vmem:[%s421 + $0x10a] sm:$0xff]
  %v573 = vld [vmem:[%s421 + $0x112] sm:$0xff]
  %v574 = vld [vmem:[%s421 + $0x122] sm:$0xff]
  %v575 = vld [vmem:[%s421 + $0x12a] sm:$0xff]
  %v576 = vld [vmem:[%s421 + $0x13a] sm:$0xff]
  %v577 = vld [vmem:[%s421 + $0x142] sm:$0xff]
  %v578 = vld [vmem:[%s421 + $0x152] sm:$0xff]
  %v579 = vld [vmem:[%s421 + $0x15a] sm:$0xff]
  %v580 = vld [vmem:[%s421 + $0x16a] sm:$0xff]
  %v581 = vld [vmem:[%s421 + $0x172] sm:$0xff]
  %v582 = vld [vmem:[%s421 + $0x1b2] sm:$0xff]
  %v583 = vld [vmem:[%s421 + $0x1ba] sm:$0xff]
  %v584 = vld [vmem:[%s421 + $0x1ca] sm:$0xff]
  %v585 = vld [vmem:[%s421 + $0x1d2] sm:$0xff]
  %v586 = vld [vmem:[%s421 + $0x1e2] sm:$0xff]
  %v587 = vld [vmem:[%s421 + $0x1ea] sm:$0xff]
  %v588 = vld [vmem:[%s421 + $0x1fa] sm:$0xff]
  %v589 = vld [vmem:[%s421 + $0x202] sm:$0xff]
  %v590 = vld [vmem:[%s421 + $0x212] sm:$0xff]
  %v591 = vld [vmem:[%s421 + $0x21a] sm:$0xff]
  %v592 = vld [vmem:[%s421 + $0x22a] sm:$0xff]
  %v593 = vld [vmem:[%s421 + $0x232] sm:$0xff]
  %v594 = vld [vmem:[%s421 + $0x242] sm:$0xff]
  %v595 = vld [vmem:[%s421 + $0x24a] sm:$0xff]
  %v596 = vld [vmem:[%s421 + $0x25a] sm:$0xff]
  %v597 = vld [vmem:[%s421 + $0x262] sm:$0xff]
  %v598 = vld [vmem:[%s421 + $0x272] sm:$0xff]
  %v599 = vld [vmem:[%s421 + $0x27a] sm:$0xff]
  %v600 = vld [vmem:[%s421 + $0x28a] sm:$0xff]
  %v601 = vld [vmem:[%s421 + $0x292] sm:$0xff]
  %v602 = vld [vmem:[%s421 + $0x2a2] sm:$0xff]
  %v603 = vld [vmem:[%s421 + $0x2aa] sm:$0xff]
  %v604 = vld [vmem:[%s421 + $0x2ba] sm:$0xff]
  %v605 = vld [vmem:[%s421 + $0x2c2] sm:$0xff]
  %v606 = vld [vmem:[%s421 + $0x2d2] sm:$0xff]
  %v607 = vld [vmem:[%s421 + $0x2da] sm:$0xff]
  %v608 = vld [vmem:[%s421 + $0x2ea] sm:$0xff]
  %v609 = vld [vmem:[%s421 + $0x2f2] sm:$0xff]
  %v610 = vld [vmem:[%s421 + $0x302] sm:$0xff]
  %v611 = vld [vmem:[%s421 + $0x30a] sm:$0xff]
  %v612 = vld [vmem:[%s421 + $0x31a] sm:$0xff]
  %v613 = vld [vmem:[%s421 + $0x322] sm:$0xff]
  %678 = vrot.lane.b32.xlu0 %v100, 4
  %v679 = vpop.permute.xlu0 %678
  %680 = vrot.lane.b32.xlu0 %v101, 4
  %v681 = vpop.permute.xlu0 %680
  %682 = vrot.lane.b32.xlu0 %v102, 4
  %v683 = vpop.permute.xlu0 %682
  %684 = vrot.lane.b32.xlu0 %v103, 4
  %v685 = vpop.permute.xlu0 %684
  %686 = vrot.lane.b32.xlu0 %v104, 4
  %v687 = vpop.permute.xlu0 %686
  %688 = vrot.lane.b32.xlu0 %v105, 4
  %v689 = vpop.permute.xlu0 %688
  %690 = vrot.lane.b32.xlu0 %v106, 4
  %v691 = vpop.permute.xlu0 %690
  %692 = vrot.lane.b32.xlu0 %v107, 4
  %v693 = vpop.permute.xlu0 %692
  %694 = vrot.lane.b32.xlu0 %v108, 4
  %v695 = vpop.permute.xlu0 %694
  %696 = vrot.lane.b32.xlu0 %v109, 4
  %v697 = vpop.permute.xlu0 %696
  %698 = vrot.lane.b32.xlu0 %v110, 4
  %v699 = vpop.permute.xlu0 %698
  %700 = vrot.lane.b32.xlu0 %v111, 4
  %v701 = vpop.permute.xlu0 %700
  %702 = vrot.lane.b32.xlu0 %v112, 4
  %v703 = vpop.permute.xlu0 %702
  %704 = vrot.lane.b32.xlu0 %v113, 4
  %v705 = vpop.permute.xlu0 %704
  %706 = vrot.lane.b32.xlu0 %v114, 4
  %v707 = vpop.permute.xlu0 %706
  %708 = vrot.lane.b32.xlu0 %v115, 4
  %v709 = vpop.permute.xlu0 %708
  %710 = vrot.lane.b32.xlu0 %v116, 4
  %v711 = vpop.permute.xlu0 %710
  %712 = vrot.lane.b32.xlu0 %v117, 4
  %v713 = vpop.permute.xlu0 %712
  %714 = vrot.lane.b32.xlu0 %v118, 4
  %v715 = vpop.permute.xlu0 %714
  %716 = vrot.lane.b32.xlu0 %v119, 4
  %v717 = vpop.permute.xlu0 %716
  %718 = vrot.lane.b32.xlu0 %v120, 4
  %v719 = vpop.permute.xlu0 %718
  %720 = vrot.lane.b32.xlu0 %v121, 4
  %v721 = vpop.permute.xlu0 %720
  %722 = vrot.lane.b32.xlu0 %v122, 4
  %v723 = vpop.permute.xlu0 %722
  %724 = vrot.lane.b32.xlu0 %v123, 4
  %v725 = vpop.permute.xlu0 %724
  %726 = vrot.lane.b32.xlu0 %v124, 4
  %v727 = vpop.permute.xlu0 %726
  %728 = vrot.lane.b32.xlu0 %v125, 4
  %v729 = vpop.permute.xlu0 %728
  %730 = vrot.lane.b32.xlu0 %v126, 4
  %v731 = vpop.permute.xlu0 %730
  %732 = vrot.lane.b32.xlu0 %v127, 4
  %v733 = vpop.permute.xlu0 %732
  %734 = vrot.lane.b32.xlu0 %v128, 4
  %v735 = vpop.permute.xlu0 %734
  %736 = vrot.lane.b32.xlu0 %v129, 4
  %v737 = vpop.permute.xlu0 %736
  %738 = vrot.lane.b32.xlu0 %v130, 4
  %v739 = vpop.permute.xlu0 %738
  %740 = vrot.lane.b32.xlu0 %v131, 4
  %v741 = vpop.permute.xlu0 %740
  %742 = vrot.lane.b32.xlu0 %v132, 4
  %v743 = vpop.permute.xlu0 %742
  %744 = vrot.lane.b32.xlu0 %v133, 4
  %v745 = vpop.permute.xlu0 %744
  %746 = vrot.lane.b32.xlu0 %v134, 4
  %v747 = vpop.permute.xlu0 %746
  %748 = vrot.lane.b32.xlu0 %v135, 4
  %v749 = vpop.permute.xlu0 %748
  %750 = vrot.lane.b32.xlu0 %v136, 4
  %v751 = vpop.permute.xlu0 %750
  %752 = vrot.lane.b32.xlu0 %v137, 4
  %v753 = vpop.permute.xlu0 %752
  %754 = vrot.lane.b32.xlu0 %v138, 4
  %v755 = vpop.permute.xlu0 %754
  %756 = vrot.lane.b32.xlu0 %v139, 4
  %v757 = vpop.permute.xlu0 %756
  %758 = vrot.lane.b32.xlu0 %v140, 4
  %v759 = vpop.permute.xlu0 %758
  %760 = vrot.lane.b32.xlu0 %v141, 4
  %v761 = vpop.permute.xlu0 %760
  %762 = vrot.lane.b32.xlu0 %v142, 4
  %v763 = vpop.permute.xlu0 %762
  %764 = vrot.lane.b32.xlu0 %v143, 4
  %v765 = vpop.permute.xlu0 %764
  %766 = vrot.lane.b32.xlu0 %v144, 4
  %v767 = vpop.permute.xlu0 %766
  %768 = vrot.lane.b32.xlu0 %v145, 4
  %v769 = vpop.permute.xlu0 %768
  %770 = vrot.lane.b32.xlu0 %v146, 4
  %v771 = vpop.permute.xlu0 %770
  %772 = vrot.lane.b32.xlu0 %v147, 4
  %v773 = vpop.permute.xlu0 %772
  %774 = vrot.lane.b32.xlu0 %v148, 4
  %v775 = vpop.permute.xlu0 %774
  %776 = vrot.lane.b32.xlu0 %v149, 4
  %v777 = vpop.permute.xlu0 %776
  %778 = vrot.lane.b32.xlu0 %v150, 4
  %v779 = vpop.permute.xlu0 %778
  %780 = vrot.lane.b32.xlu0 %v151, 4
  %v781 = vpop.permute.xlu0 %780
  %782 = vrot.lane.b32.xlu0 %v152, 4
  %v783 = vpop.permute.xlu0 %782
  %784 = vrot.lane.b32.xlu0 %v153, 4
  %v785 = vpop.permute.xlu0 %784
  %786 = vrot.lane.b32.xlu0 %v154, 4
  %v787 = vpop.permute.xlu0 %786
  %788 = vrot.lane.b32.xlu0 %v155, 4
  %v789 = vpop.permute.xlu0 %788
  %790 = vrot.lane.b32.xlu0 %v156, 4
  %v791 = vpop.permute.xlu0 %790
  %792 = vrot.lane.b32.xlu0 %v157, 4
  %v793 = vpop.permute.xlu0 %792
  %794 = vrot.lane.b32.xlu0 %v158, 4
  %v795 = vpop.permute.xlu0 %794
  %796 = vrot.lane.b32.xlu0 %v159, 4
  %v797 = vpop.permute.xlu0 %796
  %798 = vrot.lane.b32.xlu0 %v160, 4
  %v799 = vpop.permute.xlu0 %798
  %800 = vrot.lane.b32.xlu0 %v161, 4
  %v801 = vpop.permute.xlu0 %800
  %802 = vrot.lane.b32.xlu0 %v162, 4
  %v803 = vpop.permute.xlu0 %802
  %804 = vrot.lane.b32.xlu0 %v163, 4
  %v805 = vpop.permute.xlu0 %804
  %934 = vrot.lane.b32.xlu0 %v164, 8
  %v935 = vpop.permute.xlu0 %934
  %936 = vrot.lane.b32.xlu0 %v165, 8
  %v937 = vpop.permute.xlu0 %936
  %938 = vrot.lane.b32.xlu0 %v166, 8
  %v939 = vpop.permute.xlu0 %938
  %940 = vrot.lane.b32.xlu0 %v167, 8
  %v941 = vpop.permute.xlu0 %940
  %942 = vrot.lane.b32.xlu0 %v168, 8
  %v943 = vpop.permute.xlu0 %942
  %944 = vrot.lane.b32.xlu0 %v169, 8
  %v945 = vpop.permute.xlu0 %944
  %946 = vrot.lane.b32.xlu0 %v170, 8
  %v947 = vpop.permute.xlu0 %946
  %948 = vrot.lane.b32.xlu0 %v171, 8
  %v949 = vpop.permute.xlu0 %948
  %950 = vrot.lane.b32.xlu0 %v172, 8
  %v951 = vpop.permute.xlu0 %950
  %952 = vrot.lane.b32.xlu0 %v173, 8
  %v953 = vpop.permute.xlu0 %952
  %954 = vrot.lane.b32.xlu0 %v174, 8
  %v955 = vpop.permute.xlu0 %954
  %956 = vrot.lane.b32.xlu0 %v175, 8
  %v957 = vpop.permute.xlu0 %956
  %958 = vrot.lane.b32.xlu0 %v176, 8
  %v959 = vpop.permute.xlu0 %958
  %960 = vrot.lane.b32.xlu0 %v177, 8
  %v961 = vpop.permute.xlu0 %960
  %962 = vrot.lane.b32.xlu0 %v178, 8
  %v963 = vpop.permute.xlu0 %962
  %964 = vrot.lane.b32.xlu0 %v179, 8
  %v965 = vpop.permute.xlu0 %964
  %966 = vrot.lane.b32.xlu0 %v180, 8
  %v967 = vpop.permute.xlu0 %966
  %968 = vrot.lane.b32.xlu0 %v181, 8
  %v969 = vpop.permute.xlu0 %968
  %970 = vrot.lane.b32.xlu0 %v182, 8
  %v971 = vpop.permute.xlu0 %970
  %972 = vrot.lane.b32.xlu0 %v183, 8
  %v973 = vpop.permute.xlu0 %972
  %974 = vrot.lane.b32.xlu0 %v184, 8
  %v975 = vpop.permute.xlu0 %974
  %976 = vrot.lane.b32.xlu0 %v185, 8
  %v977 = vpop.permute.xlu0 %976
  %978 = vrot.lane.b32.xlu0 %v186, 8
  %v979 = vpop.permute.xlu0 %978
  %980 = vrot.lane.b32.xlu0 %v187, 8
  %v981 = vpop.permute.xlu0 %980
  %982 = vrot.lane.b32.xlu0 %v188, 8
  %v983 = vpop.permute.xlu0 %982
  %984 = vrot.lane.b32.xlu0 %v189, 8
  %v985 = vpop.permute.xlu0 %984
  %986 = vrot.lane.b32.xlu0 %v190, 8
  %v987 = vpop.permute.xlu0 %986
  %988 = vrot.lane.b32.xlu0 %v191, 8
  %v989 = vpop.permute.xlu0 %988
  %990 = vrot.lane.b32.xlu0 %v192, 8
  %v991 = vpop.permute.xlu0 %990
  %992 = vrot.lane.b32.xlu0 %v193, 8
  %v993 = vpop.permute.xlu0 %992
  %994 = vrot.lane.b32.xlu0 %v194, 8
  %v995 = vpop.permute.xlu0 %994
  %996 = vrot.lane.b32.xlu0 %v195, 8
  %v997 = vpop.permute.xlu0 %996
  %998 = vrot.lane.b32.xlu0 %v196, 8
  %v999 = vpop.permute.xlu0 %998
  %1000 = vrot.lane.b32.xlu0 %v197, 8
  %v1001 = vpop.permute.xlu0 %1000
  %1002 = vrot.lane.b32.xlu0 %v198, 8
  %v1003 = vpop.permute.xlu0 %1002
  %1004 = vrot.lane.b32.xlu0 %v199, 8
  %v1005 = vpop.permute.xlu0 %1004
  %1006 = vrot.lane.b32.xlu0 %v200, 8
  %v1007 = vpop.permute.xlu0 %1006
  %1008 = vrot.lane.b32.xlu0 %v201, 8
  %v1009 = vpop.permute.xlu0 %1008
  %1010 = vrot.lane.b32.xlu0 %v202, 8
  %v1011 = vpop.permute.xlu0 %1010
  %1012 = vrot.lane.b32.xlu0 %v203, 8
  %v1013 = vpop.permute.xlu0 %1012
  %1014 = vrot.lane.b32.xlu0 %v204, 8
  %v1015 = vpop.permute.xlu0 %1014
  %1016 = vrot.lane.b32.xlu0 %v205, 8
  %v1017 = vpop.permute.xlu0 %1016
  %1018 = vrot.lane.b32.xlu0 %v206, 8
  %v1019 = vpop.permute.xlu0 %1018
  %1020 = vrot.lane.b32.xlu0 %v207, 8
  %v1021 = vpop.permute.xlu0 %1020
  %1022 = vrot.lane.b32.xlu0 %v208, 8
  %v1023 = vpop.permute.xlu0 %1022
  %1024 = vrot.lane.b32.xlu0 %v209, 8
  %v1025 = vpop.permute.xlu0 %1024
  %1026 = vrot.lane.b32.xlu0 %v210, 8
  %v1027 = vpop.permute.xlu0 %1026
  %1028 = vrot.lane.b32.xlu0 %v211, 8
  %v1029 = vpop.permute.xlu0 %1028
  %1030 = vrot.lane.b32.xlu0 %v212, 8
  %v1031 = vpop.permute.xlu0 %1030
  %1032 = vrot.lane.b32.xlu0 %v213, 8
  %v1033 = vpop.permute.xlu0 %1032
  %1034 = vrot.lane.b32.xlu0 %v214, 8
  %v1035 = vpop.permute.xlu0 %1034
  %1036 = vrot.lane.b32.xlu0 %v215, 8
  %v1037 = vpop.permute.xlu0 %1036
  %1038 = vrot.lane.b32.xlu0 %v216, 8
  %v1039 = vpop.permute.xlu0 %1038
  %1040 = vrot.lane.b32.xlu0 %v217, 8
  %v1041 = vpop.permute.xlu0 %1040
  %1042 = vrot.lane.b32.xlu0 %v218, 8
  %v1043 = vpop.permute.xlu0 %1042
  %1044 = vrot.lane.b32.xlu0 %v219, 8
  %v1045 = vpop.permute.xlu0 %1044
  %1046 = vrot.lane.b32.xlu0 %v220, 8
  %v1047 = vpop.permute.xlu0 %1046
  %1048 = vrot.lane.b32.xlu0 %v221, 8
  %v1049 = vpop.permute.xlu0 %1048
  %1050 = vrot.lane.b32.xlu0 %v222, 8
  %v1051 = vpop.permute.xlu0 %1050
  %1052 = vrot.lane.b32.xlu0 %v223, 8
  %v1053 = vpop.permute.xlu0 %1052
  %1054 = vrot.lane.b32.xlu0 %v224, 8
  %v1055 = vpop.permute.xlu0 %1054
  %1056 = vrot.lane.b32.xlu0 %v225, 8
  %v1057 = vpop.permute.xlu0 %1056
  %1058 = vrot.lane.b32.xlu0 %v226, 8
  %v1059 = vpop.permute.xlu0 %1058
  %1060 = vrot.lane.b32.xlu0 %v227, 8
  %v1061 = vpop.permute.xlu0 %1060
  %1190 = vrot.lane.b32.xlu0 %v229, 12
  %v1191 = vpop.permute.xlu0 %1190
  %1192 = vrot.lane.b32.xlu0 %v230, 12
  %v1193 = vpop.permute.xlu0 %1192
  %1194 = vrot.lane.b32.xlu0 %v231, 12
  %v1195 = vpop.permute.xlu0 %1194
  %1196 = vrot.lane.b32.xlu0 %v232, 12
  %v1197 = vpop.permute.xlu0 %1196
  %1198 = vrot.lane.b32.xlu0 %v233, 12
  %v1199 = vpop.permute.xlu0 %1198
  %1200 = vrot.lane.b32.xlu0 %v234, 12
  %v1201 = vpop.permute.xlu0 %1200
  %1202 = vrot.lane.b32.xlu0 %v235, 12
  %v1203 = vpop.permute.xlu0 %1202
  %1204 = vrot.lane.b32.xlu0 %v236, 12
  %v1205 = vpop.permute.xlu0 %1204
  %1206 = vrot.lane.b32.xlu0 %v237, 12
  %v1207 = vpop.permute.xlu0 %1206
  %1208 = vrot.lane.b32.xlu0 %v238, 12
  %v1209 = vpop.permute.xlu0 %1208
  %1210 = vrot.lane.b32.xlu0 %v239, 12
  %v1211 = vpop.permute.xlu0 %1210
  %1212 = vrot.lane.b32.xlu0 %v240, 12
  %v1213 = vpop.permute.xlu0 %1212
  %1214 = vrot.lane.b32.xlu0 %v241, 12
  %v1215 = vpop.permute.xlu0 %1214
  %1216 = vrot.lane.b32.xlu0 %v242, 12
  %v1217 = vpop.permute.xlu0 %1216
  %1218 = vrot.lane.b32.xlu0 %v243, 12
  %v1219 = vpop.permute.xlu0 %1218
  %1220 = vrot.lane.b32.xlu0 %v244, 12
  %v1221 = vpop.permute.xlu0 %1220
  %1222 = vrot.lane.b32.xlu0 %v245, 12
  %v1223 = vpop.permute.xlu0 %1222
  %1224 = vrot.lane.b32.xlu0 %v246, 12
  %v1225 = vpop.permute.xlu0 %1224
  %1226 = vrot.lane.b32.xlu0 %v247, 12
  %v1227 = vpop.permute.xlu0 %1226
  %1228 = vrot.lane.b32.xlu0 %v248, 12
  %v1229 = vpop.permute.xlu0 %1228
  %1230 = vrot.lane.b32.xlu0 %v249, 12
  %v1231 = vpop.permute.xlu0 %1230
  %1232 = vrot.lane.b32.xlu0 %v250, 12
  %v1233 = vpop.permute.xlu0 %1232
  %1234 = vrot.lane.b32.xlu0 %v251, 12
  %v1235 = vpop.permute.xlu0 %1234
  %1236 = vrot.lane.b32.xlu0 %v252, 12
  %v1237 = vpop.permute.xlu0 %1236
  %1238 = vrot.lane.b32.xlu0 %v253, 12
  %v1239 = vpop.permute.xlu0 %1238
  %1240 = vrot.lane.b32.xlu0 %v254, 12
  %v1241 = vpop.permute.xlu0 %1240
  %1242 = vrot.lane.b32.xlu0 %v255, 12
  %v1243 = vpop.permute.xlu0 %1242
  %1244 = vrot.lane.b32.xlu0 %v256, 12
  %v1245 = vpop.permute.xlu0 %1244
  %1246 = vrot.lane.b32.xlu0 %v257, 12
  %v1247 = vpop.permute.xlu0 %1246
  %1248 = vrot.lane.b32.xlu0 %v258, 12
  %v1249 = vpop.permute.xlu0 %1248
  %1250 = vrot.lane.b32.xlu0 %v259, 12
  %v1251 = vpop.permute.xlu0 %1250
  %1252 = vrot.lane.b32.xlu0 %v260, 12
  %v1253 = vpop.permute.xlu0 %1252
  %1254 = vrot.lane.b32.xlu0 %v261, 12
  %v1255 = vpop.permute.xlu0 %1254
  %1256 = vrot.lane.b32.xlu0 %v262, 12
  %v1257 = vpop.permute.xlu0 %1256
  %1258 = vrot.lane.b32.xlu0 %v263, 12
  %v1259 = vpop.permute.xlu0 %1258
  %1260 = vrot.lane.b32.xlu0 %v264, 12
  %v1261 = vpop.permute.xlu0 %1260
  %1262 = vrot.lane.b32.xlu0 %v265, 12
  %v1263 = vpop.permute.xlu0 %1262
  %1264 = vrot.lane.b32.xlu0 %v266, 12
  %v1265 = vpop.permute.xlu0 %1264
  %1266 = vrot.lane.b32.xlu0 %v267, 12
  %v1267 = vpop.permute.xlu0 %1266
  %1268 = vrot.lane.b32.xlu0 %v268, 12
  %v1269 = vpop.permute.xlu0 %1268
  %1270 = vrot.lane.b32.xlu0 %v269, 12
  %v1271 = vpop.permute.xlu0 %1270
  %1272 = vrot.lane.b32.xlu0 %v270, 12
  %v1273 = vpop.permute.xlu0 %1272
  %1274 = vrot.lane.b32.xlu0 %v271, 12
  %v1275 = vpop.permute.xlu0 %1274
  %1276 = vrot.lane.b32.xlu0 %v272, 12
  %v1277 = vpop.permute.xlu0 %1276
  %1278 = vrot.lane.b32.xlu0 %v273, 12
  %v1279 = vpop.permute.xlu0 %1278
  %1280 = vrot.lane.b32.xlu0 %v274, 12
  %v1281 = vpop.permute.xlu0 %1280
  %1282 = vrot.lane.b32.xlu0 %v275, 12
  %v1283 = vpop.permute.xlu0 %1282
  %1284 = vrot.lane.b32.xlu0 %v276, 12
  %v1285 = vpop.permute.xlu0 %1284
  %1286 = vrot.lane.b32.xlu0 %v277, 12
  %v1287 = vpop.permute.xlu0 %1286
  %1288 = vrot.lane.b32.xlu0 %v278, 12
  %v1289 = vpop.permute.xlu0 %1288
  %1290 = vrot.lane.b32.xlu0 %v279, 12
  %v1291 = vpop.permute.xlu0 %1290
  %1292 = vrot.lane.b32.xlu0 %v280, 12
  %v1293 = vpop.permute.xlu0 %1292
  %1294 = vrot.lane.b32.xlu0 %v281, 12
  %v1295 = vpop.permute.xlu0 %1294
  %1296 = vrot.lane.b32.xlu0 %v282, 12
  %v1297 = vpop.permute.xlu0 %1296
  %1298 = vrot.lane.b32.xlu0 %v283, 12
  %v1299 = vpop.permute.xlu0 %1298
  %1300 = vrot.lane.b32.xlu0 %v284, 12
  %v1301 = vpop.permute.xlu0 %1300
  %1302 = vrot.lane.b32.xlu0 %v285, 12
  %v1303 = vpop.permute.xlu0 %1302
  %1304 = vrot.lane.b32.xlu0 %v286, 12
  %v1305 = vpop.permute.xlu0 %1304
  %1306 = vrot.lane.b32.xlu0 %v287, 12
  %v1307 = vpop.permute.xlu0 %1306
  %1308 = vrot.lane.b32.xlu0 %v288, 12
  %v1309 = vpop.permute.xlu0 %1308
  %1310 = vrot.lane.b32.xlu0 %v289, 12
  %v1311 = vpop.permute.xlu0 %1310
  %1312 = vrot.lane.b32.xlu0 %v290, 12
  %v1313 = vpop.permute.xlu0 %1312
  %1314 = vrot.lane.b32.xlu0 %v291, 12
  %v1315 = vpop.permute.xlu0 %1314
  %1316 = vrot.lane.b32.xlu0 %v292, 12
  %v1317 = vpop.permute.xlu0 %1316
  %1446 = vrot.lane.b32.xlu0 %v293, 16
  %v1447 = vpop.permute.xlu0 %1446
  %1448 = vrot.lane.b32.xlu0 %v294, 16
  %v1449 = vpop.permute.xlu0 %1448
  %1450 = vrot.lane.b32.xlu0 %v295, 16
  %v1451 = vpop.permute.xlu0 %1450
  %1452 = vrot.lane.b32.xlu0 %v296, 16
  %v1453 = vpop.permute.xlu0 %1452
  %1454 = vrot.lane.b32.xlu0 %v297, 16
  %v1455 = vpop.permute.xlu0 %1454
  %1456 = vrot.lane.b32.xlu0 %v298, 16
  %v1457 = vpop.permute.xlu0 %1456
  %1458 = vrot.lane.b32.xlu0 %v299, 16
  %v1459 = vpop.permute.xlu0 %1458
  %1460 = vrot.lane.b32.xlu0 %v300, 16
  %v1461 = vpop.permute.xlu0 %1460
  %1462 = vrot.lane.b32.xlu0 %v301, 16
  %v1463 = vpop.permute.xlu0 %1462
  %1464 = vrot.lane.b32.xlu0 %v302, 16
  %v1465 = vpop.permute.xlu0 %1464
  %1466 = vrot.lane.b32.xlu0 %v303, 16
  %v1467 = vpop.permute.xlu0 %1466
  %1468 = vrot.lane.b32.xlu0 %v304, 16
  %v1469 = vpop.permute.xlu0 %1468
  %1470 = vrot.lane.b32.xlu0 %v305, 16
  %v1471 = vpop.permute.xlu0 %1470
  %1472 = vrot.lane.b32.xlu0 %v306, 16
  %v1473 = vpop.permute.xlu0 %1472
  %1474 = vrot.lane.b32.xlu0 %v307, 16
  %v1475 = vpop.permute.xlu0 %1474
  %1476 = vrot.lane.b32.xlu0 %v308, 16
  %v1477 = vpop.permute.xlu0 %1476
  %1478 = vrot.lane.b32.xlu0 %v309, 16
  %v1479 = vpop.permute.xlu0 %1478
  %1480 = vrot.lane.b32.xlu0 %v310, 16
  %v1481 = vpop.permute.xlu0 %1480
  %1482 = vrot.lane.b32.xlu0 %v311, 16
  %v1483 = vpop.permute.xlu0 %1482
  %1484 = vrot.lane.b32.xlu0 %v312, 16
  %v1485 = vpop.permute.xlu0 %1484
  %1486 = vrot.lane.b32.xlu0 %v313, 16
  %v1487 = vpop.permute.xlu0 %1486
  %1488 = vrot.lane.b32.xlu0 %v314, 16
  %v1489 = vpop.permute.xlu0 %1488
  %1490 = vrot.lane.b32.xlu0 %v315, 16
  %v1491 = vpop.permute.xlu0 %1490
  %1492 = vrot.lane.b32.xlu0 %v316, 16
  %v1493 = vpop.permute.xlu0 %1492
  %1494 = vrot.lane.b32.xlu0 %v317, 16
  %v1495 = vpop.permute.xlu0 %1494
  %1496 = vrot.lane.b32.xlu0 %v318, 16
  %v1497 = vpop.permute.xlu0 %1496
  %1498 = vrot.lane.b32.xlu0 %v319, 16
  %v1499 = vpop.permute.xlu0 %1498
  %1500 = vrot.lane.b32.xlu0 %v320, 16
  %v1501 = vpop.permute.xlu0 %1500
  %1502 = vrot.lane.b32.xlu0 %v321, 16
  %v1503 = vpop.permute.xlu0 %1502
  %1504 = vrot.lane.b32.xlu0 %v322, 16
  %v1505 = vpop.permute.xlu0 %1504
  %1506 = vrot.lane.b32.xlu0 %v323, 16
  %v1507 = vpop.permute.xlu0 %1506
  %1508 = vrot.lane.b32.xlu0 %v324, 16
  %v1509 = vpop.permute.xlu0 %1508
  %1510 = vrot.lane.b32.xlu0 %v325, 16
  %v1511 = vpop.permute.xlu0 %1510
  %1512 = vrot.lane.b32.xlu0 %v326, 16
  %v1513 = vpop.permute.xlu0 %1512
  %1514 = vrot.lane.b32.xlu0 %v327, 16
  %v1515 = vpop.permute.xlu0 %1514
  %1516 = vrot.lane.b32.xlu0 %v328, 16
  %v1517 = vpop.permute.xlu0 %1516
  %1518 = vrot.lane.b32.xlu0 %v329, 16
  %v1519 = vpop.permute.xlu0 %1518
  %1520 = vrot.lane.b32.xlu0 %v330, 16
  %v1521 = vpop.permute.xlu0 %1520
  %1522 = vrot.lane.b32.xlu0 %v331, 16
  %v1523 = vpop.permute.xlu0 %1522
  %1524 = vrot.lane.b32.xlu0 %v332, 16
  %v1525 = vpop.permute.xlu0 %1524
  %1526 = vrot.lane.b32.xlu0 %v333, 16
  %v1527 = vpop.permute.xlu0 %1526
  %1528 = vrot.lane.b32.xlu0 %v334, 16
  %v1529 = vpop.permute.xlu0 %1528
  %1530 = vrot.lane.b32.xlu0 %v335, 16
  %v1531 = vpop.permute.xlu0 %1530
  %1532 = vrot.lane.b32.xlu0 %v336, 16
  %v1533 = vpop.permute.xlu0 %1532
  %1534 = vrot.lane.b32.xlu0 %v337, 16
  %v1535 = vpop.permute.xlu0 %1534
  %1536 = vrot.lane.b32.xlu0 %v338, 16
  %v1537 = vpop.permute.xlu0 %1536
  %1538 = vrot.lane.b32.xlu0 %v339, 16
  %v1539 = vpop.permute.xlu0 %1538
  %1540 = vrot.lane.b32.xlu0 %v340, 16
  %v1541 = vpop.permute.xlu0 %1540
  %1542 = vrot.lane.b32.xlu0 %v341, 16
  %v1543 = vpop.permute.xlu0 %1542
  %1544 = vrot.lane.b32.xlu0 %v342, 16
  %v1545 = vpop.permute.xlu0 %1544
  %1546 = vrot.lane.b32.xlu0 %v343, 16
  %v1547 = vpop.permute.xlu0 %1546
  %1548 = vrot.lane.b32.xlu0 %v344, 16
  %v1549 = vpop.permute.xlu0 %1548
  %1550 = vrot.lane.b32.xlu0 %v345, 16
  %v1551 = vpop.permute.xlu0 %1550
  %1552 = vrot.lane.b32.xlu0 %v346, 16
  %v1553 = vpop.permute.xlu0 %1552
  %1554 = vrot.lane.b32.xlu0 %v347, 16
  %v1555 = vpop.permute.xlu0 %1554
  %1556 = vrot.lane.b32.xlu0 %v348, 16
  %v1557 = vpop.permute.xlu0 %1556
  %1558 = vrot.lane.b32.xlu0 %v349, 16
  %v1559 = vpop.permute.xlu0 %1558
  %1560 = vrot.lane.b32.xlu0 %v350, 16
  %v1561 = vpop.permute.xlu0 %1560
  %1562 = vrot.lane.b32.xlu0 %v351, 16
  %v1563 = vpop.permute.xlu0 %1562
  %1564 = vrot.lane.b32.xlu0 %v352, 16
  %v1565 = vpop.permute.xlu0 %1564
  %1566 = vrot.lane.b32.xlu0 %v353, 16
  %v1567 = vpop.permute.xlu0 %1566
  %1568 = vrot.lane.b32.xlu0 %v354, 16
  %v1569 = vpop.permute.xlu0 %1568
  %1570 = vrot.lane.b32.xlu0 %v355, 16
  %v1571 = vpop.permute.xlu0 %1570
  %1572 = vrot.lane.b32.xlu0 %v356, 16
  %v1573 = vpop.permute.xlu0 %1572
  %1702 = vrot.lane.b32.xlu0 %v357, 20
  %v1703 = vpop.permute.xlu0 %1702
  %1704 = vrot.lane.b32.xlu0 %v358, 20
  %v1705 = vpop.permute.xlu0 %1704
  %1706 = vrot.lane.b32.xlu0 %v359, 20
  %v1707 = vpop.permute.xlu0 %1706
  %1708 = vrot.lane.b32.xlu0 %v360, 20
  %v1709 = vpop.permute.xlu0 %1708
  %1710 = vrot.lane.b32.xlu0 %v361, 20
  %v1711 = vpop.permute.xlu0 %1710
  %1712 = vrot.lane.b32.xlu0 %v362, 20
  %v1713 = vpop.permute.xlu0 %1712
  %1714 = vrot.lane.b32.xlu0 %v363, 20
  %v1715 = vpop.permute.xlu0 %1714
  %1716 = vrot.lane.b32.xlu0 %v364, 20
  %v1717 = vpop.permute.xlu0 %1716
  %1718 = vrot.lane.b32.xlu0 %v365, 20
  %v1719 = vpop.permute.xlu0 %1718
  %1720 = vrot.lane.b32.xlu0 %v366, 20
  %v1721 = vpop.permute.xlu0 %1720
  %1722 = vrot.lane.b32.xlu0 %v367, 20
  %v1723 = vpop.permute.xlu0 %1722
  %1724 = vrot.lane.b32.xlu0 %v368, 20
  %v1725 = vpop.permute.xlu0 %1724
  %1726 = vrot.lane.b32.xlu0 %v369, 20
  %v1727 = vpop.permute.xlu0 %1726
  %1728 = vrot.lane.b32.xlu0 %v370, 20
  %v1729 = vpop.permute.xlu0 %1728
  %1730 = vrot.lane.b32.xlu0 %v371, 20
  %v1731 = vpop.permute.xlu0 %1730
  %1732 = vrot.lane.b32.xlu0 %v372, 20
  %v1733 = vpop.permute.xlu0 %1732
  %1734 = vrot.lane.b32.xlu0 %v373, 20
  %v1735 = vpop.permute.xlu0 %1734
  %1736 = vrot.lane.b32.xlu0 %v374, 20
  %v1737 = vpop.permute.xlu0 %1736
  %1738 = vrot.lane.b32.xlu0 %v375, 20
  %v1739 = vpop.permute.xlu0 %1738
  %1740 = vrot.lane.b32.xlu0 %v376, 20
  %v1741 = vpop.permute.xlu0 %1740
  %1742 = vrot.lane.b32.xlu0 %v377, 20
  %v1743 = vpop.permute.xlu0 %1742
  %1744 = vrot.lane.b32.xlu0 %v378, 20
  %v1745 = vpop.permute.xlu0 %1744
  %1746 = vrot.lane.b32.xlu0 %v379, 20
  %v1747 = vpop.permute.xlu0 %1746
  %1748 = vrot.lane.b32.xlu0 %v380, 20
  %v1749 = vpop.permute.xlu0 %1748
  %1750 = vrot.lane.b32.xlu0 %v381, 20
  %v1751 = vpop.permute.xlu0 %1750
  %1752 = vrot.lane.b32.xlu0 %v382, 20
  %v1753 = vpop.permute.xlu0 %1752
  %1754 = vrot.lane.b32.xlu0 %v383, 20
  %v1755 = vpop.permute.xlu0 %1754
  %1756 = vrot.lane.b32.xlu0 %v384, 20
  %v1757 = vpop.permute.xlu0 %1756
  %1758 = vrot.lane.b32.xlu0 %v385, 20
  %v1759 = vpop.permute.xlu0 %1758
  %1760 = vrot.lane.b32.xlu0 %v386, 20
  %v1761 = vpop.permute.xlu0 %1760
  %1762 = vrot.lane.b32.xlu0 %v387, 20
  %v1763 = vpop.permute.xlu0 %1762
  %1764 = vrot.lane.b32.xlu0 %v388, 20
  %v1765 = vpop.permute.xlu0 %1764
  %1766 = vrot.lane.b32.xlu0 %v389, 20
  %v1767 = vpop.permute.xlu0 %1766
  %1768 = vrot.lane.b32.xlu0 %v390, 20
  %v1769 = vpop.permute.xlu0 %1768
  %1770 = vrot.lane.b32.xlu0 %v391, 20
  %v1771 = vpop.permute.xlu0 %1770
  %1772 = vrot.lane.b32.xlu0 %v392, 20
  %v1773 = vpop.permute.xlu0 %1772
  %1774 = vrot.lane.b32.xlu0 %v393, 20
  %v1775 = vpop.permute.xlu0 %1774
  %1776 = vrot.lane.b32.xlu0 %v394, 20
  %v1777 = vpop.permute.xlu0 %1776
  %1778 = vrot.lane.b32.xlu0 %v395, 20
  %v1779 = vpop.permute.xlu0 %1778
  %1780 = vrot.lane.b32.xlu0 %v396, 20
  %v1781 = vpop.permute.xlu0 %1780
  %1782 = vrot.lane.b32.xlu0 %v397, 20
  %v1783 = vpop.permute.xlu0 %1782
  %1784 = vrot.lane.b32.xlu0 %v398, 20
  %v1785 = vpop.permute.xlu0 %1784
  %1786 = vrot.lane.b32.xlu0 %v399, 20
  %v1787 = vpop.permute.xlu0 %1786
  %1788 = vrot.lane.b32.xlu0 %v400, 20
  %v1789 = vpop.permute.xlu0 %1788
  %1790 = vrot.lane.b32.xlu0 %v401, 20
  %v1791 = vpop.permute.xlu0 %1790
  %1792 = vrot.lane.b32.xlu0 %v402, 20
  %v1793 = vpop.permute.xlu0 %1792
  %1794 = vrot.lane.b32.xlu0 %v403, 20
  %v1795 = vpop.permute.xlu0 %1794
  %1796 = vrot.lane.b32.xlu0 %v404, 20
  %v1797 = vpop.permute.xlu0 %1796
  %1798 = vrot.lane.b32.xlu0 %v405, 20
  %v1799 = vpop.permute.xlu0 %1798
  %1800 = vrot.lane.b32.xlu0 %v406, 20
  %v1801 = vpop.permute.xlu0 %1800
  %1802 = vrot.lane.b32.xlu0 %v407, 20
  %v1803 = vpop.permute.xlu0 %1802
  %1804 = vrot.lane.b32.xlu0 %v408, 20
  %v1805 = vpop.permute.xlu0 %1804
  %1806 = vrot.lane.b32.xlu0 %v409, 20
  %v1807 = vpop.permute.xlu0 %1806
  %1808 = vrot.lane.b32.xlu0 %v410, 20
  %v1809 = vpop.permute.xlu0 %1808
  %1810 = vrot.lane.b32.xlu0 %v411, 20
  %v1811 = vpop.permute.xlu0 %1810
  %1812 = vrot.lane.b32.xlu0 %v412, 20
  %v1813 = vpop.permute.xlu0 %1812
  %1814 = vrot.lane.b32.xlu0 %v413, 20
  %v1815 = vpop.permute.xlu0 %1814
  %1816 = vrot.lane.b32.xlu0 %v414, 20
  %v1817 = vpop.permute.xlu0 %1816
  %1818 = vrot.lane.b32.xlu0 %v415, 20
  %v1819 = vpop.permute.xlu0 %1818
  %1820 = vrot.lane.b32.xlu0 %v416, 20
  %v1821 = vpop.permute.xlu0 %1820
  %1822 = vrot.lane.b32.xlu0 %v417, 20
  %v1823 = vpop.permute.xlu0 %1822
  %1824 = vrot.lane.b32.xlu0 %v418, 20
  %v1825 = vpop.permute.xlu0 %1824
  %1826 = vrot.lane.b32.xlu0 %v419, 20
  %v1827 = vpop.permute.xlu0 %1826
  %1828 = vrot.lane.b32.xlu0 %v420, 20
  %v1829 = vpop.permute.xlu0 %1828
  %1958 = vrot.lane.b32.xlu0 %v422, 24
  %v1959 = vpop.permute.xlu0 %1958
  %1960 = vrot.lane.b32.xlu0 %v423, 24
  %v1961 = vpop.permute.xlu0 %1960
  %1962 = vrot.lane.b32.xlu0 %v424, 24
  %v1963 = vpop.permute.xlu0 %1962
  %1964 = vrot.lane.b32.xlu0 %v425, 24
  %v1965 = vpop.permute.xlu0 %1964
  %1966 = vrot.lane.b32.xlu0 %v426, 24
  %v1967 = vpop.permute.xlu0 %1966
  %1968 = vrot.lane.b32.xlu0 %v427, 24
  %v1969 = vpop.permute.xlu0 %1968
  %1970 = vrot.lane.b32.xlu0 %v428, 24
  %v1971 = vpop.permute.xlu0 %1970
  %1972 = vrot.lane.b32.xlu0 %v429, 24
  %v1973 = vpop.permute.xlu0 %1972
  %1974 = vrot.lane.b32.xlu0 %v430, 24
  %v1975 = vpop.permute.xlu0 %1974
  %1976 = vrot.lane.b32.xlu0 %v431, 24
  %v1977 = vpop.permute.xlu0 %1976
  %1978 = vrot.lane.b32.xlu0 %v432, 24
  %v1979 = vpop.permute.xlu0 %1978
  %1980 = vrot.lane.b32.xlu0 %v433, 24
  %v1981 = vpop.permute.xlu0 %1980
  %1982 = vrot.lane.b32.xlu0 %v434, 24
  %v1983 = vpop.permute.xlu0 %1982
  %1984 = vrot.lane.b32.xlu0 %v435, 24
  %v1985 = vpop.permute.xlu0 %1984
  %1986 = vrot.lane.b32.xlu0 %v436, 24
  %v1987 = vpop.permute.xlu0 %1986
  %1988 = vrot.lane.b32.xlu0 %v437, 24
  %v1989 = vpop.permute.xlu0 %1988
  %1990 = vrot.lane.b32.xlu0 %v438, 24
  %v1991 = vpop.permute.xlu0 %1990
  %1992 = vrot.lane.b32.xlu0 %v439, 24
  %v1993 = vpop.permute.xlu0 %1992
  %1994 = vrot.lane.b32.xlu0 %v440, 24
  %v1995 = vpop.permute.xlu0 %1994
  %1996 = vrot.lane.b32.xlu0 %v441, 24
  %v1997 = vpop.permute.xlu0 %1996
  %1998 = vrot.lane.b32.xlu0 %v442, 24
  %v1999 = vpop.permute.xlu0 %1998
  %2000 = vrot.lane.b32.xlu0 %v443, 24
  %v2001 = vpop.permute.xlu0 %2000
  %2002 = vrot.lane.b32.xlu0 %v444, 24
  %v2003 = vpop.permute.xlu0 %2002
  %2004 = vrot.lane.b32.xlu0 %v445, 24
  %v2005 = vpop.permute.xlu0 %2004
  %2006 = vrot.lane.b32.xlu0 %v446, 24
  %v2007 = vpop.permute.xlu0 %2006
  %2008 = vrot.lane.b32.xlu0 %v447, 24
  %v2009 = vpop.permute.xlu0 %2008
  %2010 = vrot.lane.b32.xlu0 %v448, 24
  %v2011 = vpop.permute.xlu0 %2010
  %2012 = vrot.lane.b32.xlu0 %v449, 24
  %v2013 = vpop.permute.xlu0 %2012
  %2014 = vrot.lane.b32.xlu0 %v450, 24
  %v2015 = vpop.permute.xlu0 %2014
  %2016 = vrot.lane.b32.xlu0 %v451, 24
  %v2017 = vpop.permute.xlu0 %2016
  %2018 = vrot.lane.b32.xlu0 %v452, 24
  %v2019 = vpop.permute.xlu0 %2018
  %2020 = vrot.lane.b32.xlu0 %v453, 24
  %v2021 = vpop.permute.xlu0 %2020
  %2022 = vrot.lane.b32.xlu0 %v454, 24
  %v2023 = vpop.permute.xlu0 %2022
  %2024 = vrot.lane.b32.xlu0 %v455, 24
  %v2025 = vpop.permute.xlu0 %2024
  %2026 = vrot.lane.b32.xlu0 %v456, 24
  %v2027 = vpop.permute.xlu0 %2026
  %2028 = vrot.lane.b32.xlu0 %v457, 24
  %v2029 = vpop.permute.xlu0 %2028
  %2030 = vrot.lane.b32.xlu0 %v458, 24
  %v2031 = vpop.permute.xlu0 %2030
  %2032 = vrot.lane.b32.xlu0 %v459, 24
  %v2033 = vpop.permute.xlu0 %2032
  %2034 = vrot.lane.b32.xlu0 %v460, 24
  %v2035 = vpop.permute.xlu0 %2034
  %2036 = vrot.lane.b32.xlu0 %v461, 24
  %v2037 = vpop.permute.xlu0 %2036
  %2038 = vrot.lane.b32.xlu0 %v462, 24
  %v2039 = vpop.permute.xlu0 %2038
  %2040 = vrot.lane.b32.xlu0 %v463, 24
  %v2041 = vpop.permute.xlu0 %2040
  %2042 = vrot.lane.b32.xlu0 %v464, 24
  %v2043 = vpop.permute.xlu0 %2042
  %2044 = vrot.lane.b32.xlu0 %v465, 24
  %v2045 = vpop.permute.xlu0 %2044
  %2046 = vrot.lane.b32.xlu0 %v466, 24
  %v2047 = vpop.permute.xlu0 %2046
  %2048 = vrot.lane.b32.xlu0 %v467, 24
  %v2049 = vpop.permute.xlu0 %2048
  %2050 = vrot.lane.b32.xlu0 %v468, 24
  %v2051 = vpop.permute.xlu0 %2050
  %2052 = vrot.lane.b32.xlu0 %v469, 24
  %v2053 = vpop.permute.xlu0 %2052
  %2054 = vrot.lane.b32.xlu0 %v470, 24
  %v2055 = vpop.permute.xlu0 %2054
  %2056 = vrot.lane.b32.xlu0 %v471, 24
  %v2057 = vpop.permute.xlu0 %2056
  %2058 = vrot.lane.b32.xlu0 %v472, 24
  %v2059 = vpop.permute.xlu0 %2058
  %2060 = vrot.lane.b32.xlu0 %v473, 24
  %v2061 = vpop.permute.xlu0 %2060
  %2062 = vrot.lane.b32.xlu0 %v474, 24
  %v2063 = vpop.permute.xlu0 %2062
  %2064 = vrot.lane.b32.xlu0 %v475, 24
  %v2065 = vpop.permute.xlu0 %2064
  %2066 = vrot.lane.b32.xlu0 %v476, 24
  %v2067 = vpop.permute.xlu0 %2066
  %2068 = vrot.lane.b32.xlu0 %v477, 24
  %v2069 = vpop.permute.xlu0 %2068
  %2070 = vrot.lane.b32.xlu0 %v478, 24
  %v2071 = vpop.permute.xlu0 %2070
  %2072 = vrot.lane.b32.xlu0 %v479, 24
  %v2073 = vpop.permute.xlu0 %2072
  %2074 = vrot.lane.b32.xlu0 %v480, 24
  %v2075 = vpop.permute.xlu0 %2074
  %2076 = vrot.lane.b32.xlu0 %v481, 24
  %v2077 = vpop.permute.xlu0 %2076
  %2078 = vrot.lane.b32.xlu0 %v482, 24
  %v2079 = vpop.permute.xlu0 %2078
  %2080 = vrot.lane.b32.xlu0 %v483, 24
  %v2081 = vpop.permute.xlu0 %2080
  %2082 = vrot.lane.b32.xlu0 %v484, 24
  %v2083 = vpop.permute.xlu0 %2082
  %2084 = vrot.lane.b32.xlu0 %v485, 24
  %v2085 = vpop.permute.xlu0 %2084
  %2214 = vrot.lane.b32.xlu0 %v486, 28
  %v2215 = vpop.permute.xlu0 %2214
  %2216 = vrot.lane.b32.xlu0 %v487, 28
  %v2217 = vpop.permute.xlu0 %2216
  %2218 = vrot.lane.b32.xlu0 %v488, 28
  %v2219 = vpop.permute.xlu0 %2218
  %2220 = vrot.lane.b32.xlu0 %v489, 28
  %v2221 = vpop.permute.xlu0 %2220
  %2222 = vrot.lane.b32.xlu0 %v490, 28
  %v2223 = vpop.permute.xlu0 %2222
  %2224 = vrot.lane.b32.xlu0 %v491, 28
  %v2225 = vpop.permute.xlu0 %2224
  %2226 = vrot.lane.b32.xlu0 %v492, 28
  %v2227 = vpop.permute.xlu0 %2226
  %2228 = vrot.lane.b32.xlu0 %v493, 28
  %v2229 = vpop.permute.xlu0 %2228
  %2230 = vrot.lane.b32.xlu0 %v494, 28
  %v2231 = vpop.permute.xlu0 %2230
  %2232 = vrot.lane.b32.xlu0 %v495, 28
  %v2233 = vpop.permute.xlu0 %2232
  %2234 = vrot.lane.b32.xlu0 %v496, 28
  %v2235 = vpop.permute.xlu0 %2234
  %2236 = vrot.lane.b32.xlu0 %v497, 28
  %v2237 = vpop.permute.xlu0 %2236
  %2238 = vrot.lane.b32.xlu0 %v498, 28
  %v2239 = vpop.permute.xlu0 %2238
  %2240 = vrot.lane.b32.xlu0 %v499, 28
  %v2241 = vpop.permute.xlu0 %2240
  %2242 = vrot.lane.b32.xlu0 %v500, 28
  %v2243 = vpop.permute.xlu0 %2242
  %2244 = vrot.lane.b32.xlu0 %v501, 28
  %v2245 = vpop.permute.xlu0 %2244
  %2246 = vrot.lane.b32.xlu0 %v502, 28
  %v2247 = vpop.permute.xlu0 %2246
  %2248 = vrot.lane.b32.xlu0 %v503, 28
  %v2249 = vpop.permute.xlu0 %2248
  %2250 = vrot.lane.b32.xlu0 %v504, 28
  %v2251 = vpop.permute.xlu0 %2250
  %2252 = vrot.lane.b32.xlu0 %v505, 28
  %v2253 = vpop.permute.xlu0 %2252
  %2254 = vrot.lane.b32.xlu0 %v506, 28
  %v2255 = vpop.permute.xlu0 %2254
  %2256 = vrot.lane.b32.xlu0 %v507, 28
  %v2257 = vpop.permute.xlu0 %2256
  %2258 = vrot.lane.b32.xlu0 %v508, 28
  %v2259 = vpop.permute.xlu0 %2258
  %2260 = vrot.lane.b32.xlu0 %v509, 28
  %v2261 = vpop.permute.xlu0 %2260
  %2262 = vrot.lane.b32.xlu0 %v510, 28
  %v2263 = vpop.permute.xlu0 %2262
  %2264 = vrot.lane.b32.xlu0 %v511, 28
  %v2265 = vpop.permute.xlu0 %2264
  %2266 = vrot.lane.b32.xlu0 %v512, 28
  %v2267 = vpop.permute.xlu0 %2266
  %2268 = vrot.lane.b32.xlu0 %v513, 28
  %v2269 = vpop.permute.xlu0 %2268
  %2270 = vrot.lane.b32.xlu0 %v514, 28
  %v2271 = vpop.permute.xlu0 %2270
  %2272 = vrot.lane.b32.xlu0 %v515, 28
  %v2273 = vpop.permute.xlu0 %2272
  %2274 = vrot.lane.b32.xlu0 %v516, 28
  %v2275 = vpop.permute.xlu0 %2274
  %2276 = vrot.lane.b32.xlu0 %v517, 28
  %v2277 = vpop.permute.xlu0 %2276
  %2278 = vrot.lane.b32.xlu0 %v518, 28
  %v2279 = vpop.permute.xlu0 %2278
  %2280 = vrot.lane.b32.xlu0 %v519, 28
  %v2281 = vpop.permute.xlu0 %2280
  %2282 = vrot.lane.b32.xlu0 %v520, 28
  %v2283 = vpop.permute.xlu0 %2282
  %2284 = vrot.lane.b32.xlu0 %v521, 28
  %v2285 = vpop.permute.xlu0 %2284
  %2286 = vrot.lane.b32.xlu0 %v522, 28
  %v2287 = vpop.permute.xlu0 %2286
  %2288 = vrot.lane.b32.xlu0 %v523, 28
  %v2289 = vpop.permute.xlu0 %2288
  %2290 = vrot.lane.b32.xlu0 %v524, 28
  %v2291 = vpop.permute.xlu0 %2290
  %2292 = vrot.lane.b32.xlu0 %v525, 28
  %v2293 = vpop.permute.xlu0 %2292
  %2294 = vrot.lane.b32.xlu0 %v526, 28
  %v2295 = vpop.permute.xlu0 %2294
  %2296 = vrot.lane.b32.xlu0 %v527, 28
  %v2297 = vpop.permute.xlu0 %2296
  %2298 = vrot.lane.b32.xlu0 %v528, 28
  %v2299 = vpop.permute.xlu0 %2298
  %2300 = vrot.lane.b32.xlu0 %v529, 28
  %v2301 = vpop.permute.xlu0 %2300
  %2302 = vrot.lane.b32.xlu0 %v530, 28
  %v2303 = vpop.permute.xlu0 %2302
  %2304 = vrot.lane.b32.xlu0 %v531, 28
  %v2305 = vpop.permute.xlu0 %2304
  %2306 = vrot.lane.b32.xlu0 %v532, 28
  %v2307 = vpop.permute.xlu0 %2306
  %2308 = vrot.lane.b32.xlu0 %v533, 28
  %v2309 = vpop.permute.xlu0 %2308
  %2310 = vrot.lane.b32.xlu0 %v534, 28
  %v2311 = vpop.permute.xlu0 %2310
  %2312 = vrot.lane.b32.xlu0 %v535, 28
  %v2313 = vpop.permute.xlu0 %2312
  %2314 = vrot.lane.b32.xlu0 %v536, 28
  %v2315 = vpop.permute.xlu0 %2314
  %2316 = vrot.lane.b32.xlu0 %v537, 28
  %v2317 = vpop.permute.xlu0 %2316
  %2318 = vrot.lane.b32.xlu0 %v538, 28
  %v2319 = vpop.permute.xlu0 %2318
  %2320 = vrot.lane.b32.xlu0 %v539, 28
  %v2321 = vpop.permute.xlu0 %2320
  %2322 = vrot.lane.b32.xlu0 %v540, 28
  %v2323 = vpop.permute.xlu0 %2322
  %2324 = vrot.lane.b32.xlu0 %v541, 28
  %v2325 = vpop.permute.xlu0 %2324
  %2326 = vrot.lane.b32.xlu0 %v542, 28
  %v2327 = vpop.permute.xlu0 %2326
  %2328 = vrot.lane.b32.xlu0 %v543, 28
  %v2329 = vpop.permute.xlu0 %2328
  %2330 = vrot.lane.b32.xlu0 %v544, 28
  %v2331 = vpop.permute.xlu0 %2330
  %2332 = vrot.lane.b32.xlu0 %v545, 28
  %v2333 = vpop.permute.xlu0 %2332
  %2334 = vrot.lane.b32.xlu0 %v546, 28
  %v2335 = vpop.permute.xlu0 %2334
  %2336 = vrot.lane.b32.xlu0 %v547, 28
  %v2337 = vpop.permute.xlu0 %2336
  %2338 = vrot.lane.b32.xlu0 %v548, 28
  %v2339 = vpop.permute.xlu0 %2338
  %2340 = vrot.lane.b32.xlu0 %v549, 28
  %v2341 = vpop.permute.xlu0 %2340
  %2470 = vrot.lane.b32.xlu0 %v550, 32
  %v2471 = vpop.permute.xlu0 %2470
  %2472 = vrot.lane.b32.xlu0 %v551, 32
  %v2473 = vpop.permute.xlu0 %2472
  %2474 = vrot.lane.b32.xlu0 %v552, 32
  %v2475 = vpop.permute.xlu0 %2474
  %2476 = vrot.lane.b32.xlu0 %v553, 32
  %v2477 = vpop.permute.xlu0 %2476
  %2478 = vrot.lane.b32.xlu0 %v554, 32
  %v2479 = vpop.permute.xlu0 %2478
  %2480 = vrot.lane.b32.xlu0 %v555, 32
  %v2481 = vpop.permute.xlu0 %2480
  %2482 = vrot.lane.b32.xlu0 %v556, 32
  %v2483 = vpop.permute.xlu0 %2482
  %2484 = vrot.lane.b32.xlu0 %v557, 32
  %v2485 = vpop.permute.xlu0 %2484
  %2486 = vrot.lane.b32.xlu0 %v558, 32
  %v2487 = vpop.permute.xlu0 %2486
  %2488 = vrot.lane.b32.xlu0 %v559, 32
  %v2489 = vpop.permute.xlu0 %2488
  %2490 = vrot.lane.b32.xlu0 %v560, 32
  %v2491 = vpop.permute.xlu0 %2490
  %2492 = vrot.lane.b32.xlu0 %v561, 32
  %v2493 = vpop.permute.xlu0 %2492
  %2494 = vrot.lane.b32.xlu0 %v562, 32
  %v2495 = vpop.permute.xlu0 %2494
  %2496 = vrot.lane.b32.xlu0 %v563, 32
  %v2497 = vpop.permute.xlu0 %2496
  %2498 = vrot.lane.b32.xlu0 %v564, 32
  %v2499 = vpop.permute.xlu0 %2498
  %2500 = vrot.lane.b32.xlu0 %v565, 32
  %v2501 = vpop.permute.xlu0 %2500
  %2502 = vrot.lane.b32.xlu0 %v566, 32
  %v2503 = vpop.permute.xlu0 %2502
  %2504 = vrot.lane.b32.xlu0 %v567, 32
  %v2505 = vpop.permute.xlu0 %2504
  %2506 = vrot.lane.b32.xlu0 %v568, 32
  %v2507 = vpop.permute.xlu0 %2506
  %2508 = vrot.lane.b32.xlu0 %v569, 32
  %v2509 = vpop.permute.xlu0 %2508
  %2510 = vrot.lane.b32.xlu0 %v570, 32
  %v2511 = vpop.permute.xlu0 %2510
  %2512 = vrot.lane.b32.xlu0 %v571, 32
  %v2513 = vpop.permute.xlu0 %2512
  %2514 = vrot.lane.b32.xlu0 %v572, 32
  %v2515 = vpop.permute.xlu0 %2514
  %2516 = vrot.lane.b32.xlu0 %v573, 32
  %v2517 = vpop.permute.xlu0 %2516
  %2518 = vrot.lane.b32.xlu0 %v574, 32
  %v2519 = vpop.permute.xlu0 %2518
  %2520 = vrot.lane.b32.xlu0 %v575, 32
  %v2521 = vpop.permute.xlu0 %2520
  %2522 = vrot.lane.b32.xlu0 %v576, 32
  %v2523 = vpop.permute.xlu0 %2522
  %2524 = vrot.lane.b32.xlu0 %v577, 32
  %v2525 = vpop.permute.xlu0 %2524
  %2526 = vrot.lane.b32.xlu0 %v578, 32
  %v2527 = vpop.permute.xlu0 %2526
  %2528 = vrot.lane.b32.xlu0 %v579, 32
  %v2529 = vpop.permute.xlu0 %2528
  %2530 = vrot.lane.b32.xlu0 %v580, 32
  %v2531 = vpop.permute.xlu0 %2530
  %2532 = vrot.lane.b32.xlu0 %v581, 32
  %v2533 = vpop.permute.xlu0 %2532
  %2534 = vrot.lane.b32.xlu0 %v582, 32
  %v2535 = vpop.permute.xlu0 %2534
  %2536 = vrot.lane.b32.xlu0 %v583, 32
  %v2537 = vpop.permute.xlu0 %2536
  %2538 = vrot.lane.b32.xlu0 %v584, 32
  %v2539 = vpop.permute.xlu0 %2538
  %2540 = vrot.lane.b32.xlu0 %v585, 32
  %v2541 = vpop.permute.xlu0 %2540
  %2542 = vrot.lane.b32.xlu0 %v586, 32
  %v2543 = vpop.permute.xlu0 %2542
  %2544 = vrot.lane.b32.xlu0 %v587, 32
  %v2545 = vpop.permute.xlu0 %2544
  %2546 = vrot.lane.b32.xlu0 %v588, 32
  %v2547 = vpop.permute.xlu0 %2546
  %2548 = vrot.lane.b32.xlu0 %v589, 32
  %v2549 = vpop.permute.xlu0 %2548
  %2550 = vrot.lane.b32.xlu0 %v590, 32
  %v2551 = vpop.permute.xlu0 %2550
  %2552 = vrot.lane.b32.xlu0 %v591, 32
  %v2553 = vpop.permute.xlu0 %2552
  %2554 = vrot.lane.b32.xlu0 %v592, 32
  %v2555 = vpop.permute.xlu0 %2554
  %2556 = vrot.lane.b32.xlu0 %v593, 32
  %v2557 = vpop.permute.xlu0 %2556
  %2558 = vrot.lane.b32.xlu0 %v594, 32
  %v2559 = vpop.permute.xlu0 %2558
  %2560 = vrot.lane.b32.xlu0 %v595, 32
  %v2561 = vpop.permute.xlu0 %2560
  %2562 = vrot.lane.b32.xlu0 %v596, 32
  %v2563 = vpop.permute.xlu0 %2562
  %2564 = vrot.lane.b32.xlu0 %v597, 32
  %v2565 = vpop.permute.xlu0 %2564
  %2566 = vrot.lane.b32.xlu0 %v598, 32
  %v2567 = vpop.permute.xlu0 %2566
  %2568 = vrot.lane.b32.xlu0 %v599, 32
  %v2569 = vpop.permute.xlu0 %2568
  %2570 = vrot.lane.b32.xlu0 %v600, 32
  %v2571 = vpop.permute.xlu0 %2570
  %2572 = vrot.lane.b32.xlu0 %v601, 32
  %v2573 = vpop.permute.xlu0 %2572
  %2574 = vrot.lane.b32.xlu0 %v602, 32
  %v2575 = vpop.permute.xlu0 %2574
  %2576 = vrot.lane.b32.xlu0 %v603, 32
  %v2577 = vpop.permute.xlu0 %2576
  %2578 = vrot.lane.b32.xlu0 %v604, 32
  %v2579 = vpop.permute.xlu0 %2578
  %2580 = vrot.lane.b32.xlu0 %v605, 32
  %v2581 = vpop.permute.xlu0 %2580
  %2582 = vrot.lane.b32.xlu0 %v606, 32
  %v2583 = vpop.permute.xlu0 %2582
  %2584 = vrot.lane.b32.xlu0 %v607, 32
  %v2585 = vpop.permute.xlu0 %2584
  %2586 = vrot.lane.b32.xlu0 %v608, 32
  %v2587 = vpop.permute.xlu0 %2586
  %2588 = vrot.lane.b32.xlu0 %v609, 32
  %v2589 = vpop.permute.xlu0 %2588
  %2590 = vrot.lane.b32.xlu0 %v610, 32
  %v2591 = vpop.permute.xlu0 %2590
  %2592 = vrot.lane.b32.xlu0 %v611, 32
  %v2593 = vpop.permute.xlu0 %2592
  %2594 = vrot.lane.b32.xlu0 %v612, 32
  %v2595 = vpop.permute.xlu0 %2594
  %2596 = vrot.lane.b32.xlu0 %v613, 32
  %v2597 = vpop.permute.xlu0 %2596
  %vm2662 = vcmask 31744
  %v2663 = vsel %vm2662, %v36, %v679
  %v2664 = vsel %vm2662, %v37, %v681
  %v2665 = vsel %vm2662, %v38, %v683
  %v2666 = vsel %vm2662, %v39, %v685
  %v2667 = vsel %vm2662, %v40, %v687
  %v2668 = vsel %vm2662, %v41, %v689
  %v2669 = vsel %vm2662, %v42, %v691
  %v2670 = vsel %vm2662, %v43, %v693
  %v2671 = vsel %vm2662, %v44, %v695
  %v2672 = vsel %vm2662, %v45, %v697
  %v2673 = vsel %vm2662, %v46, %v699
  %v2674 = vsel %vm2662, %v47, %v701
  %v2675 = vsel %vm2662, %v48, %v703
  %v2676 = vsel %vm2662, %v49, %v705
  %v2677 = vsel %vm2662, %v50, %v707
  %v2678 = vsel %vm2662, %v51, %v709
  %v2679 = vsel %vm2662, %v52, %v711
  %v2680 = vsel %vm2662, %v53, %v713
  %v2681 = vsel %vm2662, %v54, %v715
  %v2682 = vsel %vm2662, %v55, %v717
  %v2683 = vsel %vm2662, %v56, %v719
  %v2684 = vsel %vm2662, %v57, %v721
  %v2685 = vsel %vm2662, %v58, %v723
  %v2686 = vsel %vm2662, %v59, %v725
  %v2687 = vsel %vm2662, %v60, %v727
  %v2688 = vsel %vm2662, %v61, %v729
  %v2689 = vsel %vm2662, %v62, %v731
  %v2690 = vsel %vm2662, %v63, %v733
  %v2691 = vsel %vm2662, %v64, %v735
  %v2692 = vsel %vm2662, %v65, %v737
  %v2693 = vsel %vm2662, %v66, %v739
  %v2694 = vsel %vm2662, %v67, %v741
  %v2695 = vsel %vm2662, %v68, %v743
  %v2696 = vsel %vm2662, %v69, %v745
  %v2697 = vsel %vm2662, %v70, %v747
  %v2698 = vsel %vm2662, %v71, %v749
  %v2699 = vsel %vm2662, %v72, %v751
  %v2700 = vsel %vm2662, %v73, %v753
  %v2701 = vsel %vm2662, %v74, %v755
  %v2702 = vsel %vm2662, %v75, %v757
  %v2703 = vsel %vm2662, %v76, %v759
  %v2704 = vsel %vm2662, %v77, %v761
  %v2705 = vsel %vm2662, %v78, %v763
  %v2706 = vsel %vm2662, %v79, %v765
  %v2707 = vsel %vm2662, %v80, %v767
  %v2708 = vsel %vm2662, %v81, %v769
  %v2709 = vsel %vm2662, %v82, %v771
  %v2710 = vsel %vm2662, %v83, %v773
  %v2711 = vsel %vm2662, %v84, %v775
  %v2712 = vsel %vm2662, %v85, %v777
  %v2713 = vsel %vm2662, %v86, %v779
  %v2714 = vsel %vm2662, %v87, %v781
  %v2715 = vsel %vm2662, %v88, %v783
  %v2716 = vsel %vm2662, %v89, %v785
  %v2717 = vsel %vm2662, %v90, %v787
  %v2718 = vsel %vm2662, %v91, %v789
  %v2719 = vsel %vm2662, %v92, %v791
  %v2720 = vsel %vm2662, %v93, %v793
  %v2721 = vsel %vm2662, %v94, %v795
  %v2722 = vsel %vm2662, %v95, %v797
  %v2723 = vsel %vm2662, %v96, %v799
  %v2724 = vsel %vm2662, %v97, %v801
  %v2725 = vsel %vm2662, %v98, %v803
  %v2726 = vsel %vm2662, %v99, %v805
  %vm2727 = vcmask 64512
  %v2728 = vsel %vm2727, %v2663, %v935
  %v2729 = vsel %vm2727, %v2664, %v937
  %v2730 = vsel %vm2727, %v2665, %v939
  %v2731 = vsel %vm2727, %v2666, %v941
  %v2732 = vsel %vm2727, %v2667, %v943
  %v2733 = vsel %vm2727, %v2668, %v945
  %v2734 = vsel %vm2727, %v2669, %v947
  %v2735 = vsel %vm2727, %v2670, %v949
  %v2736 = vsel %vm2727, %v2671, %v951
  %v2737 = vsel %vm2727, %v2672, %v953
  %v2738 = vsel %vm2727, %v2673, %v955
  %v2739 = vsel %vm2727, %v2674, %v957
  %v2740 = vsel %vm2727, %v2675, %v959
  %v2741 = vsel %vm2727, %v2676, %v961
  %v2742 = vsel %vm2727, %v2677, %v963
  %v2743 = vsel %vm2727, %v2678, %v965
  %v2744 = vsel %vm2727, %v2679, %v967
  %v2745 = vsel %vm2727, %v2680, %v969
  %v2746 = vsel %vm2727, %v2681, %v971
  %v2747 = vsel %vm2727, %v2682, %v973
  %v2748 = vsel %vm2727, %v2683, %v975
  %v2749 = vsel %vm2727, %v2684, %v977
  %v2750 = vsel %vm2727, %v2685, %v979
  %v2751 = vsel %vm2727, %v2686, %v981
  %v2752 = vsel %vm2727, %v2687, %v983
  %v2753 = vsel %vm2727, %v2688, %v985
  %v2754 = vsel %vm2727, %v2689, %v987
  %v2755 = vsel %vm2727, %v2690, %v989
  %v2756 = vsel %vm2727, %v2691, %v991
  %v2757 = vsel %vm2727, %v2692, %v993
  %v2758 = vsel %vm2727, %v2693, %v995
  %v2759 = vsel %vm2727, %v2694, %v997
  %v2760 = vsel %vm2727, %v2695, %v999
  %v2761 = vsel %vm2727, %v2696, %v1001
  %v2762 = vsel %vm2727, %v2697, %v1003
  %v2763 = vsel %vm2727, %v2698, %v1005
  %v2764 = vsel %vm2727, %v2699, %v1007
  %v2765 = vsel %vm2727, %v2700, %v1009
  %v2766 = vsel %vm2727, %v2701, %v1011
  %v2767 = vsel %vm2727, %v2702, %v1013
  %v2768 = vsel %vm2727, %v2703, %v1015
  %v2769 = vsel %vm2727, %v2704, %v1017
  %v2770 = vsel %vm2727, %v2705, %v1019
  %v2771 = vsel %vm2727, %v2706, %v1021
  %v2772 = vsel %vm2727, %v2707, %v1023
  %v2773 = vsel %vm2727, %v2708, %v1025
  %v2774 = vsel %vm2727, %v2709, %v1027
  %v2775 = vsel %vm2727, %v2710, %v1029
  %v2776 = vsel %vm2727, %v2711, %v1031
  %v2777 = vsel %vm2727, %v2712, %v1033
  %v2778 = vsel %vm2727, %v2713, %v1035
  %v2779 = vsel %vm2727, %v2714, %v1037
  %v2780 = vsel %vm2727, %v2715, %v1039
  %v2781 = vsel %vm2727, %v2716, %v1041
  %v2782 = vsel %vm2727, %v2717, %v1043
  %v2783 = vsel %vm2727, %v2718, %v1045
  %v2784 = vsel %vm2727, %v2719, %v1047
  %v2785 = vsel %vm2727, %v2720, %v1049
  %v2786 = vsel %vm2727, %v2721, %v1051
  %v2787 = vsel %vm2727, %v2722, %v1053
  %v2788 = vsel %vm2727, %v2723, %v1055
  %v2789 = vsel %vm2727, %v2724, %v1057
  %v2790 = vsel %vm2727, %v2725, %v1059
  %v2791 = vsel %vm2727, %v2726, %v1061
  %vm2792 = vcmask 97280
  %v2793 = vsel %vm2792, %v2728, %v1191
  %v2794 = vsel %vm2792, %v2729, %v1193
  %v2795 = vsel %vm2792, %v2730, %v1195
  %v2796 = vsel %vm2792, %v2731, %v1197
  %v2797 = vsel %vm2792, %v2732, %v1199
  %v2798 = vsel %vm2792, %v2733, %v1201
  %v2799 = vsel %vm2792, %v2734, %v1203
  %v2800 = vsel %vm2792, %v2735, %v1205
  %v2801 = vsel %vm2792, %v2736, %v1207
  %v2802 = vsel %vm2792, %v2737, %v1209
  %v2803 = vsel %vm2792, %v2738, %v1211
  %v2804 = vsel %vm2792, %v2739, %v1213
  %v2805 = vsel %vm2792, %v2740, %v1215
  %v2806 = vsel %vm2792, %v2741, %v1217
  %v2807 = vsel %vm2792, %v2742, %v1219
  %v2808 = vsel %vm2792, %v2743, %v1221
  %v2809 = vsel %vm2792, %v2744, %v1223
  %v2810 = vsel %vm2792, %v2745, %v1225
  %v2811 = vsel %vm2792, %v2746, %v1227
  %v2812 = vsel %vm2792, %v2747, %v1229
  %v2813 = vsel %vm2792, %v2748, %v1231
  %v2814 = vsel %vm2792, %v2749, %v1233
  %v2815 = vsel %vm2792, %v2750, %v1235
  %v2816 = vsel %vm2792, %v2751, %v1237
  %v2817 = vsel %vm2792, %v2752, %v1239
  %v2818 = vsel %vm2792, %v2753, %v1241
  %v2819 = vsel %vm2792, %v2754, %v1243
  %v2820 = vsel %vm2792, %v2755, %v1245
  %v2821 = vsel %vm2792, %v2756, %v1247
  %v2822 = vsel %vm2792, %v2757, %v1249
  %v2823 = vsel %vm2792, %v2758, %v1251
  %v2824 = vsel %vm2792, %v2759, %v1253
  %v2825 = vsel %vm2792, %v2760, %v1255
  %v2826 = vsel %vm2792, %v2761, %v1257
  %v2827 = vsel %vm2792, %v2762, %v1259
  %v2828 = vsel %vm2792, %v2763, %v1261
  %v2829 = vsel %vm2792, %v2764, %v1263
  %v2830 = vsel %vm2792, %v2765, %v1265
  %v2831 = vsel %vm2792, %v2766, %v1267
  %v2832 = vsel %vm2792, %v2767, %v1269
  %v2833 = vsel %vm2792, %v2768, %v1271
  %v2834 = vsel %vm2792, %v2769, %v1273
  %v2835 = vsel %vm2792, %v2770, %v1275
  %v2836 = vsel %vm2792, %v2771, %v1277
  %v2837 = vsel %vm2792, %v2772, %v1279
  %v2838 = vsel %vm2792, %v2773, %v1281
  %v2839 = vsel %vm2792, %v2774, %v1283
  %v2840 = vsel %vm2792, %v2775, %v1285
  %v2841 = vsel %vm2792, %v2776, %v1287
  %v2842 = vsel %vm2792, %v2777, %v1289
  %v2843 = vsel %vm2792, %v2778, %v1291
  %v2844 = vsel %vm2792, %v2779, %v1293
  %v2845 = vsel %vm2792, %v2780, %v1295
  %v2846 = vsel %vm2792, %v2781, %v1297
  %v2847 = vsel %vm2792, %v2782, %v1299
  %v2848 = vsel %vm2792, %v2783, %v1301
  %v2849 = vsel %vm2792, %v2784, %v1303
  %v2850 = vsel %vm2792, %v2785, %v1305
  %v2851 = vsel %vm2792, %v2786, %v1307
  %v2852 = vsel %vm2792, %v2787, %v1309
  %v2853 = vsel %vm2792, %v2788, %v1311
  %v2854 = vsel %vm2792, %v2789, %v1313
  %v2855 = vsel %vm2792, %v2790, %v1315
  %v2856 = vsel %vm2792, %v2791, %v1317
  %vm2857 = vcmask 130048
  %v2858 = vsel %vm2857, %v2793, %v1447
  %v2859 = vsel %vm2857, %v2794, %v1449
  %v2860 = vsel %vm2857, %v2795, %v1451
  %v2861 = vsel %vm2857, %v2796, %v1453
  %v2862 = vsel %vm2857, %v2797, %v1455
  %v2863 = vsel %vm2857, %v2798, %v1457
  %v2864 = vsel %vm2857, %v2799, %v1459
  %v2865 = vsel %vm2857, %v2800, %v1461
  %v2866 = vsel %vm2857, %v2801, %v1463
  %v2867 = vsel %vm2857, %v2802, %v1465
  %v2868 = vsel %vm2857, %v2803, %v1467
  %v2869 = vsel %vm2857, %v2804, %v1469
  %v2870 = vsel %vm2857, %v2805, %v1471
  %v2871 = vsel %vm2857, %v2806, %v1473
  %v2872 = vsel %vm2857, %v2807, %v1475
  %v2873 = vsel %vm2857, %v2808, %v1477
  %v2874 = vsel %vm2857, %v2809, %v1479
  %v2875 = vsel %vm2857, %v2810, %v1481
  %v2876 = vsel %vm2857, %v2811, %v1483
  %v2877 = vsel %vm2857, %v2812, %v1485
  %v2878 = vsel %vm2857, %v2813, %v1487
  %v2879 = vsel %vm2857, %v2814, %v1489
  %v2880 = vsel %vm2857, %v2815, %v1491
  %v2881 = vsel %vm2857, %v2816, %v1493
  %v2882 = vsel %vm2857, %v2817, %v1495
  %v2883 = vsel %vm2857, %v2818, %v1497
  %v2884 = vsel %vm2857, %v2819, %v1499
  %v2885 = vsel %vm2857, %v2820, %v1501
  %v2886 = vsel %vm2857, %v2821, %v1503
  %v2887 = vsel %vm2857, %v2822, %v1505
  %v2888 = vsel %vm2857, %v2823, %v1507
  %v2889 = vsel %vm2857, %v2824, %v1509
  %v2890 = vsel %vm2857, %v2825, %v1511
  %v2891 = vsel %vm2857, %v2826, %v1513
  %v2892 = vsel %vm2857, %v2827, %v1515
  %v2893 = vsel %vm2857, %v2828, %v1517
  %v2894 = vsel %vm2857, %v2829, %v1519
  %v2895 = vsel %vm2857, %v2830, %v1521
  %v2896 = vsel %vm2857, %v2831, %v1523
  %v2897 = vsel %vm2857, %v2832, %v1525
  %v2898 = vsel %vm2857, %v2833, %v1527
  %v2899 = vsel %vm2857, %v2834, %v1529
  %v2900 = vsel %vm2857, %v2835, %v1531
  %v2901 = vsel %vm2857, %v2836, %v1533
  %v2902 = vsel %vm2857, %v2837, %v1535
  %v2903 = vsel %vm2857, %v2838, %v1537
  %v2904 = vsel %vm2857, %v2839, %v1539
  %v2905 = vsel %vm2857, %v2840, %v1541
  %v2906 = vsel %vm2857, %v2841, %v1543
  %v2907 = vsel %vm2857, %v2842, %v1545
  %v2908 = vsel %vm2857, %v2843, %v1547
  %v2909 = vsel %vm2857, %v2844, %v1549
  %v2910 = vsel %vm2857, %v2845, %v1551
  %v2911 = vsel %vm2857, %v2846, %v1553
  %v2912 = vsel %vm2857, %v2847, %v1555
  %v2913 = vsel %vm2857, %v2848, %v1557
  %v2914 = vsel %vm2857, %v2849, %v1559
  %v2915 = vsel %vm2857, %v2850, %v1561
  %v2916 = vsel %vm2857, %v2851, %v1563
  %v2917 = vsel %vm2857, %v2852, %v1565
  %v2918 = vsel %vm2857, %v2853, %v1567
  %v2919 = vsel %vm2857, %v2854, %v1569
  %v2920 = vsel %vm2857, %v2855, %v1571
  %v2921 = vsel %vm2857, %v2856, %v1573
  %vm2922 = vcmask 162816
  %v2923 = vsel %vm2922, %v2858, %v1703
  %v2924 = vsel %vm2922, %v2859, %v1705
  %v2925 = vsel %vm2922, %v2860, %v1707
  %v2926 = vsel %vm2922, %v2861, %v1709
  %v2927 = vsel %vm2922, %v2862, %v1711
  %v2928 = vsel %vm2922, %v2863, %v1713
  %v2929 = vsel %vm2922, %v2864, %v1715
  %v2930 = vsel %vm2922, %v2865, %v1717
  %v2931 = vsel %vm2922, %v2866, %v1719
  %v2932 = vsel %vm2922, %v2867, %v1721
  %v2933 = vsel %vm2922, %v2868, %v1723
  %v2934 = vsel %vm2922, %v2869, %v1725
  %v2935 = vsel %vm2922, %v2870, %v1727
  %v2936 = vsel %vm2922, %v2871, %v1729
  %v2937 = vsel %vm2922, %v2872, %v1731
  %v2938 = vsel %vm2922, %v2873, %v1733
  %v2939 = vsel %vm2922, %v2874, %v1735
  %v2940 = vsel %vm2922, %v2875, %v1737
  %v2941 = vsel %vm2922, %v2876, %v1739
  %v2942 = vsel %vm2922, %v2877, %v1741
  %v2943 = vsel %vm2922, %v2878, %v1743
  %v2944 = vsel %vm2922, %v2879, %v1745
  %v2945 = vsel %vm2922, %v2880, %v1747
  %v2946 = vsel %vm2922, %v2881, %v1749
  %v2947 = vsel %vm2922, %v2882, %v1751
  %v2948 = vsel %vm2922, %v2883, %v1753
  %v2949 = vsel %vm2922, %v2884, %v1755
  %v2950 = vsel %vm2922, %v2885, %v1757
  %v2951 = vsel %vm2922, %v2886, %v1759
  %v2952 = vsel %vm2922, %v2887, %v1761
  %v2953 = vsel %vm2922, %v2888, %v1763
  %v2954 = vsel %vm2922, %v2889, %v1765
  %v2955 = vsel %vm2922, %v2890, %v1767
  %v2956 = vsel %vm2922, %v2891, %v1769
  %v2957 = vsel %vm2922, %v2892, %v1771
  %v2958 = vsel %vm2922, %v2893, %v1773
  %v2959 = vsel %vm2922, %v2894, %v1775
  %v2960 = vsel %vm2922, %v2895, %v1777
  %v2961 = vsel %vm2922, %v2896, %v1779
  %v2962 = vsel %vm2922, %v2897, %v1781
  %v2963 = vsel %vm2922, %v2898, %v1783
  %v2964 = vsel %vm2922, %v2899, %v1785
  %v2965 = vsel %vm2922, %v2900, %v1787
  %v2966 = vsel %vm2922, %v2901, %v1789
  %v2967 = vsel %vm2922, %v2902, %v1791
  %v2968 = vsel %vm2922, %v2903, %v1793
  %v2969 = vsel %vm2922, %v2904, %v1795
  %v2970 = vsel %vm2922, %v2905, %v1797
  %v2971 = vsel %vm2922, %v2906, %v1799
  %v2972 = vsel %vm2922, %v2907, %v1801
  %v2973 = vsel %vm2922, %v2908, %v1803
  %v2974 = vsel %vm2922, %v2909, %v1805
  %v2975 = vsel %vm2922, %v2910, %v1807
  %v2976 = vsel %vm2922, %v2911, %v1809
  %v2977 = vsel %vm2922, %v2912, %v1811
  %v2978 = vsel %vm2922, %v2913, %v1813
  %v2979 = vsel %vm2922, %v2914, %v1815
  %v2980 = vsel %vm2922, %v2915, %v1817
  %v2981 = vsel %vm2922, %v2916, %v1819
  %v2982 = vsel %vm2922, %v2917, %v1821
  %v2983 = vsel %vm2922, %v2918, %v1823
  %v2984 = vsel %vm2922, %v2919, %v1825
  %v2985 = vsel %vm2922, %v2920, %v1827
  %v2986 = vsel %vm2922, %v2921, %v1829
  %vm2987 = vcmask 195584
  %v2988 = vsel %vm2987, %v2923, %v1959
  %v2989 = vsel %vm2987, %v2924, %v1961
  %v2990 = vsel %vm2987, %v2925, %v1963
  %v2991 = vsel %vm2987, %v2926, %v1965
  %v2992 = vsel %vm2987, %v2927, %v1967
  %v2993 = vsel %vm2987, %v2928, %v1969
  %v2994 = vsel %vm2987, %v2929, %v1971
  %v2995 = vsel %vm2987, %v2930, %v1973
  %v2996 = vsel %vm2987, %v2931, %v1975
  %v2997 = vsel %vm2987, %v2932, %v1977
  %v2998 = vsel %vm2987, %v2933, %v1979
  %v2999 = vsel %vm2987, %v2934, %v1981
  %v3000 = vsel %vm2987, %v2935, %v1983
  %v3001 = vsel %vm2987, %v2936, %v1985
  %v3002 = vsel %vm2987, %v2937, %v1987
  %v3003 = vsel %vm2987, %v2938, %v1989
  %v3004 = vsel %vm2987, %v2939, %v1991
  %v3005 = vsel %vm2987, %v2940, %v1993
  %v3006 = vsel %vm2987, %v2941, %v1995
  %v3007 = vsel %vm2987, %v2942, %v1997
  %v3008 = vsel %vm2987, %v2943, %v1999
  %v3009 = vsel %vm2987, %v2944, %v2001
  %v3010 = vsel %vm2987, %v2945, %v2003
  %v3011 = vsel %vm2987, %v2946, %v2005
  %v3012 = vsel %vm2987, %v2947, %v2007
  %v3013 = vsel %vm2987, %v2948, %v2009
  %v3014 = vsel %vm2987, %v2949, %v2011
  %v3015 = vsel %vm2987, %v2950, %v2013
  %v3016 = vsel %vm2987, %v2951, %v2015
  %v3017 = vsel %vm2987, %v2952, %v2017
  %v3018 = vsel %vm2987, %v2953, %v2019
  %v3019 = vsel %vm2987, %v2954, %v2021
  %v3020 = vsel %vm2987, %v2955, %v2023
  %v3021 = vsel %vm2987, %v2956, %v2025
  %v3022 = vsel %vm2987, %v2957, %v2027
  %v3023 = vsel %vm2987, %v2958, %v2029
  %v3024 = vsel %vm2987, %v2959, %v2031
  %v3025 = vsel %vm2987, %v2960, %v2033
  %v3026 = vsel %vm2987, %v2961, %v2035
  %v3027 = vsel %vm2987, %v2962, %v2037
  %v3028 = vsel %vm2987, %v2963, %v2039
  %v3029 = vsel %vm2987, %v2964, %v2041
  %v3030 = vsel %vm2987, %v2965, %v2043
  %v3031 = vsel %vm2987, %v2966, %v2045
  %v3032 = vsel %vm2987, %v2967, %v2047
  %v3033 = vsel %vm2987, %v2968, %v2049
  %v3034 = vsel %vm2987, %v2969, %v2051
  %v3035 = vsel %vm2987, %v2970, %v2053
  %v3036 = vsel %vm2987, %v2971, %v2055
  %v3037 = vsel %vm2987, %v2972, %v2057
  %v3038 = vsel %vm2987, %v2973, %v2059
  %v3039 = vsel %vm2987, %v2974, %v2061
  %v3040 = vsel %vm2987, %v2975, %v2063
  %v3041 = vsel %vm2987, %v2976, %v2065
  %v3042 = vsel %vm2987, %v2977, %v2067
  %v3043 = vsel %vm2987, %v2978, %v2069
  %v3044 = vsel %vm2987, %v2979, %v2071
  %v3045 = vsel %vm2987, %v2980, %v2073
  %v3046 = vsel %vm2987, %v2981, %v2075
  %v3047 = vsel %vm2987, %v2982, %v2077
  %v3048 = vsel %vm2987, %v2983, %v2079
  %v3049 = vsel %vm2987, %v2984, %v2081
  %v3050 = vsel %vm2987, %v2985, %v2083
  %v3051 = vsel %vm2987, %v2986, %v2085
  %vm3052 = vcmask 228352
  %v3053 = vsel %vm3052, %v2988, %v2215
  %v3054 = vsel %vm3052, %v2989, %v2217
  %v3055 = vsel %vm3052, %v2990, %v2219
  %v3056 = vsel %vm3052, %v2991, %v2221
  %v3057 = vsel %vm3052, %v2992, %v2223
  %v3058 = vsel %vm3052, %v2993, %v2225
  %v3059 = vsel %vm3052, %v2994, %v2227
  %v3060 = vsel %vm3052, %v2995, %v2229
  %v3061 = vsel %vm3052, %v2996, %v2231
  %v3062 = vsel %vm3052, %v2997, %v2233
  %v3063 = vsel %vm3052, %v2998, %v2235
  %v3064 = vsel %vm3052, %v2999, %v2237
  %v3065 = vsel %vm3052, %v3000, %v2239
  %v3066 = vsel %vm3052, %v3001, %v2241
  %v3067 = vsel %vm3052, %v3002, %v2243
  %v3068 = vsel %vm3052, %v3003, %v2245
  %v3069 = vsel %vm3052, %v3004, %v2247
  %v3070 = vsel %vm3052, %v3005, %v2249
  %v3071 = vsel %vm3052, %v3006, %v2251
  %v3072 = vsel %vm3052, %v3007, %v2253
  %v3073 = vsel %vm3052, %v3008, %v2255
  %v3074 = vsel %vm3052, %v3009, %v2257
  %v3075 = vsel %vm3052, %v3010, %v2259
  %v3076 = vsel %vm3052, %v3011, %v2261
  %v3077 = vsel %vm3052, %v3012, %v2263
  %v3078 = vsel %vm3052, %v3013, %v2265
  %v3079 = vsel %vm3052, %v3014, %v2267
  %v3080 = vsel %vm3052, %v3015, %v2269
  %v3081 = vsel %vm3052, %v3016, %v2271
  %v3082 = vsel %vm3052, %v3017, %v2273
  %v3083 = vsel %vm3052, %v3018, %v2275
  %v3084 = vsel %vm3052, %v3019, %v2277
  %v3085 = vsel %vm3052, %v3020, %v2279
  %v3086 = vsel %vm3052, %v3021, %v2281
  %v3087 = vsel %vm3052, %v3022, %v2283
  %v3088 = vsel %vm3052, %v3023, %v2285
  %v3089 = vsel %vm3052, %v3024, %v2287
  %v3090 = vsel %vm3052, %v3025, %v2289
  %v3091 = vsel %vm3052, %v3026, %v2291
  %v3092 = vsel %vm3052, %v3027, %v2293
  %v3093 = vsel %vm3052, %v3028, %v2295
  %v3094 = vsel %vm3052, %v3029, %v2297
  %v3095 = vsel %vm3052, %v3030, %v2299
  %v3096 = vsel %vm3052, %v3031, %v2301
  %v3097 = vsel %vm3052, %v3032, %v2303
  %v3098 = vsel %vm3052, %v3033, %v2305
  %v3099 = vsel %vm3052, %v3034, %v2307
  %v3100 = vsel %vm3052, %v3035, %v2309
  %v3101 = vsel %vm3052, %v3036, %v2311
  %v3102 = vsel %vm3052, %v3037, %v2313
  %v3103 = vsel %vm3052, %v3038, %v2315
  %v3104 = vsel %vm3052, %v3039, %v2317
  %v3105 = vsel %vm3052, %v3040, %v2319
  %v3106 = vsel %vm3052, %v3041, %v2321
  %v3107 = vsel %vm3052, %v3042, %v2323
  %v3108 = vsel %vm3052, %v3043, %v2325
  %v3109 = vsel %vm3052, %v3044, %v2327
  %v3110 = vsel %vm3052, %v3045, %v2329
  %v3111 = vsel %vm3052, %v3046, %v2331
  %v3112 = vsel %vm3052, %v3047, %v2333
  %v3113 = vsel %vm3052, %v3048, %v2335
  %v3114 = vsel %vm3052, %v3049, %v2337
  %v3115 = vsel %vm3052, %v3050, %v2339
  %v3116 = vsel %vm3052, %v3051, %v2341
  %vm3117 = vcmask 261120
  %v3118 = vsel %vm3117, %v3053, %v2471
  %v3119 = vsel %vm3117, %v3054, %v2473
  %v3120 = vsel %vm3117, %v3055, %v2475
  %v3121 = vsel %vm3117, %v3056, %v2477
  %v3122 = vsel %vm3117, %v3057, %v2479
  %v3123 = vsel %vm3117, %v3058, %v2481
  %v3124 = vsel %vm3117, %v3059, %v2483
  %v3125 = vsel %vm3117, %v3060, %v2485
  %v3126 = vsel %vm3117, %v3061, %v2487
  %v3127 = vsel %vm3117, %v3062, %v2489
  %v3128 = vsel %vm3117, %v3063, %v2491
  %v3129 = vsel %vm3117, %v3064, %v2493
  %v3130 = vsel %vm3117, %v3065, %v2495
  %v3131 = vsel %vm3117, %v3066, %v2497
  %v3132 = vsel %vm3117, %v3067, %v2499
  %v3133 = vsel %vm3117, %v3068, %v2501
  %v3134 = vsel %vm3117, %v3069, %v2503
  %v3135 = vsel %vm3117, %v3070, %v2505
  %v3136 = vsel %vm3117, %v3071, %v2507
  %v3137 = vsel %vm3117, %v3072, %v2509
  %v3138 = vsel %vm3117, %v3073, %v2511
  %v3139 = vsel %vm3117, %v3074, %v2513
  %v3140 = vsel %vm3117, %v3075, %v2515
  %v3141 = vsel %vm3117, %v3076, %v2517
  %v3142 = vsel %vm3117, %v3077, %v2519
  %v3143 = vsel %vm3117, %v3078, %v2521
  %v3144 = vsel %vm3117, %v3079, %v2523
  %v3145 = vsel %vm3117, %v3080, %v2525
  %v3146 = vsel %vm3117, %v3081, %v2527
  %v3147 = vsel %vm3117, %v3082, %v2529
  %v3148 = vsel %vm3117, %v3083, %v2531
  %v3149 = vsel %vm3117, %v3084, %v2533
  %v3150 = vsel %vm3117, %v3085, %v2535
  %v3151 = vsel %vm3117, %v3086, %v2537
  %v3152 = vsel %vm3117, %v3087, %v2539
  %v3153 = vsel %vm3117, %v3088, %v2541
  %v3154 = vsel %vm3117, %v3089, %v2543
  %v3155 = vsel %vm3117, %v3090, %v2545
  %v3156 = vsel %vm3117, %v3091, %v2547
  %v3157 = vsel %vm3117, %v3092, %v2549
  %v3158 = vsel %vm3117, %v3093, %v2551
  %v3159 = vsel %vm3117, %v3094, %v2553
  %v3160 = vsel %vm3117, %v3095, %v2555
  %v3161 = vsel %vm3117, %v3096, %v2557
  %v3162 = vsel %vm3117, %v3097, %v2559
  %v3163 = vsel %vm3117, %v3098, %v2561
  %v3164 = vsel %vm3117, %v3099, %v2563
  %v3165 = vsel %vm3117, %v3100, %v2565
  %v3166 = vsel %vm3117, %v3101, %v2567
  %v3167 = vsel %vm3117, %v3102, %v2569
  %v3168 = vsel %vm3117, %v3103, %v2571
  %v3169 = vsel %vm3117, %v3104, %v2573
  %v3170 = vsel %vm3117, %v3105, %v2575
  %v3171 = vsel %vm3117, %v3106, %v2577
  %v3172 = vsel %vm3117, %v3107, %v2579
  %v3173 = vsel %vm3117, %v3108, %v2581
  %v3174 = vsel %vm3117, %v3109, %v2583
  %v3175 = vsel %vm3117, %v3110, %v2585
  %v3176 = vsel %vm3117, %v3111, %v2587
  %v3177 = vsel %vm3117, %v3112, %v2589
  %v3178 = vsel %vm3117, %v3113, %v2591
  %v3179 = vsel %vm3117, %v3114, %v2593
  %v3180 = vsel %vm3117, %v3115, %v2595
  %v3181 = vsel %vm3117, %v3116, %v2597
  %v3182 = vpack.c.bf16 %v3119, %v3118
  %v3183 = vpack.c.bf16 %v3121, %v3120
  %v3184 = vpack.c.bf16 %v3123, %v3122
  %v3185 = vpack.c.bf16 %v3125, %v3124
  %v3186 = vpack.c.bf16 %v3127, %v3126
  %v3187 = vpack.c.bf16 %v3129, %v3128
  %v3188 = vpack.c.bf16 %v3131, %v3130
  %v3189 = vpack.c.bf16 %v3133, %v3132
  %v3190 = vpack.c.bf16 %v3135, %v3134
  %v3191 = vpack.c.bf16 %v3137, %v3136
  %v3192 = vpack.c.bf16 %v3139, %v3138
  %v3193 = vpack.c.bf16 %v3141, %v3140
  %v3194 = vpack.c.bf16 %v3143, %v3142
  %v3195 = vpack.c.bf16 %v3145, %v3144
  %v3196 = vpack.c.bf16 %v3147, %v3146
  %v3197 = vpack.c.bf16 %v3149, %v3148
  %v3198 = vpack.c.bf16 %v3151, %v3150
  %v3199 = vpack.c.bf16 %v3153, %v3152
  %v3200 = vpack.c.bf16 %v3155, %v3154
  %v3201 = vpack.c.bf16 %v3157, %v3156
  %v3202 = vpack.c.bf16 %v3159, %v3158
  %v3203 = vpack.c.bf16 %v3161, %v3160
  %v3204 = vpack.c.bf16 %v3163, %v3162
  %v3205 = vpack.c.bf16 %v3165, %v3164
  %v3206 = vpack.c.bf16 %v3167, %v3166
  %v3207 = vpack.c.bf16 %v3169, %v3168
  %v3208 = vpack.c.bf16 %v3171, %v3170
  %v3209 = vpack.c.bf16 %v3173, %v3172
  %v3210 = vpack.c.bf16 %v3175, %v3174
  %v3211 = vpack.c.bf16 %v3177, %v3176
  %v3212 = vpack.c.bf16 %v3179, %v3178
  %v3213 = vpack.c.bf16 %v3181, %v3180
  %v3214 = vld [vmem:[%s1] sm:$0xf]
  %v3215 = vld [vmem:[%s1 + $0x4] sm:$0xf]
  %v3216 = vld [vmem:[%s1 + $0x8] sm:$0xf]
  %v3217 = vld [vmem:[%s1 + $0xc] sm:$0xf]
  %v3218 = vld [vmem:[%s1 + $0x10] sm:$0x3]
  %v3224 = vunpack.c.l.b16 %v3214
  %v3225 = vunpack.c.l.b16 %v3215
  %v3226 = vunpack.c.l.b16 %v3216
  %v3227 = vunpack.c.l.b16 %v3217
  %v3228 = vunpack.c.l.b16 %v3218
  %v3229 = vpack.c.b16 %v3225, %v3224
  %v3230 = vpack.c.b16 %v3227, %v3226
  %v3231 = vpack.c.b16 %v3228, %v3228
  %vm3234 = vcmask 293888
  %v3236 = vsel %vm3234, %v3182, 0
  %v3239 = vsel %vm3234, %v3183, 0
  %v3242 = vsel %vm3234, %v3184, 0
  %v3245 = vsel %vm3234, %v3185, 0
  %v3248 = vsel %vm3234, %v3186, 0
  %v3251 = vsel %vm3234, %v3187, 0
  %v3254 = vsel %vm3234, %v3188, 0
  %v3257 = vsel %vm3234, %v3189, 0
  %v3260 = vsel %vm3234, %v3190, 0
  %v3263 = vsel %vm3234, %v3191, 0
  %v3266 = vsel %vm3234, %v3192, 0
  %v3269 = vsel %vm3234, %v3193, 0
  %v3272 = vsel %vm3234, %v3194, 0
  %v3275 = vsel %vm3234, %v3195, 0
  %v3278 = vsel %vm3234, %v3196, 0
  %v3281 = vsel %vm3234, %v3197, 0
  %v3284 = vsel %vm3234, %v3198, 0
  %v3287 = vsel %vm3234, %v3199, 0
  %v3290 = vsel %vm3234, %v3200, 0
  %v3293 = vsel %vm3234, %v3201, 0
  %v3296 = vsel %vm3234, %v3202, 0
  %v3299 = vsel %vm3234, %v3203, 0
  %v3302 = vsel %vm3234, %v3204, 0
  %v3305 = vsel %vm3234, %v3205, 0
  %v3308 = vsel %vm3234, %v3206, 0
  %v3311 = vsel %vm3234, %v3207, 0
  %v3314 = vsel %vm3234, %v3208, 0
  %v3317 = vsel %vm3234, %v3209, 0
  %v3320 = vsel %vm3234, %v3210, 0
  %v3323 = vsel %vm3234, %v3211, 0
  %v3326 = vsel %vm3234, %v3212, 0
  %v3329 = vsel %vm3234, %v3213, 0
  %vm3331 = vcmask 1041408
  %v3333 = vsel %vm3331, %v3231, 0
  %3335 = vmatprep.subr.bf16.mxu0 0
  %3336 = vmatpush1.bf16.msra.mxu0 0
  %3337 = vmatprep.subr.bf16.mxu0 0
  %3338 = vmatpush1.bf16.msra.mxu0 0
  %3339 = vmatprep.subr.bf16.mxu0 0
  %3340 = vmatpush1.bf16.msra.mxu0 0
  %3341 = vmatprep.subr.bf16.mxu0 0
  %3342 = vmatpush1.bf16.msra.mxu0 0
  %3343 = vmatprep.subr.bf16.mxu0 0
  %3344 = vmatpush1.bf16.msra.mxu0 0
  %3345 = vmatprep.subr.bf16.mxu0 0
  %3346 = vmatpush1.bf16.msra.mxu0 %v3333
  %3347 = vmatprep.subr.bf16.mxu0 0
  %3348 = vmatpush1.bf16.msra.mxu0 %v3230
  %3349 = vmatprep.subr.bf16.mxu0 0
  %3350 = vmatpush1.bf16.msra.mxu0 %v3229
  %3351 = vmatprep.subr.bf16.mxu0 0
  %3352 = vmatpush2.bf16.msra.mxu0 0
  %3353 = vmatprep.subr.bf16.mxu0 0
  %3354 = vmatpush2.bf16.msra.mxu0 0
  %3355 = vmatprep.subr.bf16.mxu0 0
  %3356 = vmatpush2.bf16.msra.mxu0 0
  %3357 = vmatprep.subr.bf16.mxu0 0
  %3358 = vmatpush2.bf16.msra.mxu0 0
  %3359 = vmatprep.subr.bf16.mxu0 0
  %3360 = vmatpush2.bf16.msra.mxu0 0
  %3361 = vmatprep.subr.bf16.mxu0 0
  %3362 = vmatpush2.bf16.msra.mxu0 0
  %3363 = vmatprep.subr.bf16.mxu0 0
  %3364 = vmatpush2.bf16.msra.mxu0 0
  %3365 = vmatprep.subr.bf16.mxu0 0
  %3366 = vmatpush2.bf16.msra.mxu0 0
  %3367 = vmatprep.mubr.bf16.mxu0 0
  %3368 = vmatmul.mubr.bf16.gmra.mxu0 %v3236
  %v3369 = vpop.f32.mrf.mxu0
  %v3370 = vadd.f32 0.0, %v3369
  %v3371 = vpop.f32.mrf.mxu0
  %v3372 = vpop.f32.mrf.mxu0
  %v3373 = vadd.f32 0.0, %v3372
  %v3374 = vpop.f32.mrf.mxu0
  %3375 = vmatprep.mubr.bf16.mxu0 0
  %3376 = vmatmul.mubr.bf16.gmra.mxu0 %v3239
  %v3377 = vpop.f32.mrf.mxu0
  %v3378 = vadd.f32 0.0, %v3377
  %v3379 = vpop.f32.mrf.mxu0
  %v3380 = vpop.f32.mrf.mxu0
  %v3381 = vadd.f32 0.0, %v3380
  %v3382 = vpop.f32.mrf.mxu0
  %3383 = vmatprep.mubr.bf16.mxu0 0
  %3384 = vmatmul.mubr.bf16.gmra.mxu0 %v3242
  %v3385 = vpop.f32.mrf.mxu0
  %v3386 = vadd.f32 0.0, %v3385
  %v3387 = vpop.f32.mrf.mxu0
  %v3388 = vpop.f32.mrf.mxu0
  %v3389 = vadd.f32 0.0, %v3388
  %v3390 = vpop.f32.mrf.mxu0
  %3391 = vmatprep.mubr.bf16.mxu0 0
  %3392 = vmatmul.mubr.bf16.gmra.mxu0 %v3245
  %v3393 = vpop.f32.mrf.mxu0
  %v3394 = vadd.f32 0.0, %v3393
  %v3395 = vpop.f32.mrf.mxu0
  %v3396 = vpop.f32.mrf.mxu0
  %v3397 = vadd.f32 0.0, %v3396
  %v3398 = vpop.f32.mrf.mxu0
  %3399 = vmatprep.mubr.bf16.mxu0 0
  %3400 = vmatmul.mubr.bf16.gmra.mxu0 %v3248
  %v3401 = vpop.f32.mrf.mxu0
  %v3402 = vadd.f32 0.0, %v3401
  %v3403 = vpop.f32.mrf.mxu0
  %v3404 = vpop.f32.mrf.mxu0
  %v3405 = vadd.f32 0.0, %v3404
  %v3406 = vpop.f32.mrf.mxu0
  %3407 = vmatprep.mubr.bf16.mxu0 0
  %3408 = vmatmul.mubr.bf16.gmra.mxu0 %v3251
  %v3409 = vpop.f32.mrf.mxu0
  %v3410 = vadd.f32 0.0, %v3409
  %v3411 = vpop.f32.mrf.mxu0
  %v3412 = vpop.f32.mrf.mxu0
  %v3413 = vadd.f32 0.0, %v3412
  %v3414 = vpop.f32.mrf.mxu0
  %3415 = vmatprep.mubr.bf16.mxu0 0
  %3416 = vmatmul.mubr.bf16.gmra.mxu0 %v3254
  %v3417 = vpop.f32.mrf.mxu0
  %v3418 = vadd.f32 0.0, %v3417
  %v3419 = vpop.f32.mrf.mxu0
  %v3420 = vpop.f32.mrf.mxu0
  %v3421 = vadd.f32 0.0, %v3420
  %v3422 = vpop.f32.mrf.mxu0
  %3423 = vmatprep.mubr.bf16.mxu0 0
  %3424 = vmatmul.mubr.bf16.gmra.mxu0 %v3257
  %v3425 = vpop.f32.mrf.mxu0
  %v3426 = vadd.f32 0.0, %v3425
  %v3427 = vpop.f32.mrf.mxu0
  %v3428 = vpop.f32.mrf.mxu0
  %v3429 = vadd.f32 0.0, %v3428
  %v3430 = vpop.f32.mrf.mxu0
  %3431 = vmatprep.mubr.bf16.mxu0 0
  %3432 = vmatmul.mubr.bf16.gmra.mxu0 %v3260
  %v3433 = vpop.f32.mrf.mxu0
  %v3434 = vadd.f32 0.0, %v3433
  %v3435 = vpop.f32.mrf.mxu0
  %v3436 = vpop.f32.mrf.mxu0
  %v3437 = vadd.f32 0.0, %v3436
  %v3438 = vpop.f32.mrf.mxu0
  %3439 = vmatprep.mubr.bf16.mxu0 0
  %3440 = vmatmul.mubr.bf16.gmra.mxu0 %v3263
  %v3441 = vpop.f32.mrf.mxu0
  %v3442 = vadd.f32 0.0, %v3441
  %v3443 = vpop.f32.mrf.mxu0
  %v3444 = vpop.f32.mrf.mxu0
  %v3445 = vadd.f32 0.0, %v3444
  %v3446 = vpop.f32.mrf.mxu0
  %3447 = vmatprep.mubr.bf16.mxu0 0
  %3448 = vmatmul.mubr.bf16.gmra.mxu0 %v3266
  %v3449 = vpop.f32.mrf.mxu0
  %v3450 = vadd.f32 0.0, %v3449
  %v3451 = vpop.f32.mrf.mxu0
  %v3452 = vpop.f32.mrf.mxu0
  %v3453 = vadd.f32 0.0, %v3452
  %v3454 = vpop.f32.mrf.mxu0
  %3455 = vmatprep.mubr.bf16.mxu0 0
  %3456 = vmatmul.mubr.bf16.gmra.mxu0 %v3269
  %v3457 = vpop.f32.mrf.mxu0
  %v3458 = vadd.f32 0.0, %v3457
  %v3459 = vpop.f32.mrf.mxu0
  %v3460 = vpop.f32.mrf.mxu0
  %v3461 = vadd.f32 0.0, %v3460
  %v3462 = vpop.f32.mrf.mxu0
  %3463 = vmatprep.mubr.bf16.mxu0 0
  %3464 = vmatmul.mubr.bf16.gmra.mxu0 %v3272
  %v3465 = vpop.f32.mrf.mxu0
  %v3466 = vadd.f32 0.0, %v3465
  %v3467 = vpop.f32.mrf.mxu0
  %v3468 = vpop.f32.mrf.mxu0
  %v3469 = vadd.f32 0.0, %v3468
  %v3470 = vpop.f32.mrf.mxu0
  %3471 = vmatprep.mubr.bf16.mxu0 0
  %3472 = vmatmul.mubr.bf16.gmra.mxu0 %v3275
  %v3473 = vpop.f32.mrf.mxu0
  %v3474 = vadd.f32 0.0, %v3473
  %v3475 = vpop.f32.mrf.mxu0
  %v3476 = vpop.f32.mrf.mxu0
  %v3477 = vadd.f32 0.0, %v3476
  %v3478 = vpop.f32.mrf.mxu0
  %3479 = vmatprep.mubr.bf16.mxu0 0
  %3480 = vmatmul.mubr.bf16.gmra.mxu0 %v3278
  %v3481 = vpop.f32.mrf.mxu0
  %v3482 = vadd.f32 0.0, %v3481
  %v3483 = vpop.f32.mrf.mxu0
  %v3484 = vpop.f32.mrf.mxu0
  %v3485 = vadd.f32 0.0, %v3484
  %v3486 = vpop.f32.mrf.mxu0
  %3487 = vmatprep.mubr.bf16.mxu0 0
  %3488 = vmatmul.mubr.bf16.gmra.mxu0 %v3281
  %v3489 = vpop.f32.mrf.mxu0
  %v3490 = vadd.f32 0.0, %v3489
  %v3491 = vpop.f32.mrf.mxu0
  %v3492 = vpop.f32.mrf.mxu0
  %v3493 = vadd.f32 0.0, %v3492
  %v3494 = vpop.f32.mrf.mxu0
  %3495 = vmatprep.mubr.bf16.mxu0 0
  %3496 = vmatmul.mubr.bf16.gmra.mxu0 %v3284
  %v3497 = vpop.f32.mrf.mxu0
  %v3498 = vadd.f32 0.0, %v3497
  %v3499 = vpop.f32.mrf.mxu0
  %v3500 = vpop.f32.mrf.mxu0
  %v3501 = vadd.f32 0.0, %v3500
  %v3502 = vpop.f32.mrf.mxu0
  %3503 = vmatprep.mubr.bf16.mxu0 0
  %3504 = vmatmul.mubr.bf16.gmra.mxu0 %v3287
  %v3505 = vpop.f32.mrf.mxu0
  %v3506 = vadd.f32 0.0, %v3505
  %v3507 = vpop.f32.mrf.mxu0
  %v3508 = vpop.f32.mrf.mxu0
  %v3509 = vadd.f32 0.0, %v3508
  %v3510 = vpop.f32.mrf.mxu0
  %3511 = vmatprep.mubr.bf16.mxu0 0
  %3512 = vmatmul.mubr.bf16.gmra.mxu0 %v3290
  %v3513 = vpop.f32.mrf.mxu0
  %v3514 = vadd.f32 0.0, %v3513
  %v3515 = vpop.f32.mrf.mxu0
  %v3516 = vpop.f32.mrf.mxu0
  %v3517 = vadd.f32 0.0, %v3516
  %v3518 = vpop.f32.mrf.mxu0
  %3519 = vmatprep.mubr.bf16.mxu0 0
  %3520 = vmatmul.mubr.bf16.gmra.mxu0 %v3293
  %v3521 = vpop.f32.mrf.mxu0
  %v3522 = vadd.f32 0.0, %v3521
  %v3523 = vpop.f32.mrf.mxu0
  %v3524 = vpop.f32.mrf.mxu0
  %v3525 = vadd.f32 0.0, %v3524
  %v3526 = vpop.f32.mrf.mxu0
  %3527 = vmatprep.mubr.bf16.mxu0 0
  %3528 = vmatmul.mubr.bf16.gmra.mxu0 %v3296
  %v3529 = vpop.f32.mrf.mxu0
  %v3530 = vadd.f32 0.0, %v3529
  %v3531 = vpop.f32.mrf.mxu0
  %v3532 = vpop.f32.mrf.mxu0
  %v3533 = vadd.f32 0.0, %v3532
  %v3534 = vpop.f32.mrf.mxu0
  %3535 = vmatprep.mubr.bf16.mxu0 0
  %3536 = vmatmul.mubr.bf16.gmra.mxu0 %v3299
  %v3537 = vpop.f32.mrf.mxu0
  %v3538 = vadd.f32 0.0, %v3537
  %v3539 = vpop.f32.mrf.mxu0
  %v3540 = vpop.f32.mrf.mxu0
  %v3541 = vadd.f32 0.0, %v3540
  %v3542 = vpop.f32.mrf.mxu0
  %3543 = vmatprep.mubr.bf16.mxu0 0
  %3544 = vmatmul.mubr.bf16.gmra.mxu0 %v3302
  %v3545 = vpop.f32.mrf.mxu0
  %v3546 = vadd.f32 0.0, %v3545
  %v3547 = vpop.f32.mrf.mxu0
  %v3548 = vpop.f32.mrf.mxu0
  %v3549 = vadd.f32 0.0, %v3548
  %v3550 = vpop.f32.mrf.mxu0
  %3551 = vmatprep.mubr.bf16.mxu0 0
  %3552 = vmatmul.mubr.bf16.gmra.mxu0 %v3305
  %v3553 = vpop.f32.mrf.mxu0
  %v3554 = vadd.f32 0.0, %v3553
  %v3555 = vpop.f32.mrf.mxu0
  %v3556 = vpop.f32.mrf.mxu0
  %v3557 = vadd.f32 0.0, %v3556
  %v3558 = vpop.f32.mrf.mxu0
  %3559 = vmatprep.mubr.bf16.mxu0 0
  %3560 = vmatmul.mubr.bf16.gmra.mxu0 %v3308
  %v3561 = vpop.f32.mrf.mxu0
  %v3562 = vadd.f32 0.0, %v3561
  %v3563 = vpop.f32.mrf.mxu0
  %v3564 = vpop.f32.mrf.mxu0
  %v3565 = vadd.f32 0.0, %v3564
  %v3566 = vpop.f32.mrf.mxu0
  %3567 = vmatprep.mubr.bf16.mxu0 0
  %3568 = vmatmul.mubr.bf16.gmra.mxu0 %v3311
  %v3569 = vpop.f32.mrf.mxu0
  %v3570 = vadd.f32 0.0, %v3569
  %v3571 = vpop.f32.mrf.mxu0
  %v3572 = vpop.f32.mrf.mxu0
  %v3573 = vadd.f32 0.0, %v3572
  %v3574 = vpop.f32.mrf.mxu0
  %3575 = vmatprep.mubr.bf16.mxu0 0
  %3576 = vmatmul.mubr.bf16.gmra.mxu0 %v3314
  %v3577 = vpop.f32.mrf.mxu0
  %v3578 = vadd.f32 0.0, %v3577
  %v3579 = vpop.f32.mrf.mxu0
  %v3580 = vpop.f32.mrf.mxu0
  %v3581 = vadd.f32 0.0, %v3580
  %v3582 = vpop.f32.mrf.mxu0
  %3583 = vmatprep.mubr.bf16.mxu0 0
  %3584 = vmatmul.mubr.bf16.gmra.mxu0 %v3317
  %v3585 = vpop.f32.mrf.mxu0
  %v3586 = vadd.f32 0.0, %v3585
  %v3587 = vpop.f32.mrf.mxu0
  %v3588 = vpop.f32.mrf.mxu0
  %v3589 = vadd.f32 0.0, %v3588
  %v3590 = vpop.f32.mrf.mxu0
  %3591 = vmatprep.mubr.bf16.mxu0 0
  %3592 = vmatmul.mubr.bf16.gmra.mxu0 %v3320
  %v3593 = vpop.f32.mrf.mxu0
  %v3594 = vadd.f32 0.0, %v3593
  %v3595 = vpop.f32.mrf.mxu0
  %v3596 = vpop.f32.mrf.mxu0
  %v3597 = vadd.f32 0.0, %v3596
  %v3598 = vpop.f32.mrf.mxu0
  %3599 = vmatprep.mubr.bf16.mxu0 0
  %3600 = vmatmul.mubr.bf16.gmra.mxu0 %v3323
  %v3601 = vpop.f32.mrf.mxu0
  %v3602 = vadd.f32 0.0, %v3601
  %v3603 = vpop.f32.mrf.mxu0
  %v3604 = vpop.f32.mrf.mxu0
  %v3605 = vadd.f32 0.0, %v3604
  %v3606 = vpop.f32.mrf.mxu0
  %3607 = vmatprep.mubr.bf16.mxu0 0
  %3608 = vmatmul.mubr.bf16.gmra.mxu0 %v3326
  %v3609 = vpop.f32.mrf.mxu0
  %v3610 = vadd.f32 0.0, %v3609
  %v3611 = vpop.f32.mrf.mxu0
  %v3612 = vpop.f32.mrf.mxu0
  %v3613 = vadd.f32 0.0, %v3612
  %v3614 = vpop.f32.mrf.mxu0
  %3615 = vmatprep.mubr.bf16.mxu0 0
  %3616 = vmatmul.mubr.bf16.gmra.mxu0 %v3329
  %v3617 = vpop.f32.mrf.mxu0
  %v3618 = vadd.f32 0.0, %v3617
  %v3619 = vpop.f32.mrf.mxu0
  %v3620 = vpop.f32.mrf.mxu0
  %v3621 = vadd.f32 0.0, %v3620
  %v3622 = vpop.f32.mrf.mxu0
  %3623 = vdwg.mxu0
  %vm3624 = vcmask 15360
  %v3625 = vsel %vm3624, %v3370, 0.0
  %v3626 = vsel %vm3624, %v3373, 0.0
  %v3627 = vadd.f32 %v3625, %v3626
  %v3628 = vsel %vm3624, %v3378, 0.0
  %v3629 = vadd.f32 %v3627, %v3628
  %v3630 = vsel %vm3624, %v3381, 0.0
  %v3631 = vadd.f32 %v3629, %v3630
  %v3632 = vsel %vm3624, %v3386, 0.0
  %v3633 = vadd.f32 %v3631, %v3632
  %v3634 = vsel %vm3624, %v3389, 0.0
  %v3635 = vadd.f32 %v3633, %v3634
  %v3636 = vsel %vm3624, %v3394, 0.0
  %v3637 = vadd.f32 %v3635, %v3636
  %v3638 = vsel %vm3624, %v3397, 0.0
  %v3639 = vadd.f32 %v3637, %v3638
  %v3640 = vsel %vm3624, %v3402, 0.0
  %v3641 = vadd.f32 %v3639, %v3640
  %v3642 = vsel %vm3624, %v3405, 0.0
  %v3643 = vadd.f32 %v3641, %v3642
  %v3644 = vsel %vm3624, %v3410, 0.0
  %v3645 = vadd.f32 %v3643, %v3644
  %v3646 = vsel %vm3624, %v3413, 0.0
  %v3647 = vadd.f32 %v3645, %v3646
  %v3648 = vsel %vm3624, %v3418, 0.0
  %v3649 = vadd.f32 %v3647, %v3648
  %v3650 = vsel %vm3624, %v3421, 0.0
  %v3651 = vadd.f32 %v3649, %v3650
  %v3652 = vsel %vm3624, %v3426, 0.0
  %v3653 = vadd.f32 %v3651, %v3652
  %v3654 = vsel %vm3624, %v3429, 0.0
  %v3655 = vadd.f32 %v3653, %v3654
  %v3656 = vsel %vm3624, %v3434, 0.0
  %v3657 = vadd.f32 %v3655, %v3656
  %v3658 = vsel %vm3624, %v3437, 0.0
  %v3659 = vadd.f32 %v3657, %v3658
  %v3660 = vsel %vm3624, %v3442, 0.0
  %v3661 = vadd.f32 %v3659, %v3660
  %v3662 = vsel %vm3624, %v3445, 0.0
  %v3663 = vadd.f32 %v3661, %v3662
  %v3664 = vsel %vm3624, %v3450, 0.0
  %v3665 = vadd.f32 %v3663, %v3664
  %v3666 = vsel %vm3624, %v3453, 0.0
  %v3667 = vadd.f32 %v3665, %v3666
  %v3668 = vsel %vm3624, %v3458, 0.0
  %v3669 = vadd.f32 %v3667, %v3668
  %v3670 = vsel %vm3624, %v3461, 0.0
  %v3671 = vadd.f32 %v3669, %v3670
  %v3672 = vsel %vm3624, %v3466, 0.0
  %v3673 = vadd.f32 %v3671, %v3672
  %v3674 = vsel %vm3624, %v3469, 0.0
  %v3675 = vadd.f32 %v3673, %v3674
  %v3676 = vsel %vm3624, %v3474, 0.0
  %v3677 = vadd.f32 %v3675, %v3676
  %v3678 = vsel %vm3624, %v3477, 0.0
  %v3679 = vadd.f32 %v3677, %v3678
  %v3680 = vsel %vm3624, %v3482, 0.0
  %v3681 = vadd.f32 %v3679, %v3680
  %v3682 = vsel %vm3624, %v3485, 0.0
  %v3683 = vadd.f32 %v3681, %v3682
  %v3684 = vsel %vm3624, %v3490, 0.0
  %v3685 = vadd.f32 %v3683, %v3684
  %v3686 = vsel %vm3624, %v3493, 0.0
  %v3687 = vadd.f32 %v3685, %v3686
  %v3688 = vsel %vm3624, %v3498, 0.0
  %v3689 = vadd.f32 %v3687, %v3688
  %v3690 = vsel %vm3624, %v3501, 0.0
  %v3691 = vadd.f32 %v3689, %v3690
  %v3692 = vsel %vm3624, %v3506, 0.0
  %v3693 = vadd.f32 %v3691, %v3692
  %v3694 = vsel %vm3624, %v3509, 0.0
  %v3695 = vadd.f32 %v3693, %v3694
  %v3696 = vsel %vm3624, %v3514, 0.0
  %v3697 = vadd.f32 %v3695, %v3696
  %v3698 = vsel %vm3624, %v3517, 0.0
  %v3699 = vadd.f32 %v3697, %v3698
  %v3700 = vsel %vm3624, %v3522, 0.0
  %v3701 = vadd.f32 %v3699, %v3700
  %v3702 = vsel %vm3624, %v3525, 0.0
  %v3703 = vadd.f32 %v3701, %v3702
  %v3704 = vsel %vm3624, %v3530, 0.0
  %v3705 = vadd.f32 %v3703, %v3704
  %v3706 = vsel %vm3624, %v3533, 0.0
  %v3707 = vadd.f32 %v3705, %v3706
  %v3708 = vsel %vm3624, %v3538, 0.0
  %v3709 = vadd.f32 %v3707, %v3708
  %v3710 = vsel %vm3624, %v3541, 0.0
  %v3711 = vadd.f32 %v3709, %v3710
  %v3712 = vsel %vm3624, %v3546, 0.0
  %v3713 = vadd.f32 %v3711, %v3712
  %v3714 = vsel %vm3624, %v3549, 0.0
  %v3715 = vadd.f32 %v3713, %v3714
  %v3716 = vsel %vm3624, %v3554, 0.0
  %v3717 = vadd.f32 %v3715, %v3716
  %v3718 = vsel %vm3624, %v3557, 0.0
  %v3719 = vadd.f32 %v3717, %v3718
  %v3720 = vsel %vm3624, %v3562, 0.0
  %v3721 = vadd.f32 %v3719, %v3720
  %v3722 = vsel %vm3624, %v3565, 0.0
  %v3723 = vadd.f32 %v3721, %v3722
  %v3724 = vsel %vm3624, %v3570, 0.0
  %v3725 = vadd.f32 %v3723, %v3724
  %v3726 = vsel %vm3624, %v3573, 0.0
  %v3727 = vadd.f32 %v3725, %v3726
  %v3728 = vsel %vm3624, %v3578, 0.0
  %v3729 = vadd.f32 %v3727, %v3728
  %v3730 = vsel %vm3624, %v3581, 0.0
  %v3731 = vadd.f32 %v3729, %v3730
  %v3732 = vsel %vm3624, %v3586, 0.0
  %v3733 = vadd.f32 %v3731, %v3732
  %v3734 = vsel %vm3624, %v3589, 0.0
  %v3735 = vadd.f32 %v3733, %v3734
  %v3736 = vsel %vm3624, %v3594, 0.0
  %v3737 = vadd.f32 %v3735, %v3736
  %v3738 = vsel %vm3624, %v3597, 0.0
  %v3739 = vadd.f32 %v3737, %v3738
  %v3740 = vsel %vm3624, %v3602, 0.0
  %v3741 = vadd.f32 %v3739, %v3740
  %v3742 = vsel %vm3624, %v3605, 0.0
  %v3743 = vadd.f32 %v3741, %v3742
  %v3744 = vsel %vm3624, %v3610, 0.0
  %v3745 = vadd.f32 %v3743, %v3744
  %v3746 = vsel %vm3624, %v3613, 0.0
  %v3747 = vadd.f32 %v3745, %v3746
  %v3748 = vsel %vm3624, %v3618, 0.0
  %v3749 = vadd.f32 %v3747, %v3748
  %v3750 = vsel %vm3624, %v3621, 0.0
  %v3751 = vadd.f32 %v3749, %v3750
  %v3752 = vrot.slane %v3751, 4
  %v3753 = vadd.f32 %v3751, %v3752
  %v3754 = vrot.slane %v3753, 2
  %v3755 = vadd.f32 %v3753, %v3754
  %v3756 = vrot.slane %v3755, 1
  %v3757 = vadd.f32 %v3755, %v3756
  %v3758 = vrcp.pop 512.0
  %v3759 = vmul.f32 %v3757, %v3758
  %v3760 = vsub.f32 %v3370, %v3759
  %v3761 = vsub.f32 %v3373, %v3759
  %v3762 = vsub.f32 %v3378, %v3759
  %v3763 = vsub.f32 %v3381, %v3759
  %v3764 = vsub.f32 %v3386, %v3759
  %v3765 = vsub.f32 %v3389, %v3759
  %v3766 = vsub.f32 %v3394, %v3759
  %v3767 = vsub.f32 %v3397, %v3759
  %v3768 = vsub.f32 %v3402, %v3759
  %v3769 = vsub.f32 %v3405, %v3759
  %v3770 = vsub.f32 %v3410, %v3759
  %v3771 = vsub.f32 %v3413, %v3759
  %v3772 = vsub.f32 %v3418, %v3759
  %v3773 = vsub.f32 %v3421, %v3759
  %v3774 = vsub.f32 %v3426, %v3759
  %v3775 = vsub.f32 %v3429, %v3759
  %v3776 = vsub.f32 %v3434, %v3759
  %v3777 = vsub.f32 %v3437, %v3759
  %v3778 = vsub.f32 %v3442, %v3759
  %v3779 = vsub.f32 %v3445, %v3759
  %v3780 = vsub.f32 %v3450, %v3759
  %v3781 = vsub.f32 %v3453, %v3759
  %v3782 = vsub.f32 %v3458, %v3759
  %v3783 = vsub.f32 %v3461, %v3759
  %v3784 = vsub.f32 %v3466, %v3759
  %v3785 = vsub.f32 %v3469, %v3759
  %v3786 = vsub.f32 %v3474, %v3759
  %v3787 = vsub.f32 %v3477, %v3759
  %v3788 = vsub.f32 %v3482, %v3759
  %v3789 = vsub.f32 %v3485, %v3759
  %v3790 = vsub.f32 %v3490, %v3759
  %v3791 = vsub.f32 %v3493, %v3759
  %v3792 = vsub.f32 %v3498, %v3759
  %v3793 = vsub.f32 %v3501, %v3759
  %v3794 = vsub.f32 %v3506, %v3759
  %v3795 = vsub.f32 %v3509, %v3759
  %v3796 = vsub.f32 %v3514, %v3759
  %v3797 = vsub.f32 %v3517, %v3759
  %v3798 = vsub.f32 %v3522, %v3759
  %v3799 = vsub.f32 %v3525, %v3759
  %v3800 = vsub.f32 %v3530, %v3759
  %v3801 = vsub.f32 %v3533, %v3759
  %v3802 = vsub.f32 %v3538, %v3759
  %v3803 = vsub.f32 %v3541, %v3759
  %v3804 = vsub.f32 %v3546, %v3759
  %v3805 = vsub.f32 %v3549, %v3759
  %v3806 = vsub.f32 %v3554, %v3759
  %v3807 = vsub.f32 %v3557, %v3759
  %v3808 = vsub.f32 %v3562, %v3759
  %v3809 = vsub.f32 %v3565, %v3759
  %v3810 = vsub.f32 %v3570, %v3759
  %v3811 = vsub.f32 %v3573, %v3759
  %v3812 = vsub.f32 %v3578, %v3759
  %v3813 = vsub.f32 %v3581, %v3759
  %v3814 = vsub.f32 %v3586, %v3759
  %v3815 = vsub.f32 %v3589, %v3759
  %v3816 = vsub.f32 %v3594, %v3759
  %v3817 = vsub.f32 %v3597, %v3759
  %v3818 = vsub.f32 %v3602, %v3759
  %v3819 = vsub.f32 %v3605, %v3759
  %v3820 = vsub.f32 %v3610, %v3759
  %v3821 = vsub.f32 %v3613, %v3759
  %v3822 = vsub.f32 %v3618, %v3759
  %v3823 = vsub.f32 %v3621, %v3759
  %v3824 = vmul.f32 %v3760, %v3760
  %v3825 = vmul.f32 %v3761, %v3761
  %v3826 = vmul.f32 %v3762, %v3762
  %v3827 = vmul.f32 %v3763, %v3763
  %v3828 = vmul.f32 %v3764, %v3764
  %v3829 = vmul.f32 %v3765, %v3765
  %v3830 = vmul.f32 %v3766, %v3766
  %v3831 = vmul.f32 %v3767, %v3767
  %v3832 = vmul.f32 %v3768, %v3768
  %v3833 = vmul.f32 %v3769, %v3769
  %v3834 = vmul.f32 %v3770, %v3770
  %v3835 = vmul.f32 %v3771, %v3771
  %v3836 = vmul.f32 %v3772, %v3772
  %v3837 = vmul.f32 %v3773, %v3773
  %v3838 = vmul.f32 %v3774, %v3774
  %v3839 = vmul.f32 %v3775, %v3775
  %v3840 = vmul.f32 %v3776, %v3776
  %v3841 = vmul.f32 %v3777, %v3777
  %v3842 = vmul.f32 %v3778, %v3778
  %v3843 = vmul.f32 %v3779, %v3779
  %v3844 = vmul.f32 %v3780, %v3780
  %v3845 = vmul.f32 %v3781, %v3781
  %v3846 = vmul.f32 %v3782, %v3782
  %v3847 = vmul.f32 %v3783, %v3783
  %v3848 = vmul.f32 %v3784, %v3784
  %v3849 = vmul.f32 %v3785, %v3785
  %v3850 = vmul.f32 %v3786, %v3786
  %v3851 = vmul.f32 %v3787, %v3787
  %v3852 = vmul.f32 %v3788, %v3788
  %v3853 = vmul.f32 %v3789, %v3789
  %v3854 = vmul.f32 %v3790, %v3790
  %v3855 = vmul.f32 %v3791, %v3791
  %v3856 = vmul.f32 %v3792, %v3792
  %v3857 = vmul.f32 %v3793, %v3793
  %v3858 = vmul.f32 %v3794, %v3794
  %v3859 = vmul.f32 %v3795, %v3795
  %v3860 = vmul.f32 %v3796, %v3796
  %v3861 = vmul.f32 %v3797, %v3797
  %v3862 = vmul.f32 %v3798, %v3798
  %v3863 = vmul.f32 %v3799, %v3799
  %v3864 = vmul.f32 %v3800, %v3800
  %v3865 = vmul.f32 %v3801, %v3801
  %v3866 = vmul.f32 %v3802, %v3802
  %v3867 = vmul.f32 %v3803, %v3803
  %v3868 = vmul.f32 %v3804, %v3804
  %v3869 = vmul.f32 %v3805, %v3805
  %v3870 = vmul.f32 %v3806, %v3806
  %v3871 = vmul.f32 %v3807, %v3807
  %v3872 = vmul.f32 %v3808, %v3808
  %v3873 = vmul.f32 %v3809, %v3809
  %v3874 = vmul.f32 %v3810, %v3810
  %v3875 = vmul.f32 %v3811, %v3811
  %v3876 = vmul.f32 %v3812, %v3812
  %v3877 = vmul.f32 %v3813, %v3813
  %v3878 = vmul.f32 %v3814, %v3814
  %v3879 = vmul.f32 %v3815, %v3815
  %v3880 = vmul.f32 %v3816, %v3816
  %v3881 = vmul.f32 %v3817, %v3817
  %v3882 = vmul.f32 %v3818, %v3818
  %v3883 = vmul.f32 %v3819, %v3819
  %v3884 = vmul.f32 %v3820, %v3820
  %v3885 = vmul.f32 %v3821, %v3821
  %v3886 = vmul.f32 %v3822, %v3822
  %v3887 = vmul.f32 %v3823, %v3823
  %v3888 = vsel %vm3624, %v3824, 0.0
  %v3889 = vsel %vm3624, %v3825, 0.0
  %v3890 = vadd.f32 %v3888, %v3889
  %v3891 = vsel %vm3624, %v3826, 0.0
  %v3892 = vadd.f32 %v3890, %v3891
  %v3893 = vsel %vm3624, %v3827, 0.0
  %v3894 = vadd.f32 %v3892, %v3893
  %v3895 = vsel %vm3624, %v3828, 0.0
  %v3896 = vadd.f32 %v3894, %v3895
  %v3897 = vsel %vm3624, %v3829, 0.0
  %v3898 = vadd.f32 %v3896, %v3897
  %v3899 = vsel %vm3624, %v3830, 0.0
  %v3900 = vadd.f32 %v3898, %v3899
  %v3901 = vsel %vm3624, %v3831, 0.0
  %v3902 = vadd.f32 %v3900, %v3901
  %v3903 = vsel %vm3624, %v3832, 0.0
  %v3904 = vadd.f32 %v3902, %v3903
  %v3905 = vsel %vm3624, %v3833, 0.0
  %v3906 = vadd.f32 %v3904, %v3905
  %v3907 = vsel %vm3624, %v3834, 0.0
  %v3908 = vadd.f32 %v3906, %v3907
  %v3909 = vsel %vm3624, %v3835, 0.0
  %v3910 = vadd.f32 %v3908, %v3909
  %v3911 = vsel %vm3624, %v3836, 0.0
  %v3912 = vadd.f32 %v3910, %v3911
  %v3913 = vsel %vm3624, %v3837, 0.0
  %v3914 = vadd.f32 %v3912, %v3913
  %v3915 = vsel %vm3624, %v3838, 0.0
  %v3916 = vadd.f32 %v3914, %v3915
  %v3917 = vsel %vm3624, %v3839, 0.0
  %v3918 = vadd.f32 %v3916, %v3917
  %v3919 = vsel %vm3624, %v3840, 0.0
  %v3920 = vadd.f32 %v3918, %v3919
  %v3921 = vsel %vm3624, %v3841, 0.0
  %v3922 = vadd.f32 %v3920, %v3921
  %v3923 = vsel %vm3624, %v3842, 0.0
  %v3924 = vadd.f32 %v3922, %v3923
  %v3925 = vsel %vm3624, %v3843, 0.0
  %v3926 = vadd.f32 %v3924, %v3925
  %v3927 = vsel %vm3624, %v3844, 0.0
  %v3928 = vadd.f32 %v3926, %v3927
  %v3929 = vsel %vm3624, %v3845, 0.0
  %v3930 = vadd.f32 %v3928, %v3929
  %v3931 = vsel %vm3624, %v3846, 0.0
  %v3932 = vadd.f32 %v3930, %v3931
  %v3933 = vsel %vm3624, %v3847, 0.0
  %v3934 = vadd.f32 %v3932, %v3933
  %v3935 = vsel %vm3624, %v3848, 0.0
  %v3936 = vadd.f32 %v3934, %v3935
  %v3937 = vsel %vm3624, %v3849, 0.0
  %v3938 = vadd.f32 %v3936, %v3937
  %v3939 = vsel %vm3624, %v3850, 0.0
  %v3940 = vadd.f32 %v3938, %v3939
  %v3941 = vsel %vm3624, %v3851, 0.0
  %v3942 = vadd.f32 %v3940, %v3941
  %v3943 = vsel %vm3624, %v3852, 0.0
  %v3944 = vadd.f32 %v3942, %v3943
  %v3945 = vsel %vm3624, %v3853, 0.0
  %v3946 = vadd.f32 %v3944, %v3945
  %v3947 = vsel %vm3624, %v3854, 0.0
  %v3948 = vadd.f32 %v3946, %v3947
  %v3949 = vsel %vm3624, %v3855, 0.0
  %v3950 = vadd.f32 %v3948, %v3949
  %v3951 = vsel %vm3624, %v3856, 0.0
  %v3952 = vadd.f32 %v3950, %v3951
  %v3953 = vsel %vm3624, %v3857, 0.0
  %v3954 = vadd.f32 %v3952, %v3953
  %v3955 = vsel %vm3624, %v3858, 0.0
  %v3956 = vadd.f32 %v3954, %v3955
  %v3957 = vsel %vm3624, %v3859, 0.0
  %v3958 = vadd.f32 %v3956, %v3957
  %v3959 = vsel %vm3624, %v3860, 0.0
  %v3960 = vadd.f32 %v3958, %v3959
  %v3961 = vsel %vm3624, %v3861, 0.0
  %v3962 = vadd.f32 %v3960, %v3961
  %v3963 = vsel %vm3624, %v3862, 0.0
  %v3964 = vadd.f32 %v3962, %v3963
  %v3965 = vsel %vm3624, %v3863, 0.0
  %v3966 = vadd.f32 %v3964, %v3965
  %v3967 = vsel %vm3624, %v3864, 0.0
  %v3968 = vadd.f32 %v3966, %v3967
  %v3969 = vsel %vm3624, %v3865, 0.0
  %v3970 = vadd.f32 %v3968, %v3969
  %v3971 = vsel %vm3624, %v3866, 0.0
  %v3972 = vadd.f32 %v3970, %v3971
  %v3973 = vsel %vm3624, %v3867, 0.0
  %v3974 = vadd.f32 %v3972, %v3973
  %v3975 = vsel %vm3624, %v3868, 0.0
  %v3976 = vadd.f32 %v3974, %v3975
  %v3977 = vsel %vm3624, %v3869, 0.0
  %v3978 = vadd.f32 %v3976, %v3977
  %v3979 = vsel %vm3624, %v3870, 0.0
  %v3980 = vadd.f32 %v3978, %v3979
  %v3981 = vsel %vm3624, %v3871, 0.0
  %v3982 = vadd.f32 %v3980, %v3981
  %v3983 = vsel %vm3624, %v3872, 0.0
  %v3984 = vadd.f32 %v3982, %v3983
  %v3985 = vsel %vm3624, %v3873, 0.0
  %v3986 = vadd.f32 %v3984, %v3985
  %v3987 = vsel %vm3624, %v3874, 0.0
  %v3988 = vadd.f32 %v3986, %v3987
  %v3989 = vsel %vm3624, %v3875, 0.0
  %v3990 = vadd.f32 %v3988, %v3989
  %v3991 = vsel %vm3624, %v3876, 0.0
  %v3992 = vadd.f32 %v3990, %v3991
  %v3993 = vsel %vm3624, %v3877, 0.0
  %v3994 = vadd.f32 %v3992, %v3993
  %v3995 = vsel %vm3624, %v3878, 0.0
  %v3996 = vadd.f32 %v3994, %v3995
  %v3997 = vsel %vm3624, %v3879, 0.0
  %v3998 = vadd.f32 %v3996, %v3997
  %v3999 = vsel %vm3624, %v3880, 0.0
  %v4000 = vadd.f32 %v3998, %v3999
  %v4001 = vsel %vm3624, %v3881, 0.0
  %v4002 = vadd.f32 %v4000, %v4001
  %v4003 = vsel %vm3624, %v3882, 0.0
  %v4004 = vadd.f32 %v4002, %v4003
  %v4005 = vsel %vm3624, %v3883, 0.0
  %v4006 = vadd.f32 %v4004, %v4005
  %v4007 = vsel %vm3624, %v3884, 0.0
  %v4008 = vadd.f32 %v4006, %v4007
  %v4009 = vsel %vm3624, %v3885, 0.0
  %v4010 = vadd.f32 %v4008, %v4009
  %v4011 = vsel %vm3624, %v3886, 0.0
  %v4012 = vadd.f32 %v4010, %v4011
  %v4013 = vsel %vm3624, %v3887, 0.0
  %v4014 = vadd.f32 %v4012, %v4013
  %v4015 = vrot.slane %v4014, 4
  %v4016 = vadd.f32 %v4014, %v4015
  %v4017 = vrot.slane %v4016, 2
  %v4018 = vadd.f32 %v4016, %v4017
  %v4019 = vrot.slane %v4018, 1
  %v4020 = vadd.f32 %v4018, %v4019
  %v4021 = vmul.f32 %v4020, %v3758
  %v4022 = vld [vmem:[%s4] sm:$0x1]
  %v4023 = vadd.f32 %v4021, 1e-05
  %v4024 = vrsqrt.pop %v4023
  %v4025 = vmul.f32 %v4022, %v4024
  %v4026 = vld [vmem:[%s5] sm:$0x1]
  %v4027 = vmul.f32 %v3759, %v4025
  %v4028 = vsub.f32 %v4026, %v4027
  %v4030 = vlaneseq
  %v4031 = vshrl.u32 %v4030, 7
  %v4032 = vsub.s32 0, %v4031
  %v4033 = vrot.slane %v4025, %v4032
  %v4035 = vmul.f32 %v3370, %v4033
  %v4036 = vmul.f32 %v3373, %v4033
  %v4037 = vmul.f32 %v3378, %v4033
  %v4038 = vmul.f32 %v3381, %v4033
  %v4039 = vmul.f32 %v3386, %v4033
  %v4040 = vmul.f32 %v3389, %v4033
  %v4041 = vmul.f32 %v3394, %v4033
  %v4042 = vmul.f32 %v3397, %v4033
  %v4043 = vmul.f32 %v3402, %v4033
  %v4044 = vmul.f32 %v3405, %v4033
  %v4045 = vmul.f32 %v3410, %v4033
  %v4046 = vmul.f32 %v3413, %v4033
  %v4047 = vmul.f32 %v3418, %v4033
  %v4048 = vmul.f32 %v3421, %v4033
  %v4049 = vmul.f32 %v3426, %v4033
  %v4050 = vmul.f32 %v3429, %v4033
  %v4051 = vmul.f32 %v3434, %v4033
  %v4052 = vmul.f32 %v3437, %v4033
  %v4053 = vmul.f32 %v3442, %v4033
  %v4054 = vmul.f32 %v3445, %v4033
  %v4055 = vmul.f32 %v3450, %v4033
  %v4056 = vmul.f32 %v3453, %v4033
  %v4057 = vmul.f32 %v3458, %v4033
  %v4058 = vmul.f32 %v3461, %v4033
  %v4059 = vmul.f32 %v3466, %v4033
  %v4060 = vmul.f32 %v3469, %v4033
  %v4061 = vmul.f32 %v3474, %v4033
  %v4062 = vmul.f32 %v3477, %v4033
  %v4063 = vmul.f32 %v3482, %v4033
  %v4064 = vmul.f32 %v3485, %v4033
  %v4065 = vmul.f32 %v3490, %v4033
  %v4066 = vmul.f32 %v3493, %v4033
  %v4067 = vmul.f32 %v3498, %v4033
  %v4068 = vmul.f32 %v3501, %v4033
  %v4069 = vmul.f32 %v3506, %v4033
  %v4070 = vmul.f32 %v3509, %v4033
  %v4071 = vmul.f32 %v3514, %v4033
  %v4072 = vmul.f32 %v3517, %v4033
  %v4073 = vmul.f32 %v3522, %v4033
  %v4074 = vmul.f32 %v3525, %v4033
  %v4075 = vmul.f32 %v3530, %v4033
  %v4076 = vmul.f32 %v3533, %v4033
  %v4077 = vmul.f32 %v3538, %v4033
  %v4078 = vmul.f32 %v3541, %v4033
  %v4079 = vmul.f32 %v3546, %v4033
  %v4080 = vmul.f32 %v3549, %v4033
  %v4081 = vmul.f32 %v3554, %v4033
  %v4082 = vmul.f32 %v3557, %v4033
  %v4083 = vmul.f32 %v3562, %v4033
  %v4084 = vmul.f32 %v3565, %v4033
  %v4085 = vmul.f32 %v3570, %v4033
  %v4086 = vmul.f32 %v3573, %v4033
  %v4087 = vmul.f32 %v3578, %v4033
  %v4088 = vmul.f32 %v3581, %v4033
  %v4089 = vmul.f32 %v3586, %v4033
  %v4090 = vmul.f32 %v3589, %v4033
  %v4091 = vmul.f32 %v3594, %v4033
  %v4092 = vmul.f32 %v3597, %v4033
  %v4093 = vmul.f32 %v3602, %v4033
  %v4094 = vmul.f32 %v3605, %v4033
  %v4095 = vmul.f32 %v3610, %v4033
  %v4096 = vmul.f32 %v3613, %v4033
  %v4097 = vmul.f32 %v3618, %v4033
  %v4098 = vmul.f32 %v3621, %v4033
  %v4100 = vlaneseq
  %v4101 = vshrl.u32 %v4100, 7
  %v4102 = vsub.s32 0, %v4101
  %v4103 = vrot.slane %v4028, %v4102
  %v4105 = vadd.f32 %v4035, %v4103
  %v4106 = vadd.f32 %v4036, %v4103
  %v4107 = vadd.f32 %v4037, %v4103
  %v4108 = vadd.f32 %v4038, %v4103
  %v4109 = vadd.f32 %v4039, %v4103
  %v4110 = vadd.f32 %v4040, %v4103
  %v4111 = vadd.f32 %v4041, %v4103
  %v4112 = vadd.f32 %v4042, %v4103
  %v4113 = vadd.f32 %v4043, %v4103
  %v4114 = vadd.f32 %v4044, %v4103
  %v4115 = vadd.f32 %v4045, %v4103
  %v4116 = vadd.f32 %v4046, %v4103
  %v4117 = vadd.f32 %v4047, %v4103
  %v4118 = vadd.f32 %v4048, %v4103
  %v4119 = vadd.f32 %v4049, %v4103
  %v4120 = vadd.f32 %v4050, %v4103
  %v4121 = vadd.f32 %v4051, %v4103
  %v4122 = vadd.f32 %v4052, %v4103
  %v4123 = vadd.f32 %v4053, %v4103
  %v4124 = vadd.f32 %v4054, %v4103
  %v4125 = vadd.f32 %v4055, %v4103
  %v4126 = vadd.f32 %v4056, %v4103
  %v4127 = vadd.f32 %v4057, %v4103
  %v4128 = vadd.f32 %v4058, %v4103
  %v4129 = vadd.f32 %v4059, %v4103
  %v4130 = vadd.f32 %v4060, %v4103
  %v4131 = vadd.f32 %v4061, %v4103
  %v4132 = vadd.f32 %v4062, %v4103
  %v4133 = vadd.f32 %v4063, %v4103
  %v4134 = vadd.f32 %v4064, %v4103
  %v4135 = vadd.f32 %v4065, %v4103
  %v4136 = vadd.f32 %v4066, %v4103
  %v4137 = vadd.f32 %v4067, %v4103
  %v4138 = vadd.f32 %v4068, %v4103
  %v4139 = vadd.f32 %v4069, %v4103
  %v4140 = vadd.f32 %v4070, %v4103
  %v4141 = vadd.f32 %v4071, %v4103
  %v4142 = vadd.f32 %v4072, %v4103
  %v4143 = vadd.f32 %v4073, %v4103
  %v4144 = vadd.f32 %v4074, %v4103
  %v4145 = vadd.f32 %v4075, %v4103
  %v4146 = vadd.f32 %v4076, %v4103
  %v4147 = vadd.f32 %v4077, %v4103
  %v4148 = vadd.f32 %v4078, %v4103
  %v4149 = vadd.f32 %v4079, %v4103
  %v4150 = vadd.f32 %v4080, %v4103
  %v4151 = vadd.f32 %v4081, %v4103
  %v4152 = vadd.f32 %v4082, %v4103
  %v4153 = vadd.f32 %v4083, %v4103
  %v4154 = vadd.f32 %v4084, %v4103
  %v4155 = vadd.f32 %v4085, %v4103
  %v4156 = vadd.f32 %v4086, %v4103
  %v4157 = vadd.f32 %v4087, %v4103
  %v4158 = vadd.f32 %v4088, %v4103
  %v4159 = vadd.f32 %v4089, %v4103
  %v4160 = vadd.f32 %v4090, %v4103
  %v4161 = vadd.f32 %v4091, %v4103
  %v4162 = vadd.f32 %v4092, %v4103
  %v4163 = vadd.f32 %v4093, %v4103
  %v4164 = vadd.f32 %v4094, %v4103
  %v4165 = vadd.f32 %v4095, %v4103
  %v4166 = vadd.f32 %v4096, %v4103
  %v4167 = vadd.f32 %v4097, %v4103
  %v4168 = vadd.f32 %v4098, %v4103
  %v4169 = vmul.f32 %v4105, 0.01
  %v4170 = vmul.f32 %v4106, 0.01
  %v4171 = vmul.f32 %v4107, 0.01
  %v4172 = vmul.f32 %v4108, 0.01
  %v4173 = vmul.f32 %v4109, 0.01
  %v4174 = vmul.f32 %v4110, 0.01
  %v4175 = vmul.f32 %v4111, 0.01
  %v4176 = vmul.f32 %v4112, 0.01
  %v4177 = vmul.f32 %v4113, 0.01
  %v4178 = vmul.f32 %v4114, 0.01
  %v4179 = vmul.f32 %v4115, 0.01
  %v4180 = vmul.f32 %v4116, 0.01
  %v4181 = vmul.f32 %v4117, 0.01
  %v4182 = vmul.f32 %v4118, 0.01
  %v4183 = vmul.f32 %v4119, 0.01
  %v4184 = vmul.f32 %v4120, 0.01
  %v4185 = vmul.f32 %v4121, 0.01
  %v4186 = vmul.f32 %v4122, 0.01
  %v4187 = vmul.f32 %v4123, 0.01
  %v4188 = vmul.f32 %v4124, 0.01
  %v4189 = vmul.f32 %v4125, 0.01
  %v4190 = vmul.f32 %v4126, 0.01
  %v4191 = vmul.f32 %v4127, 0.01
  %v4192 = vmul.f32 %v4128, 0.01
  %v4193 = vmul.f32 %v4129, 0.01
  %v4194 = vmul.f32 %v4130, 0.01
  %v4195 = vmul.f32 %v4131, 0.01
  %v4196 = vmul.f32 %v4132, 0.01
  %v4197 = vmul.f32 %v4133, 0.01
  %v4198 = vmul.f32 %v4134, 0.01
  %v4199 = vmul.f32 %v4135, 0.01
  %v4200 = vmul.f32 %v4136, 0.01
  %v4201 = vmul.f32 %v4137, 0.01
  %v4202 = vmul.f32 %v4138, 0.01
  %v4203 = vmul.f32 %v4139, 0.01
  %v4204 = vmul.f32 %v4140, 0.01
  %v4205 = vmul.f32 %v4141, 0.01
  %v4206 = vmul.f32 %v4142, 0.01
  %v4207 = vmul.f32 %v4143, 0.01
  %v4208 = vmul.f32 %v4144, 0.01
  %v4209 = vmul.f32 %v4145, 0.01
  %v4210 = vmul.f32 %v4146, 0.01
  %v4211 = vmul.f32 %v4147, 0.01
  %v4212 = vmul.f32 %v4148, 0.01
  %v4213 = vmul.f32 %v4149, 0.01
  %v4214 = vmul.f32 %v4150, 0.01
  %v4215 = vmul.f32 %v4151, 0.01
  %v4216 = vmul.f32 %v4152, 0.01
  %v4217 = vmul.f32 %v4153, 0.01
  %v4218 = vmul.f32 %v4154, 0.01
  %v4219 = vmul.f32 %v4155, 0.01
  %v4220 = vmul.f32 %v4156, 0.01
  %v4221 = vmul.f32 %v4157, 0.01
  %v4222 = vmul.f32 %v4158, 0.01
  %v4223 = vmul.f32 %v4159, 0.01
  %v4224 = vmul.f32 %v4160, 0.01
  %v4225 = vmul.f32 %v4161, 0.01
  %v4226 = vmul.f32 %v4162, 0.01
  %v4227 = vmul.f32 %v4163, 0.01
  %v4228 = vmul.f32 %v4164, 0.01
  %v4229 = vmul.f32 %v4165, 0.01
  %v4230 = vmul.f32 %v4166, 0.01
  %v4231 = vmul.f32 %v4167, 0.01
  %v4232 = vmul.f32 %v4168, 0.01
  %v4233 = vmax.f32 %v4105, %v4169
  %v4234 = vmax.f32 %v4106, %v4170
  %v4235 = vmax.f32 %v4107, %v4171
  %v4236 = vmax.f32 %v4108, %v4172
  %v4237 = vmax.f32 %v4109, %v4173
  %v4238 = vmax.f32 %v4110, %v4174
  %v4239 = vmax.f32 %v4111, %v4175
  %v4240 = vmax.f32 %v4112, %v4176
  %v4241 = vmax.f32 %v4113, %v4177
  %v4242 = vmax.f32 %v4114, %v4178
  %v4243 = vmax.f32 %v4115, %v4179
  %v4244 = vmax.f32 %v4116, %v4180
  %v4245 = vmax.f32 %v4117, %v4181
  %v4246 = vmax.f32 %v4118, %v4182
  %v4247 = vmax.f32 %v4119, %v4183
  %v4248 = vmax.f32 %v4120, %v4184
  %v4249 = vmax.f32 %v4121, %v4185
  %v4250 = vmax.f32 %v4122, %v4186
  %v4251 = vmax.f32 %v4123, %v4187
  %v4252 = vmax.f32 %v4124, %v4188
  %v4253 = vmax.f32 %v4125, %v4189
  %v4254 = vmax.f32 %v4126, %v4190
  %v4255 = vmax.f32 %v4127, %v4191
  %v4256 = vmax.f32 %v4128, %v4192
  %v4257 = vmax.f32 %v4129, %v4193
  %v4258 = vmax.f32 %v4130, %v4194
  %v4259 = vmax.f32 %v4131, %v4195
  %v4260 = vmax.f32 %v4132, %v4196
  %v4261 = vmax.f32 %v4133, %v4197
  %v4262 = vmax.f32 %v4134, %v4198
  %v4263 = vmax.f32 %v4135, %v4199
  %v4264 = vmax.f32 %v4136, %v4200
  %v4265 = vmax.f32 %v4137, %v4201
  %v4266 = vmax.f32 %v4138, %v4202
  %v4267 = vmax.f32 %v4139, %v4203
  %v4268 = vmax.f32 %v4140, %v4204
  %v4269 = vmax.f32 %v4141, %v4205
  %v4270 = vmax.f32 %v4142, %v4206
  %v4271 = vmax.f32 %v4143, %v4207
  %v4272 = vmax.f32 %v4144, %v4208
  %v4273 = vmax.f32 %v4145, %v4209
  %v4274 = vmax.f32 %v4146, %v4210
  %v4275 = vmax.f32 %v4147, %v4211
  %v4276 = vmax.f32 %v4148, %v4212
  %v4277 = vmax.f32 %v4149, %v4213
  %v4278 = vmax.f32 %v4150, %v4214
  %v4279 = vmax.f32 %v4151, %v4215
  %v4280 = vmax.f32 %v4152, %v4216
  %v4281 = vmax.f32 %v4153, %v4217
  %v4282 = vmax.f32 %v4154, %v4218
  %v4283 = vmax.f32 %v4155, %v4219
  %v4284 = vmax.f32 %v4156, %v4220
  %v4285 = vmax.f32 %v4157, %v4221
  %v4286 = vmax.f32 %v4158, %v4222
  %v4287 = vmax.f32 %v4159, %v4223
  %v4288 = vmax.f32 %v4160, %v4224
  %v4289 = vmax.f32 %v4161, %v4225
  %v4290 = vmax.f32 %v4162, %v4226
  %v4291 = vmax.f32 %v4163, %v4227
  %v4292 = vmax.f32 %v4164, %v4228
  %v4293 = vmax.f32 %v4165, %v4229
  %v4294 = vmax.f32 %v4166, %v4230
  %v4295 = vmax.f32 %v4167, %v4231
  %v4296 = vmax.f32 %v4168, %v4232
  %vm4362 = vcmask 1040384
  %v4363 = vrot.slane 0.0, 7
  %v4364 = vsel %vm4362, %v4363, %v4363
  %v4365 = vrot.slane %v4233, 7
  %v4366 = vrot.slane %v4234, 7
  %v4367 = vsel %vm4362, %v4365, %v4366
  %v4368 = vrot.slane %v4235, 7
  %v4369 = vrot.slane %v4236, 7
  %v4370 = vsel %vm4362, %v4368, %v4369
  %v4371 = vrot.slane %v4237, 7
  %v4372 = vrot.slane %v4238, 7
  %v4373 = vsel %vm4362, %v4371, %v4372
  %v4374 = vrot.slane %v4239, 7
  %v4375 = vrot.slane %v4240, 7
  %v4376 = vsel %vm4362, %v4374, %v4375
  %v4377 = vrot.slane %v4241, 7
  %v4378 = vrot.slane %v4242, 7
  %v4379 = vsel %vm4362, %v4377, %v4378
  %v4380 = vrot.slane %v4243, 7
  %v4381 = vrot.slane %v4244, 7
  %v4382 = vsel %vm4362, %v4380, %v4381
  %v4383 = vrot.slane %v4245, 7
  %v4384 = vrot.slane %v4246, 7
  %v4385 = vsel %vm4362, %v4383, %v4384
  %v4386 = vrot.slane %v4247, 7
  %v4387 = vrot.slane %v4248, 7
  %v4388 = vsel %vm4362, %v4386, %v4387
  %v4389 = vrot.slane %v4249, 7
  %v4390 = vrot.slane %v4250, 7
  %v4391 = vsel %vm4362, %v4389, %v4390
  %v4392 = vrot.slane %v4251, 7
  %v4393 = vrot.slane %v4252, 7
  %v4394 = vsel %vm4362, %v4392, %v4393
  %v4395 = vrot.slane %v4253, 7
  %v4396 = vrot.slane %v4254, 7
  %v4397 = vsel %vm4362, %v4395, %v4396
  %v4398 = vrot.slane %v4255, 7
  %v4399 = vrot.slane %v4256, 7
  %v4400 = vsel %vm4362, %v4398, %v4399
  %v4401 = vrot.slane %v4257, 7
  %v4402 = vrot.slane %v4258, 7
  %v4403 = vsel %vm4362, %v4401, %v4402
  %v4404 = vrot.slane %v4259, 7
  %v4405 = vrot.slane %v4260, 7
  %v4406 = vsel %vm4362, %v4404, %v4405
  %v4407 = vrot.slane %v4261, 7
  %v4408 = vrot.slane %v4262, 7
  %v4409 = vsel %vm4362, %v4407, %v4408
  %v4410 = vrot.slane %v4263, 7
  %v4411 = vrot.slane %v4264, 7
  %v4412 = vsel %vm4362, %v4410, %v4411
  %v4413 = vrot.slane %v4265, 7
  %v4414 = vrot.slane %v4266, 7
  %v4415 = vsel %vm4362, %v4413, %v4414
  %v4416 = vrot.slane %v4267, 7
  %v4417 = vrot.slane %v4268, 7
  %v4418 = vsel %vm4362, %v4416, %v4417
  %v4419 = vrot.slane %v4269, 7
  %v4420 = vrot.slane %v4270, 7
  %v4421 = vsel %vm4362, %v4419, %v4420
  %v4422 = vrot.slane %v4271, 7
  %v4423 = vrot.slane %v4272, 7
  %v4424 = vsel %vm4362, %v4422, %v4423
  %v4425 = vrot.slane %v4273, 7
  %v4426 = vrot.slane %v4274, 7
  %v4427 = vsel %vm4362, %v4425, %v4426
  %v4428 = vrot.slane %v4275, 7
  %v4429 = vrot.slane %v4276, 7
  %v4430 = vsel %vm4362, %v4428, %v4429
  %v4431 = vrot.slane %v4277, 7
  %v4432 = vrot.slane %v4278, 7
  %v4433 = vsel %vm4362, %v4431, %v4432
  %v4434 = vrot.slane %v4279, 7
  %v4435 = vrot.slane %v4280, 7
  %v4436 = vsel %vm4362, %v4434, %v4435
  %v4437 = vrot.slane %v4281, 7
  %v4438 = vrot.slane %v4282, 7
  %v4439 = vsel %vm4362, %v4437, %v4438
  %v4440 = vrot.slane %v4283, 7
  %v4441 = vrot.slane %v4284, 7
  %v4442 = vsel %vm4362, %v4440, %v4441
  %v4443 = vrot.slane %v4285, 7
  %v4444 = vrot.slane %v4286, 7
  %v4445 = vsel %vm4362, %v4443, %v4444
  %v4446 = vrot.slane %v4287, 7
  %v4447 = vrot.slane %v4288, 7
  %v4448 = vsel %vm4362, %v4446, %v4447
  %v4449 = vrot.slane %v4289, 7
  %v4450 = vrot.slane %v4290, 7
  %v4451 = vsel %vm4362, %v4449, %v4450
  %v4452 = vrot.slane %v4291, 7
  %v4453 = vrot.slane %v4292, 7
  %v4454 = vsel %vm4362, %v4452, %v4453
  %v4455 = vrot.slane %v4293, 7
  %v4456 = vrot.slane %v4294, 7
  %v4457 = vsel %vm4362, %v4455, %v4456
  %v4458 = vrot.slane %v4295, 7
  %v4459 = vrot.slane %v4296, 7
  %v4460 = vsel %vm4362, %v4458, %v4459
  %v4557 = vsel %vm4362, 0.0, %v4363
  %v4558 = vsel %vm4362, 0.0, %v4365
  %v4559 = vsel %vm4362, 0.0, %v4368
  %v4560 = vsel %vm4362, 0.0, %v4371
  %v4561 = vsel %vm4362, 0.0, %v4374
  %v4562 = vsel %vm4362, 0.0, %v4377
  %v4563 = vsel %vm4362, 0.0, %v4380
  %v4564 = vsel %vm4362, 0.0, %v4383
  %v4565 = vsel %vm4362, 0.0, %v4386
  %v4566 = vsel %vm4362, 0.0, %v4389
  %v4567 = vsel %vm4362, 0.0, %v4392
  %v4568 = vsel %vm4362, 0.0, %v4395
  %v4569 = vsel %vm4362, 0.0, %v4398
  %v4570 = vsel %vm4362, 0.0, %v4401
  %v4571 = vsel %vm4362, 0.0, %v4404
  %v4572 = vsel %vm4362, 0.0, %v4407
  %v4573 = vsel %vm4362, 0.0, %v4410
  %v4574 = vsel %vm4362, 0.0, %v4413
  %v4575 = vsel %vm4362, 0.0, %v4416
  %v4576 = vsel %vm4362, 0.0, %v4419
  %v4577 = vsel %vm4362, 0.0, %v4422
  %v4578 = vsel %vm4362, 0.0, %v4425
  %v4579 = vsel %vm4362, 0.0, %v4428
  %v4580 = vsel %vm4362, 0.0, %v4431
  %v4581 = vsel %vm4362, 0.0, %v4434
  %v4582 = vsel %vm4362, 0.0, %v4437
  %v4583 = vsel %vm4362, 0.0, %v4440
  %v4584 = vsel %vm4362, 0.0, %v4443
  %v4585 = vsel %vm4362, 0.0, %v4446
  %v4586 = vsel %vm4362, 0.0, %v4449
  %v4587 = vsel %vm4362, 0.0, %v4452
  %v4588 = vsel %vm4362, 0.0, %v4455
  %v4589 = vsel %vm4362, 0.0, %v4458
  %v4590 = vsel %vm4362, %v4363, 0.0
  %v4591 = vsel %vm4362, %v4366, 0.0
  %v4592 = vsel %vm4362, %v4369, 0.0
  %v4593 = vsel %vm4362, %v4372, 0.0
  %v4594 = vsel %vm4362, %v4375, 0.0
  %v4595 = vsel %vm4362, %v4378, 0.0
  %v4596 = vsel %vm4362, %v4381, 0.0
  %v4597 = vsel %vm4362, %v4384, 0.0
  %v4598 = vsel %vm4362, %v4387, 0.0
  %v4599 = vsel %vm4362, %v4390, 0.0
  %v4600 = vsel %vm4362, %v4393, 0.0
  %v4601 = vsel %vm4362, %v4396, 0.0
  %v4602 = vsel %vm4362, %v4399, 0.0
  %v4603 = vsel %vm4362, %v4402, 0.0
  %v4604 = vsel %vm4362, %v4405, 0.0
  %v4605 = vsel %vm4362, %v4408, 0.0
  %v4606 = vsel %vm4362, %v4411, 0.0
  %v4607 = vsel %vm4362, %v4414, 0.0
  %v4608 = vsel %vm4362, %v4417, 0.0
  %v4609 = vsel %vm4362, %v4420, 0.0
  %v4610 = vsel %vm4362, %v4423, 0.0
  %v4611 = vsel %vm4362, %v4426, 0.0
  %v4612 = vsel %vm4362, %v4429, 0.0
  %v4613 = vsel %vm4362, %v4432, 0.0
  %v4614 = vsel %vm4362, %v4435, 0.0
  %v4615 = vsel %vm4362, %v4438, 0.0
  %v4616 = vsel %vm4362, %v4441, 0.0
  %v4617 = vsel %vm4362, %v4444, 0.0
  %v4618 = vsel %vm4362, %v4447, 0.0
  %v4619 = vsel %vm4362, %v4450, 0.0
  %v4620 = vsel %vm4362, %v4453, 0.0
  %v4621 = vsel %vm4362, %v4456, 0.0
  %v4622 = vsel %vm4362, %v4459, 0.0
  %vm4685 = vcmask 1046528
  %v4686 = vrot.slane %v4557, 1
  %v4687 = vrot.slane %v4364, 1
  %v4688 = vsel %vm4685, %v4686, %v4687
  %v4689 = vrot.slane %v4590, 1
  %v4690 = vsel %vm4685, %v4687, %v4689
  %v4691 = vrot.slane %v4558, 1
  %v4692 = vrot.slane %v4367, 1
  %v4693 = vsel %vm4685, %v4691, %v4692
  %v4694 = vrot.slane %v4591, 1
  %v4695 = vsel %vm4685, %v4692, %v4694
  %v4696 = vrot.slane %v4559, 1
  %v4697 = vrot.slane %v4370, 1
  %v4698 = vsel %vm4685, %v4696, %v4697
  %v4699 = vrot.slane %v4592, 1
  %v4700 = vsel %vm4685, %v4697, %v4699
  %v4701 = vrot.slane %v4560, 1
  %v4702 = vrot.slane %v4373, 1
  %v4703 = vsel %vm4685, %v4701, %v4702
  %v4704 = vrot.slane %v4593, 1
  %v4705 = vsel %vm4685, %v4702, %v4704
  %v4706 = vrot.slane %v4561, 1
  %v4707 = vrot.slane %v4376, 1
  %v4708 = vsel %vm4685, %v4706, %v4707
  %v4709 = vrot.slane %v4594, 1
  %v4710 = vsel %vm4685, %v4707, %v4709
  %v4711 = vrot.slane %v4562, 1
  %v4712 = vrot.slane %v4379, 1
  %v4713 = vsel %vm4685, %v4711, %v4712
  %v4714 = vrot.slane %v4595, 1
  %v4715 = vsel %vm4685, %v4712, %v4714
  %v4716 = vrot.slane %v4563, 1
  %v4717 = vrot.slane %v4382, 1
  %v4718 = vsel %vm4685, %v4716, %v4717
  %v4719 = vrot.slane %v4596, 1
  %v4720 = vsel %vm4685, %v4717, %v4719
  %v4721 = vrot.slane %v4564, 1
  %v4722 = vrot.slane %v4385, 1
  %v4723 = vsel %vm4685, %v4721, %v4722
  %v4724 = vrot.slane %v4597, 1
  %v4725 = vsel %vm4685, %v4722, %v4724
  %v4726 = vrot.slane %v4565, 1
  %v4727 = vrot.slane %v4388, 1
  %v4728 = vsel %vm4685, %v4726, %v4727
  %v4729 = vrot.slane %v4598, 1
  %v4730 = vsel %vm4685, %v4727, %v4729
  %v4731 = vrot.slane %v4566, 1
  %v4732 = vrot.slane %v4391, 1
  %v4733 = vsel %vm4685, %v4731, %v4732
  %v4734 = vrot.slane %v4599, 1
  %v4735 = vsel %vm4685, %v4732, %v4734
  %v4736 = vrot.slane %v4567, 1
  %v4737 = vrot.slane %v4394, 1
  %v4738 = vsel %vm4685, %v4736, %v4737
  %v4739 = vrot.slane %v4600, 1
  %v4740 = vsel %vm4685, %v4737, %v4739
  %v4741 = vrot.slane %v4568, 1
  %v4742 = vrot.slane %v4397, 1
  %v4743 = vsel %vm4685, %v4741, %v4742
  %v4744 = vrot.slane %v4601, 1
  %v4745 = vsel %vm4685, %v4742, %v4744
  %v4746 = vrot.slane %v4569, 1
  %v4747 = vrot.slane %v4400, 1
  %v4748 = vsel %vm4685, %v4746, %v4747
  %v4749 = vrot.slane %v4602, 1
  %v4750 = vsel %vm4685, %v4747, %v4749
  %v4751 = vrot.slane %v4570, 1
  %v4752 = vrot.slane %v4403, 1
  %v4753 = vsel %vm4685, %v4751, %v4752
  %v4754 = vrot.slane %v4603, 1
  %v4755 = vsel %vm4685, %v4752, %v4754
  %v4756 = vrot.slane %v4571, 1
  %v4757 = vrot.slane %v4406, 1
  %v4758 = vsel %vm4685, %v4756, %v4757
  %v4759 = vrot.slane %v4604, 1
  %v4760 = vsel %vm4685, %v4757, %v4759
  %v4761 = vrot.slane %v4572, 1
  %v4762 = vrot.slane %v4409, 1
  %v4763 = vsel %vm4685, %v4761, %v4762
  %v4764 = vrot.slane %v4605, 1
  %v4765 = vsel %vm4685, %v4762, %v4764
  %v4766 = vrot.slane %v4574, 1
  %v4767 = vrot.slane %v4415, 1
  %v4768 = vsel %vm4685, %v4766, %v4767
  %v4769 = vrot.slane %v4607, 1
  %v4770 = vsel %vm4685, %v4767, %v4769
  %v4771 = vrot.slane %v4575, 1
  %v4772 = vrot.slane %v4418, 1
  %v4773 = vsel %vm4685, %v4771, %v4772
  %v4774 = vrot.slane %v4608, 1
  %v4775 = vsel %vm4685, %v4772, %v4774
  %v4776 = vrot.slane %v4576, 1
  %v4777 = vrot.slane %v4421, 1
  %v4778 = vsel %vm4685, %v4776, %v4777
  %v4779 = vrot.slane %v4609, 1
  %v4780 = vsel %vm4685, %v4777, %v4779
  %v4781 = vrot.slane %v4577, 1
  %v4782 = vrot.slane %v4424, 1
  %v4783 = vsel %vm4685, %v4781, %v4782
  %v4784 = vrot.slane %v4610, 1
  %v4785 = vsel %vm4685, %v4782, %v4784
  %v4786 = vrot.slane %v4578, 1
  %v4787 = vrot.slane %v4427, 1
  %v4788 = vsel %vm4685, %v4786, %v4787
  %v4789 = vrot.slane %v4611, 1
  %v4790 = vsel %vm4685, %v4787, %v4789
  %v4791 = vrot.slane %v4579, 1
  %v4792 = vrot.slane %v4430, 1
  %v4793 = vsel %vm4685, %v4791, %v4792
  %v4794 = vrot.slane %v4612, 1
  %v4795 = vsel %vm4685, %v4792, %v4794
  %v4796 = vrot.slane %v4580, 1
  %v4797 = vrot.slane %v4433, 1
  %v4798 = vsel %vm4685, %v4796, %v4797
  %v4799 = vrot.slane %v4613, 1
  %v4800 = vsel %vm4685, %v4797, %v4799
  %v4801 = vrot.slane %v4581, 1
  %v4802 = vrot.slane %v4436, 1
  %v4803 = vsel %vm4685, %v4801, %v4802
  %v4804 = vrot.slane %v4614, 1
  %v4805 = vsel %vm4685, %v4802, %v4804
  %v4806 = vrot.slane %v4582, 1
  %v4807 = vrot.slane %v4439, 1
  %v4808 = vsel %vm4685, %v4806, %v4807
  %v4809 = vrot.slane %v4615, 1
  %v4810 = vsel %vm4685, %v4807, %v4809
  %v4811 = vrot.slane %v4583, 1
  %v4812 = vrot.slane %v4442, 1
  %v4813 = vsel %vm4685, %v4811, %v4812
  %v4814 = vrot.slane %v4616, 1
  %v4815 = vsel %vm4685, %v4812, %v4814
  %v4816 = vrot.slane %v4584, 1
  %v4817 = vrot.slane %v4445, 1
  %v4818 = vsel %vm4685, %v4816, %v4817
  %v4819 = vrot.slane %v4617, 1
  %v4820 = vsel %vm4685, %v4817, %v4819
  %v4821 = vrot.slane %v4585, 1
  %v4822 = vrot.slane %v4448, 1
  %v4823 = vsel %vm4685, %v4821, %v4822
  %v4824 = vrot.slane %v4618, 1
  %v4825 = vsel %vm4685, %v4822, %v4824
  %v4826 = vrot.slane %v4586, 1
  %v4827 = vrot.slane %v4451, 1
  %v4828 = vsel %vm4685, %v4826, %v4827
  %v4829 = vrot.slane %v4619, 1
  %v4830 = vsel %vm4685, %v4827, %v4829
  %v4831 = vrot.slane %v4587, 1
  %v4832 = vrot.slane %v4454, 1
  %v4833 = vsel %vm4685, %v4831, %v4832
  %v4834 = vrot.slane %v4620, 1
  %v4835 = vsel %vm4685, %v4832, %v4834
  %v4836 = vrot.slane %v4588, 1
  %v4837 = vrot.slane %v4457, 1
  %v4838 = vsel %vm4685, %v4836, %v4837
  %v4839 = vrot.slane %v4621, 1
  %v4840 = vsel %vm4685, %v4837, %v4839
  %4841 = vrot.lane.b32.xlu0 %v4688, 2
  %v4842 = vpop.permute.xlu0 %4841
  %4843 = vrot.lane.b32.xlu0 %v4690, 2
  %v4844 = vpop.permute.xlu0 %4843
  %4845 = vrot.lane.b32.xlu0 %v4693, 2
  %v4846 = vpop.permute.xlu0 %4845
  %4847 = vrot.lane.b32.xlu0 %v4695, 2
  %v4848 = vpop.permute.xlu0 %4847
  %4849 = vrot.lane.b32.xlu0 %v4698, 2
  %v4850 = vpop.permute.xlu0 %4849
  %4851 = vrot.lane.b32.xlu0 %v4700, 2
  %v4852 = vpop.permute.xlu0 %4851
  %4853 = vrot.lane.b32.xlu0 %v4703, 2
  %v4854 = vpop.permute.xlu0 %4853
  %4855 = vrot.lane.b32.xlu0 %v4705, 2
  %v4856 = vpop.permute.xlu0 %4855
  %4857 = vrot.lane.b32.xlu0 %v4708, 2
  %v4858 = vpop.permute.xlu0 %4857
  %4859 = vrot.lane.b32.xlu0 %v4710, 2
  %v4860 = vpop.permute.xlu0 %4859
  %4861 = vrot.lane.b32.xlu0 %v4713, 2
  %v4862 = vpop.permute.xlu0 %4861
  %4863 = vrot.lane.b32.xlu0 %v4715, 2
  %v4864 = vpop.permute.xlu0 %4863
  %4865 = vrot.lane.b32.xlu0 %v4718, 2
  %v4866 = vpop.permute.xlu0 %4865
  %4867 = vrot.lane.b32.xlu0 %v4720, 2
  %v4868 = vpop.permute.xlu0 %4867
  %4869 = vrot.lane.b32.xlu0 %v4723, 2
  %v4870 = vpop.permute.xlu0 %4869
  %4871 = vrot.lane.b32.xlu0 %v4725, 2
  %v4872 = vpop.permute.xlu0 %4871
  %4873 = vrot.lane.b32.xlu0 %v4728, 2
  %v4874 = vpop.permute.xlu0 %4873
  %4875 = vrot.lane.b32.xlu0 %v4730, 2
  %v4876 = vpop.permute.xlu0 %4875
  %4877 = vrot.lane.b32.xlu0 %v4733, 2
  %v4878 = vpop.permute.xlu0 %4877
  %4879 = vrot.lane.b32.xlu0 %v4735, 2
  %v4880 = vpop.permute.xlu0 %4879
  %4881 = vrot.lane.b32.xlu0 %v4738, 2
  %v4882 = vpop.permute.xlu0 %4881
  %4883 = vrot.lane.b32.xlu0 %v4740, 2
  %v4884 = vpop.permute.xlu0 %4883
  %4885 = vrot.lane.b32.xlu0 %v4743, 2
  %v4886 = vpop.permute.xlu0 %4885
  %4887 = vrot.lane.b32.xlu0 %v4745, 2
  %v4888 = vpop.permute.xlu0 %4887
  %4889 = vrot.lane.b32.xlu0 %v4748, 2
  %v4890 = vpop.permute.xlu0 %4889
  %4891 = vrot.lane.b32.xlu0 %v4750, 2
  %v4892 = vpop.permute.xlu0 %4891
  %4893 = vrot.lane.b32.xlu0 %v4753, 2
  %v4894 = vpop.permute.xlu0 %4893
  %4895 = vrot.lane.b32.xlu0 %v4755, 2
  %v4896 = vpop.permute.xlu0 %4895
  %4897 = vrot.lane.b32.xlu0 %v4758, 2
  %v4898 = vpop.permute.xlu0 %4897
  %4899 = vrot.lane.b32.xlu0 %v4760, 2
  %v4900 = vpop.permute.xlu0 %4899
  %4901 = vrot.lane.b32.xlu0 %v4763, 2
  %v4902 = vpop.permute.xlu0 %4901
  %4903 = vrot.lane.b32.xlu0 %v4765, 2
  %v4904 = vpop.permute.xlu0 %4903
  %4905 = vrot.lane.b32.xlu0 %v4768, 2
  %v4906 = vpop.permute.xlu0 %4905
  %4907 = vrot.lane.b32.xlu0 %v4770, 2
  %v4908 = vpop.permute.xlu0 %4907
  %4909 = vrot.lane.b32.xlu0 %v4773, 2
  %v4910 = vpop.permute.xlu0 %4909
  %4911 = vrot.lane.b32.xlu0 %v4775, 2
  %v4912 = vpop.permute.xlu0 %4911
  %4913 = vrot.lane.b32.xlu0 %v4778, 2
  %v4914 = vpop.permute.xlu0 %4913
  %4915 = vrot.lane.b32.xlu0 %v4780, 2
  %v4916 = vpop.permute.xlu0 %4915
  %4917 = vrot.lane.b32.xlu0 %v4783, 2
  %v4918 = vpop.permute.xlu0 %4917
  %4919 = vrot.lane.b32.xlu0 %v4785, 2
  %v4920 = vpop.permute.xlu0 %4919
  %4921 = vrot.lane.b32.xlu0 %v4788, 2
  %v4922 = vpop.permute.xlu0 %4921
  %4923 = vrot.lane.b32.xlu0 %v4790, 2
  %v4924 = vpop.permute.xlu0 %4923
  %4925 = vrot.lane.b32.xlu0 %v4793, 2
  %v4926 = vpop.permute.xlu0 %4925
  %4927 = vrot.lane.b32.xlu0 %v4795, 2
  %v4928 = vpop.permute.xlu0 %4927
  %4929 = vrot.lane.b32.xlu0 %v4798, 2
  %v4930 = vpop.permute.xlu0 %4929
  %4931 = vrot.lane.b32.xlu0 %v4800, 2
  %v4932 = vpop.permute.xlu0 %4931
  %4933 = vrot.lane.b32.xlu0 %v4803, 2
  %v4934 = vpop.permute.xlu0 %4933
  %4935 = vrot.lane.b32.xlu0 %v4805, 2
  %v4936 = vpop.permute.xlu0 %4935
  %4937 = vrot.lane.b32.xlu0 %v4808, 2
  %v4938 = vpop.permute.xlu0 %4937
  %4939 = vrot.lane.b32.xlu0 %v4810, 2
  %v4940 = vpop.permute.xlu0 %4939
  %4941 = vrot.lane.b32.xlu0 %v4813, 2
  %v4942 = vpop.permute.xlu0 %4941
  %4943 = vrot.lane.b32.xlu0 %v4815, 2
  %v4944 = vpop.permute.xlu0 %4943
  %4945 = vrot.lane.b32.xlu0 %v4818, 2
  %v4946 = vpop.permute.xlu0 %4945
  %4947 = vrot.lane.b32.xlu0 %v4820, 2
  %v4948 = vpop.permute.xlu0 %4947
  %4949 = vrot.lane.b32.xlu0 %v4823, 2
  %v4950 = vpop.permute.xlu0 %4949
  %4951 = vrot.lane.b32.xlu0 %v4825, 2
  %v4952 = vpop.permute.xlu0 %4951
  %4953 = vrot.lane.b32.xlu0 %v4828, 2
  %v4954 = vpop.permute.xlu0 %4953
  %4955 = vrot.lane.b32.xlu0 %v4830, 2
  %v4956 = vpop.permute.xlu0 %4955
  %4957 = vrot.lane.b32.xlu0 %v4833, 2
  %v4958 = vpop.permute.xlu0 %4957
  %4959 = vrot.lane.b32.xlu0 %v4835, 2
  %v4960 = vpop.permute.xlu0 %4959
  %4961 = vrot.lane.b32.xlu0 %v4838, 2
  %v4962 = vpop.permute.xlu0 %4961
  %4963 = vrot.lane.b32.xlu0 %v4840, 2
  %v4964 = vpop.permute.xlu0 %4963
  %vm5027 = vcmask 1045504
  %v5028 = vrot.slane %v4557, 2
  %v5029 = vrot.slane %v4364, 2
  %v5030 = vsel %vm5027, %v5028, %v5029
  %v5031 = vrot.slane %v4590, 2
  %v5032 = vsel %vm5027, %v5029, %v5031
  %v5033 = vrot.slane %v4558, 2
  %v5034 = vrot.slane %v4367, 2
  %v5035 = vsel %vm5027, %v5033, %v5034
  %v5036 = vrot.slane %v4591, 2
  %v5037 = vsel %vm5027, %v5034, %v5036
  %v5038 = vrot.slane %v4559, 2
  %v5039 = vrot.slane %v4370, 2
  %v5040 = vsel %vm5027, %v5038, %v5039
  %v5041 = vrot.slane %v4592, 2
  %v5042 = vsel %vm5027, %v5039, %v5041
  %v5043 = vrot.slane %v4560, 2
  %v5044 = vrot.slane %v4373, 2
  %v5045 = vsel %vm5027, %v5043, %v5044
  %v5046 = vrot.slane %v4593, 2
  %v5047 = vsel %vm5027, %v5044, %v5046
  %v5048 = vrot.slane %v4561, 2
  %v5049 = vrot.slane %v4376, 2
  %v5050 = vsel %vm5027, %v5048, %v5049
  %v5051 = vrot.slane %v4594, 2
  %v5052 = vsel %vm5027, %v5049, %v5051
  %v5053 = vrot.slane %v4562, 2
  %v5054 = vrot.slane %v4379, 2
  %v5055 = vsel %vm5027, %v5053, %v5054
  %v5056 = vrot.slane %v4595, 2
  %v5057 = vsel %vm5027, %v5054, %v5056
  %v5058 = vrot.slane %v4563, 2
  %v5059 = vrot.slane %v4382, 2
  %v5060 = vsel %vm5027, %v5058, %v5059
  %v5061 = vrot.slane %v4596, 2
  %v5062 = vsel %vm5027, %v5059, %v5061
  %v5063 = vrot.slane %v4564, 2
  %v5064 = vrot.slane %v4385, 2
  %v5065 = vsel %vm5027, %v5063, %v5064
  %v5066 = vrot.slane %v4597, 2
  %v5067 = vsel %vm5027, %v5064, %v5066
  %v5068 = vrot.slane %v4565, 2
  %v5069 = vrot.slane %v4388, 2
  %v5070 = vsel %vm5027, %v5068, %v5069
  %v5071 = vrot.slane %v4598, 2
  %v5072 = vsel %vm5027, %v5069, %v5071
  %v5073 = vrot.slane %v4566, 2
  %v5074 = vrot.slane %v4391, 2
  %v5075 = vsel %vm5027, %v5073, %v5074
  %v5076 = vrot.slane %v4599, 2
  %v5077 = vsel %vm5027, %v5074, %v5076
  %v5078 = vrot.slane %v4567, 2
  %v5079 = vrot.slane %v4394, 2
  %v5080 = vsel %vm5027, %v5078, %v5079
  %v5081 = vrot.slane %v4600, 2
  %v5082 = vsel %vm5027, %v5079, %v5081
  %v5083 = vrot.slane %v4568, 2
  %v5084 = vrot.slane %v4397, 2
  %v5085 = vsel %vm5027, %v5083, %v5084
  %v5086 = vrot.slane %v4601, 2
  %v5087 = vsel %vm5027, %v5084, %v5086
  %v5088 = vrot.slane %v4569, 2
  %v5089 = vrot.slane %v4400, 2
  %v5090 = vsel %vm5027, %v5088, %v5089
  %v5091 = vrot.slane %v4602, 2
  %v5092 = vsel %vm5027, %v5089, %v5091
  %v5093 = vrot.slane %v4570, 2
  %v5094 = vrot.slane %v4403, 2
  %v5095 = vsel %vm5027, %v5093, %v5094
  %v5096 = vrot.slane %v4603, 2
  %v5097 = vsel %vm5027, %v5094, %v5096
  %v5098 = vrot.slane %v4571, 2
  %v5099 = vrot.slane %v4406, 2
  %v5100 = vsel %vm5027, %v5098, %v5099
  %v5101 = vrot.slane %v4604, 2
  %v5102 = vsel %vm5027, %v5099, %v5101
  %v5103 = vrot.slane %v4572, 2
  %v5104 = vrot.slane %v4409, 2
  %v5105 = vsel %vm5027, %v5103, %v5104
  %v5106 = vrot.slane %v4605, 2
  %v5107 = vsel %vm5027, %v5104, %v5106
  %v5108 = vrot.slane %v4574, 2
  %v5109 = vrot.slane %v4415, 2
  %v5110 = vsel %vm5027, %v5108, %v5109
  %v5111 = vrot.slane %v4607, 2
  %v5112 = vsel %vm5027, %v5109, %v5111
  %v5113 = vrot.slane %v4575, 2
  %v5114 = vrot.slane %v4418, 2
  %v5115 = vsel %vm5027, %v5113, %v5114
  %v5116 = vrot.slane %v4608, 2
  %v5117 = vsel %vm5027, %v5114, %v5116
  %v5118 = vrot.slane %v4576, 2
  %v5119 = vrot.slane %v4421, 2
  %v5120 = vsel %vm5027, %v5118, %v5119
  %v5121 = vrot.slane %v4609, 2
  %v5122 = vsel %vm5027, %v5119, %v5121
  %v5123 = vrot.slane %v4577, 2
  %v5124 = vrot.slane %v4424, 2
  %v5125 = vsel %vm5027, %v5123, %v5124
  %v5126 = vrot.slane %v4610, 2
  %v5127 = vsel %vm5027, %v5124, %v5126
  %v5128 = vrot.slane %v4578, 2
  %v5129 = vrot.slane %v4427, 2
  %v5130 = vsel %vm5027, %v5128, %v5129
  %v5131 = vrot.slane %v4611, 2
  %v5132 = vsel %vm5027, %v5129, %v5131
  %v5133 = vrot.slane %v4579, 2
  %v5134 = vrot.slane %v4430, 2
  %v5135 = vsel %vm5027, %v5133, %v5134
  %v5136 = vrot.slane %v4612, 2
  %v5137 = vsel %vm5027, %v5134, %v5136
  %v5138 = vrot.slane %v4580, 2
  %v5139 = vrot.slane %v4433, 2
  %v5140 = vsel %vm5027, %v5138, %v5139
  %v5141 = vrot.slane %v4613, 2
  %v5142 = vsel %vm5027, %v5139, %v5141
  %v5143 = vrot.slane %v4581, 2
  %v5144 = vrot.slane %v4436, 2
  %v5145 = vsel %vm5027, %v5143, %v5144
  %v5146 = vrot.slane %v4614, 2
  %v5147 = vsel %vm5027, %v5144, %v5146
  %v5148 = vrot.slane %v4582, 2
  %v5149 = vrot.slane %v4439, 2
  %v5150 = vsel %vm5027, %v5148, %v5149
  %v5151 = vrot.slane %v4615, 2
  %v5152 = vsel %vm5027, %v5149, %v5151
  %v5153 = vrot.slane %v4583, 2
  %v5154 = vrot.slane %v4442, 2
  %v5155 = vsel %vm5027, %v5153, %v5154
  %v5156 = vrot.slane %v4616, 2
  %v5157 = vsel %vm5027, %v5154, %v5156
  %v5158 = vrot.slane %v4584, 2
  %v5159 = vrot.slane %v4445, 2
  %v5160 = vsel %vm5027, %v5158, %v5159
  %v5161 = vrot.slane %v4617, 2
  %v5162 = vsel %vm5027, %v5159, %v5161
  %v5163 = vrot.slane %v4585, 2
  %v5164 = vrot.slane %v4448, 2
  %v5165 = vsel %vm5027, %v5163, %v5164
  %v5166 = vrot.slane %v4618, 2
  %v5167 = vsel %vm5027, %v5164, %v5166
  %v5168 = vrot.slane %v4586, 2
  %v5169 = vrot.slane %v4451, 2
  %v5170 = vsel %vm5027, %v5168, %v5169
  %v5171 = vrot.slane %v4619, 2
  %v5172 = vsel %vm5027, %v5169, %v5171
  %v5173 = vrot.slane %v4587, 2
  %v5174 = vrot.slane %v4454, 2
  %v5175 = vsel %vm5027, %v5173, %v5174
  %v5176 = vrot.slane %v4620, 2
  %v5177 = vsel %vm5027, %v5174, %v5176
  %v5178 = vrot.slane %v4588, 2
  %v5179 = vrot.slane %v4457, 2
  %v5180 = vsel %vm5027, %v5178, %v5179
  %v5181 = vrot.slane %v4621, 2
  %v5182 = vsel %vm5027, %v5179, %v5181
  %5183 = vrot.lane.b32.xlu0 %v5030, 4
  %v5184 = vpop.permute.xlu0 %5183
  %5185 = vrot.lane.b32.xlu0 %v5032, 4
  %v5186 = vpop.permute.xlu0 %5185
  %5187 = vrot.lane.b32.xlu0 %v5035, 4
  %v5188 = vpop.permute.xlu0 %5187
  %5189 = vrot.lane.b32.xlu0 %v5037, 4
  %v5190 = vpop.permute.xlu0 %5189
  %5191 = vrot.lane.b32.xlu0 %v5040, 4
  %v5192 = vpop.permute.xlu0 %5191
  %5193 = vrot.lane.b32.xlu0 %v5042, 4
  %v5194 = vpop.permute.xlu0 %5193
  %5195 = vrot.lane.b32.xlu0 %v5045, 4
  %v5196 = vpop.permute.xlu0 %5195
  %5197 = vrot.lane.b32.xlu0 %v5047, 4
  %v5198 = vpop.permute.xlu0 %5197
  %5199 = vrot.lane.b32.xlu0 %v5050, 4
  %v5200 = vpop.permute.xlu0 %5199
  %5201 = vrot.lane.b32.xlu0 %v5052, 4
  %v5202 = vpop.permute.xlu0 %5201
  %5203 = vrot.lane.b32.xlu0 %v5055, 4
  %v5204 = vpop.permute.xlu0 %5203
  %5205 = vrot.lane.b32.xlu0 %v5057, 4
  %v5206 = vpop.permute.xlu0 %5205
  %5207 = vrot.lane.b32.xlu0 %v5060, 4
  %v5208 = vpop.permute.xlu0 %5207
  %5209 = vrot.lane.b32.xlu0 %v5062, 4
  %v5210 = vpop.permute.xlu0 %5209
  %5211 = vrot.lane.b32.xlu0 %v5065, 4
  %v5212 = vpop.permute.xlu0 %5211
  %5213 = vrot.lane.b32.xlu0 %v5067, 4
  %v5214 = vpop.permute.xlu0 %5213
  %5215 = vrot.lane.b32.xlu0 %v5070, 4
  %v5216 = vpop.permute.xlu0 %5215
  %5217 = vrot.lane.b32.xlu0 %v5072, 4
  %v5218 = vpop.permute.xlu0 %5217
  %5219 = vrot.lane.b32.xlu0 %v5075, 4
  %v5220 = vpop.permute.xlu0 %5219
  %5221 = vrot.lane.b32.xlu0 %v5077, 4
  %v5222 = vpop.permute.xlu0 %5221
  %5223 = vrot.lane.b32.xlu0 %v5080, 4
  %v5224 = vpop.permute.xlu0 %5223
  %5225 = vrot.lane.b32.xlu0 %v5082, 4
  %v5226 = vpop.permute.xlu0 %5225
  %5227 = vrot.lane.b32.xlu0 %v5085, 4
  %v5228 = vpop.permute.xlu0 %5227
  %5229 = vrot.lane.b32.xlu0 %v5087, 4
  %v5230 = vpop.permute.xlu0 %5229
  %5231 = vrot.lane.b32.xlu0 %v5090, 4
  %v5232 = vpop.permute.xlu0 %5231
  %5233 = vrot.lane.b32.xlu0 %v5092, 4
  %v5234 = vpop.permute.xlu0 %5233
  %5235 = vrot.lane.b32.xlu0 %v5095, 4
  %v5236 = vpop.permute.xlu0 %5235
  %5237 = vrot.lane.b32.xlu0 %v5097, 4
  %v5238 = vpop.permute.xlu0 %5237
  %5239 = vrot.lane.b32.xlu0 %v5100, 4
  %v5240 = vpop.permute.xlu0 %5239
  %5241 = vrot.lane.b32.xlu0 %v5102, 4
  %v5242 = vpop.permute.xlu0 %5241
  %5243 = vrot.lane.b32.xlu0 %v5105, 4
  %v5244 = vpop.permute.xlu0 %5243
  %5245 = vrot.lane.b32.xlu0 %v5107, 4
  %v5246 = vpop.permute.xlu0 %5245
  %5247 = vrot.lane.b32.xlu0 %v5110, 4
  %v5248 = vpop.permute.xlu0 %5247
  %5249 = vrot.lane.b32.xlu0 %v5112, 4
  %v5250 = vpop.permute.xlu0 %5249
  %5251 = vrot.lane.b32.xlu0 %v5115, 4
  %v5252 = vpop.permute.xlu0 %5251
  %5253 = vrot.lane.b32.xlu0 %v5117, 4
  %v5254 = vpop.permute.xlu0 %5253
  %5255 = vrot.lane.b32.xlu0 %v5120, 4
  %v5256 = vpop.permute.xlu0 %5255
  %5257 = vrot.lane.b32.xlu0 %v5122, 4
  %v5258 = vpop.permute.xlu0 %5257
  %5259 = vrot.lane.b32.xlu0 %v5125, 4
  %v5260 = vpop.permute.xlu0 %5259
  %5261 = vrot.lane.b32.xlu0 %v5127, 4
  %v5262 = vpop.permute.xlu0 %5261
  %5263 = vrot.lane.b32.xlu0 %v5130, 4
  %v5264 = vpop.permute.xlu0 %5263
  %5265 = vrot.lane.b32.xlu0 %v5132, 4
  %v5266 = vpop.permute.xlu0 %5265
  %5267 = vrot.lane.b32.xlu0 %v5135, 4
  %v5268 = vpop.permute.xlu0 %5267
  %5269 = vrot.lane.b32.xlu0 %v5137, 4
  %v5270 = vpop.permute.xlu0 %5269
  %5271 = vrot.lane.b32.xlu0 %v5140, 4
  %v5272 = vpop.permute.xlu0 %5271
  %5273 = vrot.lane.b32.xlu0 %v5142, 4
  %v5274 = vpop.permute.xlu0 %5273
  %5275 = vrot.lane.b32.xlu0 %v5145, 4
  %v5276 = vpop.permute.xlu0 %5275
  %5277 = vrot.lane.b32.xlu0 %v5147, 4
  %v5278 = vpop.permute.xlu0 %5277
  %5279 = vrot.lane.b32.xlu0 %v5150, 4
  %v5280 = vpop.permute.xlu0 %5279
  %5281 = vrot.lane.b32.xlu0 %v5152, 4
  %v5282 = vpop.permute.xlu0 %5281
  %5283 = vrot.lane.b32.xlu0 %v5155, 4
  %v5284 = vpop.permute.xlu0 %5283
  %5285 = vrot.lane.b32.xlu0 %v5157, 4
  %v5286 = vpop.permute.xlu0 %5285
  %5287 = vrot.lane.b32.xlu0 %v5160, 4
  %v5288 = vpop.permute.xlu0 %5287
  %5289 = vrot.lane.b32.xlu0 %v5162, 4
  %v5290 = vpop.permute.xlu0 %5289
  %5291 = vrot.lane.b32.xlu0 %v5165, 4
  %v5292 = vpop.permute.xlu0 %5291
  %5293 = vrot.lane.b32.xlu0 %v5167, 4
  %v5294 = vpop.permute.xlu0 %5293
  %5295 = vrot.lane.b32.xlu0 %v5170, 4
  %v5296 = vpop.permute.xlu0 %5295
  %5297 = vrot.lane.b32.xlu0 %v5172, 4
  %v5298 = vpop.permute.xlu0 %5297
  %5299 = vrot.lane.b32.xlu0 %v5175, 4
  %v5300 = vpop.permute.xlu0 %5299
  %5301 = vrot.lane.b32.xlu0 %v5177, 4
  %v5302 = vpop.permute.xlu0 %5301
  %5303 = vrot.lane.b32.xlu0 %v5180, 4
  %v5304 = vpop.permute.xlu0 %5303
  %5305 = vrot.lane.b32.xlu0 %v5182, 4
  %v5306 = vpop.permute.xlu0 %5305
  %5371 = vrot.lane.b32.xlu0 %v4558, 6
  %v5372 = vpop.permute.xlu0 %5371
  %5373 = vrot.lane.b32.xlu0 %v4367, 6
  %v5374 = vpop.permute.xlu0 %5373
  %5375 = vrot.lane.b32.xlu0 %v4559, 6
  %v5376 = vpop.permute.xlu0 %5375
  %5377 = vrot.lane.b32.xlu0 %v4370, 6
  %v5378 = vpop.permute.xlu0 %5377
  %5379 = vrot.lane.b32.xlu0 %v4560, 6
  %v5380 = vpop.permute.xlu0 %5379
  %5381 = vrot.lane.b32.xlu0 %v4373, 6
  %v5382 = vpop.permute.xlu0 %5381
  %5383 = vrot.lane.b32.xlu0 %v4561, 6
  %v5384 = vpop.permute.xlu0 %5383
  %5385 = vrot.lane.b32.xlu0 %v4376, 6
  %v5386 = vpop.permute.xlu0 %5385
  %5387 = vrot.lane.b32.xlu0 %v4562, 6
  %v5388 = vpop.permute.xlu0 %5387
  %5389 = vrot.lane.b32.xlu0 %v4379, 6
  %v5390 = vpop.permute.xlu0 %5389
  %5391 = vrot.lane.b32.xlu0 %v4563, 6
  %v5392 = vpop.permute.xlu0 %5391
  %5393 = vrot.lane.b32.xlu0 %v4382, 6
  %v5394 = vpop.permute.xlu0 %5393
  %5395 = vrot.lane.b32.xlu0 %v4564, 6
  %v5396 = vpop.permute.xlu0 %5395
  %5397 = vrot.lane.b32.xlu0 %v4385, 6
  %v5398 = vpop.permute.xlu0 %5397
  %5399 = vrot.lane.b32.xlu0 %v4565, 6
  %v5400 = vpop.permute.xlu0 %5399
  %5401 = vrot.lane.b32.xlu0 %v4388, 6
  %v5402 = vpop.permute.xlu0 %5401
  %5403 = vrot.lane.b32.xlu0 %v4566, 6
  %v5404 = vpop.permute.xlu0 %5403
  %5405 = vrot.lane.b32.xlu0 %v4391, 6
  %v5406 = vpop.permute.xlu0 %5405
  %5407 = vrot.lane.b32.xlu0 %v4567, 6
  %v5408 = vpop.permute.xlu0 %5407
  %5409 = vrot.lane.b32.xlu0 %v4394, 6
  %v5410 = vpop.permute.xlu0 %5409
  %5411 = vrot.lane.b32.xlu0 %v4568, 6
  %v5412 = vpop.permute.xlu0 %5411
  %5413 = vrot.lane.b32.xlu0 %v4397, 6
  %v5414 = vpop.permute.xlu0 %5413
  %5415 = vrot.lane.b32.xlu0 %v4569, 6
  %v5416 = vpop.permute.xlu0 %5415
  %5417 = vrot.lane.b32.xlu0 %v4400, 6
  %v5418 = vpop.permute.xlu0 %5417
  %5419 = vrot.lane.b32.xlu0 %v4570, 6
  %v5420 = vpop.permute.xlu0 %5419
  %5421 = vrot.lane.b32.xlu0 %v4403, 6
  %v5422 = vpop.permute.xlu0 %5421
  %5423 = vrot.lane.b32.xlu0 %v4571, 6
  %v5424 = vpop.permute.xlu0 %5423
  %5425 = vrot.lane.b32.xlu0 %v4406, 6
  %v5426 = vpop.permute.xlu0 %5425
  %5427 = vrot.lane.b32.xlu0 %v4572, 6
  %v5428 = vpop.permute.xlu0 %5427
  %5429 = vrot.lane.b32.xlu0 %v4409, 6
  %v5430 = vpop.permute.xlu0 %5429
  %5431 = vrot.lane.b32.xlu0 %v4573, 6
  %v5432 = vpop.permute.xlu0 %5431
  %5433 = vrot.lane.b32.xlu0 %v4412, 6
  %v5434 = vpop.permute.xlu0 %5433
  %5435 = vrot.lane.b32.xlu0 %v4574, 6
  %v5436 = vpop.permute.xlu0 %5435
  %5437 = vrot.lane.b32.xlu0 %v4415, 6
  %v5438 = vpop.permute.xlu0 %5437
  %5439 = vrot.lane.b32.xlu0 %v4575, 6
  %v5440 = vpop.permute.xlu0 %5439
  %5441 = vrot.lane.b32.xlu0 %v4418, 6
  %v5442 = vpop.permute.xlu0 %5441
  %5443 = vrot.lane.b32.xlu0 %v4576, 6
  %v5444 = vpop.permute.xlu0 %5443
  %5445 = vrot.lane.b32.xlu0 %v4421, 6
  %v5446 = vpop.permute.xlu0 %5445
  %5447 = vrot.lane.b32.xlu0 %v4577, 6
  %v5448 = vpop.permute.xlu0 %5447
  %5449 = vrot.lane.b32.xlu0 %v4424, 6
  %v5450 = vpop.permute.xlu0 %5449
  %5451 = vrot.lane.b32.xlu0 %v4578, 6
  %v5452 = vpop.permute.xlu0 %5451
  %5453 = vrot.lane.b32.xlu0 %v4427, 6
  %v5454 = vpop.permute.xlu0 %5453
  %5455 = vrot.lane.b32.xlu0 %v4579, 6
  %v5456 = vpop.permute.xlu0 %5455
  %5457 = vrot.lane.b32.xlu0 %v4430, 6
  %v5458 = vpop.permute.xlu0 %5457
  %5459 = vrot.lane.b32.xlu0 %v4580, 6
  %v5460 = vpop.permute.xlu0 %5459
  %5461 = vrot.lane.b32.xlu0 %v4433, 6
  %v5462 = vpop.permute.xlu0 %5461
  %5463 = vrot.lane.b32.xlu0 %v4581, 6
  %v5464 = vpop.permute.xlu0 %5463
  %5465 = vrot.lane.b32.xlu0 %v4436, 6
  %v5466 = vpop.permute.xlu0 %5465
  %5467 = vrot.lane.b32.xlu0 %v4582, 6
  %v5468 = vpop.permute.xlu0 %5467
  %5469 = vrot.lane.b32.xlu0 %v4439, 6
  %v5470 = vpop.permute.xlu0 %5469
  %5471 = vrot.lane.b32.xlu0 %v4583, 6
  %v5472 = vpop.permute.xlu0 %5471
  %5473 = vrot.lane.b32.xlu0 %v4442, 6
  %v5474 = vpop.permute.xlu0 %5473
  %5475 = vrot.lane.b32.xlu0 %v4584, 6
  %v5476 = vpop.permute.xlu0 %5475
  %5477 = vrot.lane.b32.xlu0 %v4445, 6
  %v5478 = vpop.permute.xlu0 %5477
  %5479 = vrot.lane.b32.xlu0 %v4585, 6
  %v5480 = vpop.permute.xlu0 %5479
  %5481 = vrot.lane.b32.xlu0 %v4448, 6
  %v5482 = vpop.permute.xlu0 %5481
  %5483 = vrot.lane.b32.xlu0 %v4586, 6
  %v5484 = vpop.permute.xlu0 %5483
  %5485 = vrot.lane.b32.xlu0 %v4451, 6
  %v5486 = vpop.permute.xlu0 %5485
  %5487 = vrot.lane.b32.xlu0 %v4587, 6
  %v5488 = vpop.permute.xlu0 %5487
  %5489 = vrot.lane.b32.xlu0 %v4454, 6
  %v5490 = vpop.permute.xlu0 %5489
  %5491 = vrot.lane.b32.xlu0 %v4588, 6
  %v5492 = vpop.permute.xlu0 %5491
  %5493 = vrot.lane.b32.xlu0 %v4457, 6
  %v5494 = vpop.permute.xlu0 %5493
  %5495 = vrot.lane.b32.xlu0 %v4589, 6
  %v5496 = vpop.permute.xlu0 %5495
  %5497 = vrot.lane.b32.xlu0 %v4460, 6
  %v5498 = vpop.permute.xlu0 %5497
  %v5565 = vrot.slane %v4573, 1
  %v5566 = vrot.slane %v4412, 1
  %v5567 = vsel %vm4685, %v5565, %v5566
  %v5568 = vrot.slane %v4606, 1
  %v5569 = vsel %vm4685, %v5566, %v5568
  %v5570 = vrot.slane %v4589, 1
  %v5571 = vrot.slane %v4460, 1
  %v5572 = vsel %vm4685, %v5570, %v5571
  %v5573 = vrot.slane %v4622, 1
  %v5574 = vsel %vm4685, %v5571, %v5573
  %5575 = vrot.lane.b32.xlu0 %v4693, 8
  %v5576 = vpop.permute.xlu0 %5575
  %5577 = vrot.lane.b32.xlu0 %v4695, 8
  %v5578 = vpop.permute.xlu0 %5577
  %5579 = vrot.lane.b32.xlu0 %v4698, 8
  %v5580 = vpop.permute.xlu0 %5579
  %5581 = vrot.lane.b32.xlu0 %v4700, 8
  %v5582 = vpop.permute.xlu0 %5581
  %5583 = vrot.lane.b32.xlu0 %v4703, 8
  %v5584 = vpop.permute.xlu0 %5583
  %5585 = vrot.lane.b32.xlu0 %v4705, 8
  %v5586 = vpop.permute.xlu0 %5585
  %5587 = vrot.lane.b32.xlu0 %v4708, 8
  %v5588 = vpop.permute.xlu0 %5587
  %5589 = vrot.lane.b32.xlu0 %v4710, 8
  %v5590 = vpop.permute.xlu0 %5589
  %5591 = vrot.lane.b32.xlu0 %v4713, 8
  %v5592 = vpop.permute.xlu0 %5591
  %5593 = vrot.lane.b32.xlu0 %v4715, 8
  %v5594 = vpop.permute.xlu0 %5593
  %5595 = vrot.lane.b32.xlu0 %v4718, 8
  %v5596 = vpop.permute.xlu0 %5595
  %5597 = vrot.lane.b32.xlu0 %v4720, 8
  %v5598 = vpop.permute.xlu0 %5597
  %5599 = vrot.lane.b32.xlu0 %v4723, 8
  %v5600 = vpop.permute.xlu0 %5599
  %5601 = vrot.lane.b32.xlu0 %v4725, 8
  %v5602 = vpop.permute.xlu0 %5601
  %5603 = vrot.lane.b32.xlu0 %v4728, 8
  %v5604 = vpop.permute.xlu0 %5603
  %5605 = vrot.lane.b32.xlu0 %v4730, 8
  %v5606 = vpop.permute.xlu0 %5605
  %5607 = vrot.lane.b32.xlu0 %v4733, 8
  %v5608 = vpop.permute.xlu0 %5607
  %5609 = vrot.lane.b32.xlu0 %v4735, 8
  %v5610 = vpop.permute.xlu0 %5609
  %5611 = vrot.lane.b32.xlu0 %v4738, 8
  %v5612 = vpop.permute.xlu0 %5611
  %5613 = vrot.lane.b32.xlu0 %v4740, 8
  %v5614 = vpop.permute.xlu0 %5613
  %5615 = vrot.lane.b32.xlu0 %v4743, 8
  %v5616 = vpop.permute.xlu0 %5615
  %5617 = vrot.lane.b32.xlu0 %v4745, 8
  %v5618 = vpop.permute.xlu0 %5617
  %5619 = vrot.lane.b32.xlu0 %v4748, 8
  %v5620 = vpop.permute.xlu0 %5619
  %5621 = vrot.lane.b32.xlu0 %v4750, 8
  %v5622 = vpop.permute.xlu0 %5621
  %5623 = vrot.lane.b32.xlu0 %v4753, 8
  %v5624 = vpop.permute.xlu0 %5623
  %5625 = vrot.lane.b32.xlu0 %v4755, 8
  %v5626 = vpop.permute.xlu0 %5625
  %5627 = vrot.lane.b32.xlu0 %v4758, 8
  %v5628 = vpop.permute.xlu0 %5627
  %5629 = vrot.lane.b32.xlu0 %v4760, 8
  %v5630 = vpop.permute.xlu0 %5629
  %5631 = vrot.lane.b32.xlu0 %v4763, 8
  %v5632 = vpop.permute.xlu0 %5631
  %5633 = vrot.lane.b32.xlu0 %v4765, 8
  %v5634 = vpop.permute.xlu0 %5633
  %5635 = vrot.lane.b32.xlu0 %v5567, 8
  %v5636 = vpop.permute.xlu0 %5635
  %5637 = vrot.lane.b32.xlu0 %v5569, 8
  %v5638 = vpop.permute.xlu0 %5637
  %5639 = vrot.lane.b32.xlu0 %v4768, 8
  %v5640 = vpop.permute.xlu0 %5639
  %5641 = vrot.lane.b32.xlu0 %v4770, 8
  %v5642 = vpop.permute.xlu0 %5641
  %5643 = vrot.lane.b32.xlu0 %v4773, 8
  %v5644 = vpop.permute.xlu0 %5643
  %5645 = vrot.lane.b32.xlu0 %v4775, 8
  %v5646 = vpop.permute.xlu0 %5645
  %5647 = vrot.lane.b32.xlu0 %v4778, 8
  %v5648 = vpop.permute.xlu0 %5647
  %5649 = vrot.lane.b32.xlu0 %v4780, 8
  %v5650 = vpop.permute.xlu0 %5649
  %5651 = vrot.lane.b32.xlu0 %v4783, 8
  %v5652 = vpop.permute.xlu0 %5651
  %5653 = vrot.lane.b32.xlu0 %v4785, 8
  %v5654 = vpop.permute.xlu0 %5653
  %5655 = vrot.lane.b32.xlu0 %v4788, 8
  %v5656 = vpop.permute.xlu0 %5655
  %5657 = vrot.lane.b32.xlu0 %v4790, 8
  %v5658 = vpop.permute.xlu0 %5657
  %5659 = vrot.lane.b32.xlu0 %v4793, 8
  %v5660 = vpop.permute.xlu0 %5659
  %5661 = vrot.lane.b32.xlu0 %v4795, 8
  %v5662 = vpop.permute.xlu0 %5661
  %5663 = vrot.lane.b32.xlu0 %v4798, 8
  %v5664 = vpop.permute.xlu0 %5663
  %5665 = vrot.lane.b32.xlu0 %v4800, 8
  %v5666 = vpop.permute.xlu0 %5665
  %5667 = vrot.lane.b32.xlu0 %v4803, 8
  %v5668 = vpop.permute.xlu0 %5667
  %5669 = vrot.lane.b32.xlu0 %v4805, 8
  %v5670 = vpop.permute.xlu0 %5669
  %5671 = vrot.lane.b32.xlu0 %v4808, 8
  %v5672 = vpop.permute.xlu0 %5671
  %5673 = vrot.lane.b32.xlu0 %v4810, 8
  %v5674 = vpop.permute.xlu0 %5673
  %5675 = vrot.lane.b32.xlu0 %v4813, 8
  %v5676 = vpop.permute.xlu0 %5675
  %5677 = vrot.lane.b32.xlu0 %v4815, 8
  %v5678 = vpop.permute.xlu0 %5677
  %5679 = vrot.lane.b32.xlu0 %v4818, 8
  %v5680 = vpop.permute.xlu0 %5679
  %5681 = vrot.lane.b32.xlu0 %v4820, 8
  %v5682 = vpop.permute.xlu0 %5681
  %5683 = vrot.lane.b32.xlu0 %v4823, 8
  %v5684 = vpop.permute.xlu0 %5683
  %5685 = vrot.lane.b32.xlu0 %v4825, 8
  %v5686 = vpop.permute.xlu0 %5685
  %5687 = vrot.lane.b32.xlu0 %v4828, 8
  %v5688 = vpop.permute.xlu0 %5687
  %5689 = vrot.lane.b32.xlu0 %v4830, 8
  %v5690 = vpop.permute.xlu0 %5689
  %5691 = vrot.lane.b32.xlu0 %v4833, 8
  %v5692 = vpop.permute.xlu0 %5691
  %5693 = vrot.lane.b32.xlu0 %v4835, 8
  %v5694 = vpop.permute.xlu0 %5693
  %5695 = vrot.lane.b32.xlu0 %v4838, 8
  %v5696 = vpop.permute.xlu0 %5695
  %5697 = vrot.lane.b32.xlu0 %v4840, 8
  %v5698 = vpop.permute.xlu0 %5697
  %5699 = vrot.lane.b32.xlu0 %v5572, 8
  %v5700 = vpop.permute.xlu0 %5699
  %5701 = vrot.lane.b32.xlu0 %v5574, 8
  %v5702 = vpop.permute.xlu0 %5701
  %v5767 = vrot.slane %v4573, 2
  %v5768 = vrot.slane %v4412, 2
  %v5769 = vsel %vm5027, %v5767, %v5768
  %v5770 = vrot.slane %v4606, 2
  %v5771 = vsel %vm5027, %v5768, %v5770
  %v5772 = vrot.slane %v4589, 2
  %v5773 = vrot.slane %v4460, 2
  %v5774 = vsel %vm5027, %v5772, %v5773
  %v5775 = vrot.slane %v4622, 2
  %v5776 = vsel %vm5027, %v5773, %v5775
  %5777 = vrot.lane.b32.xlu0 %v5035, 10
  %v5778 = vpop.permute.xlu0 %5777
  %5779 = vrot.lane.b32.xlu0 %v5037, 10
  %v5780 = vpop.permute.xlu0 %5779
  %5781 = vrot.lane.b32.xlu0 %v5040, 10
  %v5782 = vpop.permute.xlu0 %5781
  %5783 = vrot.lane.b32.xlu0 %v5042, 10
  %v5784 = vpop.permute.xlu0 %5783
  %5785 = vrot.lane.b32.xlu0 %v5045, 10
  %v5786 = vpop.permute.xlu0 %5785
  %5787 = vrot.lane.b32.xlu0 %v5047, 10
  %v5788 = vpop.permute.xlu0 %5787
  %5789 = vrot.lane.b32.xlu0 %v5050, 10
  %v5790 = vpop.permute.xlu0 %5789
  %5791 = vrot.lane.b32.xlu0 %v5052, 10
  %v5792 = vpop.permute.xlu0 %5791
  %5793 = vrot.lane.b32.xlu0 %v5055, 10
  %v5794 = vpop.permute.xlu0 %5793
  %5795 = vrot.lane.b32.xlu0 %v5057, 10
  %v5796 = vpop.permute.xlu0 %5795
  %5797 = vrot.lane.b32.xlu0 %v5060, 10
  %v5798 = vpop.permute.xlu0 %5797
  %5799 = vrot.lane.b32.xlu0 %v5062, 10
  %v5800 = vpop.permute.xlu0 %5799
  %5801 = vrot.lane.b32.xlu0 %v5065, 10
  %v5802 = vpop.permute.xlu0 %5801
  %5803 = vrot.lane.b32.xlu0 %v5067, 10
  %v5804 = vpop.permute.xlu0 %5803
  %5805 = vrot.lane.b32.xlu0 %v5070, 10
  %v5806 = vpop.permute.xlu0 %5805
  %5807 = vrot.lane.b32.xlu0 %v5072, 10
  %v5808 = vpop.permute.xlu0 %5807
  %5809 = vrot.lane.b32.xlu0 %v5075, 10
  %v5810 = vpop.permute.xlu0 %5809
  %5811 = vrot.lane.b32.xlu0 %v5077, 10
  %v5812 = vpop.permute.xlu0 %5811
  %5813 = vrot.lane.b32.xlu0 %v5080, 10
  %v5814 = vpop.permute.xlu0 %5813
  %5815 = vrot.lane.b32.xlu0 %v5082, 10
  %v5816 = vpop.permute.xlu0 %5815
  %5817 = vrot.lane.b32.xlu0 %v5085, 10
  %v5818 = vpop.permute.xlu0 %5817
  %5819 = vrot.lane.b32.xlu0 %v5087, 10
  %v5820 = vpop.permute.xlu0 %5819
  %5821 = vrot.lane.b32.xlu0 %v5090, 10
  %v5822 = vpop.permute.xlu0 %5821
  %5823 = vrot.lane.b32.xlu0 %v5092, 10
  %v5824 = vpop.permute.xlu0 %5823
  %5825 = vrot.lane.b32.xlu0 %v5095, 10
  %v5826 = vpop.permute.xlu0 %5825
  %5827 = vrot.lane.b32.xlu0 %v5097, 10
  %v5828 = vpop.permute.xlu0 %5827
  %5829 = vrot.lane.b32.xlu0 %v5100, 10
  %v5830 = vpop.permute.xlu0 %5829
  %5831 = vrot.lane.b32.xlu0 %v5102, 10
  %v5832 = vpop.permute.xlu0 %5831
  %5833 = vrot.lane.b32.xlu0 %v5105, 10
  %v5834 = vpop.permute.xlu0 %5833
  %5835 = vrot.lane.b32.xlu0 %v5107, 10
  %v5836 = vpop.permute.xlu0 %5835
  %5837 = vrot.lane.b32.xlu0 %v5769, 10
  %v5838 = vpop.permute.xlu0 %5837
  %5839 = vrot.lane.b32.xlu0 %v5771, 10
  %v5840 = vpop.permute.xlu0 %5839
  %5841 = vrot.lane.b32.xlu0 %v5110, 10
  %v5842 = vpop.permute.xlu0 %5841
  %5843 = vrot.lane.b32.xlu0 %v5112, 10
  %v5844 = vpop.permute.xlu0 %5843
  %5845 = vrot.lane.b32.xlu0 %v5115, 10
  %v5846 = vpop.permute.xlu0 %5845
  %5847 = vrot.lane.b32.xlu0 %v5117, 10
  %v5848 = vpop.permute.xlu0 %5847
  %5849 = vrot.lane.b32.xlu0 %v5120, 10
  %v5850 = vpop.permute.xlu0 %5849
  %5851 = vrot.lane.b32.xlu0 %v5122, 10
  %v5852 = vpop.permute.xlu0 %5851
  %5853 = vrot.lane.b32.xlu0 %v5125, 10
  %v5854 = vpop.permute.xlu0 %5853
  %5855 = vrot.lane.b32.xlu0 %v5127, 10
  %v5856 = vpop.permute.xlu0 %5855
  %5857 = vrot.lane.b32.xlu0 %v5130, 10
  %v5858 = vpop.permute.xlu0 %5857
  %5859 = vrot.lane.b32.xlu0 %v5132, 10
  %v5860 = vpop.permute.xlu0 %5859
  %5861 = vrot.lane.b32.xlu0 %v5135, 10
  %v5862 = vpop.permute.xlu0 %5861
  %5863 = vrot.lane.b32.xlu0 %v5137, 10
  %v5864 = vpop.permute.xlu0 %5863
  %5865 = vrot.lane.b32.xlu0 %v5140, 10
  %v5866 = vpop.permute.xlu0 %5865
  %5867 = vrot.lane.b32.xlu0 %v5142, 10
  %v5868 = vpop.permute.xlu0 %5867
  %5869 = vrot.lane.b32.xlu0 %v5145, 10
  %v5870 = vpop.permute.xlu0 %5869
  %5871 = vrot.lane.b32.xlu0 %v5147, 10
  %v5872 = vpop.permute.xlu0 %5871
  %5873 = vrot.lane.b32.xlu0 %v5150, 10
  %v5874 = vpop.permute.xlu0 %5873
  %5875 = vrot.lane.b32.xlu0 %v5152, 10
  %v5876 = vpop.permute.xlu0 %5875
  %5877 = vrot.lane.b32.xlu0 %v5155, 10
  %v5878 = vpop.permute.xlu0 %5877
  %5879 = vrot.lane.b32.xlu0 %v5157, 10
  %v5880 = vpop.permute.xlu0 %5879
  %5881 = vrot.lane.b32.xlu0 %v5160, 10
  %v5882 = vpop.permute.xlu0 %5881
  %5883 = vrot.lane.b32.xlu0 %v5162, 10
  %v5884 = vpop.permute.xlu0 %5883
  %5885 = vrot.lane.b32.xlu0 %v5165, 10
  %v5886 = vpop.permute.xlu0 %5885
  %5887 = vrot.lane.b32.xlu0 %v5167, 10
  %v5888 = vpop.permute.xlu0 %5887
  %5889 = vrot.lane.b32.xlu0 %v5170, 10
  %v5890 = vpop.permute.xlu0 %5889
  %5891 = vrot.lane.b32.xlu0 %v5172, 10
  %v5892 = vpop.permute.xlu0 %5891
  %5893 = vrot.lane.b32.xlu0 %v5175, 10
  %v5894 = vpop.permute.xlu0 %5893
  %5895 = vrot.lane.b32.xlu0 %v5177, 10
  %v5896 = vpop.permute.xlu0 %5895
  %5897 = vrot.lane.b32.xlu0 %v5180, 10
  %v5898 = vpop.permute.xlu0 %5897
  %5899 = vrot.lane.b32.xlu0 %v5182, 10
  %v5900 = vpop.permute.xlu0 %5899
  %5901 = vrot.lane.b32.xlu0 %v5774, 10
  %v5902 = vpop.permute.xlu0 %5901
  %5903 = vrot.lane.b32.xlu0 %v5776, 10
  %v5904 = vpop.permute.xlu0 %5903
  %5969 = vrot.lane.b32.xlu0 %v4559, 12
  %v5970 = vpop.permute.xlu0 %5969
  %5971 = vrot.lane.b32.xlu0 %v4370, 12
  %v5972 = vpop.permute.xlu0 %5971
  %5973 = vrot.lane.b32.xlu0 %v4560, 12
  %v5974 = vpop.permute.xlu0 %5973
  %5975 = vrot.lane.b32.xlu0 %v4373, 12
  %v5976 = vpop.permute.xlu0 %5975
  %5977 = vrot.lane.b32.xlu0 %v4561, 12
  %v5978 = vpop.permute.xlu0 %5977
  %5979 = vrot.lane.b32.xlu0 %v4376, 12
  %v5980 = vpop.permute.xlu0 %5979
  %5981 = vrot.lane.b32.xlu0 %v4562, 12
  %v5982 = vpop.permute.xlu0 %5981
  %5983 = vrot.lane.b32.xlu0 %v4379, 12
  %v5984 = vpop.permute.xlu0 %5983
  %5985 = vrot.lane.b32.xlu0 %v4563, 12
  %v5986 = vpop.permute.xlu0 %5985
  %5987 = vrot.lane.b32.xlu0 %v4382, 12
  %v5988 = vpop.permute.xlu0 %5987
  %5989 = vrot.lane.b32.xlu0 %v4564, 12
  %v5990 = vpop.permute.xlu0 %5989
  %5991 = vrot.lane.b32.xlu0 %v4385, 12
  %v5992 = vpop.permute.xlu0 %5991
  %5993 = vrot.lane.b32.xlu0 %v4565, 12
  %v5994 = vpop.permute.xlu0 %5993
  %5995 = vrot.lane.b32.xlu0 %v4388, 12
  %v5996 = vpop.permute.xlu0 %5995
  %5997 = vrot.lane.b32.xlu0 %v4566, 12
  %v5998 = vpop.permute.xlu0 %5997
  %5999 = vrot.lane.b32.xlu0 %v4391, 12
  %v6000 = vpop.permute.xlu0 %5999
  %6001 = vrot.lane.b32.xlu0 %v4567, 12
  %v6002 = vpop.permute.xlu0 %6001
  %6003 = vrot.lane.b32.xlu0 %v4394, 12
  %v6004 = vpop.permute.xlu0 %6003
  %6005 = vrot.lane.b32.xlu0 %v4568, 12
  %v6006 = vpop.permute.xlu0 %6005
  %6007 = vrot.lane.b32.xlu0 %v4397, 12
  %v6008 = vpop.permute.xlu0 %6007
  %6009 = vrot.lane.b32.xlu0 %v4569, 12
  %v6010 = vpop.permute.xlu0 %6009
  %6011 = vrot.lane.b32.xlu0 %v4400, 12
  %v6012 = vpop.permute.xlu0 %6011
  %6013 = vrot.lane.b32.xlu0 %v4570, 12
  %v6014 = vpop.permute.xlu0 %6013
  %6015 = vrot.lane.b32.xlu0 %v4403, 12
  %v6016 = vpop.permute.xlu0 %6015
  %6017 = vrot.lane.b32.xlu0 %v4571, 12
  %v6018 = vpop.permute.xlu0 %6017
  %6019 = vrot.lane.b32.xlu0 %v4406, 12
  %v6020 = vpop.permute.xlu0 %6019
  %6021 = vrot.lane.b32.xlu0 %v4572, 12
  %v6022 = vpop.permute.xlu0 %6021
  %6023 = vrot.lane.b32.xlu0 %v4409, 12
  %v6024 = vpop.permute.xlu0 %6023
  %6025 = vrot.lane.b32.xlu0 %v4573, 12
  %v6026 = vpop.permute.xlu0 %6025
  %6027 = vrot.lane.b32.xlu0 %v4412, 12
  %v6028 = vpop.permute.xlu0 %6027
  %6029 = vrot.lane.b32.xlu0 %v4557, 12
  %v6030 = vpop.permute.xlu0 %6029
  %6031 = vrot.lane.b32.xlu0 %v4364, 12
  %v6032 = vpop.permute.xlu0 %6031
  %6033 = vrot.lane.b32.xlu0 %v4575, 12
  %v6034 = vpop.permute.xlu0 %6033
  %6035 = vrot.lane.b32.xlu0 %v4418, 12
  %v6036 = vpop.permute.xlu0 %6035
  %6037 = vrot.lane.b32.xlu0 %v4576, 12
  %v6038 = vpop.permute.xlu0 %6037
  %6039 = vrot.lane.b32.xlu0 %v4421, 12
  %v6040 = vpop.permute.xlu0 %6039
  %6041 = vrot.lane.b32.xlu0 %v4577, 12
  %v6042 = vpop.permute.xlu0 %6041
  %6043 = vrot.lane.b32.xlu0 %v4424, 12
  %v6044 = vpop.permute.xlu0 %6043
  %6045 = vrot.lane.b32.xlu0 %v4578, 12
  %v6046 = vpop.permute.xlu0 %6045
  %6047 = vrot.lane.b32.xlu0 %v4427, 12
  %v6048 = vpop.permute.xlu0 %6047
  %6049 = vrot.lane.b32.xlu0 %v4579, 12
  %v6050 = vpop.permute.xlu0 %6049
  %6051 = vrot.lane.b32.xlu0 %v4430, 12
  %v6052 = vpop.permute.xlu0 %6051
  %6053 = vrot.lane.b32.xlu0 %v4580, 12
  %v6054 = vpop.permute.xlu0 %6053
  %6055 = vrot.lane.b32.xlu0 %v4433, 12
  %v6056 = vpop.permute.xlu0 %6055
  %6057 = vrot.lane.b32.xlu0 %v4581, 12
  %v6058 = vpop.permute.xlu0 %6057
  %6059 = vrot.lane.b32.xlu0 %v4436, 12
  %v6060 = vpop.permute.xlu0 %6059
  %6061 = vrot.lane.b32.xlu0 %v4582, 12
  %v6062 = vpop.permute.xlu0 %6061
  %6063 = vrot.lane.b32.xlu0 %v4439, 12
  %v6064 = vpop.permute.xlu0 %6063
  %6065 = vrot.lane.b32.xlu0 %v4583, 12
  %v6066 = vpop.permute.xlu0 %6065
  %6067 = vrot.lane.b32.xlu0 %v4442, 12
  %v6068 = vpop.permute.xlu0 %6067
  %6069 = vrot.lane.b32.xlu0 %v4584, 12
  %v6070 = vpop.permute.xlu0 %6069
  %6071 = vrot.lane.b32.xlu0 %v4445, 12
  %v6072 = vpop.permute.xlu0 %6071
  %6073 = vrot.lane.b32.xlu0 %v4585, 12
  %v6074 = vpop.permute.xlu0 %6073
  %6075 = vrot.lane.b32.xlu0 %v4448, 12
  %v6076 = vpop.permute.xlu0 %6075
  %6077 = vrot.lane.b32.xlu0 %v4586, 12
  %v6078 = vpop.permute.xlu0 %6077
  %6079 = vrot.lane.b32.xlu0 %v4451, 12
  %v6080 = vpop.permute.xlu0 %6079
  %6081 = vrot.lane.b32.xlu0 %v4587, 12
  %v6082 = vpop.permute.xlu0 %6081
  %6083 = vrot.lane.b32.xlu0 %v4454, 12
  %v6084 = vpop.permute.xlu0 %6083
  %6085 = vrot.lane.b32.xlu0 %v4588, 12
  %v6086 = vpop.permute.xlu0 %6085
  %6087 = vrot.lane.b32.xlu0 %v4457, 12
  %v6088 = vpop.permute.xlu0 %6087
  %6089 = vrot.lane.b32.xlu0 %v4589, 12
  %v6090 = vpop.permute.xlu0 %6089
  %6091 = vrot.lane.b32.xlu0 %v4460, 12
  %v6092 = vpop.permute.xlu0 %6091
  %6155 = vrot.lane.b32.xlu0 %v4698, 14
  %v6156 = vpop.permute.xlu0 %6155
  %6157 = vrot.lane.b32.xlu0 %v4700, 14
  %v6158 = vpop.permute.xlu0 %6157
  %6159 = vrot.lane.b32.xlu0 %v4703, 14
  %v6160 = vpop.permute.xlu0 %6159
  %6161 = vrot.lane.b32.xlu0 %v4705, 14
  %v6162 = vpop.permute.xlu0 %6161
  %6163 = vrot.lane.b32.xlu0 %v4708, 14
  %v6164 = vpop.permute.xlu0 %6163
  %6165 = vrot.lane.b32.xlu0 %v4710, 14
  %v6166 = vpop.permute.xlu0 %6165
  %6167 = vrot.lane.b32.xlu0 %v4713, 14
  %v6168 = vpop.permute.xlu0 %6167
  %6169 = vrot.lane.b32.xlu0 %v4715, 14
  %v6170 = vpop.permute.xlu0 %6169
  %6171 = vrot.lane.b32.xlu0 %v4718, 14
  %v6172 = vpop.permute.xlu0 %6171
  %6173 = vrot.lane.b32.xlu0 %v4720, 14
  %v6174 = vpop.permute.xlu0 %6173
  %6175 = vrot.lane.b32.xlu0 %v4723, 14
  %v6176 = vpop.permute.xlu0 %6175
  %6177 = vrot.lane.b32.xlu0 %v4725, 14
  %v6178 = vpop.permute.xlu0 %6177
  %6179 = vrot.lane.b32.xlu0 %v4728, 14
  %v6180 = vpop.permute.xlu0 %6179
  %6181 = vrot.lane.b32.xlu0 %v4730, 14
  %v6182 = vpop.permute.xlu0 %6181
  %6183 = vrot.lane.b32.xlu0 %v4733, 14
  %v6184 = vpop.permute.xlu0 %6183
  %6185 = vrot.lane.b32.xlu0 %v4735, 14
  %v6186 = vpop.permute.xlu0 %6185
  %6187 = vrot.lane.b32.xlu0 %v4738, 14
  %v6188 = vpop.permute.xlu0 %6187
  %6189 = vrot.lane.b32.xlu0 %v4740, 14
  %v6190 = vpop.permute.xlu0 %6189
  %6191 = vrot.lane.b32.xlu0 %v4743, 14
  %v6192 = vpop.permute.xlu0 %6191
  %6193 = vrot.lane.b32.xlu0 %v4745, 14
  %v6194 = vpop.permute.xlu0 %6193
  %6195 = vrot.lane.b32.xlu0 %v4748, 14
  %v6196 = vpop.permute.xlu0 %6195
  %6197 = vrot.lane.b32.xlu0 %v4750, 14
  %v6198 = vpop.permute.xlu0 %6197
  %6199 = vrot.lane.b32.xlu0 %v4753, 14
  %v6200 = vpop.permute.xlu0 %6199
  %6201 = vrot.lane.b32.xlu0 %v4755, 14
  %v6202 = vpop.permute.xlu0 %6201
  %6203 = vrot.lane.b32.xlu0 %v4758, 14
  %v6204 = vpop.permute.xlu0 %6203
  %6205 = vrot.lane.b32.xlu0 %v4760, 14
  %v6206 = vpop.permute.xlu0 %6205
  %6207 = vrot.lane.b32.xlu0 %v4763, 14
  %v6208 = vpop.permute.xlu0 %6207
  %6209 = vrot.lane.b32.xlu0 %v4765, 14
  %v6210 = vpop.permute.xlu0 %6209
  %6211 = vrot.lane.b32.xlu0 %v5567, 14
  %v6212 = vpop.permute.xlu0 %6211
  %6213 = vrot.lane.b32.xlu0 %v5569, 14
  %v6214 = vpop.permute.xlu0 %6213
  %6215 = vrot.lane.b32.xlu0 %v4688, 14
  %v6216 = vpop.permute.xlu0 %6215
  %6217 = vrot.lane.b32.xlu0 %v4690, 14
  %v6218 = vpop.permute.xlu0 %6217
  %6219 = vrot.lane.b32.xlu0 %v4773, 14
  %v6220 = vpop.permute.xlu0 %6219
  %6221 = vrot.lane.b32.xlu0 %v4775, 14
  %v6222 = vpop.permute.xlu0 %6221
  %6223 = vrot.lane.b32.xlu0 %v4778, 14
  %v6224 = vpop.permute.xlu0 %6223
  %6225 = vrot.lane.b32.xlu0 %v4780, 14
  %v6226 = vpop.permute.xlu0 %6225
  %6227 = vrot.lane.b32.xlu0 %v4783, 14
  %v6228 = vpop.permute.xlu0 %6227
  %6229 = vrot.lane.b32.xlu0 %v4785, 14
  %v6230 = vpop.permute.xlu0 %6229
  %6231 = vrot.lane.b32.xlu0 %v4788, 14
  %v6232 = vpop.permute.xlu0 %6231
  %6233 = vrot.lane.b32.xlu0 %v4790, 14
  %v6234 = vpop.permute.xlu0 %6233
  %6235 = vrot.lane.b32.xlu0 %v4793, 14
  %v6236 = vpop.permute.xlu0 %6235
  %6237 = vrot.lane.b32.xlu0 %v4795, 14
  %v6238 = vpop.permute.xlu0 %6237
  %6239 = vrot.lane.b32.xlu0 %v4798, 14
  %v6240 = vpop.permute.xlu0 %6239
  %6241 = vrot.lane.b32.xlu0 %v4800, 14
  %v6242 = vpop.permute.xlu0 %6241
  %6243 = vrot.lane.b32.xlu0 %v4803, 14
  %v6244 = vpop.permute.xlu0 %6243
  %6245 = vrot.lane.b32.xlu0 %v4805, 14
  %v6246 = vpop.permute.xlu0 %6245
  %6247 = vrot.lane.b32.xlu0 %v4808, 14
  %v6248 = vpop.permute.xlu0 %6247
  %6249 = vrot.lane.b32.xlu0 %v4810, 14
  %v6250 = vpop.permute.xlu0 %6249
  %6251 = vrot.lane.b32.xlu0 %v4813, 14
  %v6252 = vpop.permute.xlu0 %6251
  %6253 = vrot.lane.b32.xlu0 %v4815, 14
  %v6254 = vpop.permute.xlu0 %6253
  %6255 = vrot.lane.b32.xlu0 %v4818, 14
  %v6256 = vpop.permute.xlu0 %6255
  %6257 = vrot.lane.b32.xlu0 %v4820, 14
  %v6258 = vpop.permute.xlu0 %6257
  %6259 = vrot.lane.b32.xlu0 %v4823, 14
  %v6260 = vpop.permute.xlu0 %6259
  %6261 = vrot.lane.b32.xlu0 %v4825, 14
  %v6262 = vpop.permute.xlu0 %6261
  %6263 = vrot.lane.b32.xlu0 %v4828, 14
  %v6264 = vpop.permute.xlu0 %6263
  %6265 = vrot.lane.b32.xlu0 %v4830, 14
  %v6266 = vpop.permute.xlu0 %6265
  %6267 = vrot.lane.b32.xlu0 %v4833, 14
  %v6268 = vpop.permute.xlu0 %6267
  %6269 = vrot.lane.b32.xlu0 %v4835, 14
  %v6270 = vpop.permute.xlu0 %6269
  %6271 = vrot.lane.b32.xlu0 %v4838, 14
  %v6272 = vpop.permute.xlu0 %6271
  %6273 = vrot.lane.b32.xlu0 %v4840, 14
  %v6274 = vpop.permute.xlu0 %6273
  %6275 = vrot.lane.b32.xlu0 %v5572, 14
  %v6276 = vpop.permute.xlu0 %6275
  %6277 = vrot.lane.b32.xlu0 %v5574, 14
  %v6278 = vpop.permute.xlu0 %6277
  %6341 = vrot.lane.b32.xlu0 %v5040, 16
  %v6342 = vpop.permute.xlu0 %6341
  %6343 = vrot.lane.b32.xlu0 %v5042, 16
  %v6344 = vpop.permute.xlu0 %6343
  %6345 = vrot.lane.b32.xlu0 %v5045, 16
  %v6346 = vpop.permute.xlu0 %6345
  %6347 = vrot.lane.b32.xlu0 %v5047, 16
  %v6348 = vpop.permute.xlu0 %6347
  %6349 = vrot.lane.b32.xlu0 %v5050, 16
  %v6350 = vpop.permute.xlu0 %6349
  %6351 = vrot.lane.b32.xlu0 %v5052, 16
  %v6352 = vpop.permute.xlu0 %6351
  %6353 = vrot.lane.b32.xlu0 %v5055, 16
  %v6354 = vpop.permute.xlu0 %6353
  %6355 = vrot.lane.b32.xlu0 %v5057, 16
  %v6356 = vpop.permute.xlu0 %6355
  %6357 = vrot.lane.b32.xlu0 %v5060, 16
  %v6358 = vpop.permute.xlu0 %6357
  %6359 = vrot.lane.b32.xlu0 %v5062, 16
  %v6360 = vpop.permute.xlu0 %6359
  %6361 = vrot.lane.b32.xlu0 %v5065, 16
  %v6362 = vpop.permute.xlu0 %6361
  %6363 = vrot.lane.b32.xlu0 %v5067, 16
  %v6364 = vpop.permute.xlu0 %6363
  %6365 = vrot.lane.b32.xlu0 %v5070, 16
  %v6366 = vpop.permute.xlu0 %6365
  %6367 = vrot.lane.b32.xlu0 %v5072, 16
  %v6368 = vpop.permute.xlu0 %6367
  %6369 = vrot.lane.b32.xlu0 %v5075, 16
  %v6370 = vpop.permute.xlu0 %6369
  %6371 = vrot.lane.b32.xlu0 %v5077, 16
  %v6372 = vpop.permute.xlu0 %6371
  %6373 = vrot.lane.b32.xlu0 %v5080, 16
  %v6374 = vpop.permute.xlu0 %6373
  %6375 = vrot.lane.b32.xlu0 %v5082, 16
  %v6376 = vpop.permute.xlu0 %6375
  %6377 = vrot.lane.b32.xlu0 %v5085, 16
  %v6378 = vpop.permute.xlu0 %6377
  %6379 = vrot.lane.b32.xlu0 %v5087, 16
  %v6380 = vpop.permute.xlu0 %6379
  %6381 = vrot.lane.b32.xlu0 %v5090, 16
  %v6382 = vpop.permute.xlu0 %6381
  %6383 = vrot.lane.b32.xlu0 %v5092, 16
  %v6384 = vpop.permute.xlu0 %6383
  %6385 = vrot.lane.b32.xlu0 %v5095, 16
  %v6386 = vpop.permute.xlu0 %6385
  %6387 = vrot.lane.b32.xlu0 %v5097, 16
  %v6388 = vpop.permute.xlu0 %6387
  %6389 = vrot.lane.b32.xlu0 %v5100, 16
  %v6390 = vpop.permute.xlu0 %6389
  %6391 = vrot.lane.b32.xlu0 %v5102, 16
  %v6392 = vpop.permute.xlu0 %6391
  %6393 = vrot.lane.b32.xlu0 %v5105, 16
  %v6394 = vpop.permute.xlu0 %6393
  %6395 = vrot.lane.b32.xlu0 %v5107, 16
  %v6396 = vpop.permute.xlu0 %6395
  %6397 = vrot.lane.b32.xlu0 %v5769, 16
  %v6398 = vpop.permute.xlu0 %6397
  %6399 = vrot.lane.b32.xlu0 %v5771, 16
  %v6400 = vpop.permute.xlu0 %6399
  %6401 = vrot.lane.b32.xlu0 %v5030, 16
  %v6402 = vpop.permute.xlu0 %6401
  %6403 = vrot.lane.b32.xlu0 %v5032, 16
  %v6404 = vpop.permute.xlu0 %6403
  %6405 = vrot.lane.b32.xlu0 %v5115, 16
  %v6406 = vpop.permute.xlu0 %6405
  %6407 = vrot.lane.b32.xlu0 %v5117, 16
  %v6408 = vpop.permute.xlu0 %6407
  %6409 = vrot.lane.b32.xlu0 %v5120, 16
  %v6410 = vpop.permute.xlu0 %6409
  %6411 = vrot.lane.b32.xlu0 %v5122, 16
  %v6412 = vpop.permute.xlu0 %6411
  %6413 = vrot.lane.b32.xlu0 %v5125, 16
  %v6414 = vpop.permute.xlu0 %6413
  %6415 = vrot.lane.b32.xlu0 %v5127, 16
  %v6416 = vpop.permute.xlu0 %6415
  %6417 = vrot.lane.b32.xlu0 %v5130, 16
  %v6418 = vpop.permute.xlu0 %6417
  %6419 = vrot.lane.b32.xlu0 %v5132, 16
  %v6420 = vpop.permute.xlu0 %6419
  %6421 = vrot.lane.b32.xlu0 %v5135, 16
  %v6422 = vpop.permute.xlu0 %6421
  %6423 = vrot.lane.b32.xlu0 %v5137, 16
  %v6424 = vpop.permute.xlu0 %6423
  %6425 = vrot.lane.b32.xlu0 %v5140, 16
  %v6426 = vpop.permute.xlu0 %6425
  %6427 = vrot.lane.b32.xlu0 %v5142, 16
  %v6428 = vpop.permute.xlu0 %6427
  %6429 = vrot.lane.b32.xlu0 %v5145, 16
  %v6430 = vpop.permute.xlu0 %6429
  %6431 = vrot.lane.b32.xlu0 %v5147, 16
  %v6432 = vpop.permute.xlu0 %6431
  %6433 = vrot.lane.b32.xlu0 %v5150, 16
  %v6434 = vpop.permute.xlu0 %6433
  %6435 = vrot.lane.b32.xlu0 %v5152, 16
  %v6436 = vpop.permute.xlu0 %6435
  %6437 = vrot.lane.b32.xlu0 %v5155, 16
  %v6438 = vpop.permute.xlu0 %6437
  %6439 = vrot.lane.b32.xlu0 %v5157, 16
  %v6440 = vpop.permute.xlu0 %6439
  %6441 = vrot.lane.b32.xlu0 %v5160, 16
  %v6442 = vpop.permute.xlu0 %6441
  %6443 = vrot.lane.b32.xlu0 %v5162, 16
  %v6444 = vpop.permute.xlu0 %6443
  %6445 = vrot.lane.b32.xlu0 %v5165, 16
  %v6446 = vpop.permute.xlu0 %6445
  %6447 = vrot.lane.b32.xlu0 %v5167, 16
  %v6448 = vpop.permute.xlu0 %6447
  %6449 = vrot.lane.b32.xlu0 %v5170, 16
  %v6450 = vpop.permute.xlu0 %6449
  %6451 = vrot.lane.b32.xlu0 %v5172, 16
  %v6452 = vpop.permute.xlu0 %6451
  %6453 = vrot.lane.b32.xlu0 %v5175, 16
  %v6454 = vpop.permute.xlu0 %6453
  %6455 = vrot.lane.b32.xlu0 %v5177, 16
  %v6456 = vpop.permute.xlu0 %6455
  %6457 = vrot.lane.b32.xlu0 %v5180, 16
  %v6458 = vpop.permute.xlu0 %6457
  %6459 = vrot.lane.b32.xlu0 %v5182, 16
  %v6460 = vpop.permute.xlu0 %6459
  %6461 = vrot.lane.b32.xlu0 %v5774, 16
  %v6462 = vpop.permute.xlu0 %6461
  %6463 = vrot.lane.b32.xlu0 %v5776, 16
  %v6464 = vpop.permute.xlu0 %6463
  %v6527 = vsel %vm3624, %v4557, %v4842
  %v6528 = vsel %vm3624, %v4364, %v4844
  %v6529 = vsel %vm3624, %v4558, %v4846
  %v6530 = vsel %vm3624, %v4367, %v4848
  %v6531 = vsel %vm3624, %v4559, %v4850
  %v6532 = vsel %vm3624, %v4370, %v4852
  %v6533 = vsel %vm3624, %v4560, %v4854
  %v6534 = vsel %vm3624, %v4373, %v4856
  %v6535 = vsel %vm3624, %v4561, %v4858
  %v6536 = vsel %vm3624, %v4376, %v4860
  %v6537 = vsel %vm3624, %v4562, %v4862
  %v6538 = vsel %vm3624, %v4379, %v4864
  %v6539 = vsel %vm3624, %v4563, %v4866
  %v6540 = vsel %vm3624, %v4382, %v4868
  %v6541 = vsel %vm3624, %v4564, %v4870
  %v6542 = vsel %vm3624, %v4385, %v4872
  %v6543 = vsel %vm3624, %v4565, %v4874
  %v6544 = vsel %vm3624, %v4388, %v4876
  %v6545 = vsel %vm3624, %v4566, %v4878
  %v6546 = vsel %vm3624, %v4391, %v4880
  %v6547 = vsel %vm3624, %v4567, %v4882
  %v6548 = vsel %vm3624, %v4394, %v4884
  %v6549 = vsel %vm3624, %v4568, %v4886
  %v6550 = vsel %vm3624, %v4397, %v4888
  %v6551 = vsel %vm3624, %v4569, %v4890
  %v6552 = vsel %vm3624, %v4400, %v4892
  %v6553 = vsel %vm3624, %v4570, %v4894
  %v6554 = vsel %vm3624, %v4403, %v4896
  %v6555 = vsel %vm3624, %v4571, %v4898
  %v6556 = vsel %vm3624, %v4406, %v4900
  %v6557 = vsel %vm3624, %v4572, %v4902
  %v6558 = vsel %vm3624, %v4409, %v4904
  %v6559 = vsel %vm3624, %v4574, %v4906
  %v6560 = vsel %vm3624, %v4415, %v4908
  %v6561 = vsel %vm3624, %v4575, %v4910
  %v6562 = vsel %vm3624, %v4418, %v4912
  %v6563 = vsel %vm3624, %v4576, %v4914
  %v6564 = vsel %vm3624, %v4421, %v4916
  %v6565 = vsel %vm3624, %v4577, %v4918
  %v6566 = vsel %vm3624, %v4424, %v4920
  %v6567 = vsel %vm3624, %v4578, %v4922
  %v6568 = vsel %vm3624, %v4427, %v4924
  %v6569 = vsel %vm3624, %v4579, %v4926
  %v6570 = vsel %vm3624, %v4430, %v4928
  %v6571 = vsel %vm3624, %v4580, %v4930
  %v6572 = vsel %vm3624, %v4433, %v4932
  %v6573 = vsel %vm3624, %v4581, %v4934
  %v6574 = vsel %vm3624, %v4436, %v4936
  %v6575 = vsel %vm3624, %v4582, %v4938
  %v6576 = vsel %vm3624, %v4439, %v4940
  %v6577 = vsel %vm3624, %v4583, %v4942
  %v6578 = vsel %vm3624, %v4442, %v4944
  %v6579 = vsel %vm3624, %v4584, %v4946
  %v6580 = vsel %vm3624, %v4445, %v4948
  %v6581 = vsel %vm3624, %v4585, %v4950
  %v6582 = vsel %vm3624, %v4448, %v4952
  %v6583 = vsel %vm3624, %v4586, %v4954
  %v6584 = vsel %vm3624, %v4451, %v4956
  %v6585 = vsel %vm3624, %v4587, %v4958
  %v6586 = vsel %vm3624, %v4454, %v4960
  %v6587 = vsel %vm3624, %v4588, %v4962
  %v6588 = vsel %vm3624, %v4457, %v4964
  %v6589 = vsel %vm2662, %v6527, %v5184
  %v6590 = vsel %vm2662, %v6528, %v5186
  %v6591 = vsel %vm2662, %v6529, %v5188
  %v6592 = vsel %vm2662, %v6530, %v5190
  %v6593 = vsel %vm2662, %v6531, %v5192
  %v6594 = vsel %vm2662, %v6532, %v5194
  %v6595 = vsel %vm2662, %v6533, %v5196
  %v6596 = vsel %vm2662, %v6534, %v5198
  %v6597 = vsel %vm2662, %v6535, %v5200
  %v6598 = vsel %vm2662, %v6536, %v5202
  %v6599 = vsel %vm2662, %v6537, %v5204
  %v6600 = vsel %vm2662, %v6538, %v5206
  %v6601 = vsel %vm2662, %v6539, %v5208
  %v6602 = vsel %vm2662, %v6540, %v5210
  %v6603 = vsel %vm2662, %v6541, %v5212
  %v6604 = vsel %vm2662, %v6542, %v5214
  %v6605 = vsel %vm2662, %v6543, %v5216
  %v6606 = vsel %vm2662, %v6544, %v5218
  %v6607 = vsel %vm2662, %v6545, %v5220
  %v6608 = vsel %vm2662, %v6546, %v5222
  %v6609 = vsel %vm2662, %v6547, %v5224
  %v6610 = vsel %vm2662, %v6548, %v5226
  %v6611 = vsel %vm2662, %v6549, %v5228
  %v6612 = vsel %vm2662, %v6550, %v5230
  %v6613 = vsel %vm2662, %v6551, %v5232
  %v6614 = vsel %vm2662, %v6552, %v5234
  %v6615 = vsel %vm2662, %v6553, %v5236
  %v6616 = vsel %vm2662, %v6554, %v5238
  %v6617 = vsel %vm2662, %v6555, %v5240
  %v6618 = vsel %vm2662, %v6556, %v5242
  %v6619 = vsel %vm2662, %v6557, %v5244
  %v6620 = vsel %vm2662, %v6558, %v5246
  %v6621 = vsel %vm2662, %v6559, %v5248
  %v6622 = vsel %vm2662, %v6560, %v5250
  %v6623 = vsel %vm2662, %v6561, %v5252
  %v6624 = vsel %vm2662, %v6562, %v5254
  %v6625 = vsel %vm2662, %v6563, %v5256
  %v6626 = vsel %vm2662, %v6564, %v5258
  %v6627 = vsel %vm2662, %v6565, %v5260
  %v6628 = vsel %vm2662, %v6566, %v5262
  %v6629 = vsel %vm2662, %v6567, %v5264
  %v6630 = vsel %vm2662, %v6568, %v5266
  %v6631 = vsel %vm2662, %v6569, %v5268
  %v6632 = vsel %vm2662, %v6570, %v5270
  %v6633 = vsel %vm2662, %v6571, %v5272
  %v6634 = vsel %vm2662, %v6572, %v5274
  %v6635 = vsel %vm2662, %v6573, %v5276
  %v6636 = vsel %vm2662, %v6574, %v5278
  %v6637 = vsel %vm2662, %v6575, %v5280
  %v6638 = vsel %vm2662, %v6576, %v5282
  %v6639 = vsel %vm2662, %v6577, %v5284
  %v6640 = vsel %vm2662, %v6578, %v5286
  %v6641 = vsel %vm2662, %v6579, %v5288
  %v6642 = vsel %vm2662, %v6580, %v5290
  %v6643 = vsel %vm2662, %v6581, %v5292
  %v6644 = vsel %vm2662, %v6582, %v5294
  %v6645 = vsel %vm2662, %v6583, %v5296
  %v6646 = vsel %vm2662, %v6584, %v5298
  %v6647 = vsel %vm2662, %v6585, %v5300
  %v6648 = vsel %vm2662, %v6586, %v5302
  %v6649 = vsel %vm2662, %v6587, %v5304
  %v6650 = vsel %vm2662, %v6588, %v5306
  %vm6651 = vcmask 48128
  %v6652 = vsel %vm6651, %v6589, %v5372
  %v6653 = vsel %vm6651, %v6590, %v5374
  %v6654 = vsel %vm6651, %v6591, %v5376
  %v6655 = vsel %vm6651, %v6592, %v5378
  %v6656 = vsel %vm6651, %v6593, %v5380
  %v6657 = vsel %vm6651, %v6594, %v5382
  %v6658 = vsel %vm6651, %v6595, %v5384
  %v6659 = vsel %vm6651, %v6596, %v5386
  %v6660 = vsel %vm6651, %v6597, %v5388
  %v6661 = vsel %vm6651, %v6598, %v5390
  %v6662 = vsel %vm6651, %v6599, %v5392
  %v6663 = vsel %vm6651, %v6600, %v5394
  %v6664 = vsel %vm6651, %v6601, %v5396
  %v6665 = vsel %vm6651, %v6602, %v5398
  %v6666 = vsel %vm6651, %v6603, %v5400
  %v6667 = vsel %vm6651, %v6604, %v5402
  %v6668 = vsel %vm6651, %v6605, %v5404
  %v6669 = vsel %vm6651, %v6606, %v5406
  %v6670 = vsel %vm6651, %v6607, %v5408
  %v6671 = vsel %vm6651, %v6608, %v5410
  %v6672 = vsel %vm6651, %v6609, %v5412
  %v6673 = vsel %vm6651, %v6610, %v5414
  %v6674 = vsel %vm6651, %v6611, %v5416
  %v6675 = vsel %vm6651, %v6612, %v5418
  %v6676 = vsel %vm6651, %v6613, %v5420
  %v6677 = vsel %vm6651, %v6614, %v5422
  %v6678 = vsel %vm6651, %v6615, %v5424
  %v6679 = vsel %vm6651, %v6616, %v5426
  %v6680 = vsel %vm6651, %v6617, %v5428
  %v6681 = vsel %vm6651, %v6618, %v5430
  %v6682 = vsel %vm6651, %v6619, %v5432
  %v6683 = vsel %vm6651, %v6620, %v5434
  %v6684 = vsel %vm6651, %v6589, %v5436
  %v6685 = vsel %vm6651, %v6590, %v5438
  %v6686 = vsel %vm6651, %v6621, %v5440
  %v6687 = vsel %vm6651, %v6622, %v5442
  %v6688 = vsel %vm6651, %v6623, %v5444
  %v6689 = vsel %vm6651, %v6624, %v5446
  %v6690 = vsel %vm6651, %v6625, %v5448
  %v6691 = vsel %vm6651, %v6626, %v5450
  %v6692 = vsel %vm6651, %v6627, %v5452
  %v6693 = vsel %vm6651, %v6628, %v5454
  %v6694 = vsel %vm6651, %v6629, %v5456
  %v6695 = vsel %vm6651, %v6630, %v5458
  %v6696 = vsel %vm6651, %v6631, %v5460
  %v6697 = vsel %vm6651, %v6632, %v5462
  %v6698 = vsel %vm6651, %v6633, %v5464
  %v6699 = vsel %vm6651, %v6634, %v5466
  %v6700 = vsel %vm6651, %v6635, %v5468
  %v6701 = vsel %vm6651, %v6636, %v5470
  %v6702 = vsel %vm6651, %v6637, %v5472
  %v6703 = vsel %vm6651, %v6638, %v5474
  %v6704 = vsel %vm6651, %v6639, %v5476
  %v6705 = vsel %vm6651, %v6640, %v5478
  %v6706 = vsel %vm6651, %v6641, %v5480
  %v6707 = vsel %vm6651, %v6642, %v5482
  %v6708 = vsel %vm6651, %v6643, %v5484
  %v6709 = vsel %vm6651, %v6644, %v5486
  %v6710 = vsel %vm6651, %v6645, %v5488
  %v6711 = vsel %vm6651, %v6646, %v5490
  %v6712 = vsel %vm6651, %v6647, %v5492
  %v6713 = vsel %vm6651, %v6648, %v5494
  %v6714 = vsel %vm6651, %v6649, %v5496
  %v6715 = vsel %vm6651, %v6650, %v5498
  %v6716 = vsel %vm2727, %v6652, %v5576
  %v6717 = vsel %vm2727, %v6653, %v5578
  %v6718 = vsel %vm2727, %v6654, %v5580
  %v6719 = vsel %vm2727, %v6655, %v5582
  %v6720 = vsel %vm2727, %v6656, %v5584
  %v6721 = vsel %vm2727, %v6657, %v5586
  %v6722 = vsel %vm2727, %v6658, %v5588
  %v6723 = vsel %vm2727, %v6659, %v5590
  %v6724 = vsel %vm2727, %v6660, %v5592
  %v6725 = vsel %vm2727, %v6661, %v5594
  %v6726 = vsel %vm2727, %v6662, %v5596
  %v6727 = vsel %vm2727, %v6663, %v5598
  %v6728 = vsel %vm2727, %v6664, %v5600
  %v6729 = vsel %vm2727, %v6665, %v5602
  %v6730 = vsel %vm2727, %v6666, %v5604
  %v6731 = vsel %vm2727, %v6667, %v5606
  %v6732 = vsel %vm2727, %v6668, %v5608
  %v6733 = vsel %vm2727, %v6669, %v5610
  %v6734 = vsel %vm2727, %v6670, %v5612
  %v6735 = vsel %vm2727, %v6671, %v5614
  %v6736 = vsel %vm2727, %v6672, %v5616
  %v6737 = vsel %vm2727, %v6673, %v5618
  %v6738 = vsel %vm2727, %v6674, %v5620
  %v6739 = vsel %vm2727, %v6675, %v5622
  %v6740 = vsel %vm2727, %v6676, %v5624
  %v6741 = vsel %vm2727, %v6677, %v5626
  %v6742 = vsel %vm2727, %v6678, %v5628
  %v6743 = vsel %vm2727, %v6679, %v5630
  %v6744 = vsel %vm2727, %v6680, %v5632
  %v6745 = vsel %vm2727, %v6681, %v5634
  %v6746 = vsel %vm2727, %v6682, %v5636
  %v6747 = vsel %vm2727, %v6683, %v5638
  %v6748 = vsel %vm2727, %v6684, %v5640
  %v6749 = vsel %vm2727, %v6685, %v5642
  %v6750 = vsel %vm2727, %v6686, %v5644
  %v6751 = vsel %vm2727, %v6687, %v5646
  %v6752 = vsel %vm2727, %v6688, %v5648
  %v6753 = vsel %vm2727, %v6689, %v5650
  %v6754 = vsel %vm2727, %v6690, %v5652
  %v6755 = vsel %vm2727, %v6691, %v5654
  %v6756 = vsel %vm2727, %v6692, %v5656
  %v6757 = vsel %vm2727, %v6693, %v5658
  %v6758 = vsel %vm2727, %v6694, %v5660
  %v6759 = vsel %vm2727, %v6695, %v5662
  %v6760 = vsel %vm2727, %v6696, %v5664
  %v6761 = vsel %vm2727, %v6697, %v5666
  %v6762 = vsel %vm2727, %v6698, %v5668
  %v6763 = vsel %vm2727, %v6699, %v5670
  %v6764 = vsel %vm2727, %v6700, %v5672
  %v6765 = vsel %vm2727, %v6701, %v5674
  %v6766 = vsel %vm2727, %v6702, %v5676
  %v6767 = vsel %vm2727, %v6703, %v5678
  %v6768 = vsel %vm2727, %v6704, %v5680
  %v6769 = vsel %vm2727, %v6705, %v5682
  %v6770 = vsel %vm2727, %v6706, %v5684
  %v6771 = vsel %vm2727, %v6707, %v5686
  %v6772 = vsel %vm2727, %v6708, %v5688
  %v6773 = vsel %vm2727, %v6709, %v5690
  %v6774 = vsel %vm2727, %v6710, %v5692
  %v6775 = vsel %vm2727, %v6711, %v5694
  %v6776 = vsel %vm2727, %v6712, %v5696
  %v6777 = vsel %vm2727, %v6713, %v5698
  %v6778 = vsel %vm2727, %v6714, %v5700
  %v6779 = vsel %vm2727, %v6715, %v5702
  %vm6780 = vcmask 80896
  %v6781 = vsel %vm6780, %v6716, %v5778
  %v6782 = vsel %vm6780, %v6717, %v5780
  %v6783 = vsel %vm6780, %v6718, %v5782
  %v6784 = vsel %vm6780, %v6719, %v5784
  %v6785 = vsel %vm6780, %v6720, %v5786
  %v6786 = vsel %vm6780, %v6721, %v5788
  %v6787 = vsel %vm6780, %v6722, %v5790
  %v6788 = vsel %vm6780, %v6723, %v5792
  %v6789 = vsel %vm6780, %v6724, %v5794
  %v6790 = vsel %vm6780, %v6725, %v5796
  %v6791 = vsel %vm6780, %v6726, %v5798
  %v6792 = vsel %vm6780, %v6727, %v5800
  %v6793 = vsel %vm6780, %v6728, %v5802
  %v6794 = vsel %vm6780, %v6729, %v5804
  %v6795 = vsel %vm6780, %v6730, %v5806
  %v6796 = vsel %vm6780, %v6731, %v5808
  %v6797 = vsel %vm6780, %v6732, %v5810
  %v6798 = vsel %vm6780, %v6733, %v5812
  %v6799 = vsel %vm6780, %v6734, %v5814
  %v6800 = vsel %vm6780, %v6735, %v5816
  %v6801 = vsel %vm6780, %v6736, %v5818
  %v6802 = vsel %vm6780, %v6737, %v5820
  %v6803 = vsel %vm6780, %v6738, %v5822
  %v6804 = vsel %vm6780, %v6739, %v5824
  %v6805 = vsel %vm6780, %v6740, %v5826
  %v6806 = vsel %vm6780, %v6741, %v5828
  %v6807 = vsel %vm6780, %v6742, %v5830
  %v6808 = vsel %vm6780, %v6743, %v5832
  %v6809 = vsel %vm6780, %v6744, %v5834
  %v6810 = vsel %vm6780, %v6745, %v5836
  %v6811 = vsel %vm6780, %v6746, %v5838
  %v6812 = vsel %vm6780, %v6747, %v5840
  %v6813 = vsel %vm6780, %v6748, %v5842
  %v6814 = vsel %vm6780, %v6749, %v5844
  %v6815 = vsel %vm6780, %v6750, %v5846
  %v6816 = vsel %vm6780, %v6751, %v5848
  %v6817 = vsel %vm6780, %v6752, %v5850
  %v6818 = vsel %vm6780, %v6753, %v5852
  %v6819 = vsel %vm6780, %v6754, %v5854
  %v6820 = vsel %vm6780, %v6755, %v5856
  %v6821 = vsel %vm6780, %v6756, %v5858
  %v6822 = vsel %vm6780, %v6757, %v5860
  %v6823 = vsel %vm6780, %v6758, %v5862
  %v6824 = vsel %vm6780, %v6759, %v5864
  %v6825 = vsel %vm6780, %v6760, %v5866
  %v6826 = vsel %vm6780, %v6761, %v5868
  %v6827 = vsel %vm6780, %v6762, %v5870
  %v6828 = vsel %vm6780, %v6763, %v5872
  %v6829 = vsel %vm6780, %v6764, %v5874
  %v6830 = vsel %vm6780, %v6765, %v5876
  %v6831 = vsel %vm6780, %v6766, %v5878
  %v6832 = vsel %vm6780, %v6767, %v5880
  %v6833 = vsel %vm6780, %v6768, %v5882
  %v6834 = vsel %vm6780, %v6769, %v5884
  %v6835 = vsel %vm6780, %v6770, %v5886
  %v6836 = vsel %vm6780, %v6771, %v5888
  %v6837 = vsel %vm6780, %v6772, %v5890
  %v6838 = vsel %vm6780, %v6773, %v5892
  %v6839 = vsel %vm6780, %v6774, %v5894
  %v6840 = vsel %vm6780, %v6775, %v5896
  %v6841 = vsel %vm6780, %v6776, %v5898
  %v6842 = vsel %vm6780, %v6777, %v5900
  %v6843 = vsel %vm6780, %v6778, %v5902
  %v6844 = vsel %vm6780, %v6779, %v5904
  %v6845 = vsel %vm2792, %v6781, %v5970
  %v6846 = vsel %vm2792, %v6782, %v5972
  %v6847 = vsel %vm2792, %v6783, %v5974
  %v6848 = vsel %vm2792, %v6784, %v5976
  %v6849 = vsel %vm2792, %v6785, %v5978
  %v6850 = vsel %vm2792, %v6786, %v5980
  %v6851 = vsel %vm2792, %v6787, %v5982
  %v6852 = vsel %vm2792, %v6788, %v5984
  %v6853 = vsel %vm2792, %v6789, %v5986
  %v6854 = vsel %vm2792, %v6790, %v5988
  %v6855 = vsel %vm2792, %v6791, %v5990
  %v6856 = vsel %vm2792, %v6792, %v5992
  %v6857 = vsel %vm2792, %v6793, %v5994
  %v6858 = vsel %vm2792, %v6794, %v5996
  %v6859 = vsel %vm2792, %v6795, %v5998
  %v6860 = vsel %vm2792, %v6796, %v6000
  %v6861 = vsel %vm2792, %v6797, %v6002
  %v6862 = vsel %vm2792, %v6798, %v6004
  %v6863 = vsel %vm2792, %v6799, %v6006
  %v6864 = vsel %vm2792, %v6800, %v6008
  %v6865 = vsel %vm2792, %v6801, %v6010
  %v6866 = vsel %vm2792, %v6802, %v6012
  %v6867 = vsel %vm2792, %v6803, %v6014
  %v6868 = vsel %vm2792, %v6804, %v6016
  %v6869 = vsel %vm2792, %v6805, %v6018
  %v6870 = vsel %vm2792, %v6806, %v6020
  %v6871 = vsel %vm2792, %v6807, %v6022
  %v6872 = vsel %vm2792, %v6808, %v6024
  %v6873 = vsel %vm2792, %v6809, %v6026
  %v6874 = vsel %vm2792, %v6810, %v6028
  %v6875 = vsel %vm2792, %v6811, %v6030
  %v6876 = vsel %vm2792, %v6812, %v6032
  %v6877 = vsel %vm2792, %v6813, %v6034
  %v6878 = vsel %vm2792, %v6814, %v6036
  %v6879 = vsel %vm2792, %v6815, %v6038
  %v6880 = vsel %vm2792, %v6816, %v6040
  %v6881 = vsel %vm2792, %v6817, %v6042
  %v6882 = vsel %vm2792, %v6818, %v6044
  %v6883 = vsel %vm2792, %v6819, %v6046
  %v6884 = vsel %vm2792, %v6820, %v6048
  %v6885 = vsel %vm2792, %v6821, %v6050
  %v6886 = vsel %vm2792, %v6822, %v6052
  %v6887 = vsel %vm2792, %v6823, %v6054
  %v6888 = vsel %vm2792, %v6824, %v6056
  %v6889 = vsel %vm2792, %v6825, %v6058
  %v6890 = vsel %vm2792, %v6826, %v6060
  %v6891 = vsel %vm2792, %v6827, %v6062
  %v6892 = vsel %vm2792, %v6828, %v6064
  %v6893 = vsel %vm2792, %v6829, %v6066
  %v6894 = vsel %vm2792, %v6830, %v6068
  %v6895 = vsel %vm2792, %v6831, %v6070
  %v6896 = vsel %vm2792, %v6832, %v6072
  %v6897 = vsel %vm2792, %v6833, %v6074
  %v6898 = vsel %vm2792, %v6834, %v6076
  %v6899 = vsel %vm2792, %v6835, %v6078
  %v6900 = vsel %vm2792, %v6836, %v6080
  %v6901 = vsel %vm2792, %v6837, %v6082
  %v6902 = vsel %vm2792, %v6838, %v6084
  %v6903 = vsel %vm2792, %v6839, %v6086
  %v6904 = vsel %vm2792, %v6840, %v6088
  %v6905 = vsel %vm2792, %v6841, %v6090
  %v6906 = vsel %vm2792, %v6842, %v6092
  %v6907 = vsel %vm2792, %v6843, %v6030
  %v6908 = vsel %vm2792, %v6844, %v6032
  %vm6909 = vcmask 113664
  %v6910 = vsel %vm6909, %v6845, %v6156
  %v6911 = vsel %vm6909, %v6846, %v6158
  %v6912 = vsel %vm6909, %v6847, %v6160
  %v6913 = vsel %vm6909, %v6848, %v6162
  %v6914 = vsel %vm6909, %v6849, %v6164
  %v6915 = vsel %vm6909, %v6850, %v6166
  %v6916 = vsel %vm6909, %v6851, %v6168
  %v6917 = vsel %vm6909, %v6852, %v6170
  %v6918 = vsel %vm6909, %v6853, %v6172
  %v6919 = vsel %vm6909, %v6854, %v6174
  %v6920 = vsel %vm6909, %v6855, %v6176
  %v6921 = vsel %vm6909, %v6856, %v6178
  %v6922 = vsel %vm6909, %v6857, %v6180
  %v6923 = vsel %vm6909, %v6858, %v6182
  %v6924 = vsel %vm6909, %v6859, %v6184
  %v6925 = vsel %vm6909, %v6860, %v6186
  %v6926 = vsel %vm6909, %v6861, %v6188
  %v6927 = vsel %vm6909, %v6862, %v6190
  %v6928 = vsel %vm6909, %v6863, %v6192
  %v6929 = vsel %vm6909, %v6864, %v6194
  %v6930 = vsel %vm6909, %v6865, %v6196
  %v6931 = vsel %vm6909, %v6866, %v6198
  %v6932 = vsel %vm6909, %v6867, %v6200
  %v6933 = vsel %vm6909, %v6868, %v6202
  %v6934 = vsel %vm6909, %v6869, %v6204
  %v6935 = vsel %vm6909, %v6870, %v6206
  %v6936 = vsel %vm6909, %v6871, %v6208
  %v6937 = vsel %vm6909, %v6872, %v6210
  %v6938 = vsel %vm6909, %v6873, %v6212
  %v6939 = vsel %vm6909, %v6874, %v6214
  %v6940 = vsel %vm6909, %v6875, %v6216
  %v6941 = vsel %vm6909, %v6876, %v6218
  %v6942 = vsel %vm6909, %v6877, %v6220
  %v6943 = vsel %vm6909, %v6878, %v6222
  %v6944 = vsel %vm6909, %v6879, %v6224
  %v6945 = vsel %vm6909, %v6880, %v6226
  %v6946 = vsel %vm6909, %v6881, %v6228
  %v6947 = vsel %vm6909, %v6882, %v6230
  %v6948 = vsel %vm6909, %v6883, %v6232
  %v6949 = vsel %vm6909, %v6884, %v6234
  %v6950 = vsel %vm6909, %v6885, %v6236
  %v6951 = vsel %vm6909, %v6886, %v6238
  %v6952 = vsel %vm6909, %v6887, %v6240
  %v6953 = vsel %vm6909, %v6888, %v6242
  %v6954 = vsel %vm6909, %v6889, %v6244
  %v6955 = vsel %vm6909, %v6890, %v6246
  %v6956 = vsel %vm6909, %v6891, %v6248
  %v6957 = vsel %vm6909, %v6892, %v6250
  %v6958 = vsel %vm6909, %v6893, %v6252
  %v6959 = vsel %vm6909, %v6894, %v6254
  %v6960 = vsel %vm6909, %v6895, %v6256
  %v6961 = vsel %vm6909, %v6896, %v6258
  %v6962 = vsel %vm6909, %v6897, %v6260
  %v6963 = vsel %vm6909, %v6898, %v6262
  %v6964 = vsel %vm6909, %v6899, %v6264
  %v6965 = vsel %vm6909, %v6900, %v6266
  %v6966 = vsel %vm6909, %v6901, %v6268
  %v6967 = vsel %vm6909, %v6902, %v6270
  %v6968 = vsel %vm6909, %v6903, %v6272
  %v6969 = vsel %vm6909, %v6904, %v6274
  %v6970 = vsel %vm6909, %v6905, %v6276
  %v6971 = vsel %vm6909, %v6906, %v6278
  %v6972 = vsel %vm6909, %v6907, %v6216
  %v6973 = vsel %vm6909, %v6908, %v6218
  %v6974 = vsel %vm2857, %v6910, %v6342
  %v6975 = vsel %vm2857, %v6911, %v6344
  %v6976 = vsel %vm2857, %v6912, %v6346
  %v6977 = vsel %vm2857, %v6913, %v6348
  %v6978 = vsel %vm2857, %v6914, %v6350
  %v6979 = vsel %vm2857, %v6915, %v6352
  %v6980 = vsel %vm2857, %v6916, %v6354
  %v6981 = vsel %vm2857, %v6917, %v6356
  %v6982 = vsel %vm2857, %v6918, %v6358
  %v6983 = vsel %vm2857, %v6919, %v6360
  %v6984 = vsel %vm2857, %v6920, %v6362
  %v6985 = vsel %vm2857, %v6921, %v6364
  %v6986 = vsel %vm2857, %v6922, %v6366
  %v6987 = vsel %vm2857, %v6923, %v6368
  %v6988 = vsel %vm2857, %v6924, %v6370
  %v6989 = vsel %vm2857, %v6925, %v6372
  %v6990 = vsel %vm2857, %v6926, %v6374
  %v6991 = vsel %vm2857, %v6927, %v6376
  %v6992 = vsel %vm2857, %v6928, %v6378
  %v6993 = vsel %vm2857, %v6929, %v6380
  %v6994 = vsel %vm2857, %v6930, %v6382
  %v6995 = vsel %vm2857, %v6931, %v6384
  %v6996 = vsel %vm2857, %v6932, %v6386
  %v6997 = vsel %vm2857, %v6933, %v6388
  %v6998 = vsel %vm2857, %v6934, %v6390
  %v6999 = vsel %vm2857, %v6935, %v6392
  %v7000 = vsel %vm2857, %v6936, %v6394
  %v7001 = vsel %vm2857, %v6937, %v6396
  %v7002 = vsel %vm2857, %v6938, %v6398
  %v7003 = vsel %vm2857, %v6939, %v6400
  %v7004 = vsel %vm2857, %v6940, %v6402
  %v7005 = vsel %vm2857, %v6941, %v6404
  %v7006 = vsel %vm2857, %v6942, %v6406
  %v7007 = vsel %vm2857, %v6943, %v6408
  %v7008 = vsel %vm2857, %v6944, %v6410
  %v7009 = vsel %vm2857, %v6945, %v6412
  %v7010 = vsel %vm2857, %v6946, %v6414
  %v7011 = vsel %vm2857, %v6947, %v6416
  %v7012 = vsel %vm2857, %v6948, %v6418
  %v7013 = vsel %vm2857, %v6949, %v6420
  %v7014 = vsel %vm2857, %v6950, %v6422
  %v7015 = vsel %vm2857, %v6951, %v6424
  %v7016 = vsel %vm2857, %v6952, %v6426
  %v7017 = vsel %vm2857, %v6953, %v6428
  %v7018 = vsel %vm2857, %v6954, %v6430
  %v7019 = vsel %vm2857, %v6955, %v6432
  %v7020 = vsel %vm2857, %v6956, %v6434
  %v7021 = vsel %vm2857, %v6957, %v6436
  %v7022 = vsel %vm2857, %v6958, %v6438
  %v7023 = vsel %vm2857, %v6959, %v6440
  %v7024 = vsel %vm2857, %v6960, %v6442
  %v7025 = vsel %vm2857, %v6961, %v6444
  %v7026 = vsel %vm2857, %v6962, %v6446
  %v7027 = vsel %vm2857, %v6963, %v6448
  %v7028 = vsel %vm2857, %v6964, %v6450
  %v7029 = vsel %vm2857, %v6965, %v6452
  %v7030 = vsel %vm2857, %v6966, %v6454
  %v7031 = vsel %vm2857, %v6967, %v6456
  %v7032 = vsel %vm2857, %v6968, %v6458
  %v7033 = vsel %vm2857, %v6969, %v6460
  %v7034 = vsel %vm2857, %v6970, %v6462
  %v7035 = vsel %vm2857, %v6971, %v6464
  %v7036 = vsel %vm2857, %v6972, %v6402
  %v7037 = vsel %vm2857, %v6973, %v6404
  %v7038 = vpack.c.bf16 %v6975, %v6974
  %v7039 = vpack.c.bf16 %v6977, %v6976
  %v7040 = vpack.c.bf16 %v6979, %v6978
  %v7041 = vpack.c.bf16 %v6981, %v6980
  %v7042 = vpack.c.bf16 %v6983, %v6982
  %v7043 = vpack.c.bf16 %v6985, %v6984
  %v7044 = vpack.c.bf16 %v6987, %v6986
  %v7045 = vpack.c.bf16 %v6989, %v6988
  %v7046 = vpack.c.bf16 %v6991, %v6990
  %v7047 = vpack.c.bf16 %v6993, %v6992
  %v7048 = vpack.c.bf16 %v6995, %v6994
  %v7049 = vpack.c.bf16 %v6997, %v6996
  %v7050 = vpack.c.bf16 %v6999, %v6998
  %v7051 = vpack.c.bf16 %v7001, %v7000
  %v7052 = vpack.c.bf16 %v7003, %v7002
  %v7053 = vpack.c.bf16 %v7005, %v7004
  %v7054 = vpack.c.bf16 %v7007, %v7006
  %v7055 = vpack.c.bf16 %v7009, %v7008
  %v7056 = vpack.c.bf16 %v7011, %v7010
  %v7057 = vpack.c.bf16 %v7013, %v7012
  %v7058 = vpack.c.bf16 %v7015, %v7014
  %v7059 = vpack.c.bf16 %v7017, %v7016
  %v7060 = vpack.c.bf16 %v7019, %v7018
  %v7061 = vpack.c.bf16 %v7021, %v7020
  %v7062 = vpack.c.bf16 %v7023, %v7022
  %v7063 = vpack.c.bf16 %v7025, %v7024
  %v7064 = vpack.c.bf16 %v7027, %v7026
  %v7065 = vpack.c.bf16 %v7029, %v7028
  %v7066 = vpack.c.bf16 %v7031, %v7030
  %v7067 = vpack.c.bf16 %v7033, %v7032
  %v7068 = vpack.c.bf16 %v7035, %v7034
  %v7069 = vpack.c.bf16 %v7037, %v7036
  %v7070 = vld [vmem:[%s2] sm:$0xf]
  %v7071 = vld [vmem:[%s2 + $0x4] sm:$0xf]
  %v7072 = vld [vmem:[%s2 + $0x8] sm:$0x1]
  %v7076 = vunpack.c.l.b16 %v7070
  %v7077 = vunpack.c.l.b16 %v7071
  %v7078 = vunpack.c.l.b16 %v7072
  %v7079 = vpack.c.b16 %v7077, %v7076
  %v7080 = vpack.c.b16 %v7078, %v7078
  %vm7082 = vcmask 146432
  %v7084 = vsel %vm7082, %v7038, 0
  %v7087 = vsel %vm7082, %v7039, 0
  %v7090 = vsel %vm7082, %v7040, 0
  %v7093 = vsel %vm7082, %v7041, 0
  %v7096 = vsel %vm7082, %v7042, 0
  %v7099 = vsel %vm7082, %v7043, 0
  %v7102 = vsel %vm7082, %v7044, 0
  %v7105 = vsel %vm7082, %v7045, 0
  %v7108 = vsel %vm7082, %v7046, 0
  %v7111 = vsel %vm7082, %v7047, 0
  %v7114 = vsel %vm7082, %v7048, 0
  %v7117 = vsel %vm7082, %v7049, 0
  %v7120 = vsel %vm7082, %v7050, 0
  %v7123 = vsel %vm7082, %v7051, 0
  %v7126 = vsel %vm7082, %v7052, 0
  %v7129 = vsel %vm7082, %v7053, 0
  %v7132 = vsel %vm7082, %v7054, 0
  %v7135 = vsel %vm7082, %v7055, 0
  %v7138 = vsel %vm7082, %v7056, 0
  %v7141 = vsel %vm7082, %v7057, 0
  %v7144 = vsel %vm7082, %v7058, 0
  %v7147 = vsel %vm7082, %v7059, 0
  %v7150 = vsel %vm7082, %v7060, 0
  %v7153 = vsel %vm7082, %v7061, 0
  %v7156 = vsel %vm7082, %v7062, 0
  %v7159 = vsel %vm7082, %v7063, 0
  %v7162 = vsel %vm7082, %v7064, 0
  %v7165 = vsel %vm7082, %v7065, 0
  %v7168 = vsel %vm7082, %v7066, 0
  %v7171 = vsel %vm7082, %v7067, 0
  %v7174 = vsel %vm7082, %v7068, 0
  %v7177 = vsel %vm7082, %v7069, 0
  %v7180 = vsel %vm4362, %v7080, 0
  %7182 = vmatprep.subr.bf16.mxu0 0
  %7183 = vmatpush1.bf16.msra.mxu0 0
  %7184 = vmatprep.subr.bf16.mxu0 0
  %7185 = vmatpush1.bf16.msra.mxu0 0
  %7186 = vmatprep.subr.bf16.mxu0 0
  %7187 = vmatpush1.bf16.msra.mxu0 0
  %7188 = vmatprep.subr.bf16.mxu0 0
  %7189 = vmatpush1.bf16.msra.mxu0 0
  %7190 = vmatprep.subr.bf16.mxu0 0
  %7191 = vmatpush1.bf16.msra.mxu0 0
  %7192 = vmatprep.subr.bf16.mxu0 0
  %7193 = vmatpush1.bf16.msra.mxu0 0
  %7194 = vmatprep.subr.bf16.mxu0 0
  %7195 = vmatpush1.bf16.msra.mxu0 %v7180
  %7196 = vmatprep.subr.bf16.mxu0 0
  %7197 = vmatpush1.bf16.msra.mxu0 %v7079
  %7198 = vmatprep.subr.bf16.mxu0 0
  %7199 = vmatpush2.bf16.msra.mxu0 0
  %7200 = vmatprep.subr.bf16.mxu0 0
  %7201 = vmatpush2.bf16.msra.mxu0 0
  %7202 = vmatprep.subr.bf16.mxu0 0
  %7203 = vmatpush2.bf16.msra.mxu0 0
  %7204 = vmatprep.subr.bf16.mxu0 0
  %7205 = vmatpush2.bf16.msra.mxu0 0
  %7206 = vmatprep.subr.bf16.mxu0 0
  %7207 = vmatpush2.bf16.msra.mxu0 0
  %7208 = vmatprep.subr.bf16.mxu0 0
  %7209 = vmatpush2.bf16.msra.mxu0 0
  %7210 = vmatprep.subr.bf16.mxu0 0
  %7211 = vmatpush2.bf16.msra.mxu0 0
  %7212 = vmatprep.subr.bf16.mxu0 0
  %7213 = vmatpush2.bf16.msra.mxu0 0
  %7214 = vmatprep.mubr.bf16.mxu0 0
  %7215 = vmatmul.mubr.bf16.gmra.mxu0 %v7084
  %v7216 = vpop.f32.mrf.mxu0
  %v7217 = vadd.f32 0.0, %v7216
  %v7218 = vpop.f32.mrf.mxu0
  %v7219 = vpop.f32.mrf.mxu0
  %v7220 = vadd.f32 0.0, %v7219
  %v7221 = vpop.f32.mrf.mxu0
  %7222 = vmatprep.mubr.bf16.mxu0 0
  %7223 = vmatmul.mubr.bf16.gmra.mxu0 %v7087
  %v7224 = vpop.f32.mrf.mxu0
  %v7225 = vadd.f32 0.0, %v7224
  %v7226 = vpop.f32.mrf.mxu0
  %v7227 = vpop.f32.mrf.mxu0
  %v7228 = vadd.f32 0.0, %v7227
  %v7229 = vpop.f32.mrf.mxu0
  %7230 = vmatprep.mubr.bf16.mxu0 0
  %7231 = vmatmul.mubr.bf16.gmra.mxu0 %v7090
  %v7232 = vpop.f32.mrf.mxu0
  %v7233 = vadd.f32 0.0, %v7232
  %v7234 = vpop.f32.mrf.mxu0
  %v7235 = vpop.f32.mrf.mxu0
  %v7236 = vadd.f32 0.0, %v7235
  %v7237 = vpop.f32.mrf.mxu0
  %7238 = vmatprep.mubr.bf16.mxu0 0
  %7239 = vmatmul.mubr.bf16.gmra.mxu0 %v7093
  %v7240 = vpop.f32.mrf.mxu0
  %v7241 = vadd.f32 0.0, %v7240
  %v7242 = vpop.f32.mrf.mxu0
  %v7243 = vpop.f32.mrf.mxu0
  %v7244 = vadd.f32 0.0, %v7243
  %v7245 = vpop.f32.mrf.mxu0
  %7246 = vmatprep.mubr.bf16.mxu0 0
  %7247 = vmatmul.mubr.bf16.gmra.mxu0 %v7096
  %v7248 = vpop.f32.mrf.mxu0
  %v7249 = vadd.f32 0.0, %v7248
  %v7250 = vpop.f32.mrf.mxu0
  %v7251 = vpop.f32.mrf.mxu0
  %v7252 = vadd.f32 0.0, %v7251
  %v7253 = vpop.f32.mrf.mxu0
  %7254 = vmatprep.mubr.bf16.mxu0 0
  %7255 = vmatmul.mubr.bf16.gmra.mxu0 %v7099
  %v7256 = vpop.f32.mrf.mxu0
  %v7257 = vadd.f32 0.0, %v7256
  %v7258 = vpop.f32.mrf.mxu0
  %v7259 = vpop.f32.mrf.mxu0
  %v7260 = vadd.f32 0.0, %v7259
  %v7261 = vpop.f32.mrf.mxu0
  %7262 = vmatprep.mubr.bf16.mxu0 0
  %7263 = vmatmul.mubr.bf16.gmra.mxu0 %v7102
  %v7264 = vpop.f32.mrf.mxu0
  %v7265 = vadd.f32 0.0, %v7264
  %v7266 = vpop.f32.mrf.mxu0
  %v7267 = vpop.f32.mrf.mxu0
  %v7268 = vadd.f32 0.0, %v7267
  %v7269 = vpop.f32.mrf.mxu0
  %7270 = vmatprep.mubr.bf16.mxu0 0
  %7271 = vmatmul.mubr.bf16.gmra.mxu0 %v7105
  %v7272 = vpop.f32.mrf.mxu0
  %v7273 = vadd.f32 0.0, %v7272
  %v7274 = vpop.f32.mrf.mxu0
  %v7275 = vpop.f32.mrf.mxu0
  %v7276 = vadd.f32 0.0, %v7275
  %v7277 = vpop.f32.mrf.mxu0
  %7278 = vmatprep.mubr.bf16.mxu0 0
  %7279 = vmatmul.mubr.bf16.gmra.mxu0 %v7108
  %v7280 = vpop.f32.mrf.mxu0
  %v7281 = vadd.f32 0.0, %v7280
  %v7282 = vpop.f32.mrf.mxu0
  %v7283 = vpop.f32.mrf.mxu0
  %v7284 = vadd.f32 0.0, %v7283
  %v7285 = vpop.f32.mrf.mxu0
  %7286 = vmatprep.mubr.bf16.mxu0 0
  %7287 = vmatmul.mubr.bf16.gmra.mxu0 %v7111
  %v7288 = vpop.f32.mrf.mxu0
  %v7289 = vadd.f32 0.0, %v7288
  %v7290 = vpop.f32.mrf.mxu0
  %v7291 = vpop.f32.mrf.mxu0
  %v7292 = vadd.f32 0.0, %v7291
  %v7293 = vpop.f32.mrf.mxu0
  %7294 = vmatprep.mubr.bf16.mxu0 0
  %7295 = vmatmul.mubr.bf16.gmra.mxu0 %v7114
  %v7296 = vpop.f32.mrf.mxu0
  %v7297 = vadd.f32 0.0, %v7296
  %v7298 = vpop.f32.mrf.mxu0
  %v7299 = vpop.f32.mrf.mxu0
  %v7300 = vadd.f32 0.0, %v7299
  %v7301 = vpop.f32.mrf.mxu0
  %7302 = vmatprep.mubr.bf16.mxu0 0
  %7303 = vmatmul.mubr.bf16.gmra.mxu0 %v7117
  %v7304 = vpop.f32.mrf.mxu0
  %v7305 = vadd.f32 0.0, %v7304
  %v7306 = vpop.f32.mrf.mxu0
  %v7307 = vpop.f32.mrf.mxu0
  %v7308 = vadd.f32 0.0, %v7307
  %v7309 = vpop.f32.mrf.mxu0
  %7310 = vmatprep.mubr.bf16.mxu0 0
  %7311 = vmatmul.mubr.bf16.gmra.mxu0 %v7120
  %v7312 = vpop.f32.mrf.mxu0
  %v7313 = vadd.f32 0.0, %v7312
  %v7314 = vpop.f32.mrf.mxu0
  %v7315 = vpop.f32.mrf.mxu0
  %v7316 = vadd.f32 0.0, %v7315
  %v7317 = vpop.f32.mrf.mxu0
  %7318 = vmatprep.mubr.bf16.mxu0 0
  %7319 = vmatmul.mubr.bf16.gmra.mxu0 %v7123
  %v7320 = vpop.f32.mrf.mxu0
  %v7321 = vadd.f32 0.0, %v7320
  %v7322 = vpop.f32.mrf.mxu0
  %v7323 = vpop.f32.mrf.mxu0
  %v7324 = vadd.f32 0.0, %v7323
  %v7325 = vpop.f32.mrf.mxu0
  %7326 = vmatprep.mubr.bf16.mxu0 0
  %7327 = vmatmul.mubr.bf16.gmra.mxu0 %v7126
  %v7328 = vpop.f32.mrf.mxu0
  %v7329 = vadd.f32 0.0, %v7328
  %v7330 = vpop.f32.mrf.mxu0
  %v7331 = vpop.f32.mrf.mxu0
  %v7332 = vadd.f32 0.0, %v7331
  %v7333 = vpop.f32.mrf.mxu0
  %7334 = vmatprep.mubr.bf16.mxu0 0
  %7335 = vmatmul.mubr.bf16.gmra.mxu0 %v7129
  %v7336 = vpop.f32.mrf.mxu0
  %v7337 = vadd.f32 0.0, %v7336
  %v7338 = vpop.f32.mrf.mxu0
  %v7339 = vpop.f32.mrf.mxu0
  %v7340 = vadd.f32 0.0, %v7339
  %v7341 = vpop.f32.mrf.mxu0
  %7342 = vmatprep.mubr.bf16.mxu0 0
  %7343 = vmatmul.mubr.bf16.gmra.mxu0 %v7132
  %v7344 = vpop.f32.mrf.mxu0
  %v7345 = vadd.f32 0.0, %v7344
  %v7346 = vpop.f32.mrf.mxu0
  %v7347 = vpop.f32.mrf.mxu0
  %v7348 = vadd.f32 0.0, %v7347
  %v7349 = vpop.f32.mrf.mxu0
  %7350 = vmatprep.mubr.bf16.mxu0 0
  %7351 = vmatmul.mubr.bf16.gmra.mxu0 %v7135
  %v7352 = vpop.f32.mrf.mxu0
  %v7353 = vadd.f32 0.0, %v7352
  %v7354 = vpop.f32.mrf.mxu0
  %v7355 = vpop.f32.mrf.mxu0
  %v7356 = vadd.f32 0.0, %v7355
  %v7357 = vpop.f32.mrf.mxu0
  %7358 = vmatprep.mubr.bf16.mxu0 0
  %7359 = vmatmul.mubr.bf16.gmra.mxu0 %v7138
  %v7360 = vpop.f32.mrf.mxu0
  %v7361 = vadd.f32 0.0, %v7360
  %v7362 = vpop.f32.mrf.mxu0
  %v7363 = vpop.f32.mrf.mxu0
  %v7364 = vadd.f32 0.0, %v7363
  %v7365 = vpop.f32.mrf.mxu0
  %7366 = vmatprep.mubr.bf16.mxu0 0
  %7367 = vmatmul.mubr.bf16.gmra.mxu0 %v7141
  %v7368 = vpop.f32.mrf.mxu0
  %v7369 = vadd.f32 0.0, %v7368
  %v7370 = vpop.f32.mrf.mxu0
  %v7371 = vpop.f32.mrf.mxu0
  %v7372 = vadd.f32 0.0, %v7371
  %v7373 = vpop.f32.mrf.mxu0
  %7374 = vmatprep.mubr.bf16.mxu0 0
  %7375 = vmatmul.mubr.bf16.gmra.mxu0 %v7144
  %v7376 = vpop.f32.mrf.mxu0
  %v7377 = vadd.f32 0.0, %v7376
  %v7378 = vpop.f32.mrf.mxu0
  %v7379 = vpop.f32.mrf.mxu0
  %v7380 = vadd.f32 0.0, %v7379
  %v7381 = vpop.f32.mrf.mxu0
  %7382 = vmatprep.mubr.bf16.mxu0 0
  %7383 = vmatmul.mubr.bf16.gmra.mxu0 %v7147
  %v7384 = vpop.f32.mrf.mxu0
  %v7385 = vadd.f32 0.0, %v7384
  %v7386 = vpop.f32.mrf.mxu0
  %v7387 = vpop.f32.mrf.mxu0
  %v7388 = vadd.f32 0.0, %v7387
  %v7389 = vpop.f32.mrf.mxu0
  %7390 = vmatprep.mubr.bf16.mxu0 0
  %7391 = vmatmul.mubr.bf16.gmra.mxu0 %v7150
  %v7392 = vpop.f32.mrf.mxu0
  %v7393 = vadd.f32 0.0, %v7392
  %v7394 = vpop.f32.mrf.mxu0
  %v7395 = vpop.f32.mrf.mxu0
  %v7396 = vadd.f32 0.0, %v7395
  %v7397 = vpop.f32.mrf.mxu0
  %7398 = vmatprep.mubr.bf16.mxu0 0
  %7399 = vmatmul.mubr.bf16.gmra.mxu0 %v7153
  %v7400 = vpop.f32.mrf.mxu0
  %v7401 = vadd.f32 0.0, %v7400
  %v7402 = vpop.f32.mrf.mxu0
  %v7403 = vpop.f32.mrf.mxu0
  %v7404 = vadd.f32 0.0, %v7403
  %v7405 = vpop.f32.mrf.mxu0
  %7406 = vmatprep.mubr.bf16.mxu0 0
  %7407 = vmatmul.mubr.bf16.gmra.mxu0 %v7156
  %v7408 = vpop.f32.mrf.mxu0
  %v7409 = vadd.f32 0.0, %v7408
  %v7410 = vpop.f32.mrf.mxu0
  %v7411 = vpop.f32.mrf.mxu0
  %v7412 = vadd.f32 0.0, %v7411
  %v7413 = vpop.f32.mrf.mxu0
  %7414 = vmatprep.mubr.bf16.mxu0 0
  %7415 = vmatmul.mubr.bf16.gmra.mxu0 %v7159
  %v7416 = vpop.f32.mrf.mxu0
  %v7417 = vadd.f32 0.0, %v7416
  %v7418 = vpop.f32.mrf.mxu0
  %v7419 = vpop.f32.mrf.mxu0
  %v7420 = vadd.f32 0.0, %v7419
  %v7421 = vpop.f32.mrf.mxu0
  %7422 = vmatprep.mubr.bf16.mxu0 0
  %7423 = vmatmul.mubr.bf16.gmra.mxu0 %v7162
  %v7424 = vpop.f32.mrf.mxu0
  %v7425 = vadd.f32 0.0, %v7424
  %v7426 = vpop.f32.mrf.mxu0
  %v7427 = vpop.f32.mrf.mxu0
  %v7428 = vadd.f32 0.0, %v7427
  %v7429 = vpop.f32.mrf.mxu0
  %7430 = vmatprep.mubr.bf16.mxu0 0
  %7431 = vmatmul.mubr.bf16.gmra.mxu0 %v7165
  %v7432 = vpop.f32.mrf.mxu0
  %v7433 = vadd.f32 0.0, %v7432
  %v7434 = vpop.f32.mrf.mxu0
  %v7435 = vpop.f32.mrf.mxu0
  %v7436 = vadd.f32 0.0, %v7435
  %v7437 = vpop.f32.mrf.mxu0
  %7438 = vmatprep.mubr.bf16.mxu0 0
  %7439 = vmatmul.mubr.bf16.gmra.mxu0 %v7168
  %v7440 = vpop.f32.mrf.mxu0
  %v7441 = vadd.f32 0.0, %v7440
  %v7442 = vpop.f32.mrf.mxu0
  %v7443 = vpop.f32.mrf.mxu0
  %v7444 = vadd.f32 0.0, %v7443
  %v7445 = vpop.f32.mrf.mxu0
  %7446 = vmatprep.mubr.bf16.mxu0 0
  %7447 = vmatmul.mubr.bf16.gmra.mxu0 %v7171
  %v7448 = vpop.f32.mrf.mxu0
  %v7449 = vadd.f32 0.0, %v7448
  %v7450 = vpop.f32.mrf.mxu0
  %v7451 = vpop.f32.mrf.mxu0
  %v7452 = vadd.f32 0.0, %v7451
  %v7453 = vpop.f32.mrf.mxu0
  %7454 = vmatprep.mubr.bf16.mxu0 0
  %7455 = vmatmul.mubr.bf16.gmra.mxu0 %v7174
  %v7456 = vpop.f32.mrf.mxu0
  %v7457 = vadd.f32 0.0, %v7456
  %v7458 = vpop.f32.mrf.mxu0
  %v7459 = vpop.f32.mrf.mxu0
  %v7460 = vadd.f32 0.0, %v7459
  %v7461 = vpop.f32.mrf.mxu0
  %7462 = vmatprep.mubr.bf16.mxu0 0
  %7463 = vmatmul.mubr.bf16.gmra.mxu0 %v7177
  %v7464 = vpop.f32.mrf.mxu0
  %v7465 = vadd.f32 0.0, %v7464
  %v7466 = vpop.f32.mrf.mxu0
  %v7467 = vpop.f32.mrf.mxu0
  %v7468 = vadd.f32 0.0, %v7467
  %v7469 = vpop.f32.mrf.mxu0
  %7470 = vdwg.mxu0
  %v7471 = vsel %vm3624, %v7217, 0.0
  %v7472 = vsel %vm3624, %v7220, 0.0
  %v7473 = vadd.f32 %v7471, %v7472
  %v7474 = vsel %vm3624, %v7225, 0.0
  %v7475 = vadd.f32 %v7473, %v7474
  %v7476 = vsel %vm3624, %v7228, 0.0
  %v7477 = vadd.f32 %v7475, %v7476
  %v7478 = vsel %vm3624, %v7233, 0.0
  %v7479 = vadd.f32 %v7477, %v7478
  %v7480 = vsel %vm3624, %v7236, 0.0
  %v7481 = vadd.f32 %v7479, %v7480
  %v7482 = vsel %vm3624, %v7241, 0.0
  %v7483 = vadd.f32 %v7481, %v7482
  %v7484 = vsel %vm3624, %v7244, 0.0
  %v7485 = vadd.f32 %v7483, %v7484
  %v7486 = vsel %vm3624, %v7249, 0.0
  %v7487 = vadd.f32 %v7485, %v7486
  %v7488 = vsel %vm3624, %v7252, 0.0
  %v7489 = vadd.f32 %v7487, %v7488
  %v7490 = vsel %vm3624, %v7257, 0.0
  %v7491 = vadd.f32 %v7489, %v7490
  %v7492 = vsel %vm3624, %v7260, 0.0
  %v7493 = vadd.f32 %v7491, %v7492
  %v7494 = vsel %vm3624, %v7265, 0.0
  %v7495 = vadd.f32 %v7493, %v7494
  %v7496 = vsel %vm3624, %v7268, 0.0
  %v7497 = vadd.f32 %v7495, %v7496
  %v7498 = vsel %vm3624, %v7273, 0.0
  %v7499 = vadd.f32 %v7497, %v7498
  %v7500 = vsel %vm3624, %v7276, 0.0
  %v7501 = vadd.f32 %v7499, %v7500
  %v7502 = vsel %vm3624, %v7281, 0.0
  %v7503 = vadd.f32 %v7501, %v7502
  %v7504 = vsel %vm3624, %v7284, 0.0
  %v7505 = vadd.f32 %v7503, %v7504
  %v7506 = vsel %vm3624, %v7289, 0.0
  %v7507 = vadd.f32 %v7505, %v7506
  %v7508 = vsel %vm3624, %v7292, 0.0
  %v7509 = vadd.f32 %v7507, %v7508
  %v7510 = vsel %vm3624, %v7297, 0.0
  %v7511 = vadd.f32 %v7509, %v7510
  %v7512 = vsel %vm3624, %v7300, 0.0
  %v7513 = vadd.f32 %v7511, %v7512
  %v7514 = vsel %vm3624, %v7305, 0.0
  %v7515 = vadd.f32 %v7513, %v7514
  %v7516 = vsel %vm3624, %v7308, 0.0
  %v7517 = vadd.f32 %v7515, %v7516
  %v7518 = vsel %vm3624, %v7313, 0.0
  %v7519 = vadd.f32 %v7517, %v7518
  %v7520 = vsel %vm3624, %v7316, 0.0
  %v7521 = vadd.f32 %v7519, %v7520
  %v7522 = vsel %vm3624, %v7321, 0.0
  %v7523 = vadd.f32 %v7521, %v7522
  %v7524 = vsel %vm3624, %v7324, 0.0
  %v7525 = vadd.f32 %v7523, %v7524
  %v7526 = vsel %vm3624, %v7329, 0.0
  %v7527 = vadd.f32 %v7525, %v7526
  %v7528 = vsel %vm3624, %v7332, 0.0
  %v7529 = vadd.f32 %v7527, %v7528
  %v7530 = vsel %vm3624, %v7337, 0.0
  %v7531 = vadd.f32 %v7529, %v7530
  %v7532 = vsel %vm3624, %v7340, 0.0
  %v7533 = vadd.f32 %v7531, %v7532
  %v7534 = vsel %vm3624, %v7345, 0.0
  %v7535 = vadd.f32 %v7533, %v7534
  %v7536 = vsel %vm3624, %v7348, 0.0
  %v7537 = vadd.f32 %v7535, %v7536
  %v7538 = vsel %vm3624, %v7353, 0.0
  %v7539 = vadd.f32 %v7537, %v7538
  %v7540 = vsel %vm3624, %v7356, 0.0
  %v7541 = vadd.f32 %v7539, %v7540
  %v7542 = vsel %vm3624, %v7361, 0.0
  %v7543 = vadd.f32 %v7541, %v7542
  %v7544 = vsel %vm3624, %v7364, 0.0
  %v7545 = vadd.f32 %v7543, %v7544
  %v7546 = vsel %vm3624, %v7369, 0.0
  %v7547 = vadd.f32 %v7545, %v7546
  %v7548 = vsel %vm3624, %v7372, 0.0
  %v7549 = vadd.f32 %v7547, %v7548
  %v7550 = vsel %vm3624, %v7377, 0.0
  %v7551 = vadd.f32 %v7549, %v7550
  %v7552 = vsel %vm3624, %v7380, 0.0
  %v7553 = vadd.f32 %v7551, %v7552
  %v7554 = vsel %vm3624, %v7385, 0.0
  %v7555 = vadd.f32 %v7553, %v7554
  %v7556 = vsel %vm3624, %v7388, 0.0
  %v7557 = vadd.f32 %v7555, %v7556
  %v7558 = vsel %vm3624, %v7393, 0.0
  %v7559 = vadd.f32 %v7557, %v7558
  %v7560 = vsel %vm3624, %v7396, 0.0
  %v7561 = vadd.f32 %v7559, %v7560
  %v7562 = vsel %vm3624, %v7401, 0.0
  %v7563 = vadd.f32 %v7561, %v7562
  %v7564 = vsel %vm3624, %v7404, 0.0
  %v7565 = vadd.f32 %v7563, %v7564
  %v7566 = vsel %vm3624, %v7409, 0.0
  %v7567 = vadd.f32 %v7565, %v7566
  %v7568 = vsel %vm3624, %v7412, 0.0
  %v7569 = vadd.f32 %v7567, %v7568
  %v7570 = vsel %vm3624, %v7417, 0.0
  %v7571 = vadd.f32 %v7569, %v7570
  %v7572 = vsel %vm3624, %v7420, 0.0
  %v7573 = vadd.f32 %v7571, %v7572
  %v7574 = vsel %vm3624, %v7425, 0.0
  %v7575 = vadd.f32 %v7573, %v7574
  %v7576 = vsel %vm3624, %v7428, 0.0
  %v7577 = vadd.f32 %v7575, %v7576
  %v7578 = vsel %vm3624, %v7433, 0.0
  %v7579 = vadd.f32 %v7577, %v7578
  %v7580 = vsel %vm3624, %v7436, 0.0
  %v7581 = vadd.f32 %v7579, %v7580
  %v7582 = vsel %vm3624, %v7441, 0.0
  %v7583 = vadd.f32 %v7581, %v7582
  %v7584 = vsel %vm3624, %v7444, 0.0
  %v7585 = vadd.f32 %v7583, %v7584
  %v7586 = vsel %vm3624, %v7449, 0.0
  %v7587 = vadd.f32 %v7585, %v7586
  %v7588 = vsel %vm3624, %v7452, 0.0
  %v7589 = vadd.f32 %v7587, %v7588
  %v7590 = vsel %vm3624, %v7457, 0.0
  %v7591 = vadd.f32 %v7589, %v7590
  %v7592 = vsel %vm3624, %v7460, 0.0
  %v7593 = vadd.f32 %v7591, %v7592
  %v7594 = vsel %vm3624, %v7465, 0.0
  %v7595 = vadd.f32 %v7593, %v7594
  %v7596 = vsel %vm3624, %v7468, 0.0
  %v7597 = vadd.f32 %v7595, %v7596
  %v7598 = vrot.slane %v7597, 4
  %v7599 = vadd.f32 %v7597, %v7598
  %v7600 = vrot.slane %v7599, 2
  %v7601 = vadd.f32 %v7599, %v7600
  %v7602 = vrot.slane %v7601, 1
  %v7603 = vadd.f32 %v7601, %v7602
  %v7604 = vmul.f32 %v7603, %v3758
  %v7605 = vsub.f32 %v7217, %v7604
  %v7606 = vsub.f32 %v7220, %v7604
  %v7607 = vsub.f32 %v7225, %v7604
  %v7608 = vsub.f32 %v7228, %v7604
  %v7609 = vsub.f32 %v7233, %v7604
  %v7610 = vsub.f32 %v7236, %v7604
  %v7611 = vsub.f32 %v7241, %v7604
  %v7612 = vsub.f32 %v7244, %v7604
  %v7613 = vsub.f32 %v7249, %v7604
  %v7614 = vsub.f32 %v7252, %v7604
  %v7615 = vsub.f32 %v7257, %v7604
  %v7616 = vsub.f32 %v7260, %v7604
  %v7617 = vsub.f32 %v7265, %v7604
  %v7618 = vsub.f32 %v7268, %v7604
  %v7619 = vsub.f32 %v7273, %v7604
  %v7620 = vsub.f32 %v7276, %v7604
  %v7621 = vsub.f32 %v7281, %v7604
  %v7622 = vsub.f32 %v7284, %v7604
  %v7623 = vsub.f32 %v7289, %v7604
  %v7624 = vsub.f32 %v7292, %v7604
  %v7625 = vsub.f32 %v7297, %v7604
  %v7626 = vsub.f32 %v7300, %v7604
  %v7627 = vsub.f32 %v7305, %v7604
  %v7628 = vsub.f32 %v7308, %v7604
  %v7629 = vsub.f32 %v7313, %v7604
  %v7630 = vsub.f32 %v7316, %v7604
  %v7631 = vsub.f32 %v7321, %v7604
  %v7632 = vsub.f32 %v7324, %v7604
  %v7633 = vsub.f32 %v7329, %v7604
  %v7634 = vsub.f32 %v7332, %v7604
  %v7635 = vsub.f32 %v7337, %v7604
  %v7636 = vsub.f32 %v7340, %v7604
  %v7637 = vsub.f32 %v7345, %v7604
  %v7638 = vsub.f32 %v7348, %v7604
  %v7639 = vsub.f32 %v7353, %v7604
  %v7640 = vsub.f32 %v7356, %v7604
  %v7641 = vsub.f32 %v7361, %v7604
  %v7642 = vsub.f32 %v7364, %v7604
  %v7643 = vsub.f32 %v7369, %v7604
  %v7644 = vsub.f32 %v7372, %v7604
  %v7645 = vsub.f32 %v7377, %v7604
  %v7646 = vsub.f32 %v7380, %v7604
  %v7647 = vsub.f32 %v7385, %v7604
  %v7648 = vsub.f32 %v7388, %v7604
  %v7649 = vsub.f32 %v7393, %v7604
  %v7650 = vsub.f32 %v7396, %v7604
  %v7651 = vsub.f32 %v7401, %v7604
  %v7652 = vsub.f32 %v7404, %v7604
  %v7653 = vsub.f32 %v7409, %v7604
  %v7654 = vsub.f32 %v7412, %v7604
  %v7655 = vsub.f32 %v7417, %v7604
  %v7656 = vsub.f32 %v7420, %v7604
  %v7657 = vsub.f32 %v7425, %v7604
  %v7658 = vsub.f32 %v7428, %v7604
  %v7659 = vsub.f32 %v7433, %v7604
  %v7660 = vsub.f32 %v7436, %v7604
  %v7661 = vsub.f32 %v7441, %v7604
  %v7662 = vsub.f32 %v7444, %v7604
  %v7663 = vsub.f32 %v7449, %v7604
  %v7664 = vsub.f32 %v7452, %v7604
  %v7665 = vsub.f32 %v7457, %v7604
  %v7666 = vsub.f32 %v7460, %v7604
  %v7667 = vsub.f32 %v7465, %v7604
  %v7668 = vsub.f32 %v7468, %v7604
  %v7669 = vmul.f32 %v7605, %v7605
  %v7670 = vmul.f32 %v7606, %v7606
  %v7671 = vmul.f32 %v7607, %v7607
  %v7672 = vmul.f32 %v7608, %v7608
  %v7673 = vmul.f32 %v7609, %v7609
  %v7674 = vmul.f32 %v7610, %v7610
  %v7675 = vmul.f32 %v7611, %v7611
  %v7676 = vmul.f32 %v7612, %v7612
  %v7677 = vmul.f32 %v7613, %v7613
  %v7678 = vmul.f32 %v7614, %v7614
  %v7679 = vmul.f32 %v7615, %v7615
  %v7680 = vmul.f32 %v7616, %v7616
  %v7681 = vmul.f32 %v7617, %v7617
  %v7682 = vmul.f32 %v7618, %v7618
  %v7683 = vmul.f32 %v7619, %v7619
  %v7684 = vmul.f32 %v7620, %v7620
  %v7685 = vmul.f32 %v7621, %v7621
  %v7686 = vmul.f32 %v7622, %v7622
  %v7687 = vmul.f32 %v7623, %v7623
  %v7688 = vmul.f32 %v7624, %v7624
  %v7689 = vmul.f32 %v7625, %v7625
  %v7690 = vmul.f32 %v7626, %v7626
  %v7691 = vmul.f32 %v7627, %v7627
  %v7692 = vmul.f32 %v7628, %v7628
  %v7693 = vmul.f32 %v7629, %v7629
  %v7694 = vmul.f32 %v7630, %v7630
  %v7695 = vmul.f32 %v7631, %v7631
  %v7696 = vmul.f32 %v7632, %v7632
  %v7697 = vmul.f32 %v7633, %v7633
  %v7698 = vmul.f32 %v7634, %v7634
  %v7699 = vmul.f32 %v7635, %v7635
  %v7700 = vmul.f32 %v7636, %v7636
  %v7701 = vmul.f32 %v7637, %v7637
  %v7702 = vmul.f32 %v7638, %v7638
  %v7703 = vmul.f32 %v7639, %v7639
  %v7704 = vmul.f32 %v7640, %v7640
  %v7705 = vmul.f32 %v7641, %v7641
  %v7706 = vmul.f32 %v7642, %v7642
  %v7707 = vmul.f32 %v7643, %v7643
  %v7708 = vmul.f32 %v7644, %v7644
  %v7709 = vmul.f32 %v7645, %v7645
  %v7710 = vmul.f32 %v7646, %v7646
  %v7711 = vmul.f32 %v7647, %v7647
  %v7712 = vmul.f32 %v7648, %v7648
  %v7713 = vmul.f32 %v7649, %v7649
  %v7714 = vmul.f32 %v7650, %v7650
  %v7715 = vmul.f32 %v7651, %v7651
  %v7716 = vmul.f32 %v7652, %v7652
  %v7717 = vmul.f32 %v7653, %v7653
  %v7718 = vmul.f32 %v7654, %v7654
  %v7719 = vmul.f32 %v7655, %v7655
  %v7720 = vmul.f32 %v7656, %v7656
  %v7721 = vmul.f32 %v7657, %v7657
  %v7722 = vmul.f32 %v7658, %v7658
  %v7723 = vmul.f32 %v7659, %v7659
  %v7724 = vmul.f32 %v7660, %v7660
  %v7725 = vmul.f32 %v7661, %v7661
  %v7726 = vmul.f32 %v7662, %v7662
  %v7727 = vmul.f32 %v7663, %v7663
  %v7728 = vmul.f32 %v7664, %v7664
  %v7729 = vmul.f32 %v7665, %v7665
  %v7730 = vmul.f32 %v7666, %v7666
  %v7731 = vmul.f32 %v7667, %v7667
  %v7732 = vmul.f32 %v7668, %v7668
  %v7733 = vsel %vm3624, %v7669, 0.0
  %v7734 = vsel %vm3624, %v7670, 0.0
  %v7735 = vadd.f32 %v7733, %v7734
  %v7736 = vsel %vm3624, %v7671, 0.0
  %v7737 = vadd.f32 %v7735, %v7736
  %v7738 = vsel %vm3624, %v7672, 0.0
  %v7739 = vadd.f32 %v7737, %v7738
  %v7740 = vsel %vm3624, %v7673, 0.0
  %v7741 = vadd.f32 %v7739, %v7740
  %v7742 = vsel %vm3624, %v7674, 0.0
  %v7743 = vadd.f32 %v7741, %v7742
  %v7744 = vsel %vm3624, %v7675, 0.0
  %v7745 = vadd.f32 %v7743, %v7744
  %v7746 = vsel %vm3624, %v7676, 0.0
  %v7747 = vadd.f32 %v7745, %v7746
  %v7748 = vsel %vm3624, %v7677, 0.0
  %v7749 = vadd.f32 %v7747, %v7748
  %v7750 = vsel %vm3624, %v7678, 0.0
  %v7751 = vadd.f32 %v7749, %v7750
  %v7752 = vsel %vm3624, %v7679, 0.0
  %v7753 = vadd.f32 %v7751, %v7752
  %v7754 = vsel %vm3624, %v7680, 0.0
  %v7755 = vadd.f32 %v7753, %v7754
  %v7756 = vsel %vm3624, %v7681, 0.0
  %v7757 = vadd.f32 %v7755, %v7756
  %v7758 = vsel %vm3624, %v7682, 0.0
  %v7759 = vadd.f32 %v7757, %v7758
  %v7760 = vsel %vm3624, %v7683, 0.0
  %v7761 = vadd.f32 %v7759, %v7760
  %v7762 = vsel %vm3624, %v7684, 0.0
  %v7763 = vadd.f32 %v7761, %v7762
  %v7764 = vsel %vm3624, %v7685, 0.0
  %v7765 = vadd.f32 %v7763, %v7764
  %v7766 = vsel %vm3624, %v7686, 0.0
  %v7767 = vadd.f32 %v7765, %v7766
  %v7768 = vsel %vm3624, %v7687, 0.0
  %v7769 = vadd.f32 %v7767, %v7768
  %v7770 = vsel %vm3624, %v7688, 0.0
  %v7771 = vadd.f32 %v7769, %v7770
  %v7772 = vsel %vm3624, %v7689, 0.0
  %v7773 = vadd.f32 %v7771, %v7772
  %v7774 = vsel %vm3624, %v7690, 0.0
  %v7775 = vadd.f32 %v7773, %v7774
  %v7776 = vsel %vm3624, %v7691, 0.0
  %v7777 = vadd.f32 %v7775, %v7776
  %v7778 = vsel %vm3624, %v7692, 0.0
  %v7779 = vadd.f32 %v7777, %v7778
  %v7780 = vsel %vm3624, %v7693, 0.0
  %v7781 = vadd.f32 %v7779, %v7780
  %v7782 = vsel %vm3624, %v7694, 0.0
  %v7783 = vadd.f32 %v7781, %v7782
  %v7784 = vsel %vm3624, %v7695, 0.0
  %v7785 = vadd.f32 %v7783, %v7784
  %v7786 = vsel %vm3624, %v7696, 0.0
  %v7787 = vadd.f32 %v7785, %v7786
  %v7788 = vsel %vm3624, %v7697, 0.0
  %v7789 = vadd.f32 %v7787, %v7788
  %v7790 = vsel %vm3624, %v7698, 0.0
  %v7791 = vadd.f32 %v7789, %v7790
  %v7792 = vsel %vm3624, %v7699, 0.0
  %v7793 = vadd.f32 %v7791, %v7792
  %v7794 = vsel %vm3624, %v7700, 0.0
  %v7795 = vadd.f32 %v7793, %v7794
  %v7796 = vsel %vm3624, %v7701, 0.0
  %v7797 = vadd.f32 %v7795, %v7796
  %v7798 = vsel %vm3624, %v7702, 0.0
  %v7799 = vadd.f32 %v7797, %v7798
  %v7800 = vsel %vm3624, %v7703, 0.0
  %v7801 = vadd.f32 %v7799, %v7800
  %v7802 = vsel %vm3624, %v7704, 0.0
  %v7803 = vadd.f32 %v7801, %v7802
  %v7804 = vsel %vm3624, %v7705, 0.0
  %v7805 = vadd.f32 %v7803, %v7804
  %v7806 = vsel %vm3624, %v7706, 0.0
  %v7807 = vadd.f32 %v7805, %v7806
  %v7808 = vsel %vm3624, %v7707, 0.0
  %v7809 = vadd.f32 %v7807, %v7808
  %v7810 = vsel %vm3624, %v7708, 0.0
  %v7811 = vadd.f32 %v7809, %v7810
  %v7812 = vsel %vm3624, %v7709, 0.0
  %v7813 = vadd.f32 %v7811, %v7812
  %v7814 = vsel %vm3624, %v7710, 0.0
  %v7815 = vadd.f32 %v7813, %v7814
  %v7816 = vsel %vm3624, %v7711, 0.0
  %v7817 = vadd.f32 %v7815, %v7816
  %v7818 = vsel %vm3624, %v7712, 0.0
  %v7819 = vadd.f32 %v7817, %v7818
  %v7820 = vsel %vm3624, %v7713, 0.0
  %v7821 = vadd.f32 %v7819, %v7820
  %v7822 = vsel %vm3624, %v7714, 0.0
  %v7823 = vadd.f32 %v7821, %v7822
  %v7824 = vsel %vm3624, %v7715, 0.0
  %v7825 = vadd.f32 %v7823, %v7824
  %v7826 = vsel %vm3624, %v7716, 0.0
  %v7827 = vadd.f32 %v7825, %v7826
  %v7828 = vsel %vm3624, %v7717, 0.0
  %v7829 = vadd.f32 %v7827, %v7828
  %v7830 = vsel %vm3624, %v7718, 0.0
  %v7831 = vadd.f32 %v7829, %v7830
  %v7832 = vsel %vm3624, %v7719, 0.0
  %v7833 = vadd.f32 %v7831, %v7832
  %v7834 = vsel %vm3624, %v7720, 0.0
  %v7835 = vadd.f32 %v7833, %v7834
  %v7836 = vsel %vm3624, %v7721, 0.0
  %v7837 = vadd.f32 %v7835, %v7836
  %v7838 = vsel %vm3624, %v7722, 0.0
  %v7839 = vadd.f32 %v7837, %v7838
  %v7840 = vsel %vm3624, %v7723, 0.0
  %v7841 = vadd.f32 %v7839, %v7840
  %v7842 = vsel %vm3624, %v7724, 0.0
  %v7843 = vadd.f32 %v7841, %v7842
  %v7844 = vsel %vm3624, %v7725, 0.0
  %v7845 = vadd.f32 %v7843, %v7844
  %v7846 = vsel %vm3624, %v7726, 0.0
  %v7847 = vadd.f32 %v7845, %v7846
  %v7848 = vsel %vm3624, %v7727, 0.0
  %v7849 = vadd.f32 %v7847, %v7848
  %v7850 = vsel %vm3624, %v7728, 0.0
  %v7851 = vadd.f32 %v7849, %v7850
  %v7852 = vsel %vm3624, %v7729, 0.0
  %v7853 = vadd.f32 %v7851, %v7852
  %v7854 = vsel %vm3624, %v7730, 0.0
  %v7855 = vadd.f32 %v7853, %v7854
  %v7856 = vsel %vm3624, %v7731, 0.0
  %v7857 = vadd.f32 %v7855, %v7856
  %v7858 = vsel %vm3624, %v7732, 0.0
  %v7859 = vadd.f32 %v7857, %v7858
  %v7860 = vrot.slane %v7859, 4
  %v7861 = vadd.f32 %v7859, %v7860
  %v7862 = vrot.slane %v7861, 2
  %v7863 = vadd.f32 %v7861, %v7862
  %v7864 = vrot.slane %v7863, 1
  %v7865 = vadd.f32 %v7863, %v7864
  %v7866 = vmul.f32 %v7865, %v3758
  %v7867 = vld [vmem:[%s6] sm:$0x1]
  %v7868 = vadd.f32 %v7866, 1e-05
  %v7869 = vrsqrt.pop %v7868
  %v7870 = vmul.f32 %v7867, %v7869
  %v7871 = vld [vmem:[%s7] sm:$0x1]
  %v7872 = vmul.f32 %v7604, %v7870
  %v7873 = vsub.f32 %v7871, %v7872
  %v7875 = vlaneseq
  %v7876 = vshrl.u32 %v7875, 7
  %v7877 = vsub.s32 0, %v7876
  %v7878 = vrot.slane %v7870, %v7877
  %v7880 = vmul.f32 %v7217, %v7878
  %v7881 = vmul.f32 %v7220, %v7878
  %v7882 = vmul.f32 %v7225, %v7878
  %v7883 = vmul.f32 %v7228, %v7878
  %v7884 = vmul.f32 %v7233, %v7878
  %v7885 = vmul.f32 %v7236, %v7878
  %v7886 = vmul.f32 %v7241, %v7878
  %v7887 = vmul.f32 %v7244, %v7878
  %v7888 = vmul.f32 %v7249, %v7878
  %v7889 = vmul.f32 %v7252, %v7878
  %v7890 = vmul.f32 %v7257, %v7878
  %v7891 = vmul.f32 %v7260, %v7878
  %v7892 = vmul.f32 %v7265, %v7878
  %v7893 = vmul.f32 %v7268, %v7878
  %v7894 = vmul.f32 %v7273, %v7878
  %v7895 = vmul.f32 %v7276, %v7878
  %v7896 = vmul.f32 %v7281, %v7878
  %v7897 = vmul.f32 %v7284, %v7878
  %v7898 = vmul.f32 %v7289, %v7878
  %v7899 = vmul.f32 %v7292, %v7878
  %v7900 = vmul.f32 %v7297, %v7878
  %v7901 = vmul.f32 %v7300, %v7878
  %v7902 = vmul.f32 %v7305, %v7878
  %v7903 = vmul.f32 %v7308, %v7878
  %v7904 = vmul.f32 %v7313, %v7878
  %v7905 = vmul.f32 %v7316, %v7878
  %v7906 = vmul.f32 %v7321, %v7878
  %v7907 = vmul.f32 %v7324, %v7878
  %v7908 = vmul.f32 %v7329, %v7878
  %v7909 = vmul.f32 %v7332, %v7878
  %v7910 = vmul.f32 %v7337, %v7878
  %v7911 = vmul.f32 %v7340, %v7878
  %v7912 = vmul.f32 %v7345, %v7878
  %v7913 = vmul.f32 %v7348, %v7878
  %v7914 = vmul.f32 %v7353, %v7878
  %v7915 = vmul.f32 %v7356, %v7878
  %v7916 = vmul.f32 %v7361, %v7878
  %v7917 = vmul.f32 %v7364, %v7878
  %v7918 = vmul.f32 %v7369, %v7878
  %v7919 = vmul.f32 %v7372, %v7878
  %v7920 = vmul.f32 %v7377, %v7878
  %v7921 = vmul.f32 %v7380, %v7878
  %v7922 = vmul.f32 %v7385, %v7878
  %v7923 = vmul.f32 %v7388, %v7878
  %v7924 = vmul.f32 %v7393, %v7878
  %v7925 = vmul.f32 %v7396, %v7878
  %v7926 = vmul.f32 %v7401, %v7878
  %v7927 = vmul.f32 %v7404, %v7878
  %v7928 = vmul.f32 %v7409, %v7878
  %v7929 = vmul.f32 %v7412, %v7878
  %v7930 = vmul.f32 %v7417, %v7878
  %v7931 = vmul.f32 %v7420, %v7878
  %v7932 = vmul.f32 %v7425, %v7878
  %v7933 = vmul.f32 %v7428, %v7878
  %v7934 = vmul.f32 %v7433, %v7878
  %v7935 = vmul.f32 %v7436, %v7878
  %v7936 = vmul.f32 %v7441, %v7878
  %v7937 = vmul.f32 %v7444, %v7878
  %v7938 = vmul.f32 %v7449, %v7878
  %v7939 = vmul.f32 %v7452, %v7878
  %v7940 = vmul.f32 %v7457, %v7878
  %v7941 = vmul.f32 %v7460, %v7878
  %v7942 = vmul.f32 %v7465, %v7878
  %v7943 = vmul.f32 %v7468, %v7878
  %v7945 = vlaneseq
  %v7946 = vshrl.u32 %v7945, 7
  %v7947 = vsub.s32 0, %v7946
  %v7948 = vrot.slane %v7873, %v7947
  %v7950 = vadd.f32 %v7880, %v7948
  %v7951 = vadd.f32 %v7881, %v7948
  %v7952 = vadd.f32 %v7882, %v7948
  %v7953 = vadd.f32 %v7883, %v7948
  %v7954 = vadd.f32 %v7884, %v7948
  %v7955 = vadd.f32 %v7885, %v7948
  %v7956 = vadd.f32 %v7886, %v7948
  %v7957 = vadd.f32 %v7887, %v7948
  %v7958 = vadd.f32 %v7888, %v7948
  %v7959 = vadd.f32 %v7889, %v7948
  %v7960 = vadd.f32 %v7890, %v7948
  %v7961 = vadd.f32 %v7891, %v7948
  %v7962 = vadd.f32 %v7892, %v7948
  %v7963 = vadd.f32 %v7893, %v7948
  %v7964 = vadd.f32 %v7894, %v7948
  %v7965 = vadd.f32 %v7895, %v7948
  %v7966 = vadd.f32 %v7896, %v7948
  %v7967 = vadd.f32 %v7897, %v7948
  %v7968 = vadd.f32 %v7898, %v7948
  %v7969 = vadd.f32 %v7899, %v7948
  %v7970 = vadd.f32 %v7900, %v7948
  %v7971 = vadd.f32 %v7901, %v7948
  %v7972 = vadd.f32 %v7902, %v7948
  %v7973 = vadd.f32 %v7903, %v7948
  %v7974 = vadd.f32 %v7904, %v7948
  %v7975 = vadd.f32 %v7905, %v7948
  %v7976 = vadd.f32 %v7906, %v7948
  %v7977 = vadd.f32 %v7907, %v7948
  %v7978 = vadd.f32 %v7908, %v7948
  %v7979 = vadd.f32 %v7909, %v7948
  %v7980 = vadd.f32 %v7910, %v7948
  %v7981 = vadd.f32 %v7911, %v7948
  %v7982 = vadd.f32 %v7912, %v7948
  %v7983 = vadd.f32 %v7913, %v7948
  %v7984 = vadd.f32 %v7914, %v7948
  %v7985 = vadd.f32 %v7915, %v7948
  %v7986 = vadd.f32 %v7916, %v7948
  %v7987 = vadd.f32 %v7917, %v7948
  %v7988 = vadd.f32 %v7918, %v7948
  %v7989 = vadd.f32 %v7919, %v7948
  %v7990 = vadd.f32 %v7920, %v7948
  %v7991 = vadd.f32 %v7921, %v7948
  %v7992 = vadd.f32 %v7922, %v7948
  %v7993 = vadd.f32 %v7923, %v7948
  %v7994 = vadd.f32 %v7924, %v7948
  %v7995 = vadd.f32 %v7925, %v7948
  %v7996 = vadd.f32 %v7926, %v7948
  %v7997 = vadd.f32 %v7927, %v7948
  %v7998 = vadd.f32 %v7928, %v7948
  %v7999 = vadd.f32 %v7929, %v7948
  %v8000 = vadd.f32 %v7930, %v7948
  %v8001 = vadd.f32 %v7931, %v7948
  %v8002 = vadd.f32 %v7932, %v7948
  %v8003 = vadd.f32 %v7933, %v7948
  %v8004 = vadd.f32 %v7934, %v7948
  %v8005 = vadd.f32 %v7935, %v7948
  %v8006 = vadd.f32 %v7936, %v7948
  %v8007 = vadd.f32 %v7937, %v7948
  %v8008 = vadd.f32 %v7938, %v7948
  %v8009 = vadd.f32 %v7939, %v7948
  %v8010 = vadd.f32 %v7940, %v7948
  %v8011 = vadd.f32 %v7941, %v7948
  %v8012 = vadd.f32 %v7942, %v7948
  %v8013 = vadd.f32 %v7943, %v7948
  %v8014 = vmul.f32 %v7950, 0.01
  %v8015 = vmul.f32 %v7951, 0.01
  %v8016 = vmul.f32 %v7952, 0.01
  %v8017 = vmul.f32 %v7953, 0.01
  %v8018 = vmul.f32 %v7954, 0.01
  %v8019 = vmul.f32 %v7955, 0.01
  %v8020 = vmul.f32 %v7956, 0.01
  %v8021 = vmul.f32 %v7957, 0.01
  %v8022 = vmul.f32 %v7958, 0.01
  %v8023 = vmul.f32 %v7959, 0.01
  %v8024 = vmul.f32 %v7960, 0.01
  %v8025 = vmul.f32 %v7961, 0.01
  %v8026 = vmul.f32 %v7962, 0.01
  %v8027 = vmul.f32 %v7963, 0.01
  %v8028 = vmul.f32 %v7964, 0.01
  %v8029 = vmul.f32 %v7965, 0.01
  %v8030 = vmul.f32 %v7966, 0.01
  %v8031 = vmul.f32 %v7967, 0.01
  %v8032 = vmul.f32 %v7968, 0.01
  %v8033 = vmul.f32 %v7969, 0.01
  %v8034 = vmul.f32 %v7970, 0.01
  %v8035 = vmul.f32 %v7971, 0.01
  %v8036 = vmul.f32 %v7972, 0.01
  %v8037 = vmul.f32 %v7973, 0.01
  %v8038 = vmul.f32 %v7974, 0.01
  %v8039 = vmul.f32 %v7975, 0.01
  %v8040 = vmul.f32 %v7976, 0.01
  %v8041 = vmul.f32 %v7977, 0.01
  %v8042 = vmul.f32 %v7978, 0.01
  %v8043 = vmul.f32 %v7979, 0.01
  %v8044 = vmul.f32 %v7980, 0.01
  %v8045 = vmul.f32 %v7981, 0.01
  %v8046 = vmul.f32 %v7982, 0.01
  %v8047 = vmul.f32 %v7983, 0.01
  %v8048 = vmul.f32 %v7984, 0.01
  %v8049 = vmul.f32 %v7985, 0.01
  %v8050 = vmul.f32 %v7986, 0.01
  %v8051 = vmul.f32 %v7987, 0.01
  %v8052 = vmul.f32 %v7988, 0.01
  %v8053 = vmul.f32 %v7989, 0.01
  %v8054 = vmul.f32 %v7990, 0.01
  %v8055 = vmul.f32 %v7991, 0.01
  %v8056 = vmul.f32 %v7992, 0.01
  %v8057 = vmul.f32 %v7993, 0.01
  %v8058 = vmul.f32 %v7994, 0.01
  %v8059 = vmul.f32 %v7995, 0.01
  %v8060 = vmul.f32 %v7996, 0.01
  %v8061 = vmul.f32 %v7997, 0.01
  %v8062 = vmul.f32 %v7998, 0.01
  %v8063 = vmul.f32 %v7999, 0.01
  %v8064 = vmul.f32 %v8000, 0.01
  %v8065 = vmul.f32 %v8001, 0.01
  %v8066 = vmul.f32 %v8002, 0.01
  %v8067 = vmul.f32 %v8003, 0.01
  %v8068 = vmul.f32 %v8004, 0.01
  %v8069 = vmul.f32 %v8005, 0.01
  %v8070 = vmul.f32 %v8006, 0.01
  %v8071 = vmul.f32 %v8007, 0.01
  %v8072 = vmul.f32 %v8008, 0.01
  %v8073 = vmul.f32 %v8009, 0.01
  %v8074 = vmul.f32 %v8010, 0.01
  %v8075 = vmul.f32 %v8011, 0.01
  %v8076 = vmul.f32 %v8012, 0.01
  %v8077 = vmul.f32 %v8013, 0.01
  %v8078 = vmax.f32 %v7950, %v8014
  %v8079 = vmax.f32 %v7951, %v8015
  %v8080 = vmax.f32 %v7952, %v8016
  %v8081 = vmax.f32 %v7953, %v8017
  %v8082 = vmax.f32 %v7954, %v8018
  %v8083 = vmax.f32 %v7955, %v8019
  %v8084 = vmax.f32 %v7956, %v8020
  %v8085 = vmax.f32 %v7957, %v8021
  %v8086 = vmax.f32 %v7958, %v8022
  %v8087 = vmax.f32 %v7959, %v8023
  %v8088 = vmax.f32 %v7960, %v8024
  %v8089 = vmax.f32 %v7961, %v8025
  %v8090 = vmax.f32 %v7962, %v8026
  %v8091 = vmax.f32 %v7963, %v8027
  %v8092 = vmax.f32 %v7964, %v8028
  %v8093 = vmax.f32 %v7965, %v8029
  %v8094 = vmax.f32 %v7966, %v8030
  %v8095 = vmax.f32 %v7967, %v8031
  %v8096 = vmax.f32 %v7968, %v8032
  %v8097 = vmax.f32 %v7969, %v8033
  %v8098 = vmax.f32 %v7970, %v8034
  %v8099 = vmax.f32 %v7971, %v8035
  %v8100 = vmax.f32 %v7972, %v8036
  %v8101 = vmax.f32 %v7973, %v8037
  %v8102 = vmax.f32 %v7974, %v8038
  %v8103 = vmax.f32 %v7975, %v8039
  %v8104 = vmax.f32 %v7976, %v8040
  %v8105 = vmax.f32 %v7977, %v8041
  %v8106 = vmax.f32 %v7978, %v8042
  %v8107 = vmax.f32 %v7979, %v8043
  %v8108 = vmax.f32 %v7980, %v8044
  %v8109 = vmax.f32 %v7981, %v8045
  %v8110 = vmax.f32 %v7982, %v8046
  %v8111 = vmax.f32 %v7983, %v8047
  %v8112 = vmax.f32 %v7984, %v8048
  %v8113 = vmax.f32 %v7985, %v8049
  %v8114 = vmax.f32 %v7986, %v8050
  %v8115 = vmax.f32 %v7987, %v8051
  %v8116 = vmax.f32 %v7988, %v8052
  %v8117 = vmax.f32 %v7989, %v8053
  %v8118 = vmax.f32 %v7990, %v8054
  %v8119 = vmax.f32 %v7991, %v8055
  %v8120 = vmax.f32 %v7992, %v8056
  %v8121 = vmax.f32 %v7993, %v8057
  %v8122 = vmax.f32 %v7994, %v8058
  %v8123 = vmax.f32 %v7995, %v8059
  %v8124 = vmax.f32 %v7996, %v8060
  %v8125 = vmax.f32 %v7997, %v8061
  %v8126 = vmax.f32 %v7998, %v8062
  %v8127 = vmax.f32 %v7999, %v8063
  %v8128 = vmax.f32 %v8000, %v8064
  %v8129 = vmax.f32 %v8001, %v8065
  %v8130 = vmax.f32 %v8002, %v8066
  %v8131 = vmax.f32 %v8003, %v8067
  %v8132 = vmax.f32 %v8004, %v8068
  %v8133 = vmax.f32 %v8005, %v8069
  %v8134 = vmax.f32 %v8006, %v8070
  %v8135 = vmax.f32 %v8007, %v8071
  %v8136 = vmax.f32 %v8008, %v8072
  %v8137 = vmax.f32 %v8009, %v8073
  %v8138 = vmax.f32 %v8010, %v8074
  %v8139 = vmax.f32 %v8011, %v8075
  %v8140 = vmax.f32 %v8012, %v8076
  %v8141 = vmax.f32 %v8013, %v8077
  %v8206 = vrot.slane %v8078, 7
  %v8207 = vrot.slane %v8079, 7
  %v8208 = vsel %vm4362, %v8206, %v8207
  %v8209 = vrot.slane %v8080, 7
  %v8210 = vrot.slane %v8081, 7
  %v8211 = vsel %vm4362, %v8209, %v8210
  %v8212 = vrot.slane %v8082, 7
  %v8213 = vrot.slane %v8083, 7
  %v8214 = vsel %vm4362, %v8212, %v8213
  %v8215 = vrot.slane %v8084, 7
  %v8216 = vrot.slane %v8085, 7
  %v8217 = vsel %vm4362, %v8215, %v8216
  %v8218 = vrot.slane %v8086, 7
  %v8219 = vrot.slane %v8087, 7
  %v8220 = vsel %vm4362, %v8218, %v8219
  %v8221 = vrot.slane %v8088, 7
  %v8222 = vrot.slane %v8089, 7
  %v8223 = vsel %vm4362, %v8221, %v8222
  %v8224 = vrot.slane %v8090, 7
  %v8225 = vrot.slane %v8091, 7
  %v8226 = vsel %vm4362, %v8224, %v8225
  %v8227 = vrot.slane %v8092, 7
  %v8228 = vrot.slane %v8093, 7
  %v8229 = vsel %vm4362, %v8227, %v8228
  %v8230 = vrot.slane %v8094, 7
  %v8231 = vrot.slane %v8095, 7
  %v8232 = vsel %vm4362, %v8230, %v8231
  %v8233 = vrot.slane %v8096, 7
  %v8234 = vrot.slane %v8097, 7
  %v8235 = vsel %vm4362, %v8233, %v8234
  %v8236 = vrot.slane %v8098, 7
  %v8237 = vrot.slane %v8099, 7
  %v8238 = vsel %vm4362, %v8236, %v8237
  %v8239 = vrot.slane %v8100, 7
  %v8240 = vrot.slane %v8101, 7
  %v8241 = vsel %vm4362, %v8239, %v8240
  %v8242 = vrot.slane %v8102, 7
  %v8243 = vrot.slane %v8103, 7
  %v8244 = vsel %vm4362, %v8242, %v8243
  %v8245 = vrot.slane %v8104, 7
  %v8246 = vrot.slane %v8105, 7
  %v8247 = vsel %vm4362, %v8245, %v8246
  %v8248 = vrot.slane %v8106, 7
  %v8249 = vrot.slane %v8107, 7
  %v8250 = vsel %vm4362, %v8248, %v8249
  %v8251 = vrot.slane %v8108, 7
  %v8252 = vrot.slane %v8109, 7
  %v8253 = vsel %vm4362, %v8251, %v8252
  %v8254 = vrot.slane %v8110, 7
  %v8255 = vrot.slane %v8111, 7
  %v8256 = vsel %vm4362, %v8254, %v8255
  %v8257 = vrot.slane %v8112, 7
  %v8258 = vrot.slane %v8113, 7
  %v8259 = vsel %vm4362, %v8257, %v8258
  %v8260 = vrot.slane %v8114, 7
  %v8261 = vrot.slane %v8115, 7
  %v8262 = vsel %vm4362, %v8260, %v8261
  %v8263 = vrot.slane %v8116, 7
  %v8264 = vrot.slane %v8117, 7
  %v8265 = vsel %vm4362, %v8263, %v8264
  %v8266 = vrot.slane %v8118, 7
  %v8267 = vrot.slane %v8119, 7
  %v8268 = vsel %vm4362, %v8266, %v8267
  %v8269 = vrot.slane %v8120, 7
  %v8270 = vrot.slane %v8121, 7
  %v8271 = vsel %vm4362, %v8269, %v8270
  %v8272 = vrot.slane %v8122, 7
  %v8273 = vrot.slane %v8123, 7
  %v8274 = vsel %vm4362, %v8272, %v8273
  %v8275 = vrot.slane %v8124, 7
  %v8276 = vrot.slane %v8125, 7
  %v8277 = vsel %vm4362, %v8275, %v8276
  %v8278 = vrot.slane %v8126, 7
  %v8279 = vrot.slane %v8127, 7
  %v8280 = vsel %vm4362, %v8278, %v8279
  %v8281 = vrot.slane %v8128, 7
  %v8282 = vrot.slane %v8129, 7
  %v8283 = vsel %vm4362, %v8281, %v8282
  %v8284 = vrot.slane %v8130, 7
  %v8285 = vrot.slane %v8131, 7
  %v8286 = vsel %vm4362, %v8284, %v8285
  %v8287 = vrot.slane %v8132, 7
  %v8288 = vrot.slane %v8133, 7
  %v8289 = vsel %vm4362, %v8287, %v8288
  %v8290 = vrot.slane %v8134, 7
  %v8291 = vrot.slane %v8135, 7
  %v8292 = vsel %vm4362, %v8290, %v8291
  %v8293 = vrot.slane %v8136, 7
  %v8294 = vrot.slane %v8137, 7
  %v8295 = vsel %vm4362, %v8293, %v8294
  %v8296 = vrot.slane %v8138, 7
  %v8297 = vrot.slane %v8139, 7
  %v8298 = vsel %vm4362, %v8296, %v8297
  %v8299 = vrot.slane %v8140, 7
  %v8300 = vrot.slane %v8141, 7
  %v8301 = vsel %vm4362, %v8299, %v8300
  %v8396 = vsel %vm4362, 0.0, %v8206
  %v8397 = vsel %vm4362, 0.0, %v8209
  %v8398 = vsel %vm4362, 0.0, %v8212
  %v8399 = vsel %vm4362, 0.0, %v8215
  %v8400 = vsel %vm4362, 0.0, %v8218
  %v8401 = vsel %vm4362, 0.0, %v8221
  %v8402 = vsel %vm4362, 0.0, %v8224
  %v8403 = vsel %vm4362, 0.0, %v8227
  %v8404 = vsel %vm4362, 0.0, %v8230
  %v8405 = vsel %vm4362, 0.0, %v8233
  %v8406 = vsel %vm4362, 0.0, %v8236
  %v8407 = vsel %vm4362, 0.0, %v8239
  %v8408 = vsel %vm4362, 0.0, %v8242
  %v8409 = vsel %vm4362, 0.0, %v8245
  %v8410 = vsel %vm4362, 0.0, %v8248
  %v8411 = vsel %vm4362, 0.0, %v8251
  %v8412 = vsel %vm4362, 0.0, %v8254
  %v8413 = vsel %vm4362, 0.0, %v8257
  %v8414 = vsel %vm4362, 0.0, %v8260
  %v8415 = vsel %vm4362, 0.0, %v8263
  %v8416 = vsel %vm4362, 0.0, %v8266
  %v8417 = vsel %vm4362, 0.0, %v8269
  %v8418 = vsel %vm4362, 0.0, %v8272
  %v8419 = vsel %vm4362, 0.0, %v8275
  %v8420 = vsel %vm4362, 0.0, %v8278
  %v8421 = vsel %vm4362, 0.0, %v8281
  %v8422 = vsel %vm4362, 0.0, %v8284
  %v8423 = vsel %vm4362, 0.0, %v8287
  %v8424 = vsel %vm4362, 0.0, %v8290
  %v8425 = vsel %vm4362, 0.0, %v8293
  %v8426 = vsel %vm4362, 0.0, %v8296
  %v8427 = vsel %vm4362, 0.0, %v8299
  %v8428 = vsel %vm4362, %v8207, 0.0
  %v8429 = vsel %vm4362, %v8210, 0.0
  %v8430 = vsel %vm4362, %v8213, 0.0
  %v8431 = vsel %vm4362, %v8216, 0.0
  %v8432 = vsel %vm4362, %v8219, 0.0
  %v8433 = vsel %vm4362, %v8222, 0.0
  %v8434 = vsel %vm4362, %v8225, 0.0
  %v8435 = vsel %vm4362, %v8228, 0.0
  %v8436 = vsel %vm4362, %v8231, 0.0
  %v8437 = vsel %vm4362, %v8234, 0.0
  %v8438 = vsel %vm4362, %v8237, 0.0
  %v8439 = vsel %vm4362, %v8240, 0.0
  %v8440 = vsel %vm4362, %v8243, 0.0
  %v8441 = vsel %vm4362, %v8246, 0.0
  %v8442 = vsel %vm4362, %v8249, 0.0
  %v8443 = vsel %vm4362, %v8252, 0.0
  %v8444 = vsel %vm4362, %v8255, 0.0
  %v8445 = vsel %vm4362, %v8258, 0.0
  %v8446 = vsel %vm4362, %v8261, 0.0
  %v8447 = vsel %vm4362, %v8264, 0.0
  %v8448 = vsel %vm4362, %v8267, 0.0
  %v8449 = vsel %vm4362, %v8270, 0.0
  %v8450 = vsel %vm4362, %v8273, 0.0
  %v8451 = vsel %vm4362, %v8276, 0.0
  %v8452 = vsel %vm4362, %v8279, 0.0
  %v8453 = vsel %vm4362, %v8282, 0.0
  %v8454 = vsel %vm4362, %v8285, 0.0
  %v8455 = vsel %vm4362, %v8288, 0.0
  %v8456 = vsel %vm4362, %v8291, 0.0
  %v8457 = vsel %vm4362, %v8294, 0.0
  %v8458 = vsel %vm4362, %v8297, 0.0
  %v8459 = vsel %vm4362, %v8300, 0.0
  %v8520 = vrot.slane %v8396, 1
  %v8521 = vrot.slane %v8208, 1
  %v8522 = vsel %vm4685, %v8520, %v8521
  %v8523 = vrot.slane %v8428, 1
  %v8524 = vsel %vm4685, %v8521, %v8523
  %v8525 = vrot.slane %v8397, 1
  %v8526 = vrot.slane %v8211, 1
  %v8527 = vsel %vm4685, %v8525, %v8526
  %v8528 = vrot.slane %v8429, 1
  %v8529 = vsel %vm4685, %v8526, %v8528
  %v8530 = vrot.slane %v8398, 1
  %v8531 = vrot.slane %v8214, 1
  %v8532 = vsel %vm4685, %v8530, %v8531
  %v8533 = vrot.slane %v8430, 1
  %v8534 = vsel %vm4685, %v8531, %v8533
  %v8535 = vrot.slane %v8399, 1
  %v8536 = vrot.slane %v8217, 1
  %v8537 = vsel %vm4685, %v8535, %v8536
  %v8538 = vrot.slane %v8431, 1
  %v8539 = vsel %vm4685, %v8536, %v8538
  %v8540 = vrot.slane %v8400, 1
  %v8541 = vrot.slane %v8220, 1
  %v8542 = vsel %vm4685, %v8540, %v8541
  %v8543 = vrot.slane %v8432, 1
  %v8544 = vsel %vm4685, %v8541, %v8543
  %v8545 = vrot.slane %v8401, 1
  %v8546 = vrot.slane %v8223, 1
  %v8547 = vsel %vm4685, %v8545, %v8546
  %v8548 = vrot.slane %v8433, 1
  %v8549 = vsel %vm4685, %v8546, %v8548
  %v8550 = vrot.slane %v8402, 1
  %v8551 = vrot.slane %v8226, 1
  %v8552 = vsel %vm4685, %v8550, %v8551
  %v8553 = vrot.slane %v8434, 1
  %v8554 = vsel %vm4685, %v8551, %v8553
  %v8555 = vrot.slane %v8403, 1
  %v8556 = vrot.slane %v8229, 1
  %v8557 = vsel %vm4685, %v8555, %v8556
  %v8558 = vrot.slane %v8435, 1
  %v8559 = vsel %vm4685, %v8556, %v8558
  %v8560 = vrot.slane %v8404, 1
  %v8561 = vrot.slane %v8232, 1
  %v8562 = vsel %vm4685, %v8560, %v8561
  %v8563 = vrot.slane %v8436, 1
  %v8564 = vsel %vm4685, %v8561, %v8563
  %v8565 = vrot.slane %v8405, 1
  %v8566 = vrot.slane %v8235, 1
  %v8567 = vsel %vm4685, %v8565, %v8566
  %v8568 = vrot.slane %v8437, 1
  %v8569 = vsel %vm4685, %v8566, %v8568
  %v8570 = vrot.slane %v8406, 1
  %v8571 = vrot.slane %v8238, 1
  %v8572 = vsel %vm4685, %v8570, %v8571
  %v8573 = vrot.slane %v8438, 1
  %v8574 = vsel %vm4685, %v8571, %v8573
  %v8575 = vrot.slane %v8407, 1
  %v8576 = vrot.slane %v8241, 1
  %v8577 = vsel %vm4685, %v8575, %v8576
  %v8578 = vrot.slane %v8439, 1
  %v8579 = vsel %vm4685, %v8576, %v8578
  %v8580 = vrot.slane %v8408, 1
  %v8581 = vrot.slane %v8244, 1
  %v8582 = vsel %vm4685, %v8580, %v8581
  %v8583 = vrot.slane %v8440, 1
  %v8584 = vsel %vm4685, %v8581, %v8583
  %v8585 = vrot.slane %v8409, 1
  %v8586 = vrot.slane %v8247, 1
  %v8587 = vsel %vm4685, %v8585, %v8586
  %v8588 = vrot.slane %v8441, 1
  %v8589 = vsel %vm4685, %v8586, %v8588
  %v8590 = vrot.slane %v8410, 1
  %v8591 = vrot.slane %v8250, 1
  %v8592 = vsel %vm4685, %v8590, %v8591
  %v8593 = vrot.slane %v8442, 1
  %v8594 = vsel %vm4685, %v8591, %v8593
  %v8595 = vrot.slane %v8412, 1
  %v8596 = vrot.slane %v8256, 1
  %v8597 = vsel %vm4685, %v8595, %v8596
  %v8598 = vrot.slane %v8444, 1
  %v8599 = vsel %vm4685, %v8596, %v8598
  %v8600 = vrot.slane %v8413, 1
  %v8601 = vrot.slane %v8259, 1
  %v8602 = vsel %vm4685, %v8600, %v8601
  %v8603 = vrot.slane %v8445, 1
  %v8604 = vsel %vm4685, %v8601, %v8603
  %v8605 = vrot.slane %v8414, 1
  %v8606 = vrot.slane %v8262, 1
  %v8607 = vsel %vm4685, %v8605, %v8606
  %v8608 = vrot.slane %v8446, 1
  %v8609 = vsel %vm4685, %v8606, %v8608
  %v8610 = vrot.slane %v8415, 1
  %v8611 = vrot.slane %v8265, 1
  %v8612 = vsel %vm4685, %v8610, %v8611
  %v8613 = vrot.slane %v8447, 1
  %v8614 = vsel %vm4685, %v8611, %v8613
  %v8615 = vrot.slane %v8416, 1
  %v8616 = vrot.slane %v8268, 1
  %v8617 = vsel %vm4685, %v8615, %v8616
  %v8618 = vrot.slane %v8448, 1
  %v8619 = vsel %vm4685, %v8616, %v8618
  %v8620 = vrot.slane %v8417, 1
  %v8621 = vrot.slane %v8271, 1
  %v8622 = vsel %vm4685, %v8620, %v8621
  %v8623 = vrot.slane %v8449, 1
  %v8624 = vsel %vm4685, %v8621, %v8623
  %v8625 = vrot.slane %v8418, 1
  %v8626 = vrot.slane %v8274, 1
  %v8627 = vsel %vm4685, %v8625, %v8626
  %v8628 = vrot.slane %v8450, 1
  %v8629 = vsel %vm4685, %v8626, %v8628
  %v8630 = vrot.slane %v8419, 1
  %v8631 = vrot.slane %v8277, 1
  %v8632 = vsel %vm4685, %v8630, %v8631
  %v8633 = vrot.slane %v8451, 1
  %v8634 = vsel %vm4685, %v8631, %v8633
  %v8635 = vrot.slane %v8420, 1
  %v8636 = vrot.slane %v8280, 1
  %v8637 = vsel %vm4685, %v8635, %v8636
  %v8638 = vrot.slane %v8452, 1
  %v8639 = vsel %vm4685, %v8636, %v8638
  %v8640 = vrot.slane %v8421, 1
  %v8641 = vrot.slane %v8283, 1
  %v8642 = vsel %vm4685, %v8640, %v8641
  %v8643 = vrot.slane %v8453, 1
  %v8644 = vsel %vm4685, %v8641, %v8643
  %v8645 = vrot.slane %v8422, 1
  %v8646 = vrot.slane %v8286, 1
  %v8647 = vsel %vm4685, %v8645, %v8646
  %v8648 = vrot.slane %v8454, 1
  %v8649 = vsel %vm4685, %v8646, %v8648
  %v8650 = vrot.slane %v8423, 1
  %v8651 = vrot.slane %v8289, 1
  %v8652 = vsel %vm4685, %v8650, %v8651
  %v8653 = vrot.slane %v8455, 1
  %v8654 = vsel %vm4685, %v8651, %v8653
  %v8655 = vrot.slane %v8424, 1
  %v8656 = vrot.slane %v8292, 1
  %v8657 = vsel %vm4685, %v8655, %v8656
  %v8658 = vrot.slane %v8456, 1
  %v8659 = vsel %vm4685, %v8656, %v8658
  %v8660 = vrot.slane %v8425, 1
  %v8661 = vrot.slane %v8295, 1
  %v8662 = vsel %vm4685, %v8660, %v8661
  %v8663 = vrot.slane %v8457, 1
  %v8664 = vsel %vm4685, %v8661, %v8663
  %v8665 = vrot.slane %v8426, 1
  %v8666 = vrot.slane %v8298, 1
  %v8667 = vsel %vm4685, %v8665, %v8666
  %v8668 = vrot.slane %v8458, 1
  %v8669 = vsel %vm4685, %v8666, %v8668
  %8670 = vrot.lane.b32.xlu0 %v8522, 2
  %v8671 = vpop.permute.xlu0 %8670
  %8672 = vrot.lane.b32.xlu0 %v8524, 2
  %v8673 = vpop.permute.xlu0 %8672
  %8674 = vrot.lane.b32.xlu0 %v8527, 2
  %v8675 = vpop.permute.xlu0 %8674
  %8676 = vrot.lane.b32.xlu0 %v8529, 2
  %v8677 = vpop.permute.xlu0 %8676
  %8678 = vrot.lane.b32.xlu0 %v8532, 2
  %v8679 = vpop.permute.xlu0 %8678
  %8680 = vrot.lane.b32.xlu0 %v8534, 2
  %v8681 = vpop.permute.xlu0 %8680
  %8682 = vrot.lane.b32.xlu0 %v8537, 2
  %v8683 = vpop.permute.xlu0 %8682
  %8684 = vrot.lane.b32.xlu0 %v8539, 2
  %v8685 = vpop.permute.xlu0 %8684
  %8686 = vrot.lane.b32.xlu0 %v8542, 2
  %v8687 = vpop.permute.xlu0 %8686
  %8688 = vrot.lane.b32.xlu0 %v8544, 2
  %v8689 = vpop.permute.xlu0 %8688
  %8690 = vrot.lane.b32.xlu0 %v8547, 2
  %v8691 = vpop.permute.xlu0 %8690
  %8692 = vrot.lane.b32.xlu0 %v8549, 2
  %v8693 = vpop.permute.xlu0 %8692
  %8694 = vrot.lane.b32.xlu0 %v8552, 2
  %v8695 = vpop.permute.xlu0 %8694
  %8696 = vrot.lane.b32.xlu0 %v8554, 2
  %v8697 = vpop.permute.xlu0 %8696
  %8698 = vrot.lane.b32.xlu0 %v8557, 2
  %v8699 = vpop.permute.xlu0 %8698
  %8700 = vrot.lane.b32.xlu0 %v8559, 2
  %v8701 = vpop.permute.xlu0 %8700
  %8702 = vrot.lane.b32.xlu0 %v8562, 2
  %v8703 = vpop.permute.xlu0 %8702
  %8704 = vrot.lane.b32.xlu0 %v8564, 2
  %v8705 = vpop.permute.xlu0 %8704
  %8706 = vrot.lane.b32.xlu0 %v8567, 2
  %v8707 = vpop.permute.xlu0 %8706
  %8708 = vrot.lane.b32.xlu0 %v8569, 2
  %v8709 = vpop.permute.xlu0 %8708
  %8710 = vrot.lane.b32.xlu0 %v8572, 2
  %v8711 = vpop.permute.xlu0 %8710
  %8712 = vrot.lane.b32.xlu0 %v8574, 2
  %v8713 = vpop.permute.xlu0 %8712
  %8714 = vrot.lane.b32.xlu0 %v8577, 2
  %v8715 = vpop.permute.xlu0 %8714
  %8716 = vrot.lane.b32.xlu0 %v8579, 2
  %v8717 = vpop.permute.xlu0 %8716
  %8718 = vrot.lane.b32.xlu0 %v8582, 2
  %v8719 = vpop.permute.xlu0 %8718
  %8720 = vrot.lane.b32.xlu0 %v8584, 2
  %v8721 = vpop.permute.xlu0 %8720
  %8722 = vrot.lane.b32.xlu0 %v8587, 2
  %v8723 = vpop.permute.xlu0 %8722
  %8724 = vrot.lane.b32.xlu0 %v8589, 2
  %v8725 = vpop.permute.xlu0 %8724
  %8726 = vrot.lane.b32.xlu0 %v8592, 2
  %v8727 = vpop.permute.xlu0 %8726
  %8728 = vrot.lane.b32.xlu0 %v8594, 2
  %v8729 = vpop.permute.xlu0 %8728
  %8730 = vrot.lane.b32.xlu0 %v8597, 2
  %v8731 = vpop.permute.xlu0 %8730
  %8732 = vrot.lane.b32.xlu0 %v8599, 2
  %v8733 = vpop.permute.xlu0 %8732
  %8734 = vrot.lane.b32.xlu0 %v8602, 2
  %v8735 = vpop.permute.xlu0 %8734
  %8736 = vrot.lane.b32.xlu0 %v8604, 2
  %v8737 = vpop.permute.xlu0 %8736
  %8738 = vrot.lane.b32.xlu0 %v8607, 2
  %v8739 = vpop.permute.xlu0 %8738
  %8740 = vrot.lane.b32.xlu0 %v8609, 2
  %v8741 = vpop.permute.xlu0 %8740
  %8742 = vrot.lane.b32.xlu0 %v8612, 2
  %v8743 = vpop.permute.xlu0 %8742
  %8744 = vrot.lane.b32.xlu0 %v8614, 2
  %v8745 = vpop.permute.xlu0 %8744
  %8746 = vrot.lane.b32.xlu0 %v8617, 2
  %v8747 = vpop.permute.xlu0 %8746
  %8748 = vrot.lane.b32.xlu0 %v8619, 2
  %v8749 = vpop.permute.xlu0 %8748
  %8750 = vrot.lane.b32.xlu0 %v8622, 2
  %v8751 = vpop.permute.xlu0 %8750
  %8752 = vrot.lane.b32.xlu0 %v8624, 2
  %v8753 = vpop.permute.xlu0 %8752
  %8754 = vrot.lane.b32.xlu0 %v8627, 2
  %v8755 = vpop.permute.xlu0 %8754
  %8756 = vrot.lane.b32.xlu0 %v8629, 2
  %v8757 = vpop.permute.xlu0 %8756
  %8758 = vrot.lane.b32.xlu0 %v8632, 2
  %v8759 = vpop.permute.xlu0 %8758
  %8760 = vrot.lane.b32.xlu0 %v8634, 2
  %v8761 = vpop.permute.xlu0 %8760
  %8762 = vrot.lane.b32.xlu0 %v8637, 2
  %v8763 = vpop.permute.xlu0 %8762
  %8764 = vrot.lane.b32.xlu0 %v8639, 2
  %v8765 = vpop.permute.xlu0 %8764
  %8766 = vrot.lane.b32.xlu0 %v8642, 2
  %v8767 = vpop.permute.xlu0 %8766
  %8768 = vrot.lane.b32.xlu0 %v8644, 2
  %v8769 = vpop.permute.xlu0 %8768
  %8770 = vrot.lane.b32.xlu0 %v8647, 2
  %v8771 = vpop.permute.xlu0 %8770
  %8772 = vrot.lane.b32.xlu0 %v8649, 2
  %v8773 = vpop.permute.xlu0 %8772
  %8774 = vrot.lane.b32.xlu0 %v8652, 2
  %v8775 = vpop.permute.xlu0 %8774
  %8776 = vrot.lane.b32.xlu0 %v8654, 2
  %v8777 = vpop.permute.xlu0 %8776
  %8778 = vrot.lane.b32.xlu0 %v8657, 2
  %v8779 = vpop.permute.xlu0 %8778
  %8780 = vrot.lane.b32.xlu0 %v8659, 2
  %v8781 = vpop.permute.xlu0 %8780
  %8782 = vrot.lane.b32.xlu0 %v8662, 2
  %v8783 = vpop.permute.xlu0 %8782
  %8784 = vrot.lane.b32.xlu0 %v8664, 2
  %v8785 = vpop.permute.xlu0 %8784
  %8786 = vrot.lane.b32.xlu0 %v8667, 2
  %v8787 = vpop.permute.xlu0 %8786
  %8788 = vrot.lane.b32.xlu0 %v8669, 2
  %v8789 = vpop.permute.xlu0 %8788
  %v8850 = vrot.slane %v8396, 2
  %v8851 = vrot.slane %v8208, 2
  %v8852 = vsel %vm5027, %v8850, %v8851
  %v8853 = vrot.slane %v8428, 2
  %v8854 = vsel %vm5027, %v8851, %v8853
  %v8855 = vrot.slane %v8397, 2
  %v8856 = vrot.slane %v8211, 2
  %v8857 = vsel %vm5027, %v8855, %v8856
  %v8858 = vrot.slane %v8429, 2
  %v8859 = vsel %vm5027, %v8856, %v8858
  %v8860 = vrot.slane %v8398, 2
  %v8861 = vrot.slane %v8214, 2
  %v8862 = vsel %vm5027, %v8860, %v8861
  %v8863 = vrot.slane %v8430, 2
  %v8864 = vsel %vm5027, %v8861, %v8863
  %v8865 = vrot.slane %v8399, 2
  %v8866 = vrot.slane %v8217, 2
  %v8867 = vsel %vm5027, %v8865, %v8866
  %v8868 = vrot.slane %v8431, 2
  %v8869 = vsel %vm5027, %v8866, %v8868
  %v8870 = vrot.slane %v8400, 2
  %v8871 = vrot.slane %v8220, 2
  %v8872 = vsel %vm5027, %v8870, %v8871
  %v8873 = vrot.slane %v8432, 2
  %v8874 = vsel %vm5027, %v8871, %v8873
  %v8875 = vrot.slane %v8401, 2
  %v8876 = vrot.slane %v8223, 2
  %v8877 = vsel %vm5027, %v8875, %v8876
  %v8878 = vrot.slane %v8433, 2
  %v8879 = vsel %vm5027, %v8876, %v8878
  %v8880 = vrot.slane %v8402, 2
  %v8881 = vrot.slane %v8226, 2
  %v8882 = vsel %vm5027, %v8880, %v8881
  %v8883 = vrot.slane %v8434, 2
  %v8884 = vsel %vm5027, %v8881, %v8883
  %v8885 = vrot.slane %v8403, 2
  %v8886 = vrot.slane %v8229, 2
  %v8887 = vsel %vm5027, %v8885, %v8886
  %v8888 = vrot.slane %v8435, 2
  %v8889 = vsel %vm5027, %v8886, %v8888
  %v8890 = vrot.slane %v8404, 2
  %v8891 = vrot.slane %v8232, 2
  %v8892 = vsel %vm5027, %v8890, %v8891
  %v8893 = vrot.slane %v8436, 2
  %v8894 = vsel %vm5027, %v8891, %v8893
  %v8895 = vrot.slane %v8405, 2
  %v8896 = vrot.slane %v8235, 2
  %v8897 = vsel %vm5027, %v8895, %v8896
  %v8898 = vrot.slane %v8437, 2
  %v8899 = vsel %vm5027, %v8896, %v8898
  %v8900 = vrot.slane %v8406, 2
  %v8901 = vrot.slane %v8238, 2
  %v8902 = vsel %vm5027, %v8900, %v8901
  %v8903 = vrot.slane %v8438, 2
  %v8904 = vsel %vm5027, %v8901, %v8903
  %v8905 = vrot.slane %v8407, 2
  %v8906 = vrot.slane %v8241, 2
  %v8907 = vsel %vm5027, %v8905, %v8906
  %v8908 = vrot.slane %v8439, 2
  %v8909 = vsel %vm5027, %v8906, %v8908
  %v8910 = vrot.slane %v8408, 2
  %v8911 = vrot.slane %v8244, 2
  %v8912 = vsel %vm5027, %v8910, %v8911
  %v8913 = vrot.slane %v8440, 2
  %v8914 = vsel %vm5027, %v8911, %v8913
  %v8915 = vrot.slane %v8409, 2
  %v8916 = vrot.slane %v8247, 2
  %v8917 = vsel %vm5027, %v8915, %v8916
  %v8918 = vrot.slane %v8441, 2
  %v8919 = vsel %vm5027, %v8916, %v8918
  %v8920 = vrot.slane %v8410, 2
  %v8921 = vrot.slane %v8250, 2
  %v8922 = vsel %vm5027, %v8920, %v8921
  %v8923 = vrot.slane %v8442, 2
  %v8924 = vsel %vm5027, %v8921, %v8923
  %v8925 = vrot.slane %v8412, 2
  %v8926 = vrot.slane %v8256, 2
  %v8927 = vsel %vm5027, %v8925, %v8926
  %v8928 = vrot.slane %v8444, 2
  %v8929 = vsel %vm5027, %v8926, %v8928
  %v8930 = vrot.slane %v8413, 2
  %v8931 = vrot.slane %v8259, 2
  %v8932 = vsel %vm5027, %v8930, %v8931
  %v8933 = vrot.slane %v8445, 2
  %v8934 = vsel %vm5027, %v8931, %v8933
  %v8935 = vrot.slane %v8414, 2
  %v8936 = vrot.slane %v8262, 2
  %v8937 = vsel %vm5027, %v8935, %v8936
  %v8938 = vrot.slane %v8446, 2
  %v8939 = vsel %vm5027, %v8936, %v8938
  %v8940 = vrot.slane %v8415, 2
  %v8941 = vrot.slane %v8265, 2
  %v8942 = vsel %vm5027, %v8940, %v8941
  %v8943 = vrot.slane %v8447, 2
  %v8944 = vsel %vm5027, %v8941, %v8943
  %v8945 = vrot.slane %v8416, 2
  %v8946 = vrot.slane %v8268, 2
  %v8947 = vsel %vm5027, %v8945, %v8946
  %v8948 = vrot.slane %v8448, 2
  %v8949 = vsel %vm5027, %v8946, %v8948
  %v8950 = vrot.slane %v8417, 2
  %v8951 = vrot.slane %v8271, 2
  %v8952 = vsel %vm5027, %v8950, %v8951
  %v8953 = vrot.slane %v8449, 2
  %v8954 = vsel %vm5027, %v8951, %v8953
  %v8955 = vrot.slane %v8418, 2
  %v8956 = vrot.slane %v8274, 2
  %v8957 = vsel %vm5027, %v8955, %v8956
  %v8958 = vrot.slane %v8450, 2
  %v8959 = vsel %vm5027, %v8956, %v8958
  %v8960 = vrot.slane %v8419, 2
  %v8961 = vrot.slane %v8277, 2
  %v8962 = vsel %vm5027, %v8960, %v8961
  %v8963 = vrot.slane %v8451, 2
  %v8964 = vsel %vm5027, %v8961, %v8963
  %v8965 = vrot.slane %v8420, 2
  %v8966 = vrot.slane %v8280, 2
  %v8967 = vsel %vm5027, %v8965, %v8966
  %v8968 = vrot.slane %v8452, 2
  %v8969 = vsel %vm5027, %v8966, %v8968
  %v8970 = vrot.slane %v8421, 2
  %v8971 = vrot.slane %v8283, 2
  %v8972 = vsel %vm5027, %v8970, %v8971
  %v8973 = vrot.slane %v8453, 2
  %v8974 = vsel %vm5027, %v8971, %v8973
  %v8975 = vrot.slane %v8422, 2
  %v8976 = vrot.slane %v8286, 2
  %v8977 = vsel %vm5027, %v8975, %v8976
  %v8978 = vrot.slane %v8454, 2
  %v8979 = vsel %vm5027, %v8976, %v8978
  %v8980 = vrot.slane %v8423, 2
  %v8981 = vrot.slane %v8289, 2
  %v8982 = vsel %vm5027, %v8980, %v8981
  %v8983 = vrot.slane %v8455, 2
  %v8984 = vsel %vm5027, %v8981, %v8983
  %v8985 = vrot.slane %v8424, 2
  %v8986 = vrot.slane %v8292, 2
  %v8987 = vsel %vm5027, %v8985, %v8986
  %v8988 = vrot.slane %v8456, 2
  %v8989 = vsel %vm5027, %v8986, %v8988
  %v8990 = vrot.slane %v8425, 2
  %v8991 = vrot.slane %v8295, 2
  %v8992 = vsel %vm5027, %v8990, %v8991
  %v8993 = vrot.slane %v8457, 2
  %v8994 = vsel %vm5027, %v8991, %v8993
  %v8995 = vrot.slane %v8426, 2
  %v8996 = vrot.slane %v8298, 2
  %v8997 = vsel %vm5027, %v8995, %v8996
  %v8998 = vrot.slane %v8458, 2
  %v8999 = vsel %vm5027, %v8996, %v8998
  %9000 = vrot.lane.b32.xlu0 %v8852, 4
  %v9001 = vpop.permute.xlu0 %9000
  %9002 = vrot.lane.b32.xlu0 %v8854, 4
  %v9003 = vpop.permute.xlu0 %9002
  %9004 = vrot.lane.b32.xlu0 %v8857, 4
  %v9005 = vpop.permute.xlu0 %9004
  %9006 = vrot.lane.b32.xlu0 %v8859, 4
  %v9007 = vpop.permute.xlu0 %9006
  %9008 = vrot.lane.b32.xlu0 %v8862, 4
  %v9009 = vpop.permute.xlu0 %9008
  %9010 = vrot.lane.b32.xlu0 %v8864, 4
  %v9011 = vpop.permute.xlu0 %9010
  %9012 = vrot.lane.b32.xlu0 %v8867, 4
  %v9013 = vpop.permute.xlu0 %9012
  %9014 = vrot.lane.b32.xlu0 %v8869, 4
  %v9015 = vpop.permute.xlu0 %9014
  %9016 = vrot.lane.b32.xlu0 %v8872, 4
  %v9017 = vpop.permute.xlu0 %9016
  %9018 = vrot.lane.b32.xlu0 %v8874, 4
  %v9019 = vpop.permute.xlu0 %9018
  %9020 = vrot.lane.b32.xlu0 %v8877, 4
  %v9021 = vpop.permute.xlu0 %9020
  %9022 = vrot.lane.b32.xlu0 %v8879, 4
  %v9023 = vpop.permute.xlu0 %9022
  %9024 = vrot.lane.b32.xlu0 %v8882, 4
  %v9025 = vpop.permute.xlu0 %9024
  %9026 = vrot.lane.b32.xlu0 %v8884, 4
  %v9027 = vpop.permute.xlu0 %9026
  %9028 = vrot.lane.b32.xlu0 %v8887, 4
  %v9029 = vpop.permute.xlu0 %9028
  %9030 = vrot.lane.b32.xlu0 %v8889, 4
  %v9031 = vpop.permute.xlu0 %9030
  %9032 = vrot.lane.b32.xlu0 %v8892, 4
  %v9033 = vpop.permute.xlu0 %9032
  %9034 = vrot.lane.b32.xlu0 %v8894, 4
  %v9035 = vpop.permute.xlu0 %9034
  %9036 = vrot.lane.b32.xlu0 %v8897, 4
  %v9037 = vpop.permute.xlu0 %9036
  %9038 = vrot.lane.b32.xlu0 %v8899, 4
  %v9039 = vpop.permute.xlu0 %9038
  %9040 = vrot.lane.b32.xlu0 %v8902, 4
  %v9041 = vpop.permute.xlu0 %9040
  %9042 = vrot.lane.b32.xlu0 %v8904, 4
  %v9043 = vpop.permute.xlu0 %9042
  %9044 = vrot.lane.b32.xlu0 %v8907, 4
  %v9045 = vpop.permute.xlu0 %9044
  %9046 = vrot.lane.b32.xlu0 %v8909, 4
  %v9047 = vpop.permute.xlu0 %9046
  %9048 = vrot.lane.b32.xlu0 %v8912, 4
  %v9049 = vpop.permute.xlu0 %9048
  %9050 = vrot.lane.b32.xlu0 %v8914, 4
  %v9051 = vpop.permute.xlu0 %9050
  %9052 = vrot.lane.b32.xlu0 %v8917, 4
  %v9053 = vpop.permute.xlu0 %9052
  %9054 = vrot.lane.b32.xlu0 %v8919, 4
  %v9055 = vpop.permute.xlu0 %9054
  %9056 = vrot.lane.b32.xlu0 %v8922, 4
  %v9057 = vpop.permute.xlu0 %9056
  %9058 = vrot.lane.b32.xlu0 %v8924, 4
  %v9059 = vpop.permute.xlu0 %9058
  %9060 = vrot.lane.b32.xlu0 %v8927, 4
  %v9061 = vpop.permute.xlu0 %9060
  %9062 = vrot.lane.b32.xlu0 %v8929, 4
  %v9063 = vpop.permute.xlu0 %9062
  %9064 = vrot.lane.b32.xlu0 %v8932, 4
  %v9065 = vpop.permute.xlu0 %9064
  %9066 = vrot.lane.b32.xlu0 %v8934, 4
  %v9067 = vpop.permute.xlu0 %9066
  %9068 = vrot.lane.b32.xlu0 %v8937, 4
  %v9069 = vpop.permute.xlu0 %9068
  %9070 = vrot.lane.b32.xlu0 %v8939, 4
  %v9071 = vpop.permute.xlu0 %9070
  %9072 = vrot.lane.b32.xlu0 %v8942, 4
  %v9073 = vpop.permute.xlu0 %9072
  %9074 = vrot.lane.b32.xlu0 %v8944, 4
  %v9075 = vpop.permute.xlu0 %9074
  %9076 = vrot.lane.b32.xlu0 %v8947, 4
  %v9077 = vpop.permute.xlu0 %9076
  %9078 = vrot.lane.b32.xlu0 %v8949, 4
  %v9079 = vpop.permute.xlu0 %9078
  %9080 = vrot.lane.b32.xlu0 %v8952, 4
  %v9081 = vpop.permute.xlu0 %9080
  %9082 = vrot.lane.b32.xlu0 %v8954, 4
  %v9083 = vpop.permute.xlu0 %9082
  %9084 = vrot.lane.b32.xlu0 %v8957, 4
  %v9085 = vpop.permute.xlu0 %9084
  %9086 = vrot.lane.b32.xlu0 %v8959, 4
  %v9087 = vpop.permute.xlu0 %9086
  %9088 = vrot.lane.b32.xlu0 %v8962, 4
  %v9089 = vpop.permute.xlu0 %9088
  %9090 = vrot.lane.b32.xlu0 %v8964, 4
  %v9091 = vpop.permute.xlu0 %9090
  %9092 = vrot.lane.b32.xlu0 %v8967, 4
  %v9093 = vpop.permute.xlu0 %9092
  %9094 = vrot.lane.b32.xlu0 %v8969, 4
  %v9095 = vpop.permute.xlu0 %9094
  %9096 = vrot.lane.b32.xlu0 %v8972, 4
  %v9097 = vpop.permute.xlu0 %9096
  %9098 = vrot.lane.b32.xlu0 %v8974, 4
  %v9099 = vpop.permute.xlu0 %9098
  %9100 = vrot.lane.b32.xlu0 %v8977, 4
  %v9101 = vpop.permute.xlu0 %9100
  %9102 = vrot.lane.b32.xlu0 %v8979, 4
  %v9103 = vpop.permute.xlu0 %9102
  %9104 = vrot.lane.b32.xlu0 %v8982, 4
  %v9105 = vpop.permute.xlu0 %9104
  %9106 = vrot.lane.b32.xlu0 %v8984, 4
  %v9107 = vpop.permute.xlu0 %9106
  %9108 = vrot.lane.b32.xlu0 %v8987, 4
  %v9109 = vpop.permute.xlu0 %9108
  %9110 = vrot.lane.b32.xlu0 %v8989, 4
  %v9111 = vpop.permute.xlu0 %9110
  %9112 = vrot.lane.b32.xlu0 %v8992, 4
  %v9113 = vpop.permute.xlu0 %9112
  %9114 = vrot.lane.b32.xlu0 %v8994, 4
  %v9115 = vpop.permute.xlu0 %9114
  %9116 = vrot.lane.b32.xlu0 %v8997, 4
  %v9117 = vpop.permute.xlu0 %9116
  %9118 = vrot.lane.b32.xlu0 %v8999, 4
  %v9119 = vpop.permute.xlu0 %9118
  %9182 = vrot.lane.b32.xlu0 %v8396, 6
  %v9183 = vpop.permute.xlu0 %9182
  %9184 = vrot.lane.b32.xlu0 %v8208, 6
  %v9185 = vpop.permute.xlu0 %9184
  %9186 = vrot.lane.b32.xlu0 %v8397, 6
  %v9187 = vpop.permute.xlu0 %9186
  %9188 = vrot.lane.b32.xlu0 %v8211, 6
  %v9189 = vpop.permute.xlu0 %9188
  %9190 = vrot.lane.b32.xlu0 %v8398, 6
  %v9191 = vpop.permute.xlu0 %9190
  %9192 = vrot.lane.b32.xlu0 %v8214, 6
  %v9193 = vpop.permute.xlu0 %9192
  %9194 = vrot.lane.b32.xlu0 %v8399, 6
  %v9195 = vpop.permute.xlu0 %9194
  %9196 = vrot.lane.b32.xlu0 %v8217, 6
  %v9197 = vpop.permute.xlu0 %9196
  %9198 = vrot.lane.b32.xlu0 %v8400, 6
  %v9199 = vpop.permute.xlu0 %9198
  %9200 = vrot.lane.b32.xlu0 %v8220, 6
  %v9201 = vpop.permute.xlu0 %9200
  %9202 = vrot.lane.b32.xlu0 %v8401, 6
  %v9203 = vpop.permute.xlu0 %9202
  %9204 = vrot.lane.b32.xlu0 %v8223, 6
  %v9205 = vpop.permute.xlu0 %9204
  %9206 = vrot.lane.b32.xlu0 %v8402, 6
  %v9207 = vpop.permute.xlu0 %9206
  %9208 = vrot.lane.b32.xlu0 %v8226, 6
  %v9209 = vpop.permute.xlu0 %9208
  %9210 = vrot.lane.b32.xlu0 %v8403, 6
  %v9211 = vpop.permute.xlu0 %9210
  %9212 = vrot.lane.b32.xlu0 %v8229, 6
  %v9213 = vpop.permute.xlu0 %9212
  %9214 = vrot.lane.b32.xlu0 %v8404, 6
  %v9215 = vpop.permute.xlu0 %9214
  %9216 = vrot.lane.b32.xlu0 %v8232, 6
  %v9217 = vpop.permute.xlu0 %9216
  %9218 = vrot.lane.b32.xlu0 %v8405, 6
  %v9219 = vpop.permute.xlu0 %9218
  %9220 = vrot.lane.b32.xlu0 %v8235, 6
  %v9221 = vpop.permute.xlu0 %9220
  %9222 = vrot.lane.b32.xlu0 %v8406, 6
  %v9223 = vpop.permute.xlu0 %9222
  %9224 = vrot.lane.b32.xlu0 %v8238, 6
  %v9225 = vpop.permute.xlu0 %9224
  %9226 = vrot.lane.b32.xlu0 %v8407, 6
  %v9227 = vpop.permute.xlu0 %9226
  %9228 = vrot.lane.b32.xlu0 %v8241, 6
  %v9229 = vpop.permute.xlu0 %9228
  %9230 = vrot.lane.b32.xlu0 %v8408, 6
  %v9231 = vpop.permute.xlu0 %9230
  %9232 = vrot.lane.b32.xlu0 %v8244, 6
  %v9233 = vpop.permute.xlu0 %9232
  %9234 = vrot.lane.b32.xlu0 %v8409, 6
  %v9235 = vpop.permute.xlu0 %9234
  %9236 = vrot.lane.b32.xlu0 %v8247, 6
  %v9237 = vpop.permute.xlu0 %9236
  %9238 = vrot.lane.b32.xlu0 %v8410, 6
  %v9239 = vpop.permute.xlu0 %9238
  %9240 = vrot.lane.b32.xlu0 %v8250, 6
  %v9241 = vpop.permute.xlu0 %9240
  %9242 = vrot.lane.b32.xlu0 %v8411, 6
  %v9243 = vpop.permute.xlu0 %9242
  %9244 = vrot.lane.b32.xlu0 %v8253, 6
  %v9245 = vpop.permute.xlu0 %9244
  %9246 = vrot.lane.b32.xlu0 %v8412, 6
  %v9247 = vpop.permute.xlu0 %9246
  %9248 = vrot.lane.b32.xlu0 %v8256, 6
  %v9249 = vpop.permute.xlu0 %9248
  %9250 = vrot.lane.b32.xlu0 %v8413, 6
  %v9251 = vpop.permute.xlu0 %9250
  %9252 = vrot.lane.b32.xlu0 %v8259, 6
  %v9253 = vpop.permute.xlu0 %9252
  %9254 = vrot.lane.b32.xlu0 %v8414, 6
  %v9255 = vpop.permute.xlu0 %9254
  %9256 = vrot.lane.b32.xlu0 %v8262, 6
  %v9257 = vpop.permute.xlu0 %9256
  %9258 = vrot.lane.b32.xlu0 %v8415, 6
  %v9259 = vpop.permute.xlu0 %9258
  %9260 = vrot.lane.b32.xlu0 %v8265, 6
  %v9261 = vpop.permute.xlu0 %9260
  %9262 = vrot.lane.b32.xlu0 %v8416, 6
  %v9263 = vpop.permute.xlu0 %9262
  %9264 = vrot.lane.b32.xlu0 %v8268, 6
  %v9265 = vpop.permute.xlu0 %9264
  %9266 = vrot.lane.b32.xlu0 %v8417, 6
  %v9267 = vpop.permute.xlu0 %9266
  %9268 = vrot.lane.b32.xlu0 %v8271, 6
  %v9269 = vpop.permute.xlu0 %9268
  %9270 = vrot.lane.b32.xlu0 %v8418, 6
  %v9271 = vpop.permute.xlu0 %9270
  %9272 = vrot.lane.b32.xlu0 %v8274, 6
  %v9273 = vpop.permute.xlu0 %9272
  %9274 = vrot.lane.b32.xlu0 %v8419, 6
  %v9275 = vpop.permute.xlu0 %9274
  %9276 = vrot.lane.b32.xlu0 %v8277, 6
  %v9277 = vpop.permute.xlu0 %9276
  %9278 = vrot.lane.b32.xlu0 %v8420, 6
  %v9279 = vpop.permute.xlu0 %9278
  %9280 = vrot.lane.b32.xlu0 %v8280, 6
  %v9281 = vpop.permute.xlu0 %9280
  %9282 = vrot.lane.b32.xlu0 %v8421, 6
  %v9283 = vpop.permute.xlu0 %9282
  %9284 = vrot.lane.b32.xlu0 %v8283, 6
  %v9285 = vpop.permute.xlu0 %9284
  %9286 = vrot.lane.b32.xlu0 %v8422, 6
  %v9287 = vpop.permute.xlu0 %9286
  %9288 = vrot.lane.b32.xlu0 %v8286, 6
  %v9289 = vpop.permute.xlu0 %9288
  %9290 = vrot.lane.b32.xlu0 %v8423, 6
  %v9291 = vpop.permute.xlu0 %9290
  %9292 = vrot.lane.b32.xlu0 %v8289, 6
  %v9293 = vpop.permute.xlu0 %9292
  %9294 = vrot.lane.b32.xlu0 %v8424, 6
  %v9295 = vpop.permute.xlu0 %9294
  %9296 = vrot.lane.b32.xlu0 %v8292, 6
  %v9297 = vpop.permute.xlu0 %9296
  %9298 = vrot.lane.b32.xlu0 %v8425, 6
  %v9299 = vpop.permute.xlu0 %9298
  %9300 = vrot.lane.b32.xlu0 %v8295, 6
  %v9301 = vpop.permute.xlu0 %9300
  %9302 = vrot.lane.b32.xlu0 %v8426, 6
  %v9303 = vpop.permute.xlu0 %9302
  %9304 = vrot.lane.b32.xlu0 %v8298, 6
  %v9305 = vpop.permute.xlu0 %9304
  %9306 = vrot.lane.b32.xlu0 %v8427, 6
  %v9307 = vpop.permute.xlu0 %9306
  %9308 = vrot.lane.b32.xlu0 %v8301, 6
  %v9309 = vpop.permute.xlu0 %9308
  %v9376 = vrot.slane %v8411, 1
  %v9377 = vrot.slane %v8253, 1
  %v9378 = vsel %vm4685, %v9376, %v9377
  %v9379 = vrot.slane %v8443, 1
  %v9380 = vsel %vm4685, %v9377, %v9379
  %v9381 = vrot.slane %v8427, 1
  %v9382 = vrot.slane %v8301, 1
  %v9383 = vsel %vm4685, %v9381, %v9382
  %v9384 = vrot.slane %v8459, 1
  %v9385 = vsel %vm4685, %v9382, %v9384
  %9386 = vrot.lane.b32.xlu0 %v8522, 8
  %v9387 = vpop.permute.xlu0 %9386
  %9388 = vrot.lane.b32.xlu0 %v8524, 8
  %v9389 = vpop.permute.xlu0 %9388
  %9390 = vrot.lane.b32.xlu0 %v8527, 8
  %v9391 = vpop.permute.xlu0 %9390
  %9392 = vrot.lane.b32.xlu0 %v8529, 8
  %v9393 = vpop.permute.xlu0 %9392
  %9394 = vrot.lane.b32.xlu0 %v8532, 8
  %v9395 = vpop.permute.xlu0 %9394
  %9396 = vrot.lane.b32.xlu0 %v8534, 8
  %v9397 = vpop.permute.xlu0 %9396
  %9398 = vrot.lane.b32.xlu0 %v8537, 8
  %v9399 = vpop.permute.xlu0 %9398
  %9400 = vrot.lane.b32.xlu0 %v8539, 8
  %v9401 = vpop.permute.xlu0 %9400
  %9402 = vrot.lane.b32.xlu0 %v8542, 8
  %v9403 = vpop.permute.xlu0 %9402
  %9404 = vrot.lane.b32.xlu0 %v8544, 8
  %v9405 = vpop.permute.xlu0 %9404
  %9406 = vrot.lane.b32.xlu0 %v8547, 8
  %v9407 = vpop.permute.xlu0 %9406
  %9408 = vrot.lane.b32.xlu0 %v8549, 8
  %v9409 = vpop.permute.xlu0 %9408
  %9410 = vrot.lane.b32.xlu0 %v8552, 8
  %v9411 = vpop.permute.xlu0 %9410
  %9412 = vrot.lane.b32.xlu0 %v8554, 8
  %v9413 = vpop.permute.xlu0 %9412
  %9414 = vrot.lane.b32.xlu0 %v8557, 8
  %v9415 = vpop.permute.xlu0 %9414
  %9416 = vrot.lane.b32.xlu0 %v8559, 8
  %v9417 = vpop.permute.xlu0 %9416
  %9418 = vrot.lane.b32.xlu0 %v8562, 8
  %v9419 = vpop.permute.xlu0 %9418
  %9420 = vrot.lane.b32.xlu0 %v8564, 8
  %v9421 = vpop.permute.xlu0 %9420
  %9422 = vrot.lane.b32.xlu0 %v8567, 8
  %v9423 = vpop.permute.xlu0 %9422
  %9424 = vrot.lane.b32.xlu0 %v8569, 8
  %v9425 = vpop.permute.xlu0 %9424
  %9426 = vrot.lane.b32.xlu0 %v8572, 8
  %v9427 = vpop.permute.xlu0 %9426
  %9428 = vrot.lane.b32.xlu0 %v8574, 8
  %v9429 = vpop.permute.xlu0 %9428
  %9430 = vrot.lane.b32.xlu0 %v8577, 8
  %v9431 = vpop.permute.xlu0 %9430
  %9432 = vrot.lane.b32.xlu0 %v8579, 8
  %v9433 = vpop.permute.xlu0 %9432
  %9434 = vrot.lane.b32.xlu0 %v8582, 8
  %v9435 = vpop.permute.xlu0 %9434
  %9436 = vrot.lane.b32.xlu0 %v8584, 8
  %v9437 = vpop.permute.xlu0 %9436
  %9438 = vrot.lane.b32.xlu0 %v8587, 8
  %v9439 = vpop.permute.xlu0 %9438
  %9440 = vrot.lane.b32.xlu0 %v8589, 8
  %v9441 = vpop.permute.xlu0 %9440
  %9442 = vrot.lane.b32.xlu0 %v8592, 8
  %v9443 = vpop.permute.xlu0 %9442
  %9444 = vrot.lane.b32.xlu0 %v8594, 8
  %v9445 = vpop.permute.xlu0 %9444
  %9446 = vrot.lane.b32.xlu0 %v9378, 8
  %v9447 = vpop.permute.xlu0 %9446
  %9448 = vrot.lane.b32.xlu0 %v9380, 8
  %v9449 = vpop.permute.xlu0 %9448
  %9450 = vrot.lane.b32.xlu0 %v8597, 8
  %v9451 = vpop.permute.xlu0 %9450
  %9452 = vrot.lane.b32.xlu0 %v8599, 8
  %v9453 = vpop.permute.xlu0 %9452
  %9454 = vrot.lane.b32.xlu0 %v8602, 8
  %v9455 = vpop.permute.xlu0 %9454
  %9456 = vrot.lane.b32.xlu0 %v8604, 8
  %v9457 = vpop.permute.xlu0 %9456
  %9458 = vrot.lane.b32.xlu0 %v8607, 8
  %v9459 = vpop.permute.xlu0 %9458
  %9460 = vrot.lane.b32.xlu0 %v8609, 8
  %v9461 = vpop.permute.xlu0 %9460
  %9462 = vrot.lane.b32.xlu0 %v8612, 8
  %v9463 = vpop.permute.xlu0 %9462
  %9464 = vrot.lane.b32.xlu0 %v8614, 8
  %v9465 = vpop.permute.xlu0 %9464
  %9466 = vrot.lane.b32.xlu0 %v8617, 8
  %v9467 = vpop.permute.xlu0 %9466
  %9468 = vrot.lane.b32.xlu0 %v8619, 8
  %v9469 = vpop.permute.xlu0 %9468
  %9470 = vrot.lane.b32.xlu0 %v8622, 8
  %v9471 = vpop.permute.xlu0 %9470
  %9472 = vrot.lane.b32.xlu0 %v8624, 8
  %v9473 = vpop.permute.xlu0 %9472
  %9474 = vrot.lane.b32.xlu0 %v8627, 8
  %v9475 = vpop.permute.xlu0 %9474
  %9476 = vrot.lane.b32.xlu0 %v8629, 8
  %v9477 = vpop.permute.xlu0 %9476
  %9478 = vrot.lane.b32.xlu0 %v8632, 8
  %v9479 = vpop.permute.xlu0 %9478
  %9480 = vrot.lane.b32.xlu0 %v8634, 8
  %v9481 = vpop.permute.xlu0 %9480
  %9482 = vrot.lane.b32.xlu0 %v8637, 8
  %v9483 = vpop.permute.xlu0 %9482
  %9484 = vrot.lane.b32.xlu0 %v8639, 8
  %v9485 = vpop.permute.xlu0 %9484
  %9486 = vrot.lane.b32.xlu0 %v8642, 8
  %v9487 = vpop.permute.xlu0 %9486
  %9488 = vrot.lane.b32.xlu0 %v8644, 8
  %v9489 = vpop.permute.xlu0 %9488
  %9490 = vrot.lane.b32.xlu0 %v8647, 8
  %v9491 = vpop.permute.xlu0 %9490
  %9492 = vrot.lane.b32.xlu0 %v8649, 8
  %v9493 = vpop.permute.xlu0 %9492
  %9494 = vrot.lane.b32.xlu0 %v8652, 8
  %v9495 = vpop.permute.xlu0 %9494
  %9496 = vrot.lane.b32.xlu0 %v8654, 8
  %v9497 = vpop.permute.xlu0 %9496
  %9498 = vrot.lane.b32.xlu0 %v8657, 8
  %v9499 = vpop.permute.xlu0 %9498
  %9500 = vrot.lane.b32.xlu0 %v8659, 8
  %v9501 = vpop.permute.xlu0 %9500
  %9502 = vrot.lane.b32.xlu0 %v8662, 8
  %v9503 = vpop.permute.xlu0 %9502
  %9504 = vrot.lane.b32.xlu0 %v8664, 8
  %v9505 = vpop.permute.xlu0 %9504
  %9506 = vrot.lane.b32.xlu0 %v8667, 8
  %v9507 = vpop.permute.xlu0 %9506
  %9508 = vrot.lane.b32.xlu0 %v8669, 8
  %v9509 = vpop.permute.xlu0 %9508
  %9510 = vrot.lane.b32.xlu0 %v9383, 8
  %v9511 = vpop.permute.xlu0 %9510
  %9512 = vrot.lane.b32.xlu0 %v9385, 8
  %v9513 = vpop.permute.xlu0 %9512
  %v9578 = vrot.slane %v8411, 2
  %v9579 = vrot.slane %v8253, 2
  %v9580 = vsel %vm5027, %v9578, %v9579
  %v9581 = vrot.slane %v8443, 2
  %v9582 = vsel %vm5027, %v9579, %v9581
  %v9583 = vrot.slane %v8427, 2
  %v9584 = vrot.slane %v8301, 2
  %v9585 = vsel %vm5027, %v9583, %v9584
  %v9586 = vrot.slane %v8459, 2
  %v9587 = vsel %vm5027, %v9584, %v9586
  %9588 = vrot.lane.b32.xlu0 %v8852, 10
  %v9589 = vpop.permute.xlu0 %9588
  %9590 = vrot.lane.b32.xlu0 %v8854, 10
  %v9591 = vpop.permute.xlu0 %9590
  %9592 = vrot.lane.b32.xlu0 %v8857, 10
  %v9593 = vpop.permute.xlu0 %9592
  %9594 = vrot.lane.b32.xlu0 %v8859, 10
  %v9595 = vpop.permute.xlu0 %9594
  %9596 = vrot.lane.b32.xlu0 %v8862, 10
  %v9597 = vpop.permute.xlu0 %9596
  %9598 = vrot.lane.b32.xlu0 %v8864, 10
  %v9599 = vpop.permute.xlu0 %9598
  %9600 = vrot.lane.b32.xlu0 %v8867, 10
  %v9601 = vpop.permute.xlu0 %9600
  %9602 = vrot.lane.b32.xlu0 %v8869, 10
  %v9603 = vpop.permute.xlu0 %9602
  %9604 = vrot.lane.b32.xlu0 %v8872, 10
  %v9605 = vpop.permute.xlu0 %9604
  %9606 = vrot.lane.b32.xlu0 %v8874, 10
  %v9607 = vpop.permute.xlu0 %9606
  %9608 = vrot.lane.b32.xlu0 %v8877, 10
  %v9609 = vpop.permute.xlu0 %9608
  %9610 = vrot.lane.b32.xlu0 %v8879, 10
  %v9611 = vpop.permute.xlu0 %9610
  %9612 = vrot.lane.b32.xlu0 %v8882, 10
  %v9613 = vpop.permute.xlu0 %9612
  %9614 = vrot.lane.b32.xlu0 %v8884, 10
  %v9615 = vpop.permute.xlu0 %9614
  %9616 = vrot.lane.b32.xlu0 %v8887, 10
  %v9617 = vpop.permute.xlu0 %9616
  %9618 = vrot.lane.b32.xlu0 %v8889, 10
  %v9619 = vpop.permute.xlu0 %9618
  %9620 = vrot.lane.b32.xlu0 %v8892, 10
  %v9621 = vpop.permute.xlu0 %9620
  %9622 = vrot.lane.b32.xlu0 %v8894, 10
  %v9623 = vpop.permute.xlu0 %9622
  %9624 = vrot.lane.b32.xlu0 %v8897, 10
  %v9625 = vpop.permute.xlu0 %9624
  %9626 = vrot.lane.b32.xlu0 %v8899, 10
  %v9627 = vpop.permute.xlu0 %9626
  %9628 = vrot.lane.b32.xlu0 %v8902, 10
  %v9629 = vpop.permute.xlu0 %9628
  %9630 = vrot.lane.b32.xlu0 %v8904, 10
  %v9631 = vpop.permute.xlu0 %9630
  %9632 = vrot.lane.b32.xlu0 %v8907, 10
  %v9633 = vpop.permute.xlu0 %9632
  %9634 = vrot.lane.b32.xlu0 %v8909, 10
  %v9635 = vpop.permute.xlu0 %9634
  %9636 = vrot.lane.b32.xlu0 %v8912, 10
  %v9637 = vpop.permute.xlu0 %9636
  %9638 = vrot.lane.b32.xlu0 %v8914, 10
  %v9639 = vpop.permute.xlu0 %9638
  %9640 = vrot.lane.b32.xlu0 %v8917, 10
  %v9641 = vpop.permute.xlu0 %9640
  %9642 = vrot.lane.b32.xlu0 %v8919, 10
  %v9643 = vpop.permute.xlu0 %9642
  %9644 = vrot.lane.b32.xlu0 %v8922, 10
  %v9645 = vpop.permute.xlu0 %9644
  %9646 = vrot.lane.b32.xlu0 %v8924, 10
  %v9647 = vpop.permute.xlu0 %9646
  %9648 = vrot.lane.b32.xlu0 %v9580, 10
  %v9649 = vpop.permute.xlu0 %9648
  %9650 = vrot.lane.b32.xlu0 %v9582, 10
  %v9651 = vpop.permute.xlu0 %9650
  %9652 = vrot.lane.b32.xlu0 %v8927, 10
  %v9653 = vpop.permute.xlu0 %9652
  %9654 = vrot.lane.b32.xlu0 %v8929, 10
  %v9655 = vpop.permute.xlu0 %9654
  %9656 = vrot.lane.b32.xlu0 %v8932, 10
  %v9657 = vpop.permute.xlu0 %9656
  %9658 = vrot.lane.b32.xlu0 %v8934, 10
  %v9659 = vpop.permute.xlu0 %9658
  %9660 = vrot.lane.b32.xlu0 %v8937, 10
  %v9661 = vpop.permute.xlu0 %9660
  %9662 = vrot.lane.b32.xlu0 %v8939, 10
  %v9663 = vpop.permute.xlu0 %9662
  %9664 = vrot.lane.b32.xlu0 %v8942, 10
  %v9665 = vpop.permute.xlu0 %9664
  %9666 = vrot.lane.b32.xlu0 %v8944, 10
  %v9667 = vpop.permute.xlu0 %9666
  %9668 = vrot.lane.b32.xlu0 %v8947, 10
  %v9669 = vpop.permute.xlu0 %9668
  %9670 = vrot.lane.b32.xlu0 %v8949, 10
  %v9671 = vpop.permute.xlu0 %9670
  %9672 = vrot.lane.b32.xlu0 %v8952, 10
  %v9673 = vpop.permute.xlu0 %9672
  %9674 = vrot.lane.b32.xlu0 %v8954, 10
  %v9675 = vpop.permute.xlu0 %9674
  %9676 = vrot.lane.b32.xlu0 %v8957, 10
  %v9677 = vpop.permute.xlu0 %9676
  %9678 = vrot.lane.b32.xlu0 %v8959, 10
  %v9679 = vpop.permute.xlu0 %9678
  %9680 = vrot.lane.b32.xlu0 %v8962, 10
  %v9681 = vpop.permute.xlu0 %9680
  %9682 = vrot.lane.b32.xlu0 %v8964, 10
  %v9683 = vpop.permute.xlu0 %9682
  %9684 = vrot.lane.b32.xlu0 %v8967, 10
  %v9685 = vpop.permute.xlu0 %9684
  %9686 = vrot.lane.b32.xlu0 %v8969, 10
  %v9687 = vpop.permute.xlu0 %9686
  %9688 = vrot.lane.b32.xlu0 %v8972, 10
  %v9689 = vpop.permute.xlu0 %9688
  %9690 = vrot.lane.b32.xlu0 %v8974, 10
  %v9691 = vpop.permute.xlu0 %9690
  %9692 = vrot.lane.b32.xlu0 %v8977, 10
  %v9693 = vpop.permute.xlu0 %9692
  %9694 = vrot.lane.b32.xlu0 %v8979, 10
  %v9695 = vpop.permute.xlu0 %9694
  %9696 = vrot.lane.b32.xlu0 %v8982, 10
  %v9697 = vpop.permute.xlu0 %9696
  %9698 = vrot.lane.b32.xlu0 %v8984, 10
  %v9699 = vpop.permute.xlu0 %9698
  %9700 = vrot.lane.b32.xlu0 %v8987, 10
  %v9701 = vpop.permute.xlu0 %9700
  %9702 = vrot.lane.b32.xlu0 %v8989, 10
  %v9703 = vpop.permute.xlu0 %9702
  %9704 = vrot.lane.b32.xlu0 %v8992, 10
  %v9705 = vpop.permute.xlu0 %9704
  %9706 = vrot.lane.b32.xlu0 %v8994, 10
  %v9707 = vpop.permute.xlu0 %9706
  %9708 = vrot.lane.b32.xlu0 %v8997, 10
  %v9709 = vpop.permute.xlu0 %9708
  %9710 = vrot.lane.b32.xlu0 %v8999, 10
  %v9711 = vpop.permute.xlu0 %9710
  %9712 = vrot.lane.b32.xlu0 %v9585, 10
  %v9713 = vpop.permute.xlu0 %9712
  %9714 = vrot.lane.b32.xlu0 %v9587, 10
  %v9715 = vpop.permute.xlu0 %9714
  %9780 = vrot.lane.b32.xlu0 %v8397, 12
  %v9781 = vpop.permute.xlu0 %9780
  %9782 = vrot.lane.b32.xlu0 %v8211, 12
  %v9783 = vpop.permute.xlu0 %9782
  %9784 = vrot.lane.b32.xlu0 %v8398, 12
  %v9785 = vpop.permute.xlu0 %9784
  %9786 = vrot.lane.b32.xlu0 %v8214, 12
  %v9787 = vpop.permute.xlu0 %9786
  %9788 = vrot.lane.b32.xlu0 %v8399, 12
  %v9789 = vpop.permute.xlu0 %9788
  %9790 = vrot.lane.b32.xlu0 %v8217, 12
  %v9791 = vpop.permute.xlu0 %9790
  %9792 = vrot.lane.b32.xlu0 %v8400, 12
  %v9793 = vpop.permute.xlu0 %9792
  %9794 = vrot.lane.b32.xlu0 %v8220, 12
  %v9795 = vpop.permute.xlu0 %9794
  %9796 = vrot.lane.b32.xlu0 %v8401, 12
  %v9797 = vpop.permute.xlu0 %9796
  %9798 = vrot.lane.b32.xlu0 %v8223, 12
  %v9799 = vpop.permute.xlu0 %9798
  %9800 = vrot.lane.b32.xlu0 %v8402, 12
  %v9801 = vpop.permute.xlu0 %9800
  %9802 = vrot.lane.b32.xlu0 %v8226, 12
  %v9803 = vpop.permute.xlu0 %9802
  %9804 = vrot.lane.b32.xlu0 %v8403, 12
  %v9805 = vpop.permute.xlu0 %9804
  %9806 = vrot.lane.b32.xlu0 %v8229, 12
  %v9807 = vpop.permute.xlu0 %9806
  %9808 = vrot.lane.b32.xlu0 %v8404, 12
  %v9809 = vpop.permute.xlu0 %9808
  %9810 = vrot.lane.b32.xlu0 %v8232, 12
  %v9811 = vpop.permute.xlu0 %9810
  %9812 = vrot.lane.b32.xlu0 %v8405, 12
  %v9813 = vpop.permute.xlu0 %9812
  %9814 = vrot.lane.b32.xlu0 %v8235, 12
  %v9815 = vpop.permute.xlu0 %9814
  %9816 = vrot.lane.b32.xlu0 %v8406, 12
  %v9817 = vpop.permute.xlu0 %9816
  %9818 = vrot.lane.b32.xlu0 %v8238, 12
  %v9819 = vpop.permute.xlu0 %9818
  %9820 = vrot.lane.b32.xlu0 %v8407, 12
  %v9821 = vpop.permute.xlu0 %9820
  %9822 = vrot.lane.b32.xlu0 %v8241, 12
  %v9823 = vpop.permute.xlu0 %9822
  %9824 = vrot.lane.b32.xlu0 %v8408, 12
  %v9825 = vpop.permute.xlu0 %9824
  %9826 = vrot.lane.b32.xlu0 %v8244, 12
  %v9827 = vpop.permute.xlu0 %9826
  %9828 = vrot.lane.b32.xlu0 %v8409, 12
  %v9829 = vpop.permute.xlu0 %9828
  %9830 = vrot.lane.b32.xlu0 %v8247, 12
  %v9831 = vpop.permute.xlu0 %9830
  %9832 = vrot.lane.b32.xlu0 %v8410, 12
  %v9833 = vpop.permute.xlu0 %9832
  %9834 = vrot.lane.b32.xlu0 %v8250, 12
  %v9835 = vpop.permute.xlu0 %9834
  %9836 = vrot.lane.b32.xlu0 %v8411, 12
  %v9837 = vpop.permute.xlu0 %9836
  %9838 = vrot.lane.b32.xlu0 %v8253, 12
  %v9839 = vpop.permute.xlu0 %9838
  %9840 = vrot.lane.b32.xlu0 %v8413, 12
  %v9841 = vpop.permute.xlu0 %9840
  %9842 = vrot.lane.b32.xlu0 %v8259, 12
  %v9843 = vpop.permute.xlu0 %9842
  %9844 = vrot.lane.b32.xlu0 %v8414, 12
  %v9845 = vpop.permute.xlu0 %9844
  %9846 = vrot.lane.b32.xlu0 %v8262, 12
  %v9847 = vpop.permute.xlu0 %9846
  %9848 = vrot.lane.b32.xlu0 %v8415, 12
  %v9849 = vpop.permute.xlu0 %9848
  %9850 = vrot.lane.b32.xlu0 %v8265, 12
  %v9851 = vpop.permute.xlu0 %9850
  %9852 = vrot.lane.b32.xlu0 %v8416, 12
  %v9853 = vpop.permute.xlu0 %9852
  %9854 = vrot.lane.b32.xlu0 %v8268, 12
  %v9855 = vpop.permute.xlu0 %9854
  %9856 = vrot.lane.b32.xlu0 %v8417, 12
  %v9857 = vpop.permute.xlu0 %9856
  %9858 = vrot.lane.b32.xlu0 %v8271, 12
  %v9859 = vpop.permute.xlu0 %9858
  %9860 = vrot.lane.b32.xlu0 %v8418, 12
  %v9861 = vpop.permute.xlu0 %9860
  %9862 = vrot.lane.b32.xlu0 %v8274, 12
  %v9863 = vpop.permute.xlu0 %9862
  %9864 = vrot.lane.b32.xlu0 %v8419, 12
  %v9865 = vpop.permute.xlu0 %9864
  %9866 = vrot.lane.b32.xlu0 %v8277, 12
  %v9867 = vpop.permute.xlu0 %9866
  %9868 = vrot.lane.b32.xlu0 %v8420, 12
  %v9869 = vpop.permute.xlu0 %9868
  %9870 = vrot.lane.b32.xlu0 %v8280, 12
  %v9871 = vpop.permute.xlu0 %9870
  %9872 = vrot.lane.b32.xlu0 %v8421, 12
  %v9873 = vpop.permute.xlu0 %9872
  %9874 = vrot.lane.b32.xlu0 %v8283, 12
  %v9875 = vpop.permute.xlu0 %9874
  %9876 = vrot.lane.b32.xlu0 %v8422, 12
  %v9877 = vpop.permute.xlu0 %9876
  %9878 = vrot.lane.b32.xlu0 %v8286, 12
  %v9879 = vpop.permute.xlu0 %9878
  %9880 = vrot.lane.b32.xlu0 %v8423, 12
  %v9881 = vpop.permute.xlu0 %9880
  %9882 = vrot.lane.b32.xlu0 %v8289, 12
  %v9883 = vpop.permute.xlu0 %9882
  %9884 = vrot.lane.b32.xlu0 %v8424, 12
  %v9885 = vpop.permute.xlu0 %9884
  %9886 = vrot.lane.b32.xlu0 %v8292, 12
  %v9887 = vpop.permute.xlu0 %9886
  %9888 = vrot.lane.b32.xlu0 %v8425, 12
  %v9889 = vpop.permute.xlu0 %9888
  %9890 = vrot.lane.b32.xlu0 %v8295, 12
  %v9891 = vpop.permute.xlu0 %9890
  %9892 = vrot.lane.b32.xlu0 %v8426, 12
  %v9893 = vpop.permute.xlu0 %9892
  %9894 = vrot.lane.b32.xlu0 %v8298, 12
  %v9895 = vpop.permute.xlu0 %9894
  %9896 = vrot.lane.b32.xlu0 %v8427, 12
  %v9897 = vpop.permute.xlu0 %9896
  %9898 = vrot.lane.b32.xlu0 %v8301, 12
  %v9899 = vpop.permute.xlu0 %9898
  %9960 = vrot.lane.b32.xlu0 %v8527, 14
  %v9961 = vpop.permute.xlu0 %9960
  %9962 = vrot.lane.b32.xlu0 %v8529, 14
  %v9963 = vpop.permute.xlu0 %9962
  %9964 = vrot.lane.b32.xlu0 %v8532, 14
  %v9965 = vpop.permute.xlu0 %9964
  %9966 = vrot.lane.b32.xlu0 %v8534, 14
  %v9967 = vpop.permute.xlu0 %9966
  %9968 = vrot.lane.b32.xlu0 %v8537, 14
  %v9969 = vpop.permute.xlu0 %9968
  %9970 = vrot.lane.b32.xlu0 %v8539, 14
  %v9971 = vpop.permute.xlu0 %9970
  %9972 = vrot.lane.b32.xlu0 %v8542, 14
  %v9973 = vpop.permute.xlu0 %9972
  %9974 = vrot.lane.b32.xlu0 %v8544, 14
  %v9975 = vpop.permute.xlu0 %9974
  %9976 = vrot.lane.b32.xlu0 %v8547, 14
  %v9977 = vpop.permute.xlu0 %9976
  %9978 = vrot.lane.b32.xlu0 %v8549, 14
  %v9979 = vpop.permute.xlu0 %9978
  %9980 = vrot.lane.b32.xlu0 %v8552, 14
  %v9981 = vpop.permute.xlu0 %9980
  %9982 = vrot.lane.b32.xlu0 %v8554, 14
  %v9983 = vpop.permute.xlu0 %9982
  %9984 = vrot.lane.b32.xlu0 %v8557, 14
  %v9985 = vpop.permute.xlu0 %9984
  %9986 = vrot.lane.b32.xlu0 %v8559, 14
  %v9987 = vpop.permute.xlu0 %9986
  %9988 = vrot.lane.b32.xlu0 %v8562, 14
  %v9989 = vpop.permute.xlu0 %9988
  %9990 = vrot.lane.b32.xlu0 %v8564, 14
  %v9991 = vpop.permute.xlu0 %9990
  %9992 = vrot.lane.b32.xlu0 %v8567, 14
  %v9993 = vpop.permute.xlu0 %9992
  %9994 = vrot.lane.b32.xlu0 %v8569, 14
  %v9995 = vpop.permute.xlu0 %9994
  %9996 = vrot.lane.b32.xlu0 %v8572, 14
  %v9997 = vpop.permute.xlu0 %9996
  %9998 = vrot.lane.b32.xlu0 %v8574, 14
  %v9999 = vpop.permute.xlu0 %9998
  %10000 = vrot.lane.b32.xlu0 %v8577, 14
  %v10001 = vpop.permute.xlu0 %10000
  %10002 = vrot.lane.b32.xlu0 %v8579, 14
  %v10003 = vpop.permute.xlu0 %10002
  %10004 = vrot.lane.b32.xlu0 %v8582, 14
  %v10005 = vpop.permute.xlu0 %10004
  %10006 = vrot.lane.b32.xlu0 %v8584, 14
  %v10007 = vpop.permute.xlu0 %10006
  %10008 = vrot.lane.b32.xlu0 %v8587, 14
  %v10009 = vpop.permute.xlu0 %10008
  %10010 = vrot.lane.b32.xlu0 %v8589, 14
  %v10011 = vpop.permute.xlu0 %10010
  %10012 = vrot.lane.b32.xlu0 %v8592, 14
  %v10013 = vpop.permute.xlu0 %10012
  %10014 = vrot.lane.b32.xlu0 %v8594, 14
  %v10015 = vpop.permute.xlu0 %10014
  %10016 = vrot.lane.b32.xlu0 %v9378, 14
  %v10017 = vpop.permute.xlu0 %10016
  %10018 = vrot.lane.b32.xlu0 %v9380, 14
  %v10019 = vpop.permute.xlu0 %10018
  %10020 = vrot.lane.b32.xlu0 %v8602, 14
  %v10021 = vpop.permute.xlu0 %10020
  %10022 = vrot.lane.b32.xlu0 %v8604, 14
  %v10023 = vpop.permute.xlu0 %10022
  %10024 = vrot.lane.b32.xlu0 %v8607, 14
  %v10025 = vpop.permute.xlu0 %10024
  %10026 = vrot.lane.b32.xlu0 %v8609, 14
  %v10027 = vpop.permute.xlu0 %10026
  %10028 = vrot.lane.b32.xlu0 %v8612, 14
  %v10029 = vpop.permute.xlu0 %10028
  %10030 = vrot.lane.b32.xlu0 %v8614, 14
  %v10031 = vpop.permute.xlu0 %10030
  %10032 = vrot.lane.b32.xlu0 %v8617, 14
  %v10033 = vpop.permute.xlu0 %10032
  %10034 = vrot.lane.b32.xlu0 %v8619, 14
  %v10035 = vpop.permute.xlu0 %10034
  %10036 = vrot.lane.b32.xlu0 %v8622, 14
  %v10037 = vpop.permute.xlu0 %10036
  %10038 = vrot.lane.b32.xlu0 %v8624, 14
  %v10039 = vpop.permute.xlu0 %10038
  %10040 = vrot.lane.b32.xlu0 %v8627, 14
  %v10041 = vpop.permute.xlu0 %10040
  %10042 = vrot.lane.b32.xlu0 %v8629, 14
  %v10043 = vpop.permute.xlu0 %10042
  %10044 = vrot.lane.b32.xlu0 %v8632, 14
  %v10045 = vpop.permute.xlu0 %10044
  %10046 = vrot.lane.b32.xlu0 %v8634, 14
  %v10047 = vpop.permute.xlu0 %10046
  %10048 = vrot.lane.b32.xlu0 %v8637, 14
  %v10049 = vpop.permute.xlu0 %10048
  %10050 = vrot.lane.b32.xlu0 %v8639, 14
  %v10051 = vpop.permute.xlu0 %10050
  %10052 = vrot.lane.b32.xlu0 %v8642, 14
  %v10053 = vpop.permute.xlu0 %10052
  %10054 = vrot.lane.b32.xlu0 %v8644, 14
  %v10055 = vpop.permute.xlu0 %10054
  %10056 = vrot.lane.b32.xlu0 %v8647, 14
  %v10057 = vpop.permute.xlu0 %10056
  %10058 = vrot.lane.b32.xlu0 %v8649, 14
  %v10059 = vpop.permute.xlu0 %10058
  %10060 = vrot.lane.b32.xlu0 %v8652, 14
  %v10061 = vpop.permute.xlu0 %10060
  %10062 = vrot.lane.b32.xlu0 %v8654, 14
  %v10063 = vpop.permute.xlu0 %10062
  %10064 = vrot.lane.b32.xlu0 %v8657, 14
  %v10065 = vpop.permute.xlu0 %10064
  %10066 = vrot.lane.b32.xlu0 %v8659, 14
  %v10067 = vpop.permute.xlu0 %10066
  %10068 = vrot.lane.b32.xlu0 %v8662, 14
  %v10069 = vpop.permute.xlu0 %10068
  %10070 = vrot.lane.b32.xlu0 %v8664, 14
  %v10071 = vpop.permute.xlu0 %10070
  %10072 = vrot.lane.b32.xlu0 %v8667, 14
  %v10073 = vpop.permute.xlu0 %10072
  %10074 = vrot.lane.b32.xlu0 %v8669, 14
  %v10075 = vpop.permute.xlu0 %10074
  %10076 = vrot.lane.b32.xlu0 %v9383, 14
  %v10077 = vpop.permute.xlu0 %10076
  %10078 = vrot.lane.b32.xlu0 %v9385, 14
  %v10079 = vpop.permute.xlu0 %10078
  %10140 = vrot.lane.b32.xlu0 %v8857, 16
  %v10141 = vpop.permute.xlu0 %10140
  %10142 = vrot.lane.b32.xlu0 %v8859, 16
  %v10143 = vpop.permute.xlu0 %10142
  %10144 = vrot.lane.b32.xlu0 %v8862, 16
  %v10145 = vpop.permute.xlu0 %10144
  %10146 = vrot.lane.b32.xlu0 %v8864, 16
  %v10147 = vpop.permute.xlu0 %10146
  %10148 = vrot.lane.b32.xlu0 %v8867, 16
  %v10149 = vpop.permute.xlu0 %10148
  %10150 = vrot.lane.b32.xlu0 %v8869, 16
  %v10151 = vpop.permute.xlu0 %10150
  %10152 = vrot.lane.b32.xlu0 %v8872, 16
  %v10153 = vpop.permute.xlu0 %10152
  %10154 = vrot.lane.b32.xlu0 %v8874, 16
  %v10155 = vpop.permute.xlu0 %10154
  %10156 = vrot.lane.b32.xlu0 %v8877, 16
  %v10157 = vpop.permute.xlu0 %10156
  %10158 = vrot.lane.b32.xlu0 %v8879, 16
  %v10159 = vpop.permute.xlu0 %10158
  %10160 = vrot.lane.b32.xlu0 %v8882, 16
  %v10161 = vpop.permute.xlu0 %10160
  %10162 = vrot.lane.b32.xlu0 %v8884, 16
  %v10163 = vpop.permute.xlu0 %10162
  %10164 = vrot.lane.b32.xlu0 %v8887, 16
  %v10165 = vpop.permute.xlu0 %10164
  %10166 = vrot.lane.b32.xlu0 %v8889, 16
  %v10167 = vpop.permute.xlu0 %10166
  %10168 = vrot.lane.b32.xlu0 %v8892, 16
  %v10169 = vpop.permute.xlu0 %10168
  %10170 = vrot.lane.b32.xlu0 %v8894, 16
  %v10171 = vpop.permute.xlu0 %10170
  %10172 = vrot.lane.b32.xlu0 %v8897, 16
  %v10173 = vpop.permute.xlu0 %10172
  %10174 = vrot.lane.b32.xlu0 %v8899, 16
  %v10175 = vpop.permute.xlu0 %10174
  %10176 = vrot.lane.b32.xlu0 %v8902, 16
  %v10177 = vpop.permute.xlu0 %10176
  %10178 = vrot.lane.b32.xlu0 %v8904, 16
  %v10179 = vpop.permute.xlu0 %10178
  %10180 = vrot.lane.b32.xlu0 %v8907, 16
  %v10181 = vpop.permute.xlu0 %10180
  %10182 = vrot.lane.b32.xlu0 %v8909, 16
  %v10183 = vpop.permute.xlu0 %10182
  %10184 = vrot.lane.b32.xlu0 %v8912, 16
  %v10185 = vpop.permute.xlu0 %10184
  %10186 = vrot.lane.b32.xlu0 %v8914, 16
  %v10187 = vpop.permute.xlu0 %10186
  %10188 = vrot.lane.b32.xlu0 %v8917, 16
  %v10189 = vpop.permute.xlu0 %10188
  %10190 = vrot.lane.b32.xlu0 %v8919, 16
  %v10191 = vpop.permute.xlu0 %10190
  %10192 = vrot.lane.b32.xlu0 %v8922, 16
  %v10193 = vpop.permute.xlu0 %10192
  %10194 = vrot.lane.b32.xlu0 %v8924, 16
  %v10195 = vpop.permute.xlu0 %10194
  %10196 = vrot.lane.b32.xlu0 %v9580, 16
  %v10197 = vpop.permute.xlu0 %10196
  %10198 = vrot.lane.b32.xlu0 %v9582, 16
  %v10199 = vpop.permute.xlu0 %10198
  %10200 = vrot.lane.b32.xlu0 %v8932, 16
  %v10201 = vpop.permute.xlu0 %10200
  %10202 = vrot.lane.b32.xlu0 %v8934, 16
  %v10203 = vpop.permute.xlu0 %10202
  %10204 = vrot.lane.b32.xlu0 %v8937, 16
  %v10205 = vpop.permute.xlu0 %10204
  %10206 = vrot.lane.b32.xlu0 %v8939, 16
  %v10207 = vpop.permute.xlu0 %10206
  %10208 = vrot.lane.b32.xlu0 %v8942, 16
  %v10209 = vpop.permute.xlu0 %10208
  %10210 = vrot.lane.b32.xlu0 %v8944, 16
  %v10211 = vpop.permute.xlu0 %10210
  %10212 = vrot.lane.b32.xlu0 %v8947, 16
  %v10213 = vpop.permute.xlu0 %10212
  %10214 = vrot.lane.b32.xlu0 %v8949, 16
  %v10215 = vpop.permute.xlu0 %10214
  %10216 = vrot.lane.b32.xlu0 %v8952, 16
  %v10217 = vpop.permute.xlu0 %10216
  %10218 = vrot.lane.b32.xlu0 %v8954, 16
  %v10219 = vpop.permute.xlu0 %10218
  %10220 = vrot.lane.b32.xlu0 %v8957, 16
  %v10221 = vpop.permute.xlu0 %10220
  %10222 = vrot.lane.b32.xlu0 %v8959, 16
  %v10223 = vpop.permute.xlu0 %10222
  %10224 = vrot.lane.b32.xlu0 %v8962, 16
  %v10225 = vpop.permute.xlu0 %10224
  %10226 = vrot.lane.b32.xlu0 %v8964, 16
  %v10227 = vpop.permute.xlu0 %10226
  %10228 = vrot.lane.b32.xlu0 %v8967, 16
  %v10229 = vpop.permute.xlu0 %10228
  %10230 = vrot.lane.b32.xlu0 %v8969, 16
  %v10231 = vpop.permute.xlu0 %10230
  %10232 = vrot.lane.b32.xlu0 %v8972, 16
  %v10233 = vpop.permute.xlu0 %10232
  %10234 = vrot.lane.b32.xlu0 %v8974, 16
  %v10235 = vpop.permute.xlu0 %10234
  %10236 = vrot.lane.b32.xlu0 %v8977, 16
  %v10237 = vpop.permute.xlu0 %10236
  %10238 = vrot.lane.b32.xlu0 %v8979, 16
  %v10239 = vpop.permute.xlu0 %10238
  %10240 = vrot.lane.b32.xlu0 %v8982, 16
  %v10241 = vpop.permute.xlu0 %10240
  %10242 = vrot.lane.b32.xlu0 %v8984, 16
  %v10243 = vpop.permute.xlu0 %10242
  %10244 = vrot.lane.b32.xlu0 %v8987, 16
  %v10245 = vpop.permute.xlu0 %10244
  %10246 = vrot.lane.b32.xlu0 %v8989, 16
  %v10247 = vpop.permute.xlu0 %10246
  %10248 = vrot.lane.b32.xlu0 %v8992, 16
  %v10249 = vpop.permute.xlu0 %10248
  %10250 = vrot.lane.b32.xlu0 %v8994, 16
  %v10251 = vpop.permute.xlu0 %10250
  %10252 = vrot.lane.b32.xlu0 %v8997, 16
  %v10253 = vpop.permute.xlu0 %10252
  %10254 = vrot.lane.b32.xlu0 %v8999, 16
  %v10255 = vpop.permute.xlu0 %10254
  %10256 = vrot.lane.b32.xlu0 %v9585, 16
  %v10257 = vpop.permute.xlu0 %10256
  %10258 = vrot.lane.b32.xlu0 %v9587, 16
  %v10259 = vpop.permute.xlu0 %10258
  %v10320 = vsel %vm3624, %v8396, %v8671
  %v10321 = vsel %vm3624, %v8208, %v8673
  %v10322 = vsel %vm3624, %v8397, %v8675
  %v10323 = vsel %vm3624, %v8211, %v8677
  %v10324 = vsel %vm3624, %v8398, %v8679
  %v10325 = vsel %vm3624, %v8214, %v8681
  %v10326 = vsel %vm3624, %v8399, %v8683
  %v10327 = vsel %vm3624, %v8217, %v8685
  %v10328 = vsel %vm3624, %v8400, %v8687
  %v10329 = vsel %vm3624, %v8220, %v8689
  %v10330 = vsel %vm3624, %v8401, %v8691
  %v10331 = vsel %vm3624, %v8223, %v8693
  %v10332 = vsel %vm3624, %v8402, %v8695
  %v10333 = vsel %vm3624, %v8226, %v8697
  %v10334 = vsel %vm3624, %v8403, %v8699
  %v10335 = vsel %vm3624, %v8229, %v8701
  %v10336 = vsel %vm3624, %v8404, %v8703
  %v10337 = vsel %vm3624, %v8232, %v8705
  %v10338 = vsel %vm3624, %v8405, %v8707
  %v10339 = vsel %vm3624, %v8235, %v8709
  %v10340 = vsel %vm3624, %v8406, %v8711
  %v10341 = vsel %vm3624, %v8238, %v8713
  %v10342 = vsel %vm3624, %v8407, %v8715
  %v10343 = vsel %vm3624, %v8241, %v8717
  %v10344 = vsel %vm3624, %v8408, %v8719
  %v10345 = vsel %vm3624, %v8244, %v8721
  %v10346 = vsel %vm3624, %v8409, %v8723
  %v10347 = vsel %vm3624, %v8247, %v8725
  %v10348 = vsel %vm3624, %v8410, %v8727
  %v10349 = vsel %vm3624, %v8250, %v8729
  %v10350 = vsel %vm3624, %v8412, %v8731
  %v10351 = vsel %vm3624, %v8256, %v8733
  %v10352 = vsel %vm3624, %v8413, %v8735
  %v10353 = vsel %vm3624, %v8259, %v8737
  %v10354 = vsel %vm3624, %v8414, %v8739
  %v10355 = vsel %vm3624, %v8262, %v8741
  %v10356 = vsel %vm3624, %v8415, %v8743
  %v10357 = vsel %vm3624, %v8265, %v8745
  %v10358 = vsel %vm3624, %v8416, %v8747
  %v10359 = vsel %vm3624, %v8268, %v8749
  %v10360 = vsel %vm3624, %v8417, %v8751
  %v10361 = vsel %vm3624, %v8271, %v8753
  %v10362 = vsel %vm3624, %v8418, %v8755
  %v10363 = vsel %vm3624, %v8274, %v8757
  %v10364 = vsel %vm3624, %v8419, %v8759
  %v10365 = vsel %vm3624, %v8277, %v8761
  %v10366 = vsel %vm3624, %v8420, %v8763
  %v10367 = vsel %vm3624, %v8280, %v8765
  %v10368 = vsel %vm3624, %v8421, %v8767
  %v10369 = vsel %vm3624, %v8283, %v8769
  %v10370 = vsel %vm3624, %v8422, %v8771
  %v10371 = vsel %vm3624, %v8286, %v8773
  %v10372 = vsel %vm3624, %v8423, %v8775
  %v10373 = vsel %vm3624, %v8289, %v8777
  %v10374 = vsel %vm3624, %v8424, %v8779
  %v10375 = vsel %vm3624, %v8292, %v8781
  %v10376 = vsel %vm3624, %v8425, %v8783
  %v10377 = vsel %vm3624, %v8295, %v8785
  %v10378 = vsel %vm3624, %v8426, %v8787
  %v10379 = vsel %vm3624, %v8298, %v8789
  %v10380 = vsel %vm2662, %v10320, %v9001
  %v10381 = vsel %vm2662, %v10321, %v9003
  %v10382 = vsel %vm2662, %v10322, %v9005
  %v10383 = vsel %vm2662, %v10323, %v9007
  %v10384 = vsel %vm2662, %v10324, %v9009
  %v10385 = vsel %vm2662, %v10325, %v9011
  %v10386 = vsel %vm2662, %v10326, %v9013
  %v10387 = vsel %vm2662, %v10327, %v9015
  %v10388 = vsel %vm2662, %v10328, %v9017
  %v10389 = vsel %vm2662, %v10329, %v9019
  %v10390 = vsel %vm2662, %v10330, %v9021
  %v10391 = vsel %vm2662, %v10331, %v9023
  %v10392 = vsel %vm2662, %v10332, %v9025
  %v10393 = vsel %vm2662, %v10333, %v9027
  %v10394 = vsel %vm2662, %v10334, %v9029
  %v10395 = vsel %vm2662, %v10335, %v9031
  %v10396 = vsel %vm2662, %v10336, %v9033
  %v10397 = vsel %vm2662, %v10337, %v9035
  %v10398 = vsel %vm2662, %v10338, %v9037
  %v10399 = vsel %vm2662, %v10339, %v9039
  %v10400 = vsel %vm2662, %v10340, %v9041
  %v10401 = vsel %vm2662, %v10341, %v9043
  %v10402 = vsel %vm2662, %v10342, %v9045
  %v10403 = vsel %vm2662, %v10343, %v9047
  %v10404 = vsel %vm2662, %v10344, %v9049
  %v10405 = vsel %vm2662, %v10345, %v9051
  %v10406 = vsel %vm2662, %v10346, %v9053
  %v10407 = vsel %vm2662, %v10347, %v9055
  %v10408 = vsel %vm2662, %v10348, %v9057
  %v10409 = vsel %vm2662, %v10349, %v9059
  %v10410 = vsel %vm2662, %v10350, %v9061
  %v10411 = vsel %vm2662, %v10351, %v9063
  %v10412 = vsel %vm2662, %v10352, %v9065
  %v10413 = vsel %vm2662, %v10353, %v9067
  %v10414 = vsel %vm2662, %v10354, %v9069
  %v10415 = vsel %vm2662, %v10355, %v9071
  %v10416 = vsel %vm2662, %v10356, %v9073
  %v10417 = vsel %vm2662, %v10357, %v9075
  %v10418 = vsel %vm2662, %v10358, %v9077
  %v10419 = vsel %vm2662, %v10359, %v9079
  %v10420 = vsel %vm2662, %v10360, %v9081
  %v10421 = vsel %vm2662, %v10361, %v9083
  %v10422 = vsel %vm2662, %v10362, %v9085
  %v10423 = vsel %vm2662, %v10363, %v9087
  %v10424 = vsel %vm2662, %v10364, %v9089
  %v10425 = vsel %vm2662, %v10365, %v9091
  %v10426 = vsel %vm2662, %v10366, %v9093
  %v10427 = vsel %vm2662, %v10367, %v9095
  %v10428 = vsel %vm2662, %v10368, %v9097
  %v10429 = vsel %vm2662, %v10369, %v9099
  %v10430 = vsel %vm2662, %v10370, %v9101
  %v10431 = vsel %vm2662, %v10371, %v9103
  %v10432 = vsel %vm2662, %v10372, %v9105
  %v10433 = vsel %vm2662, %v10373, %v9107
  %v10434 = vsel %vm2662, %v10374, %v9109
  %v10435 = vsel %vm2662, %v10375, %v9111
  %v10436 = vsel %vm2662, %v10376, %v9113
  %v10437 = vsel %vm2662, %v10377, %v9115
  %v10438 = vsel %vm2662, %v10378, %v9117
  %v10439 = vsel %vm2662, %v10379, %v9119
  %v10440 = vsel %vm6651, %v6589, %v9183
  %v10441 = vsel %vm6651, %v6590, %v9185
  %v10442 = vsel %vm6651, %v10380, %v9187
  %v10443 = vsel %vm6651, %v10381, %v9189
  %v10444 = vsel %vm6651, %v10382, %v9191
  %v10445 = vsel %vm6651, %v10383, %v9193
  %v10446 = vsel %vm6651, %v10384, %v9195
  %v10447 = vsel %vm6651, %v10385, %v9197
  %v10448 = vsel %vm6651, %v10386, %v9199
  %v10449 = vsel %vm6651, %v10387, %v9201
  %v10450 = vsel %vm6651, %v10388, %v9203
  %v10451 = vsel %vm6651, %v10389, %v9205
  %v10452 = vsel %vm6651, %v10390, %v9207
  %v10453 = vsel %vm6651, %v10391, %v9209
  %v10454 = vsel %vm6651, %v10392, %v9211
  %v10455 = vsel %vm6651, %v10393, %v9213
  %v10456 = vsel %vm6651, %v10394, %v9215
  %v10457 = vsel %vm6651, %v10395, %v9217
  %v10458 = vsel %vm6651, %v10396, %v9219
  %v10459 = vsel %vm6651, %v10397, %v9221
  %v10460 = vsel %vm6651, %v10398, %v9223
  %v10461 = vsel %vm6651, %v10399, %v9225
  %v10462 = vsel %vm6651, %v10400, %v9227
  %v10463 = vsel %vm6651, %v10401, %v9229
  %v10464 = vsel %vm6651, %v10402, %v9231
  %v10465 = vsel %vm6651, %v10403, %v9233
  %v10466 = vsel %vm6651, %v10404, %v9235
  %v10467 = vsel %vm6651, %v10405, %v9237
  %v10468 = vsel %vm6651, %v10406, %v9239
  %v10469 = vsel %vm6651, %v10407, %v9241
  %v10470 = vsel %vm6651, %v10408, %v9243
  %v10471 = vsel %vm6651, %v10409, %v9245
  %v10472 = vsel %vm6651, %v6589, %v9247
  %v10473 = vsel %vm6651, %v6590, %v9249
  %v10474 = vsel %vm6651, %v10410, %v9251
  %v10475 = vsel %vm6651, %v10411, %v9253
  %v10476 = vsel %vm6651, %v10412, %v9255
  %v10477 = vsel %vm6651, %v10413, %v9257
  %v10478 = vsel %vm6651, %v10414, %v9259
  %v10479 = vsel %vm6651, %v10415, %v9261
  %v10480 = vsel %vm6651, %v10416, %v9263
  %v10481 = vsel %vm6651, %v10417, %v9265
  %v10482 = vsel %vm6651, %v10418, %v9267
  %v10483 = vsel %vm6651, %v10419, %v9269
  %v10484 = vsel %vm6651, %v10420, %v9271
  %v10485 = vsel %vm6651, %v10421, %v9273
  %v10486 = vsel %vm6651, %v10422, %v9275
  %v10487 = vsel %vm6651, %v10423, %v9277
  %v10488 = vsel %vm6651, %v10424, %v9279
  %v10489 = vsel %vm6651, %v10425, %v9281
  %v10490 = vsel %vm6651, %v10426, %v9283
  %v10491 = vsel %vm6651, %v10427, %v9285
  %v10492 = vsel %vm6651, %v10428, %v9287
  %v10493 = vsel %vm6651, %v10429, %v9289
  %v10494 = vsel %vm6651, %v10430, %v9291
  %v10495 = vsel %vm6651, %v10431, %v9293
  %v10496 = vsel %vm6651, %v10432, %v9295
  %v10497 = vsel %vm6651, %v10433, %v9297
  %v10498 = vsel %vm6651, %v10434, %v9299
  %v10499 = vsel %vm6651, %v10435, %v9301
  %v10500 = vsel %vm6651, %v10436, %v9303
  %v10501 = vsel %vm6651, %v10437, %v9305
  %v10502 = vsel %vm6651, %v10438, %v9307
  %v10503 = vsel %vm6651, %v10439, %v9309
  %v10504 = vsel %vm2727, %v10440, %v9387
  %v10505 = vsel %vm2727, %v10441, %v9389
  %v10506 = vsel %vm2727, %v10442, %v9391
  %v10507 = vsel %vm2727, %v10443, %v9393
  %v10508 = vsel %vm2727, %v10444, %v9395
  %v10509 = vsel %vm2727, %v10445, %v9397
  %v10510 = vsel %vm2727, %v10446, %v9399
  %v10511 = vsel %vm2727, %v10447, %v9401
  %v10512 = vsel %vm2727, %v10448, %v9403
  %v10513 = vsel %vm2727, %v10449, %v9405
  %v10514 = vsel %vm2727, %v10450, %v9407
  %v10515 = vsel %vm2727, %v10451, %v9409
  %v10516 = vsel %vm2727, %v10452, %v9411
  %v10517 = vsel %vm2727, %v10453, %v9413
  %v10518 = vsel %vm2727, %v10454, %v9415
  %v10519 = vsel %vm2727, %v10455, %v9417
  %v10520 = vsel %vm2727, %v10456, %v9419
  %v10521 = vsel %vm2727, %v10457, %v9421
  %v10522 = vsel %vm2727, %v10458, %v9423
  %v10523 = vsel %vm2727, %v10459, %v9425
  %v10524 = vsel %vm2727, %v10460, %v9427
  %v10525 = vsel %vm2727, %v10461, %v9429
  %v10526 = vsel %vm2727, %v10462, %v9431
  %v10527 = vsel %vm2727, %v10463, %v9433
  %v10528 = vsel %vm2727, %v10464, %v9435
  %v10529 = vsel %vm2727, %v10465, %v9437
  %v10530 = vsel %vm2727, %v10466, %v9439
  %v10531 = vsel %vm2727, %v10467, %v9441
  %v10532 = vsel %vm2727, %v10468, %v9443
  %v10533 = vsel %vm2727, %v10469, %v9445
  %v10534 = vsel %vm2727, %v10470, %v9447
  %v10535 = vsel %vm2727, %v10471, %v9449
  %v10536 = vsel %vm2727, %v10472, %v9451
  %v10537 = vsel %vm2727, %v10473, %v9453
  %v10538 = vsel %vm2727, %v10474, %v9455
  %v10539 = vsel %vm2727, %v10475, %v9457
  %v10540 = vsel %vm2727, %v10476, %v9459
  %v10541 = vsel %vm2727, %v10477, %v9461
  %v10542 = vsel %vm2727, %v10478, %v9463
  %v10543 = vsel %vm2727, %v10479, %v9465
  %v10544 = vsel %vm2727, %v10480, %v9467
  %v10545 = vsel %vm2727, %v10481, %v9469
  %v10546 = vsel %vm2727, %v10482, %v9471
  %v10547 = vsel %vm2727, %v10483, %v9473
  %v10548 = vsel %vm2727, %v10484, %v9475
  %v10549 = vsel %vm2727, %v10485, %v9477
  %v10550 = vsel %vm2727, %v10486, %v9479
  %v10551 = vsel %vm2727, %v10487, %v9481
  %v10552 = vsel %vm2727, %v10488, %v9483
  %v10553 = vsel %vm2727, %v10489, %v9485
  %v10554 = vsel %vm2727, %v10490, %v9487
  %v10555 = vsel %vm2727, %v10491, %v9489
  %v10556 = vsel %vm2727, %v10492, %v9491
  %v10557 = vsel %vm2727, %v10493, %v9493
  %v10558 = vsel %vm2727, %v10494, %v9495
  %v10559 = vsel %vm2727, %v10495, %v9497
  %v10560 = vsel %vm2727, %v10496, %v9499
  %v10561 = vsel %vm2727, %v10497, %v9501
  %v10562 = vsel %vm2727, %v10498, %v9503
  %v10563 = vsel %vm2727, %v10499, %v9505
  %v10564 = vsel %vm2727, %v10500, %v9507
  %v10565 = vsel %vm2727, %v10501, %v9509
  %v10566 = vsel %vm2727, %v10502, %v9511
  %v10567 = vsel %vm2727, %v10503, %v9513
  %v10568 = vsel %vm6780, %v10504, %v9589
  %v10569 = vsel %vm6780, %v10505, %v9591
  %v10570 = vsel %vm6780, %v10506, %v9593
  %v10571 = vsel %vm6780, %v10507, %v9595
  %v10572 = vsel %vm6780, %v10508, %v9597
  %v10573 = vsel %vm6780, %v10509, %v9599
  %v10574 = vsel %vm6780, %v10510, %v9601
  %v10575 = vsel %vm6780, %v10511, %v9603
  %v10576 = vsel %vm6780, %v10512, %v9605
  %v10577 = vsel %vm6780, %v10513, %v9607
  %v10578 = vsel %vm6780, %v10514, %v9609
  %v10579 = vsel %vm6780, %v10515, %v9611
  %v10580 = vsel %vm6780, %v10516, %v9613
  %v10581 = vsel %vm6780, %v10517, %v9615
  %v10582 = vsel %vm6780, %v10518, %v9617
  %v10583 = vsel %vm6780, %v10519, %v9619
  %v10584 = vsel %vm6780, %v10520, %v9621
  %v10585 = vsel %vm6780, %v10521, %v9623
  %v10586 = vsel %vm6780, %v10522, %v9625
  %v10587 = vsel %vm6780, %v10523, %v9627
  %v10588 = vsel %vm6780, %v10524, %v9629
  %v10589 = vsel %vm6780, %v10525, %v9631
  %v10590 = vsel %vm6780, %v10526, %v9633
  %v10591 = vsel %vm6780, %v10527, %v9635
  %v10592 = vsel %vm6780, %v10528, %v9637
  %v10593 = vsel %vm6780, %v10529, %v9639
  %v10594 = vsel %vm6780, %v10530, %v9641
  %v10595 = vsel %vm6780, %v10531, %v9643
  %v10596 = vsel %vm6780, %v10532, %v9645
  %v10597 = vsel %vm6780, %v10533, %v9647
  %v10598 = vsel %vm6780, %v10534, %v9649
  %v10599 = vsel %vm6780, %v10535, %v9651
  %v10600 = vsel %vm6780, %v10536, %v9653
  %v10601 = vsel %vm6780, %v10537, %v9655
  %v10602 = vsel %vm6780, %v10538, %v9657
  %v10603 = vsel %vm6780, %v10539, %v9659
  %v10604 = vsel %vm6780, %v10540, %v9661
  %v10605 = vsel %vm6780, %v10541, %v9663
  %v10606 = vsel %vm6780, %v10542, %v9665
  %v10607 = vsel %vm6780, %v10543, %v9667
  %v10608 = vsel %vm6780, %v10544, %v9669
  %v10609 = vsel %vm6780, %v10545, %v9671
  %v10610 = vsel %vm6780, %v10546, %v9673
  %v10611 = vsel %vm6780, %v10547, %v9675
  %v10612 = vsel %vm6780, %v10548, %v9677
  %v10613 = vsel %vm6780, %v10549, %v9679
  %v10614 = vsel %vm6780, %v10550, %v9681
  %v10615 = vsel %vm6780, %v10551, %v9683
  %v10616 = vsel %vm6780, %v10552, %v9685
  %v10617 = vsel %vm6780, %v10553, %v9687
  %v10618 = vsel %vm6780, %v10554, %v9689
  %v10619 = vsel %vm6780, %v10555, %v9691
  %v10620 = vsel %vm6780, %v10556, %v9693
  %v10621 = vsel %vm6780, %v10557, %v9695
  %v10622 = vsel %vm6780, %v10558, %v9697
  %v10623 = vsel %vm6780, %v10559, %v9699
  %v10624 = vsel %vm6780, %v10560, %v9701
  %v10625 = vsel %vm6780, %v10561, %v9703
  %v10626 = vsel %vm6780, %v10562, %v9705
  %v10627 = vsel %vm6780, %v10563, %v9707
  %v10628 = vsel %vm6780, %v10564, %v9709
  %v10629 = vsel %vm6780, %v10565, %v9711
  %v10630 = vsel %vm6780, %v10566, %v9713
  %v10631 = vsel %vm6780, %v10567, %v9715
  %v10632 = vsel %vm2792, %v10568, %v9781
  %v10633 = vsel %vm2792, %v10569, %v9783
  %v10634 = vsel %vm2792, %v10570, %v9785
  %v10635 = vsel %vm2792, %v10571, %v9787
  %v10636 = vsel %vm2792, %v10572, %v9789
  %v10637 = vsel %vm2792, %v10573, %v9791
  %v10638 = vsel %vm2792, %v10574, %v9793
  %v10639 = vsel %vm2792, %v10575, %v9795
  %v10640 = vsel %vm2792, %v10576, %v9797
  %v10641 = vsel %vm2792, %v10577, %v9799
  %v10642 = vsel %vm2792, %v10578, %v9801
  %v10643 = vsel %vm2792, %v10579, %v9803
  %v10644 = vsel %vm2792, %v10580, %v9805
  %v10645 = vsel %vm2792, %v10581, %v9807
  %v10646 = vsel %vm2792, %v10582, %v9809
  %v10647 = vsel %vm2792, %v10583, %v9811
  %v10648 = vsel %vm2792, %v10584, %v9813
  %v10649 = vsel %vm2792, %v10585, %v9815
  %v10650 = vsel %vm2792, %v10586, %v9817
  %v10651 = vsel %vm2792, %v10587, %v9819
  %v10652 = vsel %vm2792, %v10588, %v9821
  %v10653 = vsel %vm2792, %v10589, %v9823
  %v10654 = vsel %vm2792, %v10590, %v9825
  %v10655 = vsel %vm2792, %v10591, %v9827
  %v10656 = vsel %vm2792, %v10592, %v9829
  %v10657 = vsel %vm2792, %v10593, %v9831
  %v10658 = vsel %vm2792, %v10594, %v9833
  %v10659 = vsel %vm2792, %v10595, %v9835
  %v10660 = vsel %vm2792, %v10596, %v9837
  %v10661 = vsel %vm2792, %v10597, %v9839
  %v10662 = vsel %vm2792, %v10598, %v6030
  %v10663 = vsel %vm2792, %v10599, %v6032
  %v10664 = vsel %vm2792, %v10600, %v9841
  %v10665 = vsel %vm2792, %v10601, %v9843
  %v10666 = vsel %vm2792, %v10602, %v9845
  %v10667 = vsel %vm2792, %v10603, %v9847
  %v10668 = vsel %vm2792, %v10604, %v9849
  %v10669 = vsel %vm2792, %v10605, %v9851
  %v10670 = vsel %vm2792, %v10606, %v9853
  %v10671 = vsel %vm2792, %v10607, %v9855
  %v10672 = vsel %vm2792, %v10608, %v9857
  %v10673 = vsel %vm2792, %v10609, %v9859
  %v10674 = vsel %vm2792, %v10610, %v9861
  %v10675 = vsel %vm2792, %v10611, %v9863
  %v10676 = vsel %vm2792, %v10612, %v9865
  %v10677 = vsel %vm2792, %v10613, %v9867
  %v10678 = vsel %vm2792, %v10614, %v9869
  %v10679 = vsel %vm2792, %v10615, %v9871
  %v10680 = vsel %vm2792, %v10616, %v9873
  %v10681 = vsel %vm2792, %v10617, %v9875
  %v10682 = vsel %vm2792, %v10618, %v9877
  %v10683 = vsel %vm2792, %v10619, %v9879
  %v10684 = vsel %vm2792, %v10620, %v9881
  %v10685 = vsel %vm2792, %v10621, %v9883
  %v10686 = vsel %vm2792, %v10622, %v9885
  %v10687 = vsel %vm2792, %v10623, %v9887
  %v10688 = vsel %vm2792, %v10624, %v9889
  %v10689 = vsel %vm2792, %v10625, %v9891
  %v10690 = vsel %vm2792, %v10626, %v9893
  %v10691 = vsel %vm2792, %v10627, %v9895
  %v10692 = vsel %vm2792, %v10628, %v9897
  %v10693 = vsel %vm2792, %v10629, %v9899
  %v10694 = vsel %vm2792, %v10630, %v6030
  %v10695 = vsel %vm2792, %v10631, %v6032
  %v10696 = vsel %vm6909, %v10632, %v9961
  %v10697 = vsel %vm6909, %v10633, %v9963
  %v10698 = vsel %vm6909, %v10634, %v9965
  %v10699 = vsel %vm6909, %v10635, %v9967
  %v10700 = vsel %vm6909, %v10636, %v9969
  %v10701 = vsel %vm6909, %v10637, %v9971
  %v10702 = vsel %vm6909, %v10638, %v9973
  %v10703 = vsel %vm6909, %v10639, %v9975
  %v10704 = vsel %vm6909, %v10640, %v9977
  %v10705 = vsel %vm6909, %v10641, %v9979
  %v10706 = vsel %vm6909, %v10642, %v9981
  %v10707 = vsel %vm6909, %v10643, %v9983
  %v10708 = vsel %vm6909, %v10644, %v9985
  %v10709 = vsel %vm6909, %v10645, %v9987
  %v10710 = vsel %vm6909, %v10646, %v9989
  %v10711 = vsel %vm6909, %v10647, %v9991
  %v10712 = vsel %vm6909, %v10648, %v9993
  %v10713 = vsel %vm6909, %v10649, %v9995
  %v10714 = vsel %vm6909, %v10650, %v9997
  %v10715 = vsel %vm6909, %v10651, %v9999
  %v10716 = vsel %vm6909, %v10652, %v10001
  %v10717 = vsel %vm6909, %v10653, %v10003
  %v10718 = vsel %vm6909, %v10654, %v10005
  %v10719 = vsel %vm6909, %v10655, %v10007
  %v10720 = vsel %vm6909, %v10656, %v10009
  %v10721 = vsel %vm6909, %v10657, %v10011
  %v10722 = vsel %vm6909, %v10658, %v10013
  %v10723 = vsel %vm6909, %v10659, %v10015
  %v10724 = vsel %vm6909, %v10660, %v10017
  %v10725 = vsel %vm6909, %v10661, %v10019
  %v10726 = vsel %vm6909, %v10662, %v6216
  %v10727 = vsel %vm6909, %v10663, %v6218
  %v10728 = vsel %vm6909, %v10664, %v10021
  %v10729 = vsel %vm6909, %v10665, %v10023
  %v10730 = vsel %vm6909, %v10666, %v10025
  %v10731 = vsel %vm6909, %v10667, %v10027
  %v10732 = vsel %vm6909, %v10668, %v10029
  %v10733 = vsel %vm6909, %v10669, %v10031
  %v10734 = vsel %vm6909, %v10670, %v10033
  %v10735 = vsel %vm6909, %v10671, %v10035
  %v10736 = vsel %vm6909, %v10672, %v10037
  %v10737 = vsel %vm6909, %v10673, %v10039
  %v10738 = vsel %vm6909, %v10674, %v10041
  %v10739 = vsel %vm6909, %v10675, %v10043
  %v10740 = vsel %vm6909, %v10676, %v10045
  %v10741 = vsel %vm6909, %v10677, %v10047
  %v10742 = vsel %vm6909, %v10678, %v10049
  %v10743 = vsel %vm6909, %v10679, %v10051
  %v10744 = vsel %vm6909, %v10680, %v10053
  %v10745 = vsel %vm6909, %v10681, %v10055
  %v10746 = vsel %vm6909, %v10682, %v10057
  %v10747 = vsel %vm6909, %v10683, %v10059
  %v10748 = vsel %vm6909, %v10684, %v10061
  %v10749 = vsel %vm6909, %v10685, %v10063
  %v10750 = vsel %vm6909, %v10686, %v10065
  %v10751 = vsel %vm6909, %v10687, %v10067
  %v10752 = vsel %vm6909, %v10688, %v10069
  %v10753 = vsel %vm6909, %v10689, %v10071
  %v10754 = vsel %vm6909, %v10690, %v10073
  %v10755 = vsel %vm6909, %v10691, %v10075
  %v10756 = vsel %vm6909, %v10692, %v10077
  %v10757 = vsel %vm6909, %v10693, %v10079
  %v10758 = vsel %vm6909, %v10694, %v6216
  %v10759 = vsel %vm6909, %v10695, %v6218
  %v10760 = vsel %vm2857, %v10696, %v10141
  %v10761 = vsel %vm2857, %v10697, %v10143
  %v10762 = vsel %vm2857, %v10698, %v10145
  %v10763 = vsel %vm2857, %v10699, %v10147
  %v10764 = vsel %vm2857, %v10700, %v10149
  %v10765 = vsel %vm2857, %v10701, %v10151
  %v10766 = vsel %vm2857, %v10702, %v10153
  %v10767 = vsel %vm2857, %v10703, %v10155
  %v10768 = vsel %vm2857, %v10704, %v10157
  %v10769 = vsel %vm2857, %v10705, %v10159
  %v10770 = vsel %vm2857, %v10706, %v10161
  %v10771 = vsel %vm2857, %v10707, %v10163
  %v10772 = vsel %vm2857, %v10708, %v10165
  %v10773 = vsel %vm2857, %v10709, %v10167
  %v10774 = vsel %vm2857, %v10710, %v10169
  %v10775 = vsel %vm2857, %v10711, %v10171
  %v10776 = vsel %vm2857, %v10712, %v10173
  %v10777 = vsel %vm2857, %v10713, %v10175
  %v10778 = vsel %vm2857, %v10714, %v10177
  %v10779 = vsel %vm2857, %v10715, %v10179
  %v10780 = vsel %vm2857, %v10716, %v10181
  %v10781 = vsel %vm2857, %v10717, %v10183
  %v10782 = vsel %vm2857, %v10718, %v10185
  %v10783 = vsel %vm2857, %v10719, %v10187
  %v10784 = vsel %vm2857, %v10720, %v10189
  %v10785 = vsel %vm2857, %v10721, %v10191
  %v10786 = vsel %vm2857, %v10722, %v10193
  %v10787 = vsel %vm2857, %v10723, %v10195
  %v10788 = vsel %vm2857, %v10724, %v10197
  %v10789 = vsel %vm2857, %v10725, %v10199
  %v10790 = vsel %vm2857, %v10726, %v6402
  %v10791 = vsel %vm2857, %v10727, %v6404
  %v10792 = vsel %vm2857, %v10728, %v10201
  %v10793 = vsel %vm2857, %v10729, %v10203
  %v10794 = vsel %vm2857, %v10730, %v10205
  %v10795 = vsel %vm2857, %v10731, %v10207
  %v10796 = vsel %vm2857, %v10732, %v10209
  %v10797 = vsel %vm2857, %v10733, %v10211
  %v10798 = vsel %vm2857, %v10734, %v10213
  %v10799 = vsel %vm2857, %v10735, %v10215
  %v10800 = vsel %vm2857, %v10736, %v10217
  %v10801 = vsel %vm2857, %v10737, %v10219
  %v10802 = vsel %vm2857, %v10738, %v10221
  %v10803 = vsel %vm2857, %v10739, %v10223
  %v10804 = vsel %vm2857, %v10740, %v10225
  %v10805 = vsel %vm2857, %v10741, %v10227
  %v10806 = vsel %vm2857, %v10742, %v10229
  %v10807 = vsel %vm2857, %v10743, %v10231
  %v10808 = vsel %vm2857, %v10744, %v10233
  %v10809 = vsel %vm2857, %v10745, %v10235
  %v10810 = vsel %vm2857, %v10746, %v10237
  %v10811 = vsel %vm2857, %v10747, %v10239
  %v10812 = vsel %vm2857, %v10748, %v10241
  %v10813 = vsel %vm2857, %v10749, %v10243
  %v10814 = vsel %vm2857, %v10750, %v10245
  %v10815 = vsel %vm2857, %v10751, %v10247
  %v10816 = vsel %vm2857, %v10752, %v10249
  %v10817 = vsel %vm2857, %v10753, %v10251
  %v10818 = vsel %vm2857, %v10754, %v10253
  %v10819 = vsel %vm2857, %v10755, %v10255
  %v10820 = vsel %vm2857, %v10756, %v10257
  %v10821 = vsel %vm2857, %v10757, %v10259
  %v10822 = vsel %vm2857, %v10758, %v6402
  %v10823 = vsel %vm2857, %v10759, %v6404
  %v10824 = vpack.c.bf16 %v10761, %v10760
  %v10825 = vpack.c.bf16 %v10763, %v10762
  %v10826 = vpack.c.bf16 %v10765, %v10764
  %v10827 = vpack.c.bf16 %v10767, %v10766
  %v10828 = vpack.c.bf16 %v10769, %v10768
  %v10829 = vpack.c.bf16 %v10771, %v10770
  %v10830 = vpack.c.bf16 %v10773, %v10772
  %v10831 = vpack.c.bf16 %v10775, %v10774
  %v10832 = vpack.c.bf16 %v10777, %v10776
  %v10833 = vpack.c.bf16 %v10779, %v10778
  %v10834 = vpack.c.bf16 %v10781, %v10780
  %v10835 = vpack.c.bf16 %v10783, %v10782
  %v10836 = vpack.c.bf16 %v10785, %v10784
  %v10837 = vpack.c.bf16 %v10787, %v10786
  %v10838 = vpack.c.bf16 %v10789, %v10788
  %v10839 = vpack.c.bf16 %v10791, %v10790
  %v10840 = vpack.c.bf16 %v10793, %v10792
  %v10841 = vpack.c.bf16 %v10795, %v10794
  %v10842 = vpack.c.bf16 %v10797, %v10796
  %v10843 = vpack.c.bf16 %v10799, %v10798
  %v10844 = vpack.c.bf16 %v10801, %v10800
  %v10845 = vpack.c.bf16 %v10803, %v10802
  %v10846 = vpack.c.bf16 %v10805, %v10804
  %v10847 = vpack.c.bf16 %v10807, %v10806
  %v10848 = vpack.c.bf16 %v10809, %v10808
  %v10849 = vpack.c.bf16 %v10811, %v10810
  %v10850 = vpack.c.bf16 %v10813, %v10812
  %v10851 = vpack.c.bf16 %v10815, %v10814
  %v10852 = vpack.c.bf16 %v10817, %v10816
  %v10853 = vpack.c.bf16 %v10819, %v10818
  %v10854 = vpack.c.bf16 %v10821, %v10820
  %v10855 = vpack.c.bf16 %v10823, %v10822
  %v10856 = vld [vmem:[%s3] sm:$0xf]
  %v10857 = vld [vmem:[%s3 + $0x4] sm:$0xf]
  %v10858 = vld [vmem:[%s3 + $0x8] sm:$0x1]
  %v10862 = vunpack.c.l.b16 %v10856
  %v10863 = vunpack.c.l.b16 %v10857
  %v10864 = vunpack.c.l.b16 %v10858
  %v10865 = vpack.c.b16 %v10863, %v10862
  %v10866 = vpack.c.b16 %v10864, %v10864
  %v10869 = vsel %vm7082, %v10824, 0
  %v10872 = vsel %vm7082, %v10825, 0
  %v10875 = vsel %vm7082, %v10826, 0
  %v10878 = vsel %vm7082, %v10827, 0
  %v10881 = vsel %vm7082, %v10828, 0
  %v10884 = vsel %vm7082, %v10829, 0
  %v10887 = vsel %vm7082, %v10830, 0
  %v10890 = vsel %vm7082, %v10831, 0
  %v10893 = vsel %vm7082, %v10832, 0
  %v10896 = vsel %vm7082, %v10833, 0
  %v10899 = vsel %vm7082, %v10834, 0
  %v10902 = vsel %vm7082, %v10835, 0
  %v10905 = vsel %vm7082, %v10836, 0
  %v10908 = vsel %vm7082, %v10837, 0
  %v10911 = vsel %vm7082, %v10838, 0
  %v10914 = vsel %vm7082, %v10839, 0
  %v10917 = vsel %vm7082, %v10840, 0
  %v10920 = vsel %vm7082, %v10841, 0
  %v10923 = vsel %vm7082, %v10842, 0
  %v10926 = vsel %vm7082, %v10843, 0
  %v10929 = vsel %vm7082, %v10844, 0
  %v10932 = vsel %vm7082, %v10845, 0
  %v10935 = vsel %vm7082, %v10846, 0
  %v10938 = vsel %vm7082, %v10847, 0
  %v10941 = vsel %vm7082, %v10848, 0
  %v10944 = vsel %vm7082, %v10849, 0
  %v10947 = vsel %vm7082, %v10850, 0
  %v10950 = vsel %vm7082, %v10851, 0
  %v10953 = vsel %vm7082, %v10852, 0
  %v10956 = vsel %vm7082, %v10853, 0
  %v10959 = vsel %vm7082, %v10854, 0
  %v10962 = vsel %vm7082, %v10855, 0
  %v10965 = vsel %vm4362, %v10866, 0
  %10967 = vmatprep.subr.bf16.mxu0 0
  %10968 = vmatpush1.bf16.msra.mxu0 0
  %10969 = vmatprep.subr.bf16.mxu0 0
  %10970 = vmatpush1.bf16.msra.mxu0 0
  %10971 = vmatprep.subr.bf16.mxu0 0
  %10972 = vmatpush1.bf16.msra.mxu0 0
  %10973 = vmatprep.subr.bf16.mxu0 0
  %10974 = vmatpush1.bf16.msra.mxu0 0
  %10975 = vmatprep.subr.bf16.mxu0 0
  %10976 = vmatpush1.bf16.msra.mxu0 0
  %10977 = vmatprep.subr.bf16.mxu0 0
  %10978 = vmatpush1.bf16.msra.mxu0 0
  %10979 = vmatprep.subr.bf16.mxu0 0
  %10980 = vmatpush1.bf16.msra.mxu0 %v10965
  %10981 = vmatprep.subr.bf16.mxu0 0
  %10982 = vmatpush1.bf16.msra.mxu0 %v10865
  %10983 = vmatprep.subr.bf16.mxu0 0
  %10984 = vmatpush2.bf16.msra.mxu0 0
  %10985 = vmatprep.subr.bf16.mxu0 0
  %10986 = vmatpush2.bf16.msra.mxu0 0
  %10987 = vmatprep.subr.bf16.mxu0 0
  %10988 = vmatpush2.bf16.msra.mxu0 0
  %10989 = vmatprep.subr.bf16.mxu0 0
  %10990 = vmatpush2.bf16.msra.mxu0 0
  %10991 = vmatprep.subr.bf16.mxu0 0
  %10992 = vmatpush2.bf16.msra.mxu0 0
  %10993 = vmatprep.subr.bf16.mxu0 0
  %10994 = vmatpush2.bf16.msra.mxu0 0
  %10995 = vmatprep.subr.bf16.mxu0 0
  %10996 = vmatpush2.bf16.msra.mxu0 0
  %10997 = vmatprep.subr.bf16.mxu0 0
  %10998 = vmatpush2.bf16.msra.mxu0 0
  %10999 = vmatprep.mubr.bf16.mxu0 0
  %11000 = vmatmul.mubr.bf16.gmra.mxu0 %v10869
  %v11001 = vpop.f32.mrf.mxu0
  %v11002 = vadd.f32 0.0, %v11001
  %v11003 = vpop.f32.mrf.mxu0
  %v11004 = vpop.f32.mrf.mxu0
  %v11005 = vadd.f32 0.0, %v11004
  %v11006 = vpop.f32.mrf.mxu0
  %11007 = vmatprep.mubr.bf16.mxu0 0
  %11008 = vmatmul.mubr.bf16.gmra.mxu0 %v10872
  %v11009 = vpop.f32.mrf.mxu0
  %v11010 = vadd.f32 0.0, %v11009
  %v11011 = vpop.f32.mrf.mxu0
  %v11012 = vpop.f32.mrf.mxu0
  %v11013 = vadd.f32 0.0, %v11012
  %v11014 = vpop.f32.mrf.mxu0
  %11015 = vmatprep.mubr.bf16.mxu0 0
  %11016 = vmatmul.mubr.bf16.gmra.mxu0 %v10875
  %v11017 = vpop.f32.mrf.mxu0
  %v11018 = vadd.f32 0.0, %v11017
  %v11019 = vpop.f32.mrf.mxu0
  %v11020 = vpop.f32.mrf.mxu0
  %v11021 = vadd.f32 0.0, %v11020
  %v11022 = vpop.f32.mrf.mxu0
  %11023 = vmatprep.mubr.bf16.mxu0 0
  %11024 = vmatmul.mubr.bf16.gmra.mxu0 %v10878
  %v11025 = vpop.f32.mrf.mxu0
  %v11026 = vadd.f32 0.0, %v11025
  %v11027 = vpop.f32.mrf.mxu0
  %v11028 = vpop.f32.mrf.mxu0
  %v11029 = vadd.f32 0.0, %v11028
  %v11030 = vpop.f32.mrf.mxu0
  %11031 = vmatprep.mubr.bf16.mxu0 0
  %11032 = vmatmul.mubr.bf16.gmra.mxu0 %v10881
  %v11033 = vpop.f32.mrf.mxu0
  %v11034 = vadd.f32 0.0, %v11033
  %v11035 = vpop.f32.mrf.mxu0
  %v11036 = vpop.f32.mrf.mxu0
  %v11037 = vadd.f32 0.0, %v11036
  %v11038 = vpop.f32.mrf.mxu0
  %11039 = vmatprep.mubr.bf16.mxu0 0
  %11040 = vmatmul.mubr.bf16.gmra.mxu0 %v10884
  %v11041 = vpop.f32.mrf.mxu0
  %v11042 = vadd.f32 0.0, %v11041
  %v11043 = vpop.f32.mrf.mxu0
  %v11044 = vpop.f32.mrf.mxu0
  %v11045 = vadd.f32 0.0, %v11044
  %v11046 = vpop.f32.mrf.mxu0
  %11047 = vmatprep.mubr.bf16.mxu0 0
  %11048 = vmatmul.mubr.bf16.gmra.mxu0 %v10887
  %v11049 = vpop.f32.mrf.mxu0
  %v11050 = vadd.f32 0.0, %v11049
  %v11051 = vpop.f32.mrf.mxu0
  %v11052 = vpop.f32.mrf.mxu0
  %v11053 = vadd.f32 0.0, %v11052
  %v11054 = vpop.f32.mrf.mxu0
  %11055 = vmatprep.mubr.bf16.mxu0 0
  %11056 = vmatmul.mubr.bf16.gmra.mxu0 %v10890
  %v11057 = vpop.f32.mrf.mxu0
  %v11058 = vadd.f32 0.0, %v11057
  %v11059 = vpop.f32.mrf.mxu0
  %v11060 = vpop.f32.mrf.mxu0
  %v11061 = vadd.f32 0.0, %v11060
  %v11062 = vpop.f32.mrf.mxu0
  %11063 = vmatprep.mubr.bf16.mxu0 0
  %11064 = vmatmul.mubr.bf16.gmra.mxu0 %v10893
  %v11065 = vpop.f32.mrf.mxu0
  %v11066 = vadd.f32 0.0, %v11065
  %v11067 = vpop.f32.mrf.mxu0
  %v11068 = vpop.f32.mrf.mxu0
  %v11069 = vadd.f32 0.0, %v11068
  %v11070 = vpop.f32.mrf.mxu0
  %11071 = vmatprep.mubr.bf16.mxu0 0
  %11072 = vmatmul.mubr.bf16.gmra.mxu0 %v10896
  %v11073 = vpop.f32.mrf.mxu0
  %v11074 = vadd.f32 0.0, %v11073
  %v11075 = vpop.f32.mrf.mxu0
  %v11076 = vpop.f32.mrf.mxu0
  %v11077 = vadd.f32 0.0, %v11076
  %v11078 = vpop.f32.mrf.mxu0
  %11079 = vmatprep.mubr.bf16.mxu0 0
  %11080 = vmatmul.mubr.bf16.gmra.mxu0 %v10899
  %v11081 = vpop.f32.mrf.mxu0
  %v11082 = vadd.f32 0.0, %v11081
  %v11083 = vpop.f32.mrf.mxu0
  %v11084 = vpop.f32.mrf.mxu0
  %v11085 = vadd.f32 0.0, %v11084
  %v11086 = vpop.f32.mrf.mxu0
  %11087 = vmatprep.mubr.bf16.mxu0 0
  %11088 = vmatmul.mubr.bf16.gmra.mxu0 %v10902
  %v11089 = vpop.f32.mrf.mxu0
  %v11090 = vadd.f32 0.0, %v11089
  %v11091 = vpop.f32.mrf.mxu0
  %v11092 = vpop.f32.mrf.mxu0
  %v11093 = vadd.f32 0.0, %v11092
  %v11094 = vpop.f32.mrf.mxu0
  %11095 = vmatprep.mubr.bf16.mxu0 0
  %11096 = vmatmul.mubr.bf16.gmra.mxu0 %v10905
  %v11097 = vpop.f32.mrf.mxu0
  %v11098 = vadd.f32 0.0, %v11097
  %v11099 = vpop.f32.mrf.mxu0
  %v11100 = vpop.f32.mrf.mxu0
  %v11101 = vadd.f32 0.0, %v11100
  %v11102 = vpop.f32.mrf.mxu0
  %11103 = vmatprep.mubr.bf16.mxu0 0
  %11104 = vmatmul.mubr.bf16.gmra.mxu0 %v10908
  %v11105 = vpop.f32.mrf.mxu0
  %v11106 = vadd.f32 0.0, %v11105
  %v11107 = vpop.f32.mrf.mxu0
  %v11108 = vpop.f32.mrf.mxu0
  %v11109 = vadd.f32 0.0, %v11108
  %v11110 = vpop.f32.mrf.mxu0
  %11111 = vmatprep.mubr.bf16.mxu0 0
  %11112 = vmatmul.mubr.bf16.gmra.mxu0 %v10911
  %v11113 = vpop.f32.mrf.mxu0
  %v11114 = vadd.f32 0.0, %v11113
  %v11115 = vpop.f32.mrf.mxu0
  %v11116 = vpop.f32.mrf.mxu0
  %v11117 = vadd.f32 0.0, %v11116
  %v11118 = vpop.f32.mrf.mxu0
  %11119 = vmatprep.mubr.bf16.mxu0 0
  %11120 = vmatmul.mubr.bf16.gmra.mxu0 %v10914
  %v11121 = vpop.f32.mrf.mxu0
  %v11122 = vadd.f32 0.0, %v11121
  %v11123 = vpop.f32.mrf.mxu0
  %v11124 = vpop.f32.mrf.mxu0
  %v11125 = vadd.f32 0.0, %v11124
  %v11126 = vpop.f32.mrf.mxu0
  %11127 = vmatprep.mubr.bf16.mxu0 0
  %11128 = vmatmul.mubr.bf16.gmra.mxu0 %v10917
  %v11129 = vpop.f32.mrf.mxu0
  %v11130 = vadd.f32 0.0, %v11129
  %v11131 = vpop.f32.mrf.mxu0
  %v11132 = vpop.f32.mrf.mxu0
  %v11133 = vadd.f32 0.0, %v11132
  %v11134 = vpop.f32.mrf.mxu0
  %11135 = vmatprep.mubr.bf16.mxu0 0
  %11136 = vmatmul.mubr.bf16.gmra.mxu0 %v10920
  %v11137 = vpop.f32.mrf.mxu0
  %v11138 = vadd.f32 0.0, %v11137
  %v11139 = vpop.f32.mrf.mxu0
  %v11140 = vpop.f32.mrf.mxu0
  %v11141 = vadd.f32 0.0, %v11140
  %v11142 = vpop.f32.mrf.mxu0
  %11143 = vmatprep.mubr.bf16.mxu0 0
  %11144 = vmatmul.mubr.bf16.gmra.mxu0 %v10923
  %v11145 = vpop.f32.mrf.mxu0
  %v11146 = vadd.f32 0.0, %v11145
  %v11147 = vpop.f32.mrf.mxu0
  %v11148 = vpop.f32.mrf.mxu0
  %v11149 = vadd.f32 0.0, %v11148
  %v11150 = vpop.f32.mrf.mxu0
  %11151 = vmatprep.mubr.bf16.mxu0 0
  %11152 = vmatmul.mubr.bf16.gmra.mxu0 %v10926
  %v11153 = vpop.f32.mrf.mxu0
  %v11154 = vadd.f32 0.0, %v11153
  %v11155 = vpop.f32.mrf.mxu0
  %v11156 = vpop.f32.mrf.mxu0
  %v11157 = vadd.f32 0.0, %v11156
  %v11158 = vpop.f32.mrf.mxu0
  %11159 = vmatprep.mubr.bf16.mxu0 0
  %11160 = vmatmul.mubr.bf16.gmra.mxu0 %v10929
  %v11161 = vpop.f32.mrf.mxu0
  %v11162 = vadd.f32 0.0, %v11161
  %v11163 = vpop.f32.mrf.mxu0
  %v11164 = vpop.f32.mrf.mxu0
  %v11165 = vadd.f32 0.0, %v11164
  %v11166 = vpop.f32.mrf.mxu0
  %11167 = vmatprep.mubr.bf16.mxu0 0
  %11168 = vmatmul.mubr.bf16.gmra.mxu0 %v10932
  %v11169 = vpop.f32.mrf.mxu0
  %v11170 = vadd.f32 0.0, %v11169
  %v11171 = vpop.f32.mrf.mxu0
  %v11172 = vpop.f32.mrf.mxu0
  %v11173 = vadd.f32 0.0, %v11172
  %v11174 = vpop.f32.mrf.mxu0
  %11175 = vmatprep.mubr.bf16.mxu0 0
  %11176 = vmatmul.mubr.bf16.gmra.mxu0 %v10935
  %v11177 = vpop.f32.mrf.mxu0
  %v11178 = vadd.f32 0.0, %v11177
  %v11179 = vpop.f32.mrf.mxu0
  %v11180 = vpop.f32.mrf.mxu0
  %v11181 = vadd.f32 0.0, %v11180
  %v11182 = vpop.f32.mrf.mxu0
  %11183 = vmatprep.mubr.bf16.mxu0 0
  %11184 = vmatmul.mubr.bf16.gmra.mxu0 %v10938
  %v11185 = vpop.f32.mrf.mxu0
  %v11186 = vadd.f32 0.0, %v11185
  %v11187 = vpop.f32.mrf.mxu0
  %v11188 = vpop.f32.mrf.mxu0
  %v11189 = vadd.f32 0.0, %v11188
  %v11190 = vpop.f32.mrf.mxu0
  %11191 = vmatprep.mubr.bf16.mxu0 0
  %11192 = vmatmul.mubr.bf16.gmra.mxu0 %v10941
  %v11193 = vpop.f32.mrf.mxu0
  %v11194 = vadd.f32 0.0, %v11193
  %v11195 = vpop.f32.mrf.mxu0
  %v11196 = vpop.f32.mrf.mxu0
  %v11197 = vadd.f32 0.0, %v11196
  %v11198 = vpop.f32.mrf.mxu0
  %11199 = vmatprep.mubr.bf16.mxu0 0
  %11200 = vmatmul.mubr.bf16.gmra.mxu0 %v10944
  %v11201 = vpop.f32.mrf.mxu0
  %v11202 = vadd.f32 0.0, %v11201
  %v11203 = vpop.f32.mrf.mxu0
  %v11204 = vpop.f32.mrf.mxu0
  %v11205 = vadd.f32 0.0, %v11204
  %v11206 = vpop.f32.mrf.mxu0
  %11207 = vmatprep.mubr.bf16.mxu0 0
  %11208 = vmatmul.mubr.bf16.gmra.mxu0 %v10947
  %v11209 = vpop.f32.mrf.mxu0
  %v11210 = vadd.f32 0.0, %v11209
  %v11211 = vpop.f32.mrf.mxu0
  %v11212 = vpop.f32.mrf.mxu0
  %v11213 = vadd.f32 0.0, %v11212
  %v11214 = vpop.f32.mrf.mxu0
  %11215 = vmatprep.mubr.bf16.mxu0 0
  %11216 = vmatmul.mubr.bf16.gmra.mxu0 %v10950
  %v11217 = vpop.f32.mrf.mxu0
  %v11218 = vadd.f32 0.0, %v11217
  %v11219 = vpop.f32.mrf.mxu0
  %v11220 = vpop.f32.mrf.mxu0
  %v11221 = vadd.f32 0.0, %v11220
  %v11222 = vpop.f32.mrf.mxu0
  %11223 = vmatprep.mubr.bf16.mxu0 0
  %11224 = vmatmul.mubr.bf16.gmra.mxu0 %v10953
  %v11225 = vpop.f32.mrf.mxu0
  %v11226 = vadd.f32 0.0, %v11225
  %v11227 = vpop.f32.mrf.mxu0
  %v11228 = vpop.f32.mrf.mxu0
  %v11229 = vadd.f32 0.0, %v11228
  %v11230 = vpop.f32.mrf.mxu0
  %11231 = vmatprep.mubr.bf16.mxu0 0
  %11232 = vmatmul.mubr.bf16.gmra.mxu0 %v10956
  %v11233 = vpop.f32.mrf.mxu0
  %v11234 = vadd.f32 0.0, %v11233
  %v11235 = vpop.f32.mrf.mxu0
  %v11236 = vpop.f32.mrf.mxu0
  %v11237 = vadd.f32 0.0, %v11236
  %v11238 = vpop.f32.mrf.mxu0
  %11239 = vmatprep.mubr.bf16.mxu0 0
  %11240 = vmatmul.mubr.bf16.gmra.mxu0 %v10959
  %v11241 = vpop.f32.mrf.mxu0
  %v11242 = vadd.f32 0.0, %v11241
  %v11243 = vpop.f32.mrf.mxu0
  %v11244 = vpop.f32.mrf.mxu0
  %v11245 = vadd.f32 0.0, %v11244
  %v11246 = vpop.f32.mrf.mxu0
  %11247 = vmatprep.mubr.bf16.mxu0 0
  %11248 = vmatmul.mubr.bf16.gmra.mxu0 %v10962
  %v11249 = vpop.f32.mrf.mxu0
  %v11250 = vadd.f32 0.0, %v11249
  %v11251 = vpop.f32.mrf.mxu0
  %v11252 = vpop.f32.mrf.mxu0
  %v11253 = vadd.f32 0.0, %v11252
  %v11254 = vpop.f32.mrf.mxu0
  %11255 = vdwg.mxu0
  %v11256 = vsel %vm2662, %v11002, 0.0
  %v11257 = vsel %vm2662, %v11005, 0.0
  %v11258 = vadd.f32 %v11256, %v11257
  %v11259 = vsel %vm2662, %v11010, 0.0
  %v11260 = vadd.f32 %v11258, %v11259
  %v11261 = vsel %vm2662, %v11013, 0.0
  %v11262 = vadd.f32 %v11260, %v11261
  %v11263 = vsel %vm2662, %v11018, 0.0
  %v11264 = vadd.f32 %v11262, %v11263
  %v11265 = vsel %vm2662, %v11021, 0.0
  %v11266 = vadd.f32 %v11264, %v11265
  %v11267 = vsel %vm2662, %v11026, 0.0
  %v11268 = vadd.f32 %v11266, %v11267
  %v11269 = vsel %vm2662, %v11029, 0.0
  %v11270 = vadd.f32 %v11268, %v11269
  %v11271 = vsel %vm2662, %v11034, 0.0
  %v11272 = vadd.f32 %v11270, %v11271
  %v11273 = vsel %vm2662, %v11037, 0.0
  %v11274 = vadd.f32 %v11272, %v11273
  %v11275 = vsel %vm2662, %v11042, 0.0
  %v11276 = vadd.f32 %v11274, %v11275
  %v11277 = vsel %vm2662, %v11045, 0.0
  %v11278 = vadd.f32 %v11276, %v11277
  %v11279 = vsel %vm2662, %v11050, 0.0
  %v11280 = vadd.f32 %v11278, %v11279
  %v11281 = vsel %vm2662, %v11053, 0.0
  %v11282 = vadd.f32 %v11280, %v11281
  %v11283 = vsel %vm2662, %v11058, 0.0
  %v11284 = vadd.f32 %v11282, %v11283
  %v11285 = vsel %vm2662, %v11061, 0.0
  %v11286 = vadd.f32 %v11284, %v11285
  %v11287 = vsel %vm2662, %v11066, 0.0
  %v11288 = vadd.f32 %v11286, %v11287
  %v11289 = vsel %vm2662, %v11069, 0.0
  %v11290 = vadd.f32 %v11288, %v11289
  %v11291 = vsel %vm2662, %v11074, 0.0
  %v11292 = vadd.f32 %v11290, %v11291
  %v11293 = vsel %vm2662, %v11077, 0.0
  %v11294 = vadd.f32 %v11292, %v11293
  %v11295 = vsel %vm2662, %v11082, 0.0
  %v11296 = vadd.f32 %v11294, %v11295
  %v11297 = vsel %vm2662, %v11085, 0.0
  %v11298 = vadd.f32 %v11296, %v11297
  %v11299 = vsel %vm2662, %v11090, 0.0
  %v11300 = vadd.f32 %v11298, %v11299
  %v11301 = vsel %vm2662, %v11093, 0.0
  %v11302 = vadd.f32 %v11300, %v11301
  %v11303 = vsel %vm2662, %v11098, 0.0
  %v11304 = vadd.f32 %v11302, %v11303
  %v11305 = vsel %vm2662, %v11101, 0.0
  %v11306 = vadd.f32 %v11304, %v11305
  %v11307 = vsel %vm2662, %v11106, 0.0
  %v11308 = vadd.f32 %v11306, %v11307
  %v11309 = vsel %vm2662, %v11109, 0.0
  %v11310 = vadd.f32 %v11308, %v11309
  %v11311 = vsel %vm2662, %v11114, 0.0
  %v11312 = vadd.f32 %v11310, %v11311
  %v11313 = vsel %vm2662, %v11117, 0.0
  %v11314 = vadd.f32 %v11312, %v11313
  %v11315 = vsel %vm2662, %v11122, 0.0
  %v11316 = vadd.f32 %v11314, %v11315
  %v11317 = vsel %vm2662, %v11125, 0.0
  %v11318 = vadd.f32 %v11316, %v11317
  %v11319 = vsel %vm2662, %v11130, 0.0
  %v11320 = vadd.f32 %v11318, %v11319
  %v11321 = vsel %vm2662, %v11133, 0.0
  %v11322 = vadd.f32 %v11320, %v11321
  %v11323 = vsel %vm2662, %v11138, 0.0
  %v11324 = vadd.f32 %v11322, %v11323
  %v11325 = vsel %vm2662, %v11141, 0.0
  %v11326 = vadd.f32 %v11324, %v11325
  %v11327 = vsel %vm2662, %v11146, 0.0
  %v11328 = vadd.f32 %v11326, %v11327
  %v11329 = vsel %vm2662, %v11149, 0.0
  %v11330 = vadd.f32 %v11328, %v11329
  %v11331 = vsel %vm2662, %v11154, 0.0
  %v11332 = vadd.f32 %v11330, %v11331
  %v11333 = vsel %vm2662, %v11157, 0.0
  %v11334 = vadd.f32 %v11332, %v11333
  %v11335 = vsel %vm2662, %v11162, 0.0
  %v11336 = vadd.f32 %v11334, %v11335
  %v11337 = vsel %vm2662, %v11165, 0.0
  %v11338 = vadd.f32 %v11336, %v11337
  %v11339 = vsel %vm2662, %v11170, 0.0
  %v11340 = vadd.f32 %v11338, %v11339
  %v11341 = vsel %vm2662, %v11173, 0.0
  %v11342 = vadd.f32 %v11340, %v11341
  %v11343 = vsel %vm2662, %v11178, 0.0
  %v11344 = vadd.f32 %v11342, %v11343
  %v11345 = vsel %vm2662, %v11181, 0.0
  %v11346 = vadd.f32 %v11344, %v11345
  %v11347 = vsel %vm2662, %v11186, 0.0
  %v11348 = vadd.f32 %v11346, %v11347
  %v11349 = vsel %vm2662, %v11189, 0.0
  %v11350 = vadd.f32 %v11348, %v11349
  %v11351 = vsel %vm2662, %v11194, 0.0
  %v11352 = vadd.f32 %v11350, %v11351
  %v11353 = vsel %vm2662, %v11197, 0.0
  %v11354 = vadd.f32 %v11352, %v11353
  %v11355 = vsel %vm2662, %v11202, 0.0
  %v11356 = vadd.f32 %v11354, %v11355
  %v11357 = vsel %vm2662, %v11205, 0.0
  %v11358 = vadd.f32 %v11356, %v11357
  %v11359 = vsel %vm2662, %v11210, 0.0
  %v11360 = vadd.f32 %v11358, %v11359
  %v11361 = vsel %vm2662, %v11213, 0.0
  %v11362 = vadd.f32 %v11360, %v11361
  %v11363 = vsel %vm2662, %v11218, 0.0
  %v11364 = vadd.f32 %v11362, %v11363
  %v11365 = vsel %vm2662, %v11221, 0.0
  %v11366 = vadd.f32 %v11364, %v11365
  %v11367 = vsel %vm2662, %v11226, 0.0
  %v11368 = vadd.f32 %v11366, %v11367
  %v11369 = vsel %vm2662, %v11229, 0.0
  %v11370 = vadd.f32 %v11368, %v11369
  %v11371 = vsel %vm2662, %v11234, 0.0
  %v11372 = vadd.f32 %v11370, %v11371
  %v11373 = vsel %vm2662, %v11237, 0.0
  %v11374 = vadd.f32 %v11372, %v11373
  %v11375 = vsel %vm2662, %v11242, 0.0
  %v11376 = vadd.f32 %v11374, %v11375
  %v11377 = vsel %vm2662, %v11245, 0.0
  %v11378 = vadd.f32 %v11376, %v11377
  %v11379 = vsel %vm2662, %v11250, 0.0
  %v11380 = vadd.f32 %v11378, %v11379
  %v11381 = vsel %vm2662, %v11253, 0.0
  %v11382 = vadd.f32 %v11380, %v11381
  %v11383 = vrot.slane %v11382, 4
  %v11384 = vadd.f32 %v11382, %v11383
  %v11385 = vrot.slane %v11384, 2
  %v11386 = vadd.f32 %v11384, %v11385
  %v11387 = vrot.slane %v11386, 1
  %v11388 = vadd.f32 %v11386, %v11387
  %v11389 = vmul.f32 %v11388, %v3758
  %v11390 = vsub.f32 %v11002, %v11389
  %v11391 = vsub.f32 %v11005, %v11389
  %v11392 = vsub.f32 %v11010, %v11389
  %v11393 = vsub.f32 %v11013, %v11389
  %v11394 = vsub.f32 %v11018, %v11389
  %v11395 = vsub.f32 %v11021, %v11389
  %v11396 = vsub.f32 %v11026, %v11389
  %v11397 = vsub.f32 %v11029, %v11389
  %v11398 = vsub.f32 %v11034, %v11389
  %v11399 = vsub.f32 %v11037, %v11389
  %v11400 = vsub.f32 %v11042, %v11389
  %v11401 = vsub.f32 %v11045, %v11389
  %v11402 = vsub.f32 %v11050, %v11389
  %v11403 = vsub.f32 %v11053, %v11389
  %v11404 = vsub.f32 %v11058, %v11389
  %v11405 = vsub.f32 %v11061, %v11389
  %v11406 = vsub.f32 %v11066, %v11389
  %v11407 = vsub.f32 %v11069, %v11389
  %v11408 = vsub.f32 %v11074, %v11389
  %v11409 = vsub.f32 %v11077, %v11389
  %v11410 = vsub.f32 %v11082, %v11389
  %v11411 = vsub.f32 %v11085, %v11389
  %v11412 = vsub.f32 %v11090, %v11389
  %v11413 = vsub.f32 %v11093, %v11389
  %v11414 = vsub.f32 %v11098, %v11389
  %v11415 = vsub.f32 %v11101, %v11389
  %v11416 = vsub.f32 %v11106, %v11389
  %v11417 = vsub.f32 %v11109, %v11389
  %v11418 = vsub.f32 %v11114, %v11389
  %v11419 = vsub.f32 %v11117, %v11389
  %v11420 = vsub.f32 %v11122, %v11389
  %v11421 = vsub.f32 %v11125, %v11389
  %v11422 = vsub.f32 %v11130, %v11389
  %v11423 = vsub.f32 %v11133, %v11389
  %v11424 = vsub.f32 %v11138, %v11389
  %v11425 = vsub.f32 %v11141, %v11389
  %v11426 = vsub.f32 %v11146, %v11389
  %v11427 = vsub.f32 %v11149, %v11389
  %v11428 = vsub.f32 %v11154, %v11389
  %v11429 = vsub.f32 %v11157, %v11389
  %v11430 = vsub.f32 %v11162, %v11389
  %v11431 = vsub.f32 %v11165, %v11389
  %v11432 = vsub.f32 %v11170, %v11389
  %v11433 = vsub.f32 %v11173, %v11389
  %v11434 = vsub.f32 %v11178, %v11389
  %v11435 = vsub.f32 %v11181, %v11389
  %v11436 = vsub.f32 %v11186, %v11389
  %v11437 = vsub.f32 %v11189, %v11389
  %v11438 = vsub.f32 %v11194, %v11389
  %v11439 = vsub.f32 %v11197, %v11389
  %v11440 = vsub.f32 %v11202, %v11389
  %v11441 = vsub.f32 %v11205, %v11389
  %v11442 = vsub.f32 %v11210, %v11389
  %v11443 = vsub.f32 %v11213, %v11389
  %v11444 = vsub.f32 %v11218, %v11389
  %v11445 = vsub.f32 %v11221, %v11389
  %v11446 = vsub.f32 %v11226, %v11389
  %v11447 = vsub.f32 %v11229, %v11389
  %v11448 = vsub.f32 %v11234, %v11389
  %v11449 = vsub.f32 %v11237, %v11389
  %v11450 = vsub.f32 %v11242, %v11389
  %v11451 = vsub.f32 %v11245, %v11389
  %v11452 = vsub.f32 %v11250, %v11389
  %v11453 = vsub.f32 %v11253, %v11389
  %v11454 = vmul.f32 %v11390, %v11390
  %v11455 = vmul.f32 %v11391, %v11391
  %v11456 = vmul.f32 %v11392, %v11392
  %v11457 = vmul.f32 %v11393, %v11393
  %v11458 = vmul.f32 %v11394, %v11394
  %v11459 = vmul.f32 %v11395, %v11395
  %v11460 = vmul.f32 %v11396, %v11396
  %v11461 = vmul.f32 %v11397, %v11397
  %v11462 = vmul.f32 %v11398, %v11398
  %v11463 = vmul.f32 %v11399, %v11399
  %v11464 = vmul.f32 %v11400, %v11400
  %v11465 = vmul.f32 %v11401, %v11401
  %v11466 = vmul.f32 %v11402, %v11402
  %v11467 = vmul.f32 %v11403, %v11403
  %v11468 = vmul.f32 %v11404, %v11404
  %v11469 = vmul.f32 %v11405, %v11405
  %v11470 = vmul.f32 %v11406, %v11406
  %v11471 = vmul.f32 %v11407, %v11407
  %v11472 = vmul.f32 %v11408, %v11408
  %v11473 = vmul.f32 %v11409, %v11409
  %v11474 = vmul.f32 %v11410, %v11410
  %v11475 = vmul.f32 %v11411, %v11411
  %v11476 = vmul.f32 %v11412, %v11412
  %v11477 = vmul.f32 %v11413, %v11413
  %v11478 = vmul.f32 %v11414, %v11414
  %v11479 = vmul.f32 %v11415, %v11415
  %v11480 = vmul.f32 %v11416, %v11416
  %v11481 = vmul.f32 %v11417, %v11417
  %v11482 = vmul.f32 %v11418, %v11418
  %v11483 = vmul.f32 %v11419, %v11419
  %v11484 = vmul.f32 %v11420, %v11420
  %v11485 = vmul.f32 %v11421, %v11421
  %v11486 = vmul.f32 %v11422, %v11422
  %v11487 = vmul.f32 %v11423, %v11423
  %v11488 = vmul.f32 %v11424, %v11424
  %v11489 = vmul.f32 %v11425, %v11425
  %v11490 = vmul.f32 %v11426, %v11426
  %v11491 = vmul.f32 %v11427, %v11427
  %v11492 = vmul.f32 %v11428, %v11428
  %v11493 = vmul.f32 %v11429, %v11429
  %v11494 = vmul.f32 %v11430, %v11430
  %v11495 = vmul.f32 %v11431, %v11431
  %v11496 = vmul.f32 %v11432, %v11432
  %v11497 = vmul.f32 %v11433, %v11433
  %v11498 = vmul.f32 %v11434, %v11434
  %v11499 = vmul.f32 %v11435, %v11435
  %v11500 = vmul.f32 %v11436, %v11436
  %v11501 = vmul.f32 %v11437, %v11437
  %v11502 = vmul.f32 %v11438, %v11438
  %v11503 = vmul.f32 %v11439, %v11439
  %v11504 = vmul.f32 %v11440, %v11440
  %v11505 = vmul.f32 %v11441, %v11441
  %v11506 = vmul.f32 %v11442, %v11442
  %v11507 = vmul.f32 %v11443, %v11443
  %v11508 = vmul.f32 %v11444, %v11444
  %v11509 = vmul.f32 %v11445, %v11445
  %v11510 = vmul.f32 %v11446, %v11446
  %v11511 = vmul.f32 %v11447, %v11447
  %v11512 = vmul.f32 %v11448, %v11448
  %v11513 = vmul.f32 %v11449, %v11449
  %v11514 = vmul.f32 %v11450, %v11450
  %v11515 = vmul.f32 %v11451, %v11451
  %v11516 = vmul.f32 %v11452, %v11452
  %v11517 = vmul.f32 %v11453, %v11453
  %v11518 = vsel %vm2662, %v11454, 0.0
  %v11519 = vsel %vm2662, %v11455, 0.0
  %v11520 = vadd.f32 %v11518, %v11519
  %v11521 = vsel %vm2662, %v11456, 0.0
  %v11522 = vadd.f32 %v11520, %v11521
  %v11523 = vsel %vm2662, %v11457, 0.0
  %v11524 = vadd.f32 %v11522, %v11523
  %v11525 = vsel %vm2662, %v11458, 0.0
  %v11526 = vadd.f32 %v11524, %v11525
  %v11527 = vsel %vm2662, %v11459, 0.0
  %v11528 = vadd.f32 %v11526, %v11527
  %v11529 = vsel %vm2662, %v11460, 0.0
  %v11530 = vadd.f32 %v11528, %v11529
  %v11531 = vsel %vm2662, %v11461, 0.0
  %v11532 = vadd.f32 %v11530, %v11531
  %v11533 = vsel %vm2662, %v11462, 0.0
  %v11534 = vadd.f32 %v11532, %v11533
  %v11535 = vsel %vm2662, %v11463, 0.0
  %v11536 = vadd.f32 %v11534, %v11535
  %v11537 = vsel %vm2662, %v11464, 0.0
  %v11538 = vadd.f32 %v11536, %v11537
  %v11539 = vsel %vm2662, %v11465, 0.0
  %v11540 = vadd.f32 %v11538, %v11539
  %v11541 = vsel %vm2662, %v11466, 0.0
  %v11542 = vadd.f32 %v11540, %v11541
  %v11543 = vsel %vm2662, %v11467, 0.0
  %v11544 = vadd.f32 %v11542, %v11543
  %v11545 = vsel %vm2662, %v11468, 0.0
  %v11546 = vadd.f32 %v11544, %v11545
  %v11547 = vsel %vm2662, %v11469, 0.0
  %v11548 = vadd.f32 %v11546, %v11547
  %v11549 = vsel %vm2662, %v11470, 0.0
  %v11550 = vadd.f32 %v11548, %v11549
  %v11551 = vsel %vm2662, %v11471, 0.0
  %v11552 = vadd.f32 %v11550, %v11551
  %v11553 = vsel %vm2662, %v11472, 0.0
  %v11554 = vadd.f32 %v11552, %v11553
  %v11555 = vsel %vm2662, %v11473, 0.0
  %v11556 = vadd.f32 %v11554, %v11555
  %v11557 = vsel %vm2662, %v11474, 0.0
  %v11558 = vadd.f32 %v11556, %v11557
  %v11559 = vsel %vm2662, %v11475, 0.0
  %v11560 = vadd.f32 %v11558, %v11559
  %v11561 = vsel %vm2662, %v11476, 0.0
  %v11562 = vadd.f32 %v11560, %v11561
  %v11563 = vsel %vm2662, %v11477, 0.0
  %v11564 = vadd.f32 %v11562, %v11563
  %v11565 = vsel %vm2662, %v11478, 0.0
  %v11566 = vadd.f32 %v11564, %v11565
  %v11567 = vsel %vm2662, %v11479, 0.0
  %v11568 = vadd.f32 %v11566, %v11567
  %v11569 = vsel %vm2662, %v11480, 0.0
  %v11570 = vadd.f32 %v11568, %v11569
  %v11571 = vsel %vm2662, %v11481, 0.0
  %v11572 = vadd.f32 %v11570, %v11571
  %v11573 = vsel %vm2662, %v11482, 0.0
  %v11574 = vadd.f32 %v11572, %v11573
  %v11575 = vsel %vm2662, %v11483, 0.0
  %v11576 = vadd.f32 %v11574, %v11575
  %v11577 = vsel %vm2662, %v11484, 0.0
  %v11578 = vadd.f32 %v11576, %v11577
  %v11579 = vsel %vm2662, %v11485, 0.0
  %v11580 = vadd.f32 %v11578, %v11579
  %v11581 = vsel %vm2662, %v11486, 0.0
  %v11582 = vadd.f32 %v11580, %v11581
  %v11583 = vsel %vm2662, %v11487, 0.0
  %v11584 = vadd.f32 %v11582, %v11583
  %v11585 = vsel %vm2662, %v11488, 0.0
  %v11586 = vadd.f32 %v11584, %v11585
  %v11587 = vsel %vm2662, %v11489, 0.0
  %v11588 = vadd.f32 %v11586, %v11587
  %v11589 = vsel %vm2662, %v11490, 0.0
  %v11590 = vadd.f32 %v11588, %v11589
  %v11591 = vsel %vm2662, %v11491, 0.0
  %v11592 = vadd.f32 %v11590, %v11591
  %v11593 = vsel %vm2662, %v11492, 0.0
  %v11594 = vadd.f32 %v11592, %v11593
  %v11595 = vsel %vm2662, %v11493, 0.0
  %v11596 = vadd.f32 %v11594, %v11595
  %v11597 = vsel %vm2662, %v11494, 0.0
  %v11598 = vadd.f32 %v11596, %v11597
  %v11599 = vsel %vm2662, %v11495, 0.0
  %v11600 = vadd.f32 %v11598, %v11599
  %v11601 = vsel %vm2662, %v11496, 0.0
  %v11602 = vadd.f32 %v11600, %v11601
  %v11603 = vsel %vm2662, %v11497, 0.0
  %v11604 = vadd.f32 %v11602, %v11603
  %v11605 = vsel %vm2662, %v11498, 0.0
  %v11606 = vadd.f32 %v11604, %v11605
  %v11607 = vsel %vm2662, %v11499, 0.0
  %v11608 = vadd.f32 %v11606, %v11607
  %v11609 = vsel %vm2662, %v11500, 0.0
  %v11610 = vadd.f32 %v11608, %v11609
  %v11611 = vsel %vm2662, %v11501, 0.0
  %v11612 = vadd.f32 %v11610, %v11611
  %v11613 = vsel %vm2662, %v11502, 0.0
  %v11614 = vadd.f32 %v11612, %v11613
  %v11615 = vsel %vm2662, %v11503, 0.0
  %v11616 = vadd.f32 %v11614, %v11615
  %v11617 = vsel %vm2662, %v11504, 0.0
  %v11618 = vadd.f32 %v11616, %v11617
  %v11619 = vsel %vm2662, %v11505, 0.0
  %v11620 = vadd.f32 %v11618, %v11619
  %v11621 = vsel %vm2662, %v11506, 0.0
  %v11622 = vadd.f32 %v11620, %v11621
  %v11623 = vsel %vm2662, %v11507, 0.0
  %v11624 = vadd.f32 %v11622, %v11623
  %v11625 = vsel %vm2662, %v11508, 0.0
  %v11626 = vadd.f32 %v11624, %v11625
  %v11627 = vsel %vm2662, %v11509, 0.0
  %v11628 = vadd.f32 %v11626, %v11627
  %v11629 = vsel %vm2662, %v11510, 0.0
  %v11630 = vadd.f32 %v11628, %v11629
  %v11631 = vsel %vm2662, %v11511, 0.0
  %v11632 = vadd.f32 %v11630, %v11631
  %v11633 = vsel %vm2662, %v11512, 0.0
  %v11634 = vadd.f32 %v11632, %v11633
  %v11635 = vsel %vm2662, %v11513, 0.0
  %v11636 = vadd.f32 %v11634, %v11635
  %v11637 = vsel %vm2662, %v11514, 0.0
  %v11638 = vadd.f32 %v11636, %v11637
  %v11639 = vsel %vm2662, %v11515, 0.0
  %v11640 = vadd.f32 %v11638, %v11639
  %v11641 = vsel %vm2662, %v11516, 0.0
  %v11642 = vadd.f32 %v11640, %v11641
  %v11643 = vsel %vm2662, %v11517, 0.0
  %v11644 = vadd.f32 %v11642, %v11643
  %v11645 = vrot.slane %v11644, 4
  %v11646 = vadd.f32 %v11644, %v11645
  %v11647 = vrot.slane %v11646, 2
  %v11648 = vadd.f32 %v11646, %v11647
  %v11649 = vrot.slane %v11648, 1
  %v11650 = vadd.f32 %v11648, %v11649
  %v11651 = vmul.f32 %v11650, %v3758
  %v11652 = vld [vmem:[%s8] sm:$0x1]
  %v11653 = vadd.f32 %v11651, 1e-05
  %v11654 = vrsqrt.pop %v11653
  %v11655 = vmul.f32 %v11652, %v11654
  %v11656 = vld [vmem:[%s9] sm:$0x1]
  %v11657 = vmul.f32 %v11389, %v11655
  %v11658 = vsub.f32 %v11656, %v11657
  %v11660 = vlaneseq
  %v11661 = vshrl.u32 %v11660, 7
  %v11662 = vsub.s32 0, %v11661
  %v11663 = vrot.slane %v11655, %v11662
  %v11665 = vmul.f32 %v11002, %v11663
  %v11666 = vmul.f32 %v11005, %v11663
  %v11667 = vmul.f32 %v11010, %v11663
  %v11668 = vmul.f32 %v11013, %v11663
  %v11669 = vmul.f32 %v11018, %v11663
  %v11670 = vmul.f32 %v11021, %v11663
  %v11671 = vmul.f32 %v11026, %v11663
  %v11672 = vmul.f32 %v11029, %v11663
  %v11673 = vmul.f32 %v11034, %v11663
  %v11674 = vmul.f32 %v11037, %v11663
  %v11675 = vmul.f32 %v11042, %v11663
  %v11676 = vmul.f32 %v11045, %v11663
  %v11677 = vmul.f32 %v11050, %v11663
  %v11678 = vmul.f32 %v11053, %v11663
  %v11679 = vmul.f32 %v11058, %v11663
  %v11680 = vmul.f32 %v11061, %v11663
  %v11681 = vmul.f32 %v11066, %v11663
  %v11682 = vmul.f32 %v11069, %v11663
  %v11683 = vmul.f32 %v11074, %v11663
  %v11684 = vmul.f32 %v11077, %v11663
  %v11685 = vmul.f32 %v11082, %v11663
  %v11686 = vmul.f32 %v11085, %v11663
  %v11687 = vmul.f32 %v11090, %v11663
  %v11688 = vmul.f32 %v11093, %v11663
  %v11689 = vmul.f32 %v11098, %v11663
  %v11690 = vmul.f32 %v11101, %v11663
  %v11691 = vmul.f32 %v11106, %v11663
  %v11692 = vmul.f32 %v11109, %v11663
  %v11693 = vmul.f32 %v11114, %v11663
  %v11694 = vmul.f32 %v11117, %v11663
  %v11695 = vmul.f32 %v11122, %v11663
  %v11696 = vmul.f32 %v11125, %v11663
  %v11697 = vmul.f32 %v11130, %v11663
  %v11698 = vmul.f32 %v11133, %v11663
  %v11699 = vmul.f32 %v11138, %v11663
  %v11700 = vmul.f32 %v11141, %v11663
  %v11701 = vmul.f32 %v11146, %v11663
  %v11702 = vmul.f32 %v11149, %v11663
  %v11703 = vmul.f32 %v11154, %v11663
  %v11704 = vmul.f32 %v11157, %v11663
  %v11705 = vmul.f32 %v11162, %v11663
  %v11706 = vmul.f32 %v11165, %v11663
  %v11707 = vmul.f32 %v11170, %v11663
  %v11708 = vmul.f32 %v11173, %v11663
  %v11709 = vmul.f32 %v11178, %v11663
  %v11710 = vmul.f32 %v11181, %v11663
  %v11711 = vmul.f32 %v11186, %v11663
  %v11712 = vmul.f32 %v11189, %v11663
  %v11713 = vmul.f32 %v11194, %v11663
  %v11714 = vmul.f32 %v11197, %v11663
  %v11715 = vmul.f32 %v11202, %v11663
  %v11716 = vmul.f32 %v11205, %v11663
  %v11717 = vmul.f32 %v11210, %v11663
  %v11718 = vmul.f32 %v11213, %v11663
  %v11719 = vmul.f32 %v11218, %v11663
  %v11720 = vmul.f32 %v11221, %v11663
  %v11721 = vmul.f32 %v11226, %v11663
  %v11722 = vmul.f32 %v11229, %v11663
  %v11723 = vmul.f32 %v11234, %v11663
  %v11724 = vmul.f32 %v11237, %v11663
  %v11725 = vmul.f32 %v11242, %v11663
  %v11726 = vmul.f32 %v11245, %v11663
  %v11727 = vmul.f32 %v11250, %v11663
  %v11728 = vmul.f32 %v11253, %v11663
  %v11730 = vlaneseq
  %v11731 = vshrl.u32 %v11730, 7
  %v11732 = vsub.s32 0, %v11731
  %v11733 = vrot.slane %v11658, %v11732
  %v11735 = vadd.f32 %v11665, %v11733
  %v11736 = vadd.f32 %v11666, %v11733
  %v11737 = vadd.f32 %v11667, %v11733
  %v11738 = vadd.f32 %v11668, %v11733
  %v11739 = vadd.f32 %v11669, %v11733
  %v11740 = vadd.f32 %v11670, %v11733
  %v11741 = vadd.f32 %v11671, %v11733
  %v11742 = vadd.f32 %v11672, %v11733
  %v11743 = vadd.f32 %v11673, %v11733
  %v11744 = vadd.f32 %v11674, %v11733
  %v11745 = vadd.f32 %v11675, %v11733
  %v11746 = vadd.f32 %v11676, %v11733
  %v11747 = vadd.f32 %v11677, %v11733
  %v11748 = vadd.f32 %v11678, %v11733
  %v11749 = vadd.f32 %v11679, %v11733
  %v11750 = vadd.f32 %v11680, %v11733
  %v11751 = vadd.f32 %v11681, %v11733
  %v11752 = vadd.f32 %v11682, %v11733
  %v11753 = vadd.f32 %v11683, %v11733
  %v11754 = vadd.f32 %v11684, %v11733
  %v11755 = vadd.f32 %v11685, %v11733
  %v11756 = vadd.f32 %v11686, %v11733
  %v11757 = vadd.f32 %v11687, %v11733
  %v11758 = vadd.f32 %v11688, %v11733
  %v11759 = vadd.f32 %v11689, %v11733
  %v11760 = vadd.f32 %v11690, %v11733
  %v11761 = vadd.f32 %v11691, %v11733
  %v11762 = vadd.f32 %v11692, %v11733
  %v11763 = vadd.f32 %v11693, %v11733
  %v11764 = vadd.f32 %v11694, %v11733
  %v11765 = vadd.f32 %v11695, %v11733
  %v11766 = vadd.f32 %v11696, %v11733
  %v11767 = vadd.f32 %v11697, %v11733
  %v11768 = vadd.f32 %v11698, %v11733
  %v11769 = vadd.f32 %v11699, %v11733
  %v11770 = vadd.f32 %v11700, %v11733
  %v11771 = vadd.f32 %v11701, %v11733
  %v11772 = vadd.f32 %v11702, %v11733
  %v11773 = vadd.f32 %v11703, %v11733
  %v11774 = vadd.f32 %v11704, %v11733
  %v11775 = vadd.f32 %v11705, %v11733
  %v11776 = vadd.f32 %v11706, %v11733
  %v11777 = vadd.f32 %v11707, %v11733
  %v11778 = vadd.f32 %v11708, %v11733
  %v11779 = vadd.f32 %v11709, %v11733
  %v11780 = vadd.f32 %v11710, %v11733
  %v11781 = vadd.f32 %v11711, %v11733
  %v11782 = vadd.f32 %v11712, %v11733
  %v11783 = vadd.f32 %v11713, %v11733
  %v11784 = vadd.f32 %v11714, %v11733
  %v11785 = vadd.f32 %v11715, %v11733
  %v11786 = vadd.f32 %v11716, %v11733
  %v11787 = vadd.f32 %v11717, %v11733
  %v11788 = vadd.f32 %v11718, %v11733
  %v11789 = vadd.f32 %v11719, %v11733
  %v11790 = vadd.f32 %v11720, %v11733
  %v11791 = vadd.f32 %v11721, %v11733
  %v11792 = vadd.f32 %v11722, %v11733
  %v11793 = vadd.f32 %v11723, %v11733
  %v11794 = vadd.f32 %v11724, %v11733
  %v11795 = vadd.f32 %v11725, %v11733
  %v11796 = vadd.f32 %v11726, %v11733
  %v11797 = vadd.f32 %v11727, %v11733
  %v11798 = vadd.f32 %v11728, %v11733
  %v11799 = vmul.f32 %v11735, 0.01
  %v11800 = vmul.f32 %v11736, 0.01
  %v11801 = vmul.f32 %v11737, 0.01
  %v11802 = vmul.f32 %v11738, 0.01
  %v11803 = vmul.f32 %v11739, 0.01
  %v11804 = vmul.f32 %v11740, 0.01
  %v11805 = vmul.f32 %v11741, 0.01
  %v11806 = vmul.f32 %v11742, 0.01
  %v11807 = vmul.f32 %v11743, 0.01
  %v11808 = vmul.f32 %v11744, 0.01
  %v11809 = vmul.f32 %v11745, 0.01
  %v11810 = vmul.f32 %v11746, 0.01
  %v11811 = vmul.f32 %v11747, 0.01
  %v11812 = vmul.f32 %v11748, 0.01
  %v11813 = vmul.f32 %v11749, 0.01
  %v11814 = vmul.f32 %v11750, 0.01
  %v11815 = vmul.f32 %v11751, 0.01
  %v11816 = vmul.f32 %v11752, 0.01
  %v11817 = vmul.f32 %v11753, 0.01
  %v11818 = vmul.f32 %v11754, 0.01
  %v11819 = vmul.f32 %v11755, 0.01
  %v11820 = vmul.f32 %v11756, 0.01
  %v11821 = vmul.f32 %v11757, 0.01
  %v11822 = vmul.f32 %v11758, 0.01
  %v11823 = vmul.f32 %v11759, 0.01
  %v11824 = vmul.f32 %v11760, 0.01
  %v11825 = vmul.f32 %v11761, 0.01
  %v11826 = vmul.f32 %v11762, 0.01
  %v11827 = vmul.f32 %v11763, 0.01
  %v11828 = vmul.f32 %v11764, 0.01
  %v11829 = vmul.f32 %v11765, 0.01
  %v11830 = vmul.f32 %v11766, 0.01
  %v11831 = vmul.f32 %v11767, 0.01
  %v11832 = vmul.f32 %v11768, 0.01
  %v11833 = vmul.f32 %v11769, 0.01
  %v11834 = vmul.f32 %v11770, 0.01
  %v11835 = vmul.f32 %v11771, 0.01
  %v11836 = vmul.f32 %v11772, 0.01
  %v11837 = vmul.f32 %v11773, 0.01
  %v11838 = vmul.f32 %v11774, 0.01
  %v11839 = vmul.f32 %v11775, 0.01
  %v11840 = vmul.f32 %v11776, 0.01
  %v11841 = vmul.f32 %v11777, 0.01
  %v11842 = vmul.f32 %v11778, 0.01
  %v11843 = vmul.f32 %v11779, 0.01
  %v11844 = vmul.f32 %v11780, 0.01
  %v11845 = vmul.f32 %v11781, 0.01
  %v11846 = vmul.f32 %v11782, 0.01
  %v11847 = vmul.f32 %v11783, 0.01
  %v11848 = vmul.f32 %v11784, 0.01
  %v11849 = vmul.f32 %v11785, 0.01
  %v11850 = vmul.f32 %v11786, 0.01
  %v11851 = vmul.f32 %v11787, 0.01
  %v11852 = vmul.f32 %v11788, 0.01
  %v11853 = vmul.f32 %v11789, 0.01
  %v11854 = vmul.f32 %v11790, 0.01
  %v11855 = vmul.f32 %v11791, 0.01
  %v11856 = vmul.f32 %v11792, 0.01
  %v11857 = vmul.f32 %v11793, 0.01
  %v11858 = vmul.f32 %v11794, 0.01
  %v11859 = vmul.f32 %v11795, 0.01
  %v11860 = vmul.f32 %v11796, 0.01
  %v11861 = vmul.f32 %v11797, 0.01
  %v11862 = vmul.f32 %v11798, 0.01
  %v11863 = vmax.f32 %v11735, %v11799
  %v11864 = vmax.f32 %v11736, %v11800
  %v11865 = vmax.f32 %v11737, %v11801
  %v11866 = vmax.f32 %v11738, %v11802
  %v11867 = vmax.f32 %v11739, %v11803
  %v11868 = vmax.f32 %v11740, %v11804
  %v11869 = vmax.f32 %v11741, %v11805
  %v11870 = vmax.f32 %v11742, %v11806
  %v11871 = vmax.f32 %v11743, %v11807
  %v11872 = vmax.f32 %v11744, %v11808
  %v11873 = vmax.f32 %v11745, %v11809
  %v11874 = vmax.f32 %v11746, %v11810
  %v11875 = vmax.f32 %v11747, %v11811
  %v11876 = vmax.f32 %v11748, %v11812
  %v11877 = vmax.f32 %v11749, %v11813
  %v11878 = vmax.f32 %v11750, %v11814
  %v11879 = vmax.f32 %v11751, %v11815
  %v11880 = vmax.f32 %v11752, %v11816
  %v11881 = vmax.f32 %v11753, %v11817
  %v11882 = vmax.f32 %v11754, %v11818
  %v11883 = vmax.f32 %v11755, %v11819
  %v11884 = vmax.f32 %v11756, %v11820
  %v11885 = vmax.f32 %v11757, %v11821
  %v11886 = vmax.f32 %v11758, %v11822
  %v11887 = vmax.f32 %v11759, %v11823
  %v11888 = vmax.f32 %v11760, %v11824
  %v11889 = vmax.f32 %v11761, %v11825
  %v11890 = vmax.f32 %v11762, %v11826
  %v11891 = vmax.f32 %v11763, %v11827
  %v11892 = vmax.f32 %v11764, %v11828
  %v11893 = vmax.f32 %v11765, %v11829
  %v11894 = vmax.f32 %v11766, %v11830
  %v11895 = vmax.f32 %v11767, %v11831
  %v11896 = vmax.f32 %v11768, %v11832
  %v11897 = vmax.f32 %v11769, %v11833
  %v11898 = vmax.f32 %v11770, %v11834
  %v11899 = vmax.f32 %v11771, %v11835
  %v11900 = vmax.f32 %v11772, %v11836
  %v11901 = vmax.f32 %v11773, %v11837
  %v11902 = vmax.f32 %v11774, %v11838
  %v11903 = vmax.f32 %v11775, %v11839
  %v11904 = vmax.f32 %v11776, %v11840
  %v11905 = vmax.f32 %v11777, %v11841
  %v11906 = vmax.f32 %v11778, %v11842
  %v11907 = vmax.f32 %v11779, %v11843
  %v11908 = vmax.f32 %v11780, %v11844
  %v11909 = vmax.f32 %v11781, %v11845
  %v11910 = vmax.f32 %v11782, %v11846
  %v11911 = vmax.f32 %v11783, %v11847
  %v11912 = vmax.f32 %v11784, %v11848
  %v11913 = vmax.f32 %v11785, %v11849
  %v11914 = vmax.f32 %v11786, %v11850
  %v11915 = vmax.f32 %v11787, %v11851
  %v11916 = vmax.f32 %v11788, %v11852
  %v11917 = vmax.f32 %v11789, %v11853
  %v11918 = vmax.f32 %v11790, %v11854
  %v11919 = vmax.f32 %v11791, %v11855
  %v11920 = vmax.f32 %v11792, %v11856
  %v11921 = vmax.f32 %v11793, %v11857
  %v11922 = vmax.f32 %v11794, %v11858
  %v11923 = vmax.f32 %v11795, %v11859
  %v11924 = vmax.f32 %v11796, %v11860
  %v11925 = vmax.f32 %v11797, %v11861
  %v11926 = vmax.f32 %v11798, %v11862
  %v11927 = vadd.f32 %v293, %v11863
  %v11928 = vadd.f32 %v294, %v11864
  %v11929 = vadd.f32 %v295, %v11865
  %v11930 = vadd.f32 %v296, %v11866
  %v11931 = vadd.f32 %v297, %v11867
  %v11932 = vadd.f32 %v298, %v11868
  %v11933 = vadd.f32 %v299, %v11869
  %v11934 = vadd.f32 %v300, %v11870
  %v11935 = vadd.f32 %v301, %v11871
  %v11936 = vadd.f32 %v302, %v11872
  %v11937 = vadd.f32 %v303, %v11873
  %v11938 = vadd.f32 %v304, %v11874
  %v11939 = vadd.f32 %v305, %v11875
  %v11940 = vadd.f32 %v306, %v11876
  %v11941 = vadd.f32 %v307, %v11877
  %v11942 = vadd.f32 %v308, %v11878
  %v11943 = vadd.f32 %v309, %v11879
  %v11944 = vadd.f32 %v310, %v11880
  %v11945 = vadd.f32 %v311, %v11881
  %v11946 = vadd.f32 %v312, %v11882
  %v11947 = vadd.f32 %v313, %v11883
  %v11948 = vadd.f32 %v314, %v11884
  %v11949 = vadd.f32 %v315, %v11885
  %v11950 = vadd.f32 %v316, %v11886
  %v11951 = vadd.f32 %v317, %v11887
  %v11952 = vadd.f32 %v318, %v11888
  %v11953 = vadd.f32 %v319, %v11889
  %v11954 = vadd.f32 %v320, %v11890
  %v11955 = vadd.f32 %v321, %v11891
  %v11956 = vadd.f32 %v322, %v11892
  %v11957 = vadd.f32 %v323, %v11893
  %v11958 = vadd.f32 %v324, %v11894
  %v11959 = vadd.f32 %v325, %v11895
  %v11960 = vadd.f32 %v326, %v11896
  %v11961 = vadd.f32 %v327, %v11897
  %v11962 = vadd.f32 %v328, %v11898
  %v11963 = vadd.f32 %v329, %v11899
  %v11964 = vadd.f32 %v330, %v11900
  %v11965 = vadd.f32 %v331, %v11901
  %v11966 = vadd.f32 %v332, %v11902
  %v11967 = vadd.f32 %v333, %v11903
  %v11968 = vadd.f32 %v334, %v11904
  %v11969 = vadd.f32 %v335, %v11905
  %v11970 = vadd.f32 %v336, %v11906
  %v11971 = vadd.f32 %v337, %v11907
  %v11972 = vadd.f32 %v338, %v11908
  %v11973 = vadd.f32 %v339, %v11909
  %v11974 = vadd.f32 %v340, %v11910
  %v11975 = vadd.f32 %v341, %v11911
  %v11976 = vadd.f32 %v342, %v11912
  %v11977 = vadd.f32 %v343, %v11913
  %v11978 = vadd.f32 %v344, %v11914
  %v11979 = vadd.f32 %v345, %v11915
  %v11980 = vadd.f32 %v346, %v11916
  %v11981 = vadd.f32 %v347, %v11917
  %v11982 = vadd.f32 %v348, %v11918
  %v11983 = vadd.f32 %v349, %v11919
  %v11984 = vadd.f32 %v350, %v11920
  %v11985 = vadd.f32 %v351, %v11921
  %v11986 = vadd.f32 %v352, %v11922
  %v11987 = vadd.f32 %v353, %v11923
  %v11988 = vadd.f32 %v354, %v11924
  %v11989 = vadd.f32 %v355, %v11925
  %v11990 = vadd.f32 %v356, %v11926
  %11991 = vst.msk [vmem:[%s10] sm:$0xff] %vm2662, %v11927
  %11992 = vst.msk [vmem:[%s10 + $0x8] sm:$0xff] %vm2662, %v11928
  %11993 = vst.msk [vmem:[%s10 + $0x10] sm:$0xff] %vm2662, %v11929
  %11994 = vst.msk [vmem:[%s10 + $0x18] sm:$0xff] %vm2662, %v11930
  %11995 = vst.msk [vmem:[%s10 + $0x20] sm:$0xff] %vm2662, %v11931
  %11996 = vst.msk [vmem:[%s10 + $0x28] sm:$0xff] %vm2662, %v11932
  %11997 = vst.msk [vmem:[%s10 + $0x30] sm:$0xff] %vm2662, %v11933
  %11998 = vst.msk [vmem:[%s10 + $0x38] sm:$0xff] %vm2662, %v11934
  %11999 = vst.msk [vmem:[%s10 + $0x40] sm:$0xff] %vm2662, %v11935
  %12000 = vst.msk [vmem:[%s10 + $0x48] sm:$0xff] %vm2662, %v11936
  %12001 = vst.msk [vmem:[%s10 + $0x50] sm:$0xff] %vm2662, %v11937
  %12002 = vst.msk [vmem:[%s10 + $0x58] sm:$0xff] %vm2662, %v11938
  %12003 = vst.msk [vmem:[%s10 + $0x60] sm:$0xff] %vm2662, %v11939
  %12004 = vst.msk [vmem:[%s10 + $0x68] sm:$0xff] %vm2662, %v11940
  %12005 = vst.msk [vmem:[%s10 + $0x70] sm:$0xff] %vm2662, %v11941
  %12006 = vst.msk [vmem:[%s10 + $0x78] sm:$0xff] %vm2662, %v11942
  %12007 = vst.msk [vmem:[%s10 + $0x80] sm:$0xff] %vm2662, %v11943
  %12008 = vst.msk [vmem:[%s10 + $0x88] sm:$0xff] %vm2662, %v11944
  %12009 = vst.msk [vmem:[%s10 + $0x90] sm:$0xff] %vm2662, %v11945
  %12010 = vst.msk [vmem:[%s10 + $0x98] sm:$0xff] %vm2662, %v11946
  %12011 = vst.msk [vmem:[%s10 + $0xa0] sm:$0xff] %vm2662, %v11947
  %12012 = vst.msk [vmem:[%s10 + $0xa8] sm:$0xff] %vm2662, %v11948
  %12013 = vst.msk [vmem:[%s10 + $0xb0] sm:$0xff] %vm2662, %v11949
  %12014 = vst.msk [vmem:[%s10 + $0xb8] sm:$0xff] %vm2662, %v11950
  %12015 = vst.msk [vmem:[%s10 + $0xc0] sm:$0xff] %vm2662, %v11951
  %12016 = vst.msk [vmem:[%s10 + $0xc8] sm:$0xff] %vm2662, %v11952
  %12017 = vst.msk [vmem:[%s10 + $0xd0] sm:$0xff] %vm2662, %v11953
  %12018 = vst.msk [vmem:[%s10 + $0xd8] sm:$0xff] %vm2662, %v11954
  %12019 = vst.msk [vmem:[%s10 + $0xe0] sm:$0xff] %vm2662, %v11955
  %12020 = vst.msk [vmem:[%s10 + $0xe8] sm:$0xff] %vm2662, %v11956
  %12021 = vst.msk [vmem:[%s10 + $0xf0] sm:$0xff] %vm2662, %v11957
  %12022 = vst.msk [vmem:[%s10 + $0xf8] sm:$0xff] %vm2662, %v11958
  %12023 = vst.msk [vmem:[%s10 + $0x100] sm:$0xff] %vm2662, %v11959
  %12024 = vst.msk [vmem:[%s10 + $0x108] sm:$0xff] %vm2662, %v11960
  %12025 = vst.msk [vmem:[%s10 + $0x110] sm:$0xff] %vm2662, %v11961
  %12026 = vst.msk [vmem:[%s10 + $0x118] sm:$0xff] %vm2662, %v11962
  %12027 = vst.msk [vmem:[%s10 + $0x120] sm:$0xff] %vm2662, %v11963
  %12028 = vst.msk [vmem:[%s10 + $0x128] sm:$0xff] %vm2662, %v11964
  %12029 = vst.msk [vmem:[%s10 + $0x130] sm:$0xff] %vm2662, %v11965
  %12030 = vst.msk [vmem:[%s10 + $0x138] sm:$0xff] %vm2662, %v11966
  %12031 = vst.msk [vmem:[%s10 + $0x140] sm:$0xff] %vm2662, %v11967
  %12032 = vst.msk [vmem:[%s10 + $0x148] sm:$0xff] %vm2662, %v11968
  %12033 = vst.msk [vmem:[%s10 + $0x150] sm:$0xff] %vm2662, %v11969
  %12034 = vst.msk [vmem:[%s10 + $0x158] sm:$0xff] %vm2662, %v11970
  %12035 = vst.msk [vmem:[%s10 + $0x160] sm:$0xff] %vm2662, %v11971
  %12036 = vst.msk [vmem:[%s10 + $0x168] sm:$0xff] %vm2662, %v11972
  %12037 = vst.msk [vmem:[%s10 + $0x170] sm:$0xff] %vm2662, %v11973
  %12038 = vst.msk [vmem:[%s10 + $0x178] sm:$0xff] %vm2662, %v11974
  %12039 = vst.msk [vmem:[%s10 + $0x180] sm:$0xff] %vm2662, %v11975
  %12040 = vst.msk [vmem:[%s10 + $0x188] sm:$0xff] %vm2662, %v11976
  %12041 = vst.msk [vmem:[%s10 + $0x190] sm:$0xff] %vm2662, %v11977
  %12042 = vst.msk [vmem:[%s10 + $0x198] sm:$0xff] %vm2662, %v11978
  %12043 = vst.msk [vmem:[%s10 + $0x1a0] sm:$0xff] %vm2662, %v11979
  %12044 = vst.msk [vmem:[%s10 + $0x1a8] sm:$0xff] %vm2662, %v11980
  %12045 = vst.msk [vmem:[%s10 + $0x1b0] sm:$0xff] %vm2662, %v11981
  %12046 = vst.msk [vmem:[%s10 + $0x1b8] sm:$0xff] %vm2662, %v11982
  %12047 = vst.msk [vmem:[%s10 + $0x1c0] sm:$0xff] %vm2662, %v11983
  %12048 = vst.msk [vmem:[%s10 + $0x1c8] sm:$0xff] %vm2662, %v11984
  %12049 = vst.msk [vmem:[%s10 + $0x1d0] sm:$0xff] %vm2662, %v11985
  %12050 = vst.msk [vmem:[%s10 + $0x1d8] sm:$0xff] %vm2662, %v11986
  %12051 = vst.msk [vmem:[%s10 + $0x1e0] sm:$0xff] %vm2662, %v11987
  %12052 = vst.msk [vmem:[%s10 + $0x1e8] sm:$0xff] %vm2662, %v11988
  %12053 = vst.msk [vmem:[%s10 + $0x1f0] sm:$0xff] %vm2662, %v11989
  %12054 = vst.msk [vmem:[%s10 + $0x1f8] sm:$0xff] %vm2662, %v11990
  // Predicated region
  $region42: #{tpu_custom_call.1} parent=0 // pred_check
    _
  $region43: #{tpu_custom_call.1} parent=0 // pred_check_branch
    %12056 = sbr.rel (0) target = $region45
  $region44: #{tpu_custom_call.1} parent=0 // pred_region
    _
  $region45: #{tpu_custom_call.1} parent=0 // pred_fallthru
    _
  // Predicated region
  $region46: #{tpu_custom_call.1} parent=0 // pred_check
    _
  $region47: #{tpu_custom_call.1} parent=0 // pred_check_branch
    %12058 = sbr.rel (0) target = $region49
  $region48: #{tpu_custom_call.1} parent=0 // pred_region
    _
  $region49: #{tpu_custom_call.1} parent=0 // pred_fallthru
    _

</llo_original>
